<compile_context>
chip_gen: v7x
topology: tpu7x:2x2x1
jax: 0.10.0
libtpu: 0.0.40
codegen_flags: <defaults>
</compile_context>

<pallas_src>
import functools

import jax
import jax.numpy as jnp
from jax import lax
from jax.experimental import pallas as pl
from jax.experimental.pallas import tpu as pltpu


def _pick_batch_block(batch):
    """Batch elements per grid step.

    Amortize the per-step pipeline overhead over several batch elements, but
    keep >= 2 grid steps when possible so a v7x megacore can split the batch
    across its two TensorCores (a single step cannot be sharded).
    """
    if batch <= 2:
        return 1
    return int(min(8, -(-batch // 2)))


def _sum_term_kernel(x_ref, w_ref, b_ref, coef_ref, out_ref, *,
                     k, h, total_c, rows, cols, bb):
    """One batch block (bb elements) per grid step.

    x_ref:    (bb, k, N, T*h) f32 VMEM   host-packed: x_ref[b, dj, r, c*h + j]
                                         = x[b, r, dj + j]  (channel-tiled)
    w_ref:    (k*k, T*h) f32 VMEM        lane-packed conv weights
    b_ref:    (1, T*h)  f32 VMEM         lane-packed conv bias
    coef_ref: (T*rows*cols,) f32 SMEM    coef pre-scaled by (h*h)^-i
    out_ref:  (1, 1, bb) f32 VMEM        sigmoid(total) per batch element
    """
    th = total_c * h
    kk = k * k
    p_max = (rows + 2) // 2          # materialise C^1 .. C^p_max only
    n_t = (rows + 1) // 2            # transposes needed by the trace pairing
    inv_hh = 1.0 / float(h * h)

    bias = b_ref[...]                # (1, T*h), hoisted out of the batch loop
    totals = []
    for b_i in range(bb):
        # One (N, T*h) slab per column offset dj; only sublane-offset slices
        # are needed inside the tap loop (no in-kernel lane tiling / shifts).
        slabs = [x_ref[b_i, dj] for dj in range(k)]

        # ---- lane-packed VALID conv: all T channel maps side by side along
        # lanes.  Each tap is one vector multiply-add over the packed slab.
        acc = jnp.zeros((h, th), jnp.float32)
        for t in range(kk):
            di, dj = t // k, t % k
            acc = acc + slabs[dj][di:di + h, :] * w_ref[t:t + 1, :]
        acc = acc + bias                                    # (h, T*h) features

        # ---- per-channel power/trace chain with trace pairing:
        #        trace(C^(a+b)) = sum(C^a * (C^b)^T)
        total = jnp.float32(0.0)
        for c in range(total_c):
            ch = acc[:, c * h:(c + 1) * h]                  # (h, h) channel map
            powers = [ch]                                   # powers[m] = C^(m+1)
            for m in range(1, p_max):
                powers.append(jnp.dot(ch, powers[-1],
                                      precision=lax.Precision.HIGHEST,
                                      preferred_element_type=jnp.float32))
            powers_t = [p.T for p in powers[:n_t]]
            for i in range(rows):
                p = i + 2
                a_p, b_p = (p + 1) // 2, p // 2
                # Normalised trace: tr/(h*h) keeps tr^(j+1) bounded; the
                # remaining (h*h)^-i factor lives in the host-scaled coef.
                tr = jnp.sum(powers[a_p - 1] * powers_t[b_p - 1]) * inv_hh
                pw = tr
                for j in range(cols):
                    total = total + coef_ref[(c * rows + i) * cols + j] * pw
                    pw = pw * tr
        totals.append(jnp.full((1, 1), total, jnp.float32))

    # TODO(synk): block-diagonal packing of the T channel maps (review item 5)
    # would run the whole power chain as one MXU matmul per step; skipped since
    # building the (T*h, T*h) operand needs unaligned sublane+lane placements
    # that cost more relayout than the T tiny (h,h) matmuls they replace.

    # Lane-dense output row for this batch block + numerically stable sigmoid.
    tot_row = totals[0] if bb == 1 else jnp.concatenate(totals, axis=1)
    neg = tot_row < 0.0
    z = jnp.exp(jnp.where(neg, tot_row, -tot_row))          # exp(<=0): no inf
    sig = jnp.where(neg, z / (1.0 + z), 1.0 / (1.0 + z))
    out_ref[...] = sig.reshape(1, 1, bb)


@functools.partial(jax.jit, static_argnames=("k",))
def sum_term_forward(x, conv_w, conv_b, coef, *, k):
    """x: (B,N,N) or (N,N); conv_w: (T,1,k,k); conv_b: (T,); coef: (T,rows,cols).

    T is the total channel count over all modules in the SumTerm mod_list.
    Returns sigmoid of the summed per-module outputs, shape (B,).
    """
    if x.ndim == 2:
        x = x[None]
    assert x.ndim == 3
    B, N, _ = x.shape
    T, rows, cols = coef.shape
    h = N - k + 1
    th = T * h

    # ---- batch blocking ----------------------------------------------------
    bb = _pick_batch_block(B)
    grid = -(-B // bb)
    b_pad = grid * bb
    x = x.astype(jnp.float32)
    if b_pad != B:
        x = jnp.concatenate(
            [x, jnp.zeros((b_pad - B, N, N), jnp.float32)], axis=0)

    # ---- host-side lane packing ---------------------------------------------
    # x_packed[b, dj, r, c*h + j] = x[b, r, dj + j]: every in-kernel conv tap is
    # then a sublane-offset slice of a channel-packed (h, T*h) slab (T*h = 110
    # fits one lane tile at the test shapes), so the conv is k*k vector FMAs.
    x_packed = jnp.stack(
        [jnp.tile(x[:, :, dj:dj + h], (1, 1, T)) for dj in range(k)], axis=1)
    # w_slab[t, c*h + j] = conv_w[c, 0, di_t, dj_t];  b_row[0, c*h + j] = bias[c]
    w_tc = conv_w.reshape(T, k * k).T.astype(jnp.float32)        # (k*k, T)
    w_slab = jnp.repeat(w_tc, h, axis=1)                         # (k*k, T*h)
    b_row = jnp.repeat(conv_b.astype(jnp.float32)[None, :], h, axis=1)  # (1, T*h)

    # coef pre-scaled by (h*h)^-i; the (h*h)^-(j+1) part is folded into the
    # in-kernel normalised trace before powering (overflow-safe).
    row_scale = jnp.asarray([float(h * h) ** (-i) for i in range(rows)],
                            jnp.float32)
    coef_flat = (coef.astype(jnp.float32) * row_scale[None, :, None]).reshape(-1)

    out = pl.pallas_call(
        functools.partial(_sum_term_kernel, k=k, h=h, total_c=T,
                          rows=rows, cols=cols, bb=bb),
        out_shape=jax.ShapeDtypeStruct((grid, 1, bb), jnp.float32),
        grid=(grid,),
        in_specs=[
            pl.BlockSpec((bb, k, N, th), lambda g: (g, 0, 0, 0)),  # packed x
            pl.BlockSpec((k * k, th), lambda g: (0, 0)),           # weights
            pl.BlockSpec((1, th), lambda g: (0, 0)),               # bias row
            pl.BlockSpec(memory_space=pltpu.MemorySpace.SMEM),     # coef table
        ],
        out_specs=pl.BlockSpec((1, 1, bb), lambda g: (g, 0, 0)),
        compiler_params=pltpu.CompilerParams(
            dimension_semantics=("parallel",)),                    # v7x megacore
    )(x_packed, w_slab, b_row, coef_flat)
    return out.reshape(-1)[:B]


def reference_forward(x, conv_w_list, conv_b_list, coef_list, *, k):
    """Pure-JAX mirror of SumTerm over a list of conv/trace term modules."""
    if x.ndim == 2:
        x = x[None]
    B, N, _ = x.shape
    h = N - k + 1
    mod_sums = jnp.zeros((B,), jnp.float32)
    for conv_w, conv_b, coef in zip(conv_w_list, conv_b_list, coef_list):
        C, rows, cols = coef.shape
        y = lax.conv_general_dilated(
            x[:, None, :, :], conv_w, window_strides=(1, 1), padding="VALID",
            dimension_numbers=("NCHW", "OIHW", "NCHW"),
            precision=lax.Precision.HIGHEST)
        y = y + conv_b[None, :, None, None]
        for b in range(B):
            acc = jnp.float32(0.0)
            for c in range(C):
                chm = y[b, c]
                cur = jnp.dot(chm, chm, precision=lax.Precision.HIGHEST)
                for i in range(rows):
                    nxt = jnp.dot(chm, cur, precision=lax.Precision.HIGHEST)
                    tr = jnp.trace(cur)
                    for j in range(cols):
                        acc = acc + coef[c, i, j] * tr ** (j + 1) \
                              / float((h * h) ** (i + j + 1))
                    cur = nxt
            mod_sums = mod_sums.at[b].add(acc)
    return jax.nn.sigmoid(mod_sums)


if __name__ == "__main__":
    B, N, K_SIZE = 2, 16, 6
    N_MODULES, CHANNELS, ROWS, COLS = 2, 5, 3, 4

    key = jax.random.PRNGKey(0)
    kx, kp = jax.random.split(key)
    x = jax.random.normal(kx, (B, N, N), jnp.float32)

    # Per-module parameters (every module in mod_list shares the structure):
    #   conv.weight (C,1,k,k) ~ kaiming (fan_in=k*k), conv.bias ~ U(-1/sqrt, 1/sqrt),
    #   coef (C,rows,cols) ~ kaiming (fan_in=rows*cols).
    fan_in = K_SIZE * K_SIZE
    bound = 1.0 / fan_in ** 0.5
    w_list, b_list, c_list = [], [], []
    for _ in range(N_MODULES):
        kw, kb, kc, kp = jax.random.split(kp, 4)
        w_list.append(jax.random.normal(kw, (CHANNELS, 1, K_SIZE, K_SIZE),
                                        jnp.float32) * (2.0 / fan_in) ** 0.5)
        b_list.append(jax.random.uniform(kb, (CHANNELS,), jnp.float32,
                                         -bound, bound))
        c_list.append(jax.random.normal(kc, (CHANNELS, ROWS, COLS), jnp.float32)
                      * (2.0 / (ROWS * COLS)) ** 0.5)

    # Kernel path: concatenate every module's channels into one channel axis.
    conv_w = jnp.concatenate(w_list, axis=0)        # (T, 1, k, k)
    conv_b = jnp.concatenate(b_list, axis=0)        # (T,)
    coef = jnp.concatenate(c_list, axis=0)          # (T, rows, cols)

    out = sum_term_forward(x, conv_w, conv_b, coef, k=K_SIZE)
    out = jax.block_until_ready(out)

    ref = reference_forward(x, w_list, b_list, c_list, k=K_SIZE)
    assert out.shape == (B,)
    assert bool(jnp.all(jnp.isfinite(out)))
    # HIGHEST-precision matmuls + VPU traces: only associativity-level error
    # remains vs. the pure-JAX reference (was atol=3e-2 with bf16 MXU passes).
    assert jnp.allclose(out, ref, atol=1e-3, rtol=1e-3), (out, ref)

    print("KERNEL_OK")
</pallas_src>

<mosaic_0001>
module attributes {stable_mosaic.version = 11 : i64} {
  func.func @_sum_term_kernel(%arg0: i32, %arg1: memref<1x6x16x110xf32, #tpu.memory_space<vmem>>, %arg2: memref<36x110xf32, #tpu.memory_space<vmem>>, %arg3: memref<1x110xf32, #tpu.memory_space<vmem>>, %arg4: memref<120xf32, #tpu.memory_space<smem>>, %arg5: memref<1x1x1xf32, #tpu.memory_space<vmem>>) attributes {dimension_semantics = [#tpu.dimension_semantics<parallel>], iteration_bounds = array<i64: 2>, scalar_prefetch = 0 : i64, scratch_operands = 0 : i64, tpu.core_type = #tpu.core_type<tc>, window_params = [{transform_indices = @transform_0, window_bounds = array<i64: 1, 6, 16, 110>}, {pipeline_mode = #tpu.pipeline_mode<synchronous>, transform_indices = @transform_1, window_bounds = array<i64: 36, 110>}, {pipeline_mode = #tpu.pipeline_mode<synchronous>, transform_indices = @transform_2, window_bounds = array<i64: 1, 110>}, {transform_indices = @transform_3, window_bounds = array<i64: 120>}, {transform_indices = @transform_4, window_bounds = array<i64: 1, 1, 1>}]} {
    %c0 = arith.constant 0 : index
    %c0_0 = arith.constant 0 : index
    %0 = vector.load %arg3[%c0, %c0_0] : memref<1x110xf32, #tpu.memory_space<vmem>>, vector<1x110xf32>
    %c0_1 = arith.constant 0 : index
    %c0_2 = arith.constant 0 : index
    %c0_3 = arith.constant 0 : index
    %c0_4 = arith.constant 0 : index
    %1 = vector.load %arg1[%c0_1, %c0_2, %c0_3, %c0_4] : memref<1x6x16x110xf32, #tpu.memory_space<vmem>>, vector<1x1x16x110xf32>
    %2 = vector.shape_cast %1 : vector<1x1x16x110xf32> to vector<16x110xf32>
    %c0_5 = arith.constant 0 : index
    %c1 = arith.constant 1 : index
    %c0_6 = arith.constant 0 : index
    %c0_7 = arith.constant 0 : index
    %3 = vector.load %arg1[%c0_5, %c1, %c0_6, %c0_7] : memref<1x6x16x110xf32, #tpu.memory_space<vmem>>, vector<1x1x16x110xf32>
    %4 = vector.shape_cast %3 : vector<1x1x16x110xf32> to vector<16x110xf32>
    %c0_8 = arith.constant 0 : index
    %c2 = arith.constant 2 : index
    %c0_9 = arith.constant 0 : index
    %c0_10 = arith.constant 0 : index
    %5 = vector.load %arg1[%c0_8, %c2, %c0_9, %c0_10] : memref<1x6x16x110xf32, #tpu.memory_space<vmem>>, vector<1x1x16x110xf32>
    %6 = vector.shape_cast %5 : vector<1x1x16x110xf32> to vector<16x110xf32>
    %c0_11 = arith.constant 0 : index
    %c3 = arith.constant 3 : index
    %c0_12 = arith.constant 0 : index
    %c0_13 = arith.constant 0 : index
    %7 = vector.load %arg1[%c0_11, %c3, %c0_12, %c0_13] : memref<1x6x16x110xf32, #tpu.memory_space<vmem>>, vector<1x1x16x110xf32>
    %8 = vector.shape_cast %7 : vector<1x1x16x110xf32> to vector<16x110xf32>
    %c0_14 = arith.constant 0 : index
    %c4 = arith.constant 4 : index
    %c0_15 = arith.constant 0 : index
    %c0_16 = arith.constant 0 : index
    %9 = vector.load %arg1[%c0_14, %c4, %c0_15, %c0_16] : memref<1x6x16x110xf32, #tpu.memory_space<vmem>>, vector<1x1x16x110xf32>
    %10 = vector.shape_cast %9 : vector<1x1x16x110xf32> to vector<16x110xf32>
    %c0_17 = arith.constant 0 : index
    %c5 = arith.constant 5 : index
    %c0_18 = arith.constant 0 : index
    %c0_19 = arith.constant 0 : index
    %11 = vector.load %arg1[%c0_17, %c5, %c0_18, %c0_19] : memref<1x6x16x110xf32, #tpu.memory_space<vmem>>, vector<1x1x16x110xf32>
    %12 = vector.shape_cast %11 : vector<1x1x16x110xf32> to vector<16x110xf32>
    %cst = arith.constant 0.000000e+00 : f32
    %13 = vector.broadcast %cst : f32 to vector<11x110xf32>
    %14 = vector.extract_strided_slice %2 {offsets = [0, 0], sizes = [11, 110], strides = [1, 1]} : vector<16x110xf32> to vector<11x110xf32>
    %c0_20 = arith.constant 0 : index
    %c0_21 = arith.constant 0 : index
    %15 = vector.load %arg2[%c0_20, %c0_21] : memref<36x110xf32, #tpu.memory_space<vmem>>, vector<1x110xf32>
    %16 = vector.broadcast %15 : vector<1x110xf32> to vector<11x110xf32>
    %17 = arith.mulf %14, %16 : vector<11x110xf32>
    %18 = arith.addf %13, %17 : vector<11x110xf32>
    %19 = vector.extract_strided_slice %4 {offsets = [0, 0], sizes = [11, 110], strides = [1, 1]} : vector<16x110xf32> to vector<11x110xf32>
    %c1_22 = arith.constant 1 : index
    %c0_23 = arith.constant 0 : index
    %20 = vector.load %arg2[%c1_22, %c0_23] : memref<36x110xf32, #tpu.memory_space<vmem>>, vector<1x110xf32>
    %21 = vector.broadcast %20 : vector<1x110xf32> to vector<11x110xf32>
    %22 = arith.mulf %19, %21 : vector<11x110xf32>
    %23 = arith.addf %18, %22 : vector<11x110xf32>
    %24 = vector.extract_strided_slice %6 {offsets = [0, 0], sizes = [11, 110], strides = [1, 1]} : vector<16x110xf32> to vector<11x110xf32>
    %c2_24 = arith.constant 2 : index
    %c0_25 = arith.constant 0 : index
    %25 = vector.load %arg2[%c2_24, %c0_25] : memref<36x110xf32, #tpu.memory_space<vmem>>, vector<1x110xf32>
    %26 = vector.broadcast %25 : vector<1x110xf32> to vector<11x110xf32>
    %27 = arith.mulf %24, %26 : vector<11x110xf32>
    %28 = arith.addf %23, %27 : vector<11x110xf32>
    %29 = vector.extract_strided_slice %8 {offsets = [0, 0], sizes = [11, 110], strides = [1, 1]} : vector<16x110xf32> to vector<11x110xf32>
    %c3_26 = arith.constant 3 : index
    %c0_27 = arith.constant 0 : index
    %30 = vector.load %arg2[%c3_26, %c0_27] : memref<36x110xf32, #tpu.memory_space<vmem>>, vector<1x110xf32>
    %31 = vector.broadcast %30 : vector<1x110xf32> to vector<11x110xf32>
    %32 = arith.mulf %29, %31 : vector<11x110xf32>
    %33 = arith.addf %28, %32 : vector<11x110xf32>
    %34 = vector.extract_strided_slice %10 {offsets = [0, 0], sizes = [11, 110], strides = [1, 1]} : vector<16x110xf32> to vector<11x110xf32>
    %c4_28 = arith.constant 4 : index
    %c0_29 = arith.constant 0 : index
    %35 = vector.load %arg2[%c4_28, %c0_29] : memref<36x110xf32, #tpu.memory_space<vmem>>, vector<1x110xf32>
    %36 = vector.broadcast %35 : vector<1x110xf32> to vector<11x110xf32>
    %37 = arith.mulf %34, %36 : vector<11x110xf32>
    %38 = arith.addf %33, %37 : vector<11x110xf32>
    %39 = vector.extract_strided_slice %12 {offsets = [0, 0], sizes = [11, 110], strides = [1, 1]} : vector<16x110xf32> to vector<11x110xf32>
    %c5_30 = arith.constant 5 : index
    %c0_31 = arith.constant 0 : index
    %40 = vector.load %arg2[%c5_30, %c0_31] : memref<36x110xf32, #tpu.memory_space<vmem>>, vector<1x110xf32>
    %41 = vector.broadcast %40 : vector<1x110xf32> to vector<11x110xf32>
    %42 = arith.mulf %39, %41 : vector<11x110xf32>
    %43 = arith.addf %38, %42 : vector<11x110xf32>
    %44 = vector.extract_strided_slice %2 {offsets = [1, 0], sizes = [11, 110], strides = [1, 1]} : vector<16x110xf32> to vector<11x110xf32>
    %c6 = arith.constant 6 : index
    %c0_32 = arith.constant 0 : index
    %45 = vector.load %arg2[%c6, %c0_32] : memref<36x110xf32, #tpu.memory_space<vmem>>, vector<1x110xf32>
    %46 = vector.broadcast %45 : vector<1x110xf32> to vector<11x110xf32>
    %47 = arith.mulf %44, %46 : vector<11x110xf32>
    %48 = arith.addf %43, %47 : vector<11x110xf32>
    %49 = vector.extract_strided_slice %4 {offsets = [1, 0], sizes = [11, 110], strides = [1, 1]} : vector<16x110xf32> to vector<11x110xf32>
    %c7 = arith.constant 7 : index
    %c0_33 = arith.constant 0 : index
    %50 = vector.load %arg2[%c7, %c0_33] : memref<36x110xf32, #tpu.memory_space<vmem>>, vector<1x110xf32>
    %51 = vector.broadcast %50 : vector<1x110xf32> to vector<11x110xf32>
    %52 = arith.mulf %49, %51 : vector<11x110xf32>
    %53 = arith.addf %48, %52 : vector<11x110xf32>
    %54 = vector.extract_strided_slice %6 {offsets = [1, 0], sizes = [11, 110], strides = [1, 1]} : vector<16x110xf32> to vector<11x110xf32>
    %c8 = arith.constant 8 : index
    %c0_34 = arith.constant 0 : index
    %55 = vector.load %arg2[%c8, %c0_34] : memref<36x110xf32, #tpu.memory_space<vmem>>, vector<1x110xf32>
    %56 = vector.broadcast %55 : vector<1x110xf32> to vector<11x110xf32>
    %57 = arith.mulf %54, %56 : vector<11x110xf32>
    %58 = arith.addf %53, %57 : vector<11x110xf32>
    %59 = vector.extract_strided_slice %8 {offsets = [1, 0], sizes = [11, 110], strides = [1, 1]} : vector<16x110xf32> to vector<11x110xf32>
    %c9 = arith.constant 9 : index
    %c0_35 = arith.constant 0 : index
    %60 = vector.load %arg2[%c9, %c0_35] : memref<36x110xf32, #tpu.memory_space<vmem>>, vector<1x110xf32>
    %61 = vector.broadcast %60 : vector<1x110xf32> to vector<11x110xf32>
    %62 = arith.mulf %59, %61 : vector<11x110xf32>
    %63 = arith.addf %58, %62 : vector<11x110xf32>
    %64 = vector.extract_strided_slice %10 {offsets = [1, 0], sizes = [11, 110], strides = [1, 1]} : vector<16x110xf32> to vector<11x110xf32>
    %c10 = arith.constant 10 : index
    %c0_36 = arith.constant 0 : index
    %65 = vector.load %arg2[%c10, %c0_36] : memref<36x110xf32, #tpu.memory_space<vmem>>, vector<1x110xf32>
    %66 = vector.broadcast %65 : vector<1x110xf32> to vector<11x110xf32>
    %67 = arith.mulf %64, %66 : vector<11x110xf32>
    %68 = arith.addf %63, %67 : vector<11x110xf32>
    %69 = vector.extract_strided_slice %12 {offsets = [1, 0], sizes = [11, 110], strides = [1, 1]} : vector<16x110xf32> to vector<11x110xf32>
    %c11 = arith.constant 11 : index
    %c0_37 = arith.constant 0 : index
    %70 = vector.load %arg2[%c11, %c0_37] : memref<36x110xf32, #tpu.memory_space<vmem>>, vector<1x110xf32>
    %71 = vector.broadcast %70 : vector<1x110xf32> to vector<11x110xf32>
    %72 = arith.mulf %69, %71 : vector<11x110xf32>
    %73 = arith.addf %68, %72 : vector<11x110xf32>
    %74 = vector.extract_strided_slice %2 {offsets = [2, 0], sizes = [11, 110], strides = [1, 1]} : vector<16x110xf32> to vector<11x110xf32>
    %c12 = arith.constant 12 : index
    %c0_38 = arith.constant 0 : index
    %75 = vector.load %arg2[%c12, %c0_38] : memref<36x110xf32, #tpu.memory_space<vmem>>, vector<1x110xf32>
    %76 = vector.broadcast %75 : vector<1x110xf32> to vector<11x110xf32>
    %77 = arith.mulf %74, %76 : vector<11x110xf32>
    %78 = arith.addf %73, %77 : vector<11x110xf32>
    %79 = vector.extract_strided_slice %4 {offsets = [2, 0], sizes = [11, 110], strides = [1, 1]} : vector<16x110xf32> to vector<11x110xf32>
    %c13 = arith.constant 13 : index
    %c0_39 = arith.constant 0 : index
    %80 = vector.load %arg2[%c13, %c0_39] : memref<36x110xf32, #tpu.memory_space<vmem>>, vector<1x110xf32>
    %81 = vector.broadcast %80 : vector<1x110xf32> to vector<11x110xf32>
    %82 = arith.mulf %79, %81 : vector<11x110xf32>
    %83 = arith.addf %78, %82 : vector<11x110xf32>
    %84 = vector.extract_strided_slice %6 {offsets = [2, 0], sizes = [11, 110], strides = [1, 1]} : vector<16x110xf32> to vector<11x110xf32>
    %c14 = arith.constant 14 : index
    %c0_40 = arith.constant 0 : index
    %85 = vector.load %arg2[%c14, %c0_40] : memref<36x110xf32, #tpu.memory_space<vmem>>, vector<1x110xf32>
    %86 = vector.broadcast %85 : vector<1x110xf32> to vector<11x110xf32>
    %87 = arith.mulf %84, %86 : vector<11x110xf32>
    %88 = arith.addf %83, %87 : vector<11x110xf32>
    %89 = vector.extract_strided_slice %8 {offsets = [2, 0], sizes = [11, 110], strides = [1, 1]} : vector<16x110xf32> to vector<11x110xf32>
    %c15 = arith.constant 15 : index
    %c0_41 = arith.constant 0 : index
    %90 = vector.load %arg2[%c15, %c0_41] : memref<36x110xf32, #tpu.memory_space<vmem>>, vector<1x110xf32>
    %91 = vector.broadcast %90 : vector<1x110xf32> to vector<11x110xf32>
    %92 = arith.mulf %89, %91 : vector<11x110xf32>
    %93 = arith.addf %88, %92 : vector<11x110xf32>
    %94 = vector.extract_strided_slice %10 {offsets = [2, 0], sizes = [11, 110], strides = [1, 1]} : vector<16x110xf32> to vector<11x110xf32>
    %c16 = arith.constant 16 : index
    %c0_42 = arith.constant 0 : index
    %95 = vector.load %arg2[%c16, %c0_42] : memref<36x110xf32, #tpu.memory_space<vmem>>, vector<1x110xf32>
    %96 = vector.broadcast %95 : vector<1x110xf32> to vector<11x110xf32>
    %97 = arith.mulf %94, %96 : vector<11x110xf32>
    %98 = arith.addf %93, %97 : vector<11x110xf32>
    %99 = vector.extract_strided_slice %12 {offsets = [2, 0], sizes = [11, 110], strides = [1, 1]} : vector<16x110xf32> to vector<11x110xf32>
    %c17 = arith.constant 17 : index
    %c0_43 = arith.constant 0 : index
    %100 = vector.load %arg2[%c17, %c0_43] : memref<36x110xf32, #tpu.memory_space<vmem>>, vector<1x110xf32>
    %101 = vector.broadcast %100 : vector<1x110xf32> to vector<11x110xf32>
    %102 = arith.mulf %99, %101 : vector<11x110xf32>
    %103 = arith.addf %98, %102 : vector<11x110xf32>
    %104 = vector.extract_strided_slice %2 {offsets = [3, 0], sizes = [11, 110], strides = [1, 1]} : vector<16x110xf32> to vector<11x110xf32>
    %c18 = arith.constant 18 : index
    %c0_44 = arith.constant 0 : index
    %105 = vector.load %arg2[%c18, %c0_44] : memref<36x110xf32, #tpu.memory_space<vmem>>, vector<1x110xf32>
    %106 = vector.broadcast %105 : vector<1x110xf32> to vector<11x110xf32>
    %107 = arith.mulf %104, %106 : vector<11x110xf32>
    %108 = arith.addf %103, %107 : vector<11x110xf32>
    %109 = vector.extract_strided_slice %4 {offsets = [3, 0], sizes = [11, 110], strides = [1, 1]} : vector<16x110xf32> to vector<11x110xf32>
    %c19 = arith.constant 19 : index
    %c0_45 = arith.constant 0 : index
    %110 = vector.load %arg2[%c19, %c0_45] : memref<36x110xf32, #tpu.memory_space<vmem>>, vector<1x110xf32>
    %111 = vector.broadcast %110 : vector<1x110xf32> to vector<11x110xf32>
    %112 = arith.mulf %109, %111 : vector<11x110xf32>
    %113 = arith.addf %108, %112 : vector<11x110xf32>
    %114 = vector.extract_strided_slice %6 {offsets = [3, 0], sizes = [11, 110], strides = [1, 1]} : vector<16x110xf32> to vector<11x110xf32>
    %c20 = arith.constant 20 : index
    %c0_46 = arith.constant 0 : index
    %115 = vector.load %arg2[%c20, %c0_46] : memref<36x110xf32, #tpu.memory_space<vmem>>, vector<1x110xf32>
    %116 = vector.broadcast %115 : vector<1x110xf32> to vector<11x110xf32>
    %117 = arith.mulf %114, %116 : vector<11x110xf32>
    %118 = arith.addf %113, %117 : vector<11x110xf32>
    %119 = vector.extract_strided_slice %8 {offsets = [3, 0], sizes = [11, 110], strides = [1, 1]} : vector<16x110xf32> to vector<11x110xf32>
    %c21 = arith.constant 21 : index
    %c0_47 = arith.constant 0 : index
    %120 = vector.load %arg2[%c21, %c0_47] : memref<36x110xf32, #tpu.memory_space<vmem>>, vector<1x110xf32>
    %121 = vector.broadcast %120 : vector<1x110xf32> to vector<11x110xf32>
    %122 = arith.mulf %119, %121 : vector<11x110xf32>
    %123 = arith.addf %118, %122 : vector<11x110xf32>
    %124 = vector.extract_strided_slice %10 {offsets = [3, 0], sizes = [11, 110], strides = [1, 1]} : vector<16x110xf32> to vector<11x110xf32>
    %c22 = arith.constant 22 : index
    %c0_48 = arith.constant 0 : index
    %125 = vector.load %arg2[%c22, %c0_48] : memref<36x110xf32, #tpu.memory_space<vmem>>, vector<1x110xf32>
    %126 = vector.broadcast %125 : vector<1x110xf32> to vector<11x110xf32>
    %127 = arith.mulf %124, %126 : vector<11x110xf32>
    %128 = arith.addf %123, %127 : vector<11x110xf32>
    %129 = vector.extract_strided_slice %12 {offsets = [3, 0], sizes = [11, 110], strides = [1, 1]} : vector<16x110xf32> to vector<11x110xf32>
    %c23 = arith.constant 23 : index
    %c0_49 = arith.constant 0 : index
    %130 = vector.load %arg2[%c23, %c0_49] : memref<36x110xf32, #tpu.memory_space<vmem>>, vector<1x110xf32>
    %131 = vector.broadcast %130 : vector<1x110xf32> to vector<11x110xf32>
    %132 = arith.mulf %129, %131 : vector<11x110xf32>
    %133 = arith.addf %128, %132 : vector<11x110xf32>
    %134 = vector.extract_strided_slice %2 {offsets = [4, 0], sizes = [11, 110], strides = [1, 1]} : vector<16x110xf32> to vector<11x110xf32>
    %c24 = arith.constant 24 : index
    %c0_50 = arith.constant 0 : index
    %135 = vector.load %arg2[%c24, %c0_50] : memref<36x110xf32, #tpu.memory_space<vmem>>, vector<1x110xf32>
    %136 = vector.broadcast %135 : vector<1x110xf32> to vector<11x110xf32>
    %137 = arith.mulf %134, %136 : vector<11x110xf32>
    %138 = arith.addf %133, %137 : vector<11x110xf32>
    %139 = vector.extract_strided_slice %4 {offsets = [4, 0], sizes = [11, 110], strides = [1, 1]} : vector<16x110xf32> to vector<11x110xf32>
    %c25 = arith.constant 25 : index
    %c0_51 = arith.constant 0 : index
    %140 = vector.load %arg2[%c25, %c0_51] : memref<36x110xf32, #tpu.memory_space<vmem>>, vector<1x110xf32>
    %141 = vector.broadcast %140 : vector<1x110xf32> to vector<11x110xf32>
    %142 = arith.mulf %139, %141 : vector<11x110xf32>
    %143 = arith.addf %138, %142 : vector<11x110xf32>
    %144 = vector.extract_strided_slice %6 {offsets = [4, 0], sizes = [11, 110], strides = [1, 1]} : vector<16x110xf32> to vector<11x110xf32>
    %c26 = arith.constant 26 : index
    %c0_52 = arith.constant 0 : index
    %145 = vector.load %arg2[%c26, %c0_52] : memref<36x110xf32, #tpu.memory_space<vmem>>, vector<1x110xf32>
    %146 = vector.broadcast %145 : vector<1x110xf32> to vector<11x110xf32>
    %147 = arith.mulf %144, %146 : vector<11x110xf32>
    %148 = arith.addf %143, %147 : vector<11x110xf32>
    %149 = vector.extract_strided_slice %8 {offsets = [4, 0], sizes = [11, 110], strides = [1, 1]} : vector<16x110xf32> to vector<11x110xf32>
    %c27 = arith.constant 27 : index
    %c0_53 = arith.constant 0 : index
    %150 = vector.load %arg2[%c27, %c0_53] : memref<36x110xf32, #tpu.memory_space<vmem>>, vector<1x110xf32>
    %151 = vector.broadcast %150 : vector<1x110xf32> to vector<11x110xf32>
    %152 = arith.mulf %149, %151 : vector<11x110xf32>
    %153 = arith.addf %148, %152 : vector<11x110xf32>
    %154 = vector.extract_strided_slice %10 {offsets = [4, 0], sizes = [11, 110], strides = [1, 1]} : vector<16x110xf32> to vector<11x110xf32>
    %c28 = arith.constant 28 : index
    %c0_54 = arith.constant 0 : index
    %155 = vector.load %arg2[%c28, %c0_54] : memref<36x110xf32, #tpu.memory_space<vmem>>, vector<1x110xf32>
    %156 = vector.broadcast %155 : vector<1x110xf32> to vector<11x110xf32>
    %157 = arith.mulf %154, %156 : vector<11x110xf32>
    %158 = arith.addf %153, %157 : vector<11x110xf32>
    %159 = vector.extract_strided_slice %12 {offsets = [4, 0], sizes = [11, 110], strides = [1, 1]} : vector<16x110xf32> to vector<11x110xf32>
    %c29 = arith.constant 29 : index
    %c0_55 = arith.constant 0 : index
    %160 = vector.load %arg2[%c29, %c0_55] : memref<36x110xf32, #tpu.memory_space<vmem>>, vector<1x110xf32>
    %161 = vector.broadcast %160 : vector<1x110xf32> to vector<11x110xf32>
    %162 = arith.mulf %159, %161 : vector<11x110xf32>
    %163 = arith.addf %158, %162 : vector<11x110xf32>
    %164 = vector.extract_strided_slice %2 {offsets = [5, 0], sizes = [11, 110], strides = [1, 1]} : vector<16x110xf32> to vector<11x110xf32>
    %c30 = arith.constant 30 : index
    %c0_56 = arith.constant 0 : index
    %165 = vector.load %arg2[%c30, %c0_56] : memref<36x110xf32, #tpu.memory_space<vmem>>, vector<1x110xf32>
    %166 = vector.broadcast %165 : vector<1x110xf32> to vector<11x110xf32>
    %167 = arith.mulf %164, %166 : vector<11x110xf32>
    %168 = arith.addf %163, %167 : vector<11x110xf32>
    %169 = vector.extract_strided_slice %4 {offsets = [5, 0], sizes = [11, 110], strides = [1, 1]} : vector<16x110xf32> to vector<11x110xf32>
    %c31 = arith.constant 31 : index
    %c0_57 = arith.constant 0 : index
    %170 = vector.load %arg2[%c31, %c0_57] : memref<36x110xf32, #tpu.memory_space<vmem>>, vector<1x110xf32>
    %171 = vector.broadcast %170 : vector<1x110xf32> to vector<11x110xf32>
    %172 = arith.mulf %169, %171 : vector<11x110xf32>
    %173 = arith.addf %168, %172 : vector<11x110xf32>
    %174 = vector.extract_strided_slice %6 {offsets = [5, 0], sizes = [11, 110], strides = [1, 1]} : vector<16x110xf32> to vector<11x110xf32>
    %c32 = arith.constant 32 : index
    %c0_58 = arith.constant 0 : index
    %175 = vector.load %arg2[%c32, %c0_58] : memref<36x110xf32, #tpu.memory_space<vmem>>, vector<1x110xf32>
    %176 = vector.broadcast %175 : vector<1x110xf32> to vector<11x110xf32>
    %177 = arith.mulf %174, %176 : vector<11x110xf32>
    %178 = arith.addf %173, %177 : vector<11x110xf32>
    %179 = vector.extract_strided_slice %8 {offsets = [5, 0], sizes = [11, 110], strides = [1, 1]} : vector<16x110xf32> to vector<11x110xf32>
    %c33 = arith.constant 33 : index
    %c0_59 = arith.constant 0 : index
    %180 = vector.load %arg2[%c33, %c0_59] : memref<36x110xf32, #tpu.memory_space<vmem>>, vector<1x110xf32>
    %181 = vector.broadcast %180 : vector<1x110xf32> to vector<11x110xf32>
    %182 = arith.mulf %179, %181 : vector<11x110xf32>
    %183 = arith.addf %178, %182 : vector<11x110xf32>
    %184 = vector.extract_strided_slice %10 {offsets = [5, 0], sizes = [11, 110], strides = [1, 1]} : vector<16x110xf32> to vector<11x110xf32>
    %c34 = arith.constant 34 : index
    %c0_60 = arith.constant 0 : index
    %185 = vector.load %arg2[%c34, %c0_60] : memref<36x110xf32, #tpu.memory_space<vmem>>, vector<1x110xf32>
    %186 = vector.broadcast %185 : vector<1x110xf32> to vector<11x110xf32>
    %187 = arith.mulf %184, %186 : vector<11x110xf32>
    %188 = arith.addf %183, %187 : vector<11x110xf32>
    %189 = vector.extract_strided_slice %12 {offsets = [5, 0], sizes = [11, 110], strides = [1, 1]} : vector<16x110xf32> to vector<11x110xf32>
    %c35 = arith.constant 35 : index
    %c0_61 = arith.constant 0 : index
    %190 = vector.load %arg2[%c35, %c0_61] : memref<36x110xf32, #tpu.memory_space<vmem>>, vector<1x110xf32>
    %191 = vector.broadcast %190 : vector<1x110xf32> to vector<11x110xf32>
    %192 = arith.mulf %189, %191 : vector<11x110xf32>
    %193 = arith.addf %188, %192 : vector<11x110xf32>
    %194 = vector.broadcast %0 : vector<1x110xf32> to vector<11x110xf32>
    %195 = arith.addf %193, %194 : vector<11x110xf32>
    %196 = vector.extract_strided_slice %195 {offsets = [0, 0], sizes = [11, 11], strides = [1, 1]} : vector<11x110xf32> to vector<11x11xf32>
    %cst_62 = arith.constant dense<0.000000e+00> : vector<11x11xf32>
    %197 = tpu.matmul %196, %196, %cst_62 {dimension_numbers = #tpu.dot_dimension_numbers<[1], [0], [0], [1], [0, 0, 1, 1], [], []>, precision = #tpu.contract_precision<fp32>} : vector<11x11xf32>, vector<11x11xf32>, vector<11x11xf32> -> vector<11x11xf32>
    %198 = tpu.transpose %196, [1, 0] : vector<11x11xf32> -> vector<11x11xf32>
    %199 = tpu.transpose %197, [1, 0] : vector<11x11xf32> -> vector<11x11xf32>
    %200 = arith.mulf %196, %198 : vector<11x11xf32>
    %201 = vector.shape_cast %200 : vector<11x11xf32> to vector<1x11x11xf32>
    %cst_63 = arith.constant dense<0.000000e+00> : vector<1xf32>
    %202 = vector.multi_reduction <add>, %201, %cst_63 [1, 2] : vector<1x11x11xf32> to vector<1xf32>
    %203 = vector.shape_cast %202 : vector<1xf32> to vector<1x1x1xf32>
    %204 = vector.extract %203[0, 0, 0] : f32 from vector<1x1x1xf32>
    %cst_64 = arith.constant 0.00826446246 : f32
    %205 = arith.mulf %204, %cst_64 : f32
    %c0_65 = arith.constant 0 : index
    %206 = memref.load %arg4[%c0_65] : memref<120xf32, #tpu.memory_space<smem>>
    %207 = arith.mulf %206, %205 : f32
    %cst_66 = arith.constant 0.000000e+00 : f32
    %208 = arith.addf %cst_66, %207 : f32
    %209 = arith.mulf %205, %205 : f32
    %c1_67 = arith.constant 1 : index
    %210 = memref.load %arg4[%c1_67] : memref<120xf32, #tpu.memory_space<smem>>
    %211 = arith.mulf %210, %209 : f32
    %212 = arith.addf %208, %211 : f32
    %213 = arith.mulf %209, %205 : f32
    %c2_68 = arith.constant 2 : index
    %214 = memref.load %arg4[%c2_68] : memref<120xf32, #tpu.memory_space<smem>>
    %215 = arith.mulf %214, %213 : f32
    %216 = arith.addf %212, %215 : f32
    %217 = arith.mulf %213, %205 : f32
    %c3_69 = arith.constant 3 : index
    %218 = memref.load %arg4[%c3_69] : memref<120xf32, #tpu.memory_space<smem>>
    %219 = arith.mulf %218, %217 : f32
    %220 = arith.addf %216, %219 : f32
    %221 = arith.mulf %197, %198 : vector<11x11xf32>
    %222 = vector.shape_cast %221 : vector<11x11xf32> to vector<1x11x11xf32>
    %cst_70 = arith.constant dense<0.000000e+00> : vector<1xf32>
    %223 = vector.multi_reduction <add>, %222, %cst_70 [1, 2] : vector<1x11x11xf32> to vector<1xf32>
    %224 = vector.shape_cast %223 : vector<1xf32> to vector<1x1x1xf32>
    %225 = vector.extract %224[0, 0, 0] : f32 from vector<1x1x1xf32>
    %cst_71 = arith.constant 0.00826446246 : f32
    %226 = arith.mulf %225, %cst_71 : f32
    %c4_72 = arith.constant 4 : index
    %227 = memref.load %arg4[%c4_72] : memref<120xf32, #tpu.memory_space<smem>>
    %228 = arith.mulf %227, %226 : f32
    %229 = arith.addf %220, %228 : f32
    %230 = arith.mulf %226, %226 : f32
    %c5_73 = arith.constant 5 : index
    %231 = memref.load %arg4[%c5_73] : memref<120xf32, #tpu.memory_space<smem>>
    %232 = arith.mulf %231, %230 : f32
    %233 = arith.addf %229, %232 : f32
    %234 = arith.mulf %230, %226 : f32
    %c6_74 = arith.constant 6 : index
    %235 = memref.load %arg4[%c6_74] : memref<120xf32, #tpu.memory_space<smem>>
    %236 = arith.mulf %235, %234 : f32
    %237 = arith.addf %233, %236 : f32
    %238 = arith.mulf %234, %226 : f32
    %c7_75 = arith.constant 7 : index
    %239 = memref.load %arg4[%c7_75] : memref<120xf32, #tpu.memory_space<smem>>
    %240 = arith.mulf %239, %238 : f32
    %241 = arith.addf %237, %240 : f32
    %242 = arith.mulf %197, %199 : vector<11x11xf32>
    %243 = vector.shape_cast %242 : vector<11x11xf32> to vector<1x11x11xf32>
    %cst_76 = arith.constant dense<0.000000e+00> : vector<1xf32>
    %244 = vector.multi_reduction <add>, %243, %cst_76 [1, 2] : vector<1x11x11xf32> to vector<1xf32>
    %245 = vector.shape_cast %244 : vector<1xf32> to vector<1x1x1xf32>
    %246 = vector.extract %245[0, 0, 0] : f32 from vector<1x1x1xf32>
    %cst_77 = arith.constant 0.00826446246 : f32
    %247 = arith.mulf %246, %cst_77 : f32
    %c8_78 = arith.constant 8 : index
    %248 = memref.load %arg4[%c8_78] : memref<120xf32, #tpu.memory_space<smem>>
    %249 = arith.mulf %248, %247 : f32
    %250 = arith.addf %241, %249 : f32
    %251 = arith.mulf %247, %247 : f32
    %c9_79 = arith.constant 9 : index
    %252 = memref.load %arg4[%c9_79] : memref<120xf32, #tpu.memory_space<smem>>
    %253 = arith.mulf %252, %251 : f32
    %254 = arith.addf %250, %253 : f32
    %255 = arith.mulf %251, %247 : f32
    %c10_80 = arith.constant 10 : index
    %256 = memref.load %arg4[%c10_80] : memref<120xf32, #tpu.memory_space<smem>>
    %257 = arith.mulf %256, %255 : f32
    %258 = arith.addf %254, %257 : f32
    %259 = arith.mulf %255, %247 : f32
    %c11_81 = arith.constant 11 : index
    %260 = memref.load %arg4[%c11_81] : memref<120xf32, #tpu.memory_space<smem>>
    %261 = arith.mulf %260, %259 : f32
    %262 = arith.addf %258, %261 : f32
    %263 = vector.extract_strided_slice %195 {offsets = [0, 11], sizes = [11, 11], strides = [1, 1]} : vector<11x110xf32> to vector<11x11xf32>
    %cst_82 = arith.constant dense<0.000000e+00> : vector<11x11xf32>
    %264 = tpu.matmul %263, %263, %cst_82 {dimension_numbers = #tpu.dot_dimension_numbers<[1], [0], [0], [1], [0, 0, 1, 1], [], []>, precision = #tpu.contract_precision<fp32>} : vector<11x11xf32>, vector<11x11xf32>, vector<11x11xf32> -> vector<11x11xf32>
    %265 = tpu.transpose %263, [1, 0] : vector<11x11xf32> -> vector<11x11xf32>
    %266 = tpu.transpose %264, [1, 0] : vector<11x11xf32> -> vector<11x11xf32>
    %267 = arith.mulf %263, %265 : vector<11x11xf32>
    %268 = vector.shape_cast %267 : vector<11x11xf32> to vector<1x11x11xf32>
    %cst_83 = arith.constant dense<0.000000e+00> : vector<1xf32>
    %269 = vector.multi_reduction <add>, %268, %cst_83 [1, 2] : vector<1x11x11xf32> to vector<1xf32>
    %270 = vector.shape_cast %269 : vector<1xf32> to vector<1x1x1xf32>
    %271 = vector.extract %270[0, 0, 0] : f32 from vector<1x1x1xf32>
    %cst_84 = arith.constant 0.00826446246 : f32
    %272 = arith.mulf %271, %cst_84 : f32
    %c12_85 = arith.constant 12 : index
    %273 = memref.load %arg4[%c12_85] : memref<120xf32, #tpu.memory_space<smem>>
    %274 = arith.mulf %273, %272 : f32
    %275 = arith.addf %262, %274 : f32
    %276 = arith.mulf %272, %272 : f32
    %c13_86 = arith.constant 13 : index
    %277 = memref.load %arg4[%c13_86] : memref<120xf32, #tpu.memory_space<smem>>
    %278 = arith.mulf %277, %276 : f32
    %279 = arith.addf %275, %278 : f32
    %280 = arith.mulf %276, %272 : f32
    %c14_87 = arith.constant 14 : index
    %281 = memref.load %arg4[%c14_87] : memref<120xf32, #tpu.memory_space<smem>>
    %282 = arith.mulf %281, %280 : f32
    %283 = arith.addf %279, %282 : f32
    %284 = arith.mulf %280, %272 : f32
    %c15_88 = arith.constant 15 : index
    %285 = memref.load %arg4[%c15_88] : memref<120xf32, #tpu.memory_space<smem>>
    %286 = arith.mulf %285, %284 : f32
    %287 = arith.addf %283, %286 : f32
    %288 = arith.mulf %264, %265 : vector<11x11xf32>
    %289 = vector.shape_cast %288 : vector<11x11xf32> to vector<1x11x11xf32>
    %cst_89 = arith.constant dense<0.000000e+00> : vector<1xf32>
    %290 = vector.multi_reduction <add>, %289, %cst_89 [1, 2] : vector<1x11x11xf32> to vector<1xf32>
    %291 = vector.shape_cast %290 : vector<1xf32> to vector<1x1x1xf32>
    %292 = vector.extract %291[0, 0, 0] : f32 from vector<1x1x1xf32>
    %cst_90 = arith.constant 0.00826446246 : f32
    %293 = arith.mulf %292, %cst_90 : f32
    %c16_91 = arith.constant 16 : index
    %294 = memref.load %arg4[%c16_91] : memref<120xf32, #tpu.memory_space<smem>>
    %295 = arith.mulf %294, %293 : f32
    %296 = arith.addf %287, %295 : f32
    %297 = arith.mulf %293, %293 : f32
    %c17_92 = arith.constant 17 : index
    %298 = memref.load %arg4[%c17_92] : memref<120xf32, #tpu.memory_space<smem>>
    %299 = arith.mulf %298, %297 : f32
    %300 = arith.addf %296, %299 : f32
    %301 = arith.mulf %297, %293 : f32
    %c18_93 = arith.constant 18 : index
    %302 = memref.load %arg4[%c18_93] : memref<120xf32, #tpu.memory_space<smem>>
    %303 = arith.mulf %302, %301 : f32
    %304 = arith.addf %300, %303 : f32
    %305 = arith.mulf %301, %293 : f32
    %c19_94 = arith.constant 19 : index
    %306 = memref.load %arg4[%c19_94] : memref<120xf32, #tpu.memory_space<smem>>
    %307 = arith.mulf %306, %305 : f32
    %308 = arith.addf %304, %307 : f32
    %309 = arith.mulf %264, %266 : vector<11x11xf32>
    %310 = vector.shape_cast %309 : vector<11x11xf32> to vector<1x11x11xf32>
    %cst_95 = arith.constant dense<0.000000e+00> : vector<1xf32>
    %311 = vector.multi_reduction <add>, %310, %cst_95 [1, 2] : vector<1x11x11xf32> to vector<1xf32>
    %312 = vector.shape_cast %311 : vector<1xf32> to vector<1x1x1xf32>
    %313 = vector.extract %312[0, 0, 0] : f32 from vector<1x1x1xf32>
    %cst_96 = arith.constant 0.00826446246 : f32
    %314 = arith.mulf %313, %cst_96 : f32
    %c20_97 = arith.constant 20 : index
    %315 = memref.load %arg4[%c20_97] : memref<120xf32, #tpu.memory_space<smem>>
    %316 = arith.mulf %315, %314 : f32
    %317 = arith.addf %308, %316 : f32
    %318 = arith.mulf %314, %314 : f32
    %c21_98 = arith.constant 21 : index
    %319 = memref.load %arg4[%c21_98] : memref<120xf32, #tpu.memory_space<smem>>
    %320 = arith.mulf %319, %318 : f32
    %321 = arith.addf %317, %320 : f32
    %322 = arith.mulf %318, %314 : f32
    %c22_99 = arith.constant 22 : index
    %323 = memref.load %arg4[%c22_99] : memref<120xf32, #tpu.memory_space<smem>>
    %324 = arith.mulf %323, %322 : f32
    %325 = arith.addf %321, %324 : f32
    %326 = arith.mulf %322, %314 : f32
    %c23_100 = arith.constant 23 : index
    %327 = memref.load %arg4[%c23_100] : memref<120xf32, #tpu.memory_space<smem>>
    %328 = arith.mulf %327, %326 : f32
    %329 = arith.addf %325, %328 : f32
    %330 = vector.extract_strided_slice %195 {offsets = [0, 22], sizes = [11, 11], strides = [1, 1]} : vector<11x110xf32> to vector<11x11xf32>
    %cst_101 = arith.constant dense<0.000000e+00> : vector<11x11xf32>
    %331 = tpu.matmul %330, %330, %cst_101 {dimension_numbers = #tpu.dot_dimension_numbers<[1], [0], [0], [1], [0, 0, 1, 1], [], []>, precision = #tpu.contract_precision<fp32>} : vector<11x11xf32>, vector<11x11xf32>, vector<11x11xf32> -> vector<11x11xf32>
    %332 = tpu.transpose %330, [1, 0] : vector<11x11xf32> -> vector<11x11xf32>
    %333 = tpu.transpose %331, [1, 0] : vector<11x11xf32> -> vector<11x11xf32>
    %334 = arith.mulf %330, %332 : vector<11x11xf32>
    %335 = vector.shape_cast %334 : vector<11x11xf32> to vector<1x11x11xf32>
    %cst_102 = arith.constant dense<0.000000e+00> : vector<1xf32>
    %336 = vector.multi_reduction <add>, %335, %cst_102 [1, 2] : vector<1x11x11xf32> to vector<1xf32>
    %337 = vector.shape_cast %336 : vector<1xf32> to vector<1x1x1xf32>
    %338 = vector.extract %337[0, 0, 0] : f32 from vector<1x1x1xf32>
    %cst_103 = arith.constant 0.00826446246 : f32
    %339 = arith.mulf %338, %cst_103 : f32
    %c24_104 = arith.constant 24 : index
    %340 = memref.load %arg4[%c24_104] : memref<120xf32, #tpu.memory_space<smem>>
    %341 = arith.mulf %340, %339 : f32
    %342 = arith.addf %329, %341 : f32
    %343 = arith.mulf %339, %339 : f32
    %c25_105 = arith.constant 25 : index
    %344 = memref.load %arg4[%c25_105] : memref<120xf32, #tpu.memory_space<smem>>
    %345 = arith.mulf %344, %343 : f32
    %346 = arith.addf %342, %345 : f32
    %347 = arith.mulf %343, %339 : f32
    %c26_106 = arith.constant 26 : index
    %348 = memref.load %arg4[%c26_106] : memref<120xf32, #tpu.memory_space<smem>>
    %349 = arith.mulf %348, %347 : f32
    %350 = arith.addf %346, %349 : f32
    %351 = arith.mulf %347, %339 : f32
    %c27_107 = arith.constant 27 : index
    %352 = memref.load %arg4[%c27_107] : memref<120xf32, #tpu.memory_space<smem>>
    %353 = arith.mulf %352, %351 : f32
    %354 = arith.addf %350, %353 : f32
    %355 = arith.mulf %331, %332 : vector<11x11xf32>
    %356 = vector.shape_cast %355 : vector<11x11xf32> to vector<1x11x11xf32>
    %cst_108 = arith.constant dense<0.000000e+00> : vector<1xf32>
    %357 = vector.multi_reduction <add>, %356, %cst_108 [1, 2] : vector<1x11x11xf32> to vector<1xf32>
    %358 = vector.shape_cast %357 : vector<1xf32> to vector<1x1x1xf32>
    %359 = vector.extract %358[0, 0, 0] : f32 from vector<1x1x1xf32>
    %cst_109 = arith.constant 0.00826446246 : f32
    %360 = arith.mulf %359, %cst_109 : f32
    %c28_110 = arith.constant 28 : index
    %361 = memref.load %arg4[%c28_110] : memref<120xf32, #tpu.memory_space<smem>>
    %362 = arith.mulf %361, %360 : f32
    %363 = arith.addf %354, %362 : f32
    %364 = arith.mulf %360, %360 : f32
    %c29_111 = arith.constant 29 : index
    %365 = memref.load %arg4[%c29_111] : memref<120xf32, #tpu.memory_space<smem>>
    %366 = arith.mulf %365, %364 : f32
    %367 = arith.addf %363, %366 : f32
    %368 = arith.mulf %364, %360 : f32
    %c30_112 = arith.constant 30 : index
    %369 = memref.load %arg4[%c30_112] : memref<120xf32, #tpu.memory_space<smem>>
    %370 = arith.mulf %369, %368 : f32
    %371 = arith.addf %367, %370 : f32
    %372 = arith.mulf %368, %360 : f32
    %c31_113 = arith.constant 31 : index
    %373 = memref.load %arg4[%c31_113] : memref<120xf32, #tpu.memory_space<smem>>
    %374 = arith.mulf %373, %372 : f32
    %375 = arith.addf %371, %374 : f32
    %376 = arith.mulf %331, %333 : vector<11x11xf32>
    %377 = vector.shape_cast %376 : vector<11x11xf32> to vector<1x11x11xf32>
    %cst_114 = arith.constant dense<0.000000e+00> : vector<1xf32>
    %378 = vector.multi_reduction <add>, %377, %cst_114 [1, 2] : vector<1x11x11xf32> to vector<1xf32>
    %379 = vector.shape_cast %378 : vector<1xf32> to vector<1x1x1xf32>
    %380 = vector.extract %379[0, 0, 0] : f32 from vector<1x1x1xf32>
    %cst_115 = arith.constant 0.00826446246 : f32
    %381 = arith.mulf %380, %cst_115 : f32
    %c32_116 = arith.constant 32 : index
    %382 = memref.load %arg4[%c32_116] : memref<120xf32, #tpu.memory_space<smem>>
    %383 = arith.mulf %382, %381 : f32
    %384 = arith.addf %375, %383 : f32
    %385 = arith.mulf %381, %381 : f32
    %c33_117 = arith.constant 33 : index
    %386 = memref.load %arg4[%c33_117] : memref<120xf32, #tpu.memory_space<smem>>
    %387 = arith.mulf %386, %385 : f32
    %388 = arith.addf %384, %387 : f32
    %389 = arith.mulf %385, %381 : f32
    %c34_118 = arith.constant 34 : index
    %390 = memref.load %arg4[%c34_118] : memref<120xf32, #tpu.memory_space<smem>>
    %391 = arith.mulf %390, %389 : f32
    %392 = arith.addf %388, %391 : f32
    %393 = arith.mulf %389, %381 : f32
    %c35_119 = arith.constant 35 : index
    %394 = memref.load %arg4[%c35_119] : memref<120xf32, #tpu.memory_space<smem>>
    %395 = arith.mulf %394, %393 : f32
    %396 = arith.addf %392, %395 : f32
    %397 = vector.extract_strided_slice %195 {offsets = [0, 33], sizes = [11, 11], strides = [1, 1]} : vector<11x110xf32> to vector<11x11xf32>
    %cst_120 = arith.constant dense<0.000000e+00> : vector<11x11xf32>
    %398 = tpu.matmul %397, %397, %cst_120 {dimension_numbers = #tpu.dot_dimension_numbers<[1], [0], [0], [1], [0, 0, 1, 1], [], []>, precision = #tpu.contract_precision<fp32>} : vector<11x11xf32>, vector<11x11xf32>, vector<11x11xf32> -> vector<11x11xf32>
    %399 = tpu.transpose %397, [1, 0] : vector<11x11xf32> -> vector<11x11xf32>
    %400 = tpu.transpose %398, [1, 0] : vector<11x11xf32> -> vector<11x11xf32>
    %401 = arith.mulf %397, %399 : vector<11x11xf32>
    %402 = vector.shape_cast %401 : vector<11x11xf32> to vector<1x11x11xf32>
    %cst_121 = arith.constant dense<0.000000e+00> : vector<1xf32>
    %403 = vector.multi_reduction <add>, %402, %cst_121 [1, 2] : vector<1x11x11xf32> to vector<1xf32>
    %404 = vector.shape_cast %403 : vector<1xf32> to vector<1x1x1xf32>
    %405 = vector.extract %404[0, 0, 0] : f32 from vector<1x1x1xf32>
    %cst_122 = arith.constant 0.00826446246 : f32
    %406 = arith.mulf %405, %cst_122 : f32
    %c36 = arith.constant 36 : index
    %407 = memref.load %arg4[%c36] : memref<120xf32, #tpu.memory_space<smem>>
    %408 = arith.mulf %407, %406 : f32
    %409 = arith.addf %396, %408 : f32
    %410 = arith.mulf %406, %406 : f32
    %c37 = arith.constant 37 : index
    %411 = memref.load %arg4[%c37] : memref<120xf32, #tpu.memory_space<smem>>
    %412 = arith.mulf %411, %410 : f32
    %413 = arith.addf %409, %412 : f32
    %414 = arith.mulf %410, %406 : f32
    %c38 = arith.constant 38 : index
    %415 = memref.load %arg4[%c38] : memref<120xf32, #tpu.memory_space<smem>>
    %416 = arith.mulf %415, %414 : f32
    %417 = arith.addf %413, %416 : f32
    %418 = arith.mulf %414, %406 : f32
    %c39 = arith.constant 39 : index
    %419 = memref.load %arg4[%c39] : memref<120xf32, #tpu.memory_space<smem>>
    %420 = arith.mulf %419, %418 : f32
    %421 = arith.addf %417, %420 : f32
    %422 = arith.mulf %398, %399 : vector<11x11xf32>
    %423 = vector.shape_cast %422 : vector<11x11xf32> to vector<1x11x11xf32>
    %cst_123 = arith.constant dense<0.000000e+00> : vector<1xf32>
    %424 = vector.multi_reduction <add>, %423, %cst_123 [1, 2] : vector<1x11x11xf32> to vector<1xf32>
    %425 = vector.shape_cast %424 : vector<1xf32> to vector<1x1x1xf32>
    %426 = vector.extract %425[0, 0, 0] : f32 from vector<1x1x1xf32>
    %cst_124 = arith.constant 0.00826446246 : f32
    %427 = arith.mulf %426, %cst_124 : f32
    %c40 = arith.constant 40 : index
    %428 = memref.load %arg4[%c40] : memref<120xf32, #tpu.memory_space<smem>>
    %429 = arith.mulf %428, %427 : f32
    %430 = arith.addf %421, %429 : f32
    %431 = arith.mulf %427, %427 : f32
    %c41 = arith.constant 41 : index
    %432 = memref.load %arg4[%c41] : memref<120xf32, #tpu.memory_space<smem>>
    %433 = arith.mulf %432, %431 : f32
    %434 = arith.addf %430, %433 : f32
    %435 = arith.mulf %431, %427 : f32
    %c42 = arith.constant 42 : index
    %436 = memref.load %arg4[%c42] : memref<120xf32, #tpu.memory_space<smem>>
    %437 = arith.mulf %436, %435 : f32
    %438 = arith.addf %434, %437 : f32
    %439 = arith.mulf %435, %427 : f32
    %c43 = arith.constant 43 : index
    %440 = memref.load %arg4[%c43] : memref<120xf32, #tpu.memory_space<smem>>
    %441 = arith.mulf %440, %439 : f32
    %442 = arith.addf %438, %441 : f32
    %443 = arith.mulf %398, %400 : vector<11x11xf32>
    %444 = vector.shape_cast %443 : vector<11x11xf32> to vector<1x11x11xf32>
    %cst_125 = arith.constant dense<0.000000e+00> : vector<1xf32>
    %445 = vector.multi_reduction <add>, %444, %cst_125 [1, 2] : vector<1x11x11xf32> to vector<1xf32>
    %446 = vector.shape_cast %445 : vector<1xf32> to vector<1x1x1xf32>
    %447 = vector.extract %446[0, 0, 0] : f32 from vector<1x1x1xf32>
    %cst_126 = arith.constant 0.00826446246 : f32
    %448 = arith.mulf %447, %cst_126 : f32
    %c44 = arith.constant 44 : index
    %449 = memref.load %arg4[%c44] : memref<120xf32, #tpu.memory_space<smem>>
    %450 = arith.mulf %449, %448 : f32
    %451 = arith.addf %442, %450 : f32
    %452 = arith.mulf %448, %448 : f32
    %c45 = arith.constant 45 : index
    %453 = memref.load %arg4[%c45] : memref<120xf32, #tpu.memory_space<smem>>
    %454 = arith.mulf %453, %452 : f32
    %455 = arith.addf %451, %454 : f32
    %456 = arith.mulf %452, %448 : f32
    %c46 = arith.constant 46 : index
    %457 = memref.load %arg4[%c46] : memref<120xf32, #tpu.memory_space<smem>>
    %458 = arith.mulf %457, %456 : f32
    %459 = arith.addf %455, %458 : f32
    %460 = arith.mulf %456, %448 : f32
    %c47 = arith.constant 47 : index
    %461 = memref.load %arg4[%c47] : memref<120xf32, #tpu.memory_space<smem>>
    %462 = arith.mulf %461, %460 : f32
    %463 = arith.addf %459, %462 : f32
    %464 = vector.extract_strided_slice %195 {offsets = [0, 44], sizes = [11, 11], strides = [1, 1]} : vector<11x110xf32> to vector<11x11xf32>
    %cst_127 = arith.constant dense<0.000000e+00> : vector<11x11xf32>
    %465 = tpu.matmul %464, %464, %cst_127 {dimension_numbers = #tpu.dot_dimension_numbers<[1], [0], [0], [1], [0, 0, 1, 1], [], []>, precision = #tpu.contract_precision<fp32>} : vector<11x11xf32>, vector<11x11xf32>, vector<11x11xf32> -> vector<11x11xf32>
    %466 = tpu.transpose %464, [1, 0] : vector<11x11xf32> -> vector<11x11xf32>
    %467 = tpu.transpose %465, [1, 0] : vector<11x11xf32> -> vector<11x11xf32>
    %468 = arith.mulf %464, %466 : vector<11x11xf32>
    %469 = vector.shape_cast %468 : vector<11x11xf32> to vector<1x11x11xf32>
    %cst_128 = arith.constant dense<0.000000e+00> : vector<1xf32>
    %470 = vector.multi_reduction <add>, %469, %cst_128 [1, 2] : vector<1x11x11xf32> to vector<1xf32>
    %471 = vector.shape_cast %470 : vector<1xf32> to vector<1x1x1xf32>
    %472 = vector.extract %471[0, 0, 0] : f32 from vector<1x1x1xf32>
    %cst_129 = arith.constant 0.00826446246 : f32
    %473 = arith.mulf %472, %cst_129 : f32
    %c48 = arith.constant 48 : index
    %474 = memref.load %arg4[%c48] : memref<120xf32, #tpu.memory_space<smem>>
    %475 = arith.mulf %474, %473 : f32
    %476 = arith.addf %463, %475 : f32
    %477 = arith.mulf %473, %473 : f32
    %c49 = arith.constant 49 : index
    %478 = memref.load %arg4[%c49] : memref<120xf32, #tpu.memory_space<smem>>
    %479 = arith.mulf %478, %477 : f32
    %480 = arith.addf %476, %479 : f32
    %481 = arith.mulf %477, %473 : f32
    %c50 = arith.constant 50 : index
    %482 = memref.load %arg4[%c50] : memref<120xf32, #tpu.memory_space<smem>>
    %483 = arith.mulf %482, %481 : f32
    %484 = arith.addf %480, %483 : f32
    %485 = arith.mulf %481, %473 : f32
    %c51 = arith.constant 51 : index
    %486 = memref.load %arg4[%c51] : memref<120xf32, #tpu.memory_space<smem>>
    %487 = arith.mulf %486, %485 : f32
    %488 = arith.addf %484, %487 : f32
    %489 = arith.mulf %465, %466 : vector<11x11xf32>
    %490 = vector.shape_cast %489 : vector<11x11xf32> to vector<1x11x11xf32>
    %cst_130 = arith.constant dense<0.000000e+00> : vector<1xf32>
    %491 = vector.multi_reduction <add>, %490, %cst_130 [1, 2] : vector<1x11x11xf32> to vector<1xf32>
    %492 = vector.shape_cast %491 : vector<1xf32> to vector<1x1x1xf32>
    %493 = vector.extract %492[0, 0, 0] : f32 from vector<1x1x1xf32>
    %cst_131 = arith.constant 0.00826446246 : f32
    %494 = arith.mulf %493, %cst_131 : f32
    %c52 = arith.constant 52 : index
    %495 = memref.load %arg4[%c52] : memref<120xf32, #tpu.memory_space<smem>>
    %496 = arith.mulf %495, %494 : f32
    %497 = arith.addf %488, %496 : f32
    %498 = arith.mulf %494, %494 : f32
    %c53 = arith.constant 53 : index
    %499 = memref.load %arg4[%c53] : memref<120xf32, #tpu.memory_space<smem>>
    %500 = arith.mulf %499, %498 : f32
    %501 = arith.addf %497, %500 : f32
    %502 = arith.mulf %498, %494 : f32
    %c54 = arith.constant 54 : index
    %503 = memref.load %arg4[%c54] : memref<120xf32, #tpu.memory_space<smem>>
    %504 = arith.mulf %503, %502 : f32
    %505 = arith.addf %501, %504 : f32
    %506 = arith.mulf %502, %494 : f32
    %c55 = arith.constant 55 : index
    %507 = memref.load %arg4[%c55] : memref<120xf32, #tpu.memory_space<smem>>
    %508 = arith.mulf %507, %506 : f32
    %509 = arith.addf %505, %508 : f32
    %510 = arith.mulf %465, %467 : vector<11x11xf32>
    %511 = vector.shape_cast %510 : vector<11x11xf32> to vector<1x11x11xf32>
    %cst_132 = arith.constant dense<0.000000e+00> : vector<1xf32>
    %512 = vector.multi_reduction <add>, %511, %cst_132 [1, 2] : vector<1x11x11xf32> to vector<1xf32>
    %513 = vector.shape_cast %512 : vector<1xf32> to vector<1x1x1xf32>
    %514 = vector.extract %513[0, 0, 0] : f32 from vector<1x1x1xf32>
    %cst_133 = arith.constant 0.00826446246 : f32
    %515 = arith.mulf %514, %cst_133 : f32
    %c56 = arith.constant 56 : index
    %516 = memref.load %arg4[%c56] : memref<120xf32, #tpu.memory_space<smem>>
    %517 = arith.mulf %516, %515 : f32
    %518 = arith.addf %509, %517 : f32
    %519 = arith.mulf %515, %515 : f32
    %c57 = arith.constant 57 : index
    %520 = memref.load %arg4[%c57] : memref<120xf32, #tpu.memory_space<smem>>
    %521 = arith.mulf %520, %519 : f32
    %522 = arith.addf %518, %521 : f32
    %523 = arith.mulf %519, %515 : f32
    %c58 = arith.constant 58 : index
    %524 = memref.load %arg4[%c58] : memref<120xf32, #tpu.memory_space<smem>>
    %525 = arith.mulf %524, %523 : f32
    %526 = arith.addf %522, %525 : f32
    %527 = arith.mulf %523, %515 : f32
    %c59 = arith.constant 59 : index
    %528 = memref.load %arg4[%c59] : memref<120xf32, #tpu.memory_space<smem>>
    %529 = arith.mulf %528, %527 : f32
    %530 = arith.addf %526, %529 : f32
    %531 = vector.extract_strided_slice %195 {offsets = [0, 55], sizes = [11, 11], strides = [1, 1]} : vector<11x110xf32> to vector<11x11xf32>
    %cst_134 = arith.constant dense<0.000000e+00> : vector<11x11xf32>
    %532 = tpu.matmul %531, %531, %cst_134 {dimension_numbers = #tpu.dot_dimension_numbers<[1], [0], [0], [1], [0, 0, 1, 1], [], []>, precision = #tpu.contract_precision<fp32>} : vector<11x11xf32>, vector<11x11xf32>, vector<11x11xf32> -> vector<11x11xf32>
    %533 = tpu.transpose %531, [1, 0] : vector<11x11xf32> -> vector<11x11xf32>
    %534 = tpu.transpose %532, [1, 0] : vector<11x11xf32> -> vector<11x11xf32>
    %535 = arith.mulf %531, %533 : vector<11x11xf32>
    %536 = vector.shape_cast %535 : vector<11x11xf32> to vector<1x11x11xf32>
    %cst_135 = arith.constant dense<0.000000e+00> : vector<1xf32>
    %537 = vector.multi_reduction <add>, %536, %cst_135 [1, 2] : vector<1x11x11xf32> to vector<1xf32>
    %538 = vector.shape_cast %537 : vector<1xf32> to vector<1x1x1xf32>
    %539 = vector.extract %538[0, 0, 0] : f32 from vector<1x1x1xf32>
    %cst_136 = arith.constant 0.00826446246 : f32
    %540 = arith.mulf %539, %cst_136 : f32
    %c60 = arith.constant 60 : index
    %541 = memref.load %arg4[%c60] : memref<120xf32, #tpu.memory_space<smem>>
    %542 = arith.mulf %541, %540 : f32
    %543 = arith.addf %530, %542 : f32
    %544 = arith.mulf %540, %540 : f32
    %c61 = arith.constant 61 : index
    %545 = memref.load %arg4[%c61] : memref<120xf32, #tpu.memory_space<smem>>
    %546 = arith.mulf %545, %544 : f32
    %547 = arith.addf %543, %546 : f32
    %548 = arith.mulf %544, %540 : f32
    %c62 = arith.constant 62 : index
    %549 = memref.load %arg4[%c62] : memref<120xf32, #tpu.memory_space<smem>>
    %550 = arith.mulf %549, %548 : f32
    %551 = arith.addf %547, %550 : f32
    %552 = arith.mulf %548, %540 : f32
    %c63 = arith.constant 63 : index
    %553 = memref.load %arg4[%c63] : memref<120xf32, #tpu.memory_space<smem>>
    %554 = arith.mulf %553, %552 : f32
    %555 = arith.addf %551, %554 : f32
    %556 = arith.mulf %532, %533 : vector<11x11xf32>
    %557 = vector.shape_cast %556 : vector<11x11xf32> to vector<1x11x11xf32>
    %cst_137 = arith.constant dense<0.000000e+00> : vector<1xf32>
    %558 = vector.multi_reduction <add>, %557, %cst_137 [1, 2] : vector<1x11x11xf32> to vector<1xf32>
    %559 = vector.shape_cast %558 : vector<1xf32> to vector<1x1x1xf32>
    %560 = vector.extract %559[0, 0, 0] : f32 from vector<1x1x1xf32>
    %cst_138 = arith.constant 0.00826446246 : f32
    %561 = arith.mulf %560, %cst_138 : f32
    %c64 = arith.constant 64 : index
    %562 = memref.load %arg4[%c64] : memref<120xf32, #tpu.memory_space<smem>>
    %563 = arith.mulf %562, %561 : f32
    %564 = arith.addf %555, %563 : f32
    %565 = arith.mulf %561, %561 : f32
    %c65 = arith.constant 65 : index
    %566 = memref.load %arg4[%c65] : memref<120xf32, #tpu.memory_space<smem>>
    %567 = arith.mulf %566, %565 : f32
    %568 = arith.addf %564, %567 : f32
    %569 = arith.mulf %565, %561 : f32
    %c66 = arith.constant 66 : index
    %570 = memref.load %arg4[%c66] : memref<120xf32, #tpu.memory_space<smem>>
    %571 = arith.mulf %570, %569 : f32
    %572 = arith.addf %568, %571 : f32
    %573 = arith.mulf %569, %561 : f32
    %c67 = arith.constant 67 : index
    %574 = memref.load %arg4[%c67] : memref<120xf32, #tpu.memory_space<smem>>
    %575 = arith.mulf %574, %573 : f32
    %576 = arith.addf %572, %575 : f32
    %577 = arith.mulf %532, %534 : vector<11x11xf32>
    %578 = vector.shape_cast %577 : vector<11x11xf32> to vector<1x11x11xf32>
    %cst_139 = arith.constant dense<0.000000e+00> : vector<1xf32>
    %579 = vector.multi_reduction <add>, %578, %cst_139 [1, 2] : vector<1x11x11xf32> to vector<1xf32>
    %580 = vector.shape_cast %579 : vector<1xf32> to vector<1x1x1xf32>
    %581 = vector.extract %580[0, 0, 0] : f32 from vector<1x1x1xf32>
    %cst_140 = arith.constant 0.00826446246 : f32
    %582 = arith.mulf %581, %cst_140 : f32
    %c68 = arith.constant 68 : index
    %583 = memref.load %arg4[%c68] : memref<120xf32, #tpu.memory_space<smem>>
    %584 = arith.mulf %583, %582 : f32
    %585 = arith.addf %576, %584 : f32
    %586 = arith.mulf %582, %582 : f32
    %c69 = arith.constant 69 : index
    %587 = memref.load %arg4[%c69] : memref<120xf32, #tpu.memory_space<smem>>
    %588 = arith.mulf %587, %586 : f32
    %589 = arith.addf %585, %588 : f32
    %590 = arith.mulf %586, %582 : f32
    %c70 = arith.constant 70 : index
    %591 = memref.load %arg4[%c70] : memref<120xf32, #tpu.memory_space<smem>>
    %592 = arith.mulf %591, %590 : f32
    %593 = arith.addf %589, %592 : f32
    %594 = arith.mulf %590, %582 : f32
    %c71 = arith.constant 71 : index
    %595 = memref.load %arg4[%c71] : memref<120xf32, #tpu.memory_space<smem>>
    %596 = arith.mulf %595, %594 : f32
    %597 = arith.addf %593, %596 : f32
    %598 = vector.extract_strided_slice %195 {offsets = [0, 66], sizes = [11, 11], strides = [1, 1]} : vector<11x110xf32> to vector<11x11xf32>
    %cst_141 = arith.constant dense<0.000000e+00> : vector<11x11xf32>
    %599 = tpu.matmul %598, %598, %cst_141 {dimension_numbers = #tpu.dot_dimension_numbers<[1], [0], [0], [1], [0, 0, 1, 1], [], []>, precision = #tpu.contract_precision<fp32>} : vector<11x11xf32>, vector<11x11xf32>, vector<11x11xf32> -> vector<11x11xf32>
    %600 = tpu.transpose %598, [1, 0] : vector<11x11xf32> -> vector<11x11xf32>
    %601 = tpu.transpose %599, [1, 0] : vector<11x11xf32> -> vector<11x11xf32>
    %602 = arith.mulf %598, %600 : vector<11x11xf32>
    %603 = vector.shape_cast %602 : vector<11x11xf32> to vector<1x11x11xf32>
    %cst_142 = arith.constant dense<0.000000e+00> : vector<1xf32>
    %604 = vector.multi_reduction <add>, %603, %cst_142 [1, 2] : vector<1x11x11xf32> to vector<1xf32>
    %605 = vector.shape_cast %604 : vector<1xf32> to vector<1x1x1xf32>
    %606 = vector.extract %605[0, 0, 0] : f32 from vector<1x1x1xf32>
    %cst_143 = arith.constant 0.00826446246 : f32
    %607 = arith.mulf %606, %cst_143 : f32
    %c72 = arith.constant 72 : index
    %608 = memref.load %arg4[%c72] : memref<120xf32, #tpu.memory_space<smem>>
    %609 = arith.mulf %608, %607 : f32
    %610 = arith.addf %597, %609 : f32
    %611 = arith.mulf %607, %607 : f32
    %c73 = arith.constant 73 : index
    %612 = memref.load %arg4[%c73] : memref<120xf32, #tpu.memory_space<smem>>
    %613 = arith.mulf %612, %611 : f32
    %614 = arith.addf %610, %613 : f32
    %615 = arith.mulf %611, %607 : f32
    %c74 = arith.constant 74 : index
    %616 = memref.load %arg4[%c74] : memref<120xf32, #tpu.memory_space<smem>>
    %617 = arith.mulf %616, %615 : f32
    %618 = arith.addf %614, %617 : f32
    %619 = arith.mulf %615, %607 : f32
    %c75 = arith.constant 75 : index
    %620 = memref.load %arg4[%c75] : memref<120xf32, #tpu.memory_space<smem>>
    %621 = arith.mulf %620, %619 : f32
    %622 = arith.addf %618, %621 : f32
    %623 = arith.mulf %599, %600 : vector<11x11xf32>
    %624 = vector.shape_cast %623 : vector<11x11xf32> to vector<1x11x11xf32>
    %cst_144 = arith.constant dense<0.000000e+00> : vector<1xf32>
    %625 = vector.multi_reduction <add>, %624, %cst_144 [1, 2] : vector<1x11x11xf32> to vector<1xf32>
    %626 = vector.shape_cast %625 : vector<1xf32> to vector<1x1x1xf32>
    %627 = vector.extract %626[0, 0, 0] : f32 from vector<1x1x1xf32>
    %cst_145 = arith.constant 0.00826446246 : f32
    %628 = arith.mulf %627, %cst_145 : f32
    %c76 = arith.constant 76 : index
    %629 = memref.load %arg4[%c76] : memref<120xf32, #tpu.memory_space<smem>>
    %630 = arith.mulf %629, %628 : f32
    %631 = arith.addf %622, %630 : f32
    %632 = arith.mulf %628, %628 : f32
    %c77 = arith.constant 77 : index
    %633 = memref.load %arg4[%c77] : memref<120xf32, #tpu.memory_space<smem>>
    %634 = arith.mulf %633, %632 : f32
    %635 = arith.addf %631, %634 : f32
    %636 = arith.mulf %632, %628 : f32
    %c78 = arith.constant 78 : index
    %637 = memref.load %arg4[%c78] : memref<120xf32, #tpu.memory_space<smem>>
    %638 = arith.mulf %637, %636 : f32
    %639 = arith.addf %635, %638 : f32
    %640 = arith.mulf %636, %628 : f32
    %c79 = arith.constant 79 : index
    %641 = memref.load %arg4[%c79] : memref<120xf32, #tpu.memory_space<smem>>
    %642 = arith.mulf %641, %640 : f32
    %643 = arith.addf %639, %642 : f32
    %644 = arith.mulf %599, %601 : vector<11x11xf32>
    %645 = vector.shape_cast %644 : vector<11x11xf32> to vector<1x11x11xf32>
    %cst_146 = arith.constant dense<0.000000e+00> : vector<1xf32>
    %646 = vector.multi_reduction <add>, %645, %cst_146 [1, 2] : vector<1x11x11xf32> to vector<1xf32>
    %647 = vector.shape_cast %646 : vector<1xf32> to vector<1x1x1xf32>
    %648 = vector.extract %647[0, 0, 0] : f32 from vector<1x1x1xf32>
    %cst_147 = arith.constant 0.00826446246 : f32
    %649 = arith.mulf %648, %cst_147 : f32
    %c80 = arith.constant 80 : index
    %650 = memref.load %arg4[%c80] : memref<120xf32, #tpu.memory_space<smem>>
    %651 = arith.mulf %650, %649 : f32
    %652 = arith.addf %643, %651 : f32
    %653 = arith.mulf %649, %649 : f32
    %c81 = arith.constant 81 : index
    %654 = memref.load %arg4[%c81] : memref<120xf32, #tpu.memory_space<smem>>
    %655 = arith.mulf %654, %653 : f32
    %656 = arith.addf %652, %655 : f32
    %657 = arith.mulf %653, %649 : f32
    %c82 = arith.constant 82 : index
    %658 = memref.load %arg4[%c82] : memref<120xf32, #tpu.memory_space<smem>>
    %659 = arith.mulf %658, %657 : f32
    %660 = arith.addf %656, %659 : f32
    %661 = arith.mulf %657, %649 : f32
    %c83 = arith.constant 83 : index
    %662 = memref.load %arg4[%c83] : memref<120xf32, #tpu.memory_space<smem>>
    %663 = arith.mulf %662, %661 : f32
    %664 = arith.addf %660, %663 : f32
    %665 = vector.extract_strided_slice %195 {offsets = [0, 77], sizes = [11, 11], strides = [1, 1]} : vector<11x110xf32> to vector<11x11xf32>
    %cst_148 = arith.constant dense<0.000000e+00> : vector<11x11xf32>
    %666 = tpu.matmul %665, %665, %cst_148 {dimension_numbers = #tpu.dot_dimension_numbers<[1], [0], [0], [1], [0, 0, 1, 1], [], []>, precision = #tpu.contract_precision<fp32>} : vector<11x11xf32>, vector<11x11xf32>, vector<11x11xf32> -> vector<11x11xf32>
    %667 = tpu.transpose %665, [1, 0] : vector<11x11xf32> -> vector<11x11xf32>
    %668 = tpu.transpose %666, [1, 0] : vector<11x11xf32> -> vector<11x11xf32>
    %669 = arith.mulf %665, %667 : vector<11x11xf32>
    %670 = vector.shape_cast %669 : vector<11x11xf32> to vector<1x11x11xf32>
    %cst_149 = arith.constant dense<0.000000e+00> : vector<1xf32>
    %671 = vector.multi_reduction <add>, %670, %cst_149 [1, 2] : vector<1x11x11xf32> to vector<1xf32>
    %672 = vector.shape_cast %671 : vector<1xf32> to vector<1x1x1xf32>
    %673 = vector.extract %672[0, 0, 0] : f32 from vector<1x1x1xf32>
    %cst_150 = arith.constant 0.00826446246 : f32
    %674 = arith.mulf %673, %cst_150 : f32
    %c84 = arith.constant 84 : index
    %675 = memref.load %arg4[%c84] : memref<120xf32, #tpu.memory_space<smem>>
    %676 = arith.mulf %675, %674 : f32
    %677 = arith.addf %664, %676 : f32
    %678 = arith.mulf %674, %674 : f32
    %c85 = arith.constant 85 : index
    %679 = memref.load %arg4[%c85] : memref<120xf32, #tpu.memory_space<smem>>
    %680 = arith.mulf %679, %678 : f32
    %681 = arith.addf %677, %680 : f32
    %682 = arith.mulf %678, %674 : f32
    %c86 = arith.constant 86 : index
    %683 = memref.load %arg4[%c86] : memref<120xf32, #tpu.memory_space<smem>>
    %684 = arith.mulf %683, %682 : f32
    %685 = arith.addf %681, %684 : f32
    %686 = arith.mulf %682, %674 : f32
    %c87 = arith.constant 87 : index
    %687 = memref.load %arg4[%c87] : memref<120xf32, #tpu.memory_space<smem>>
    %688 = arith.mulf %687, %686 : f32
    %689 = arith.addf %685, %688 : f32
    %690 = arith.mulf %666, %667 : vector<11x11xf32>
    %691 = vector.shape_cast %690 : vector<11x11xf32> to vector<1x11x11xf32>
    %cst_151 = arith.constant dense<0.000000e+00> : vector<1xf32>
    %692 = vector.multi_reduction <add>, %691, %cst_151 [1, 2] : vector<1x11x11xf32> to vector<1xf32>
    %693 = vector.shape_cast %692 : vector<1xf32> to vector<1x1x1xf32>
    %694 = vector.extract %693[0, 0, 0] : f32 from vector<1x1x1xf32>
    %cst_152 = arith.constant 0.00826446246 : f32
    %695 = arith.mulf %694, %cst_152 : f32
    %c88 = arith.constant 88 : index
    %696 = memref.load %arg4[%c88] : memref<120xf32, #tpu.memory_space<smem>>
    %697 = arith.mulf %696, %695 : f32
    %698 = arith.addf %689, %697 : f32
    %699 = arith.mulf %695, %695 : f32
    %c89 = arith.constant 89 : index
    %700 = memref.load %arg4[%c89] : memref<120xf32, #tpu.memory_space<smem>>
    %701 = arith.mulf %700, %699 : f32
    %702 = arith.addf %698, %701 : f32
    %703 = arith.mulf %699, %695 : f32
    %c90 = arith.constant 90 : index
    %704 = memref.load %arg4[%c90] : memref<120xf32, #tpu.memory_space<smem>>
    %705 = arith.mulf %704, %703 : f32
    %706 = arith.addf %702, %705 : f32
    %707 = arith.mulf %703, %695 : f32
    %c91 = arith.constant 91 : index
    %708 = memref.load %arg4[%c91] : memref<120xf32, #tpu.memory_space<smem>>
    %709 = arith.mulf %708, %707 : f32
    %710 = arith.addf %706, %709 : f32
    %711 = arith.mulf %666, %668 : vector<11x11xf32>
    %712 = vector.shape_cast %711 : vector<11x11xf32> to vector<1x11x11xf32>
    %cst_153 = arith.constant dense<0.000000e+00> : vector<1xf32>
    %713 = vector.multi_reduction <add>, %712, %cst_153 [1, 2] : vector<1x11x11xf32> to vector<1xf32>
    %714 = vector.shape_cast %713 : vector<1xf32> to vector<1x1x1xf32>
    %715 = vector.extract %714[0, 0, 0] : f32 from vector<1x1x1xf32>
    %cst_154 = arith.constant 0.00826446246 : f32
    %716 = arith.mulf %715, %cst_154 : f32
    %c92 = arith.constant 92 : index
    %717 = memref.load %arg4[%c92] : memref<120xf32, #tpu.memory_space<smem>>
    %718 = arith.mulf %717, %716 : f32
    %719 = arith.addf %710, %718 : f32
    %720 = arith.mulf %716, %716 : f32
    %c93 = arith.constant 93 : index
    %721 = memref.load %arg4[%c93] : memref<120xf32, #tpu.memory_space<smem>>
    %722 = arith.mulf %721, %720 : f32
    %723 = arith.addf %719, %722 : f32
    %724 = arith.mulf %720, %716 : f32
    %c94 = arith.constant 94 : index
    %725 = memref.load %arg4[%c94] : memref<120xf32, #tpu.memory_space<smem>>
    %726 = arith.mulf %725, %724 : f32
    %727 = arith.addf %723, %726 : f32
    %728 = arith.mulf %724, %716 : f32
    %c95 = arith.constant 95 : index
    %729 = memref.load %arg4[%c95] : memref<120xf32, #tpu.memory_space<smem>>
    %730 = arith.mulf %729, %728 : f32
    %731 = arith.addf %727, %730 : f32
    %732 = vector.extract_strided_slice %195 {offsets = [0, 88], sizes = [11, 11], strides = [1, 1]} : vector<11x110xf32> to vector<11x11xf32>
    %cst_155 = arith.constant dense<0.000000e+00> : vector<11x11xf32>
    %733 = tpu.matmul %732, %732, %cst_155 {dimension_numbers = #tpu.dot_dimension_numbers<[1], [0], [0], [1], [0, 0, 1, 1], [], []>, precision = #tpu.contract_precision<fp32>} : vector<11x11xf32>, vector<11x11xf32>, vector<11x11xf32> -> vector<11x11xf32>
    %734 = tpu.transpose %732, [1, 0] : vector<11x11xf32> -> vector<11x11xf32>
    %735 = tpu.transpose %733, [1, 0] : vector<11x11xf32> -> vector<11x11xf32>
    %736 = arith.mulf %732, %734 : vector<11x11xf32>
    %737 = vector.shape_cast %736 : vector<11x11xf32> to vector<1x11x11xf32>
    %cst_156 = arith.constant dense<0.000000e+00> : vector<1xf32>
    %738 = vector.multi_reduction <add>, %737, %cst_156 [1, 2] : vector<1x11x11xf32> to vector<1xf32>
    %739 = vector.shape_cast %738 : vector<1xf32> to vector<1x1x1xf32>
    %740 = vector.extract %739[0, 0, 0] : f32 from vector<1x1x1xf32>
    %cst_157 = arith.constant 0.00826446246 : f32
    %741 = arith.mulf %740, %cst_157 : f32
    %c96 = arith.constant 96 : index
    %742 = memref.load %arg4[%c96] : memref<120xf32, #tpu.memory_space<smem>>
    %743 = arith.mulf %742, %741 : f32
    %744 = arith.addf %731, %743 : f32
    %745 = arith.mulf %741, %741 : f32
    %c97 = arith.constant 97 : index
    %746 = memref.load %arg4[%c97] : memref<120xf32, #tpu.memory_space<smem>>
    %747 = arith.mulf %746, %745 : f32
    %748 = arith.addf %744, %747 : f32
    %749 = arith.mulf %745, %741 : f32
    %c98 = arith.constant 98 : index
    %750 = memref.load %arg4[%c98] : memref<120xf32, #tpu.memory_space<smem>>
    %751 = arith.mulf %750, %749 : f32
    %752 = arith.addf %748, %751 : f32
    %753 = arith.mulf %749, %741 : f32
    %c99 = arith.constant 99 : index
    %754 = memref.load %arg4[%c99] : memref<120xf32, #tpu.memory_space<smem>>
    %755 = arith.mulf %754, %753 : f32
    %756 = arith.addf %752, %755 : f32
    %757 = arith.mulf %733, %734 : vector<11x11xf32>
    %758 = vector.shape_cast %757 : vector<11x11xf32> to vector<1x11x11xf32>
    %cst_158 = arith.constant dense<0.000000e+00> : vector<1xf32>
    %759 = vector.multi_reduction <add>, %758, %cst_158 [1, 2] : vector<1x11x11xf32> to vector<1xf32>
    %760 = vector.shape_cast %759 : vector<1xf32> to vector<1x1x1xf32>
    %761 = vector.extract %760[0, 0, 0] : f32 from vector<1x1x1xf32>
    %cst_159 = arith.constant 0.00826446246 : f32
    %762 = arith.mulf %761, %cst_159 : f32
    %c100 = arith.constant 100 : index
    %763 = memref.load %arg4[%c100] : memref<120xf32, #tpu.memory_space<smem>>
    %764 = arith.mulf %763, %762 : f32
    %765 = arith.addf %756, %764 : f32
    %766 = arith.mulf %762, %762 : f32
    %c101 = arith.constant 101 : index
    %767 = memref.load %arg4[%c101] : memref<120xf32, #tpu.memory_space<smem>>
    %768 = arith.mulf %767, %766 : f32
    %769 = arith.addf %765, %768 : f32
    %770 = arith.mulf %766, %762 : f32
    %c102 = arith.constant 102 : index
    %771 = memref.load %arg4[%c102] : memref<120xf32, #tpu.memory_space<smem>>
    %772 = arith.mulf %771, %770 : f32
    %773 = arith.addf %769, %772 : f32
    %774 = arith.mulf %770, %762 : f32
    %c103 = arith.constant 103 : index
    %775 = memref.load %arg4[%c103] : memref<120xf32, #tpu.memory_space<smem>>
    %776 = arith.mulf %775, %774 : f32
    %777 = arith.addf %773, %776 : f32
    %778 = arith.mulf %733, %735 : vector<11x11xf32>
    %779 = vector.shape_cast %778 : vector<11x11xf32> to vector<1x11x11xf32>
    %cst_160 = arith.constant dense<0.000000e+00> : vector<1xf32>
    %780 = vector.multi_reduction <add>, %779, %cst_160 [1, 2] : vector<1x11x11xf32> to vector<1xf32>
    %781 = vector.shape_cast %780 : vector<1xf32> to vector<1x1x1xf32>
    %782 = vector.extract %781[0, 0, 0] : f32 from vector<1x1x1xf32>
    %cst_161 = arith.constant 0.00826446246 : f32
    %783 = arith.mulf %782, %cst_161 : f32
    %c104 = arith.constant 104 : index
    %784 = memref.load %arg4[%c104] : memref<120xf32, #tpu.memory_space<smem>>
    %785 = arith.mulf %784, %783 : f32
    %786 = arith.addf %777, %785 : f32
    %787 = arith.mulf %783, %783 : f32
    %c105 = arith.constant 105 : index
    %788 = memref.load %arg4[%c105] : memref<120xf32, #tpu.memory_space<smem>>
    %789 = arith.mulf %788, %787 : f32
    %790 = arith.addf %786, %789 : f32
    %791 = arith.mulf %787, %783 : f32
    %c106 = arith.constant 106 : index
    %792 = memref.load %arg4[%c106] : memref<120xf32, #tpu.memory_space<smem>>
    %793 = arith.mulf %792, %791 : f32
    %794 = arith.addf %790, %793 : f32
    %795 = arith.mulf %791, %783 : f32
    %c107 = arith.constant 107 : index
    %796 = memref.load %arg4[%c107] : memref<120xf32, #tpu.memory_space<smem>>
    %797 = arith.mulf %796, %795 : f32
    %798 = arith.addf %794, %797 : f32
    %799 = vector.extract_strided_slice %195 {offsets = [0, 99], sizes = [11, 11], strides = [1, 1]} : vector<11x110xf32> to vector<11x11xf32>
    %cst_162 = arith.constant dense<0.000000e+00> : vector<11x11xf32>
    %800 = tpu.matmul %799, %799, %cst_162 {dimension_numbers = #tpu.dot_dimension_numbers<[1], [0], [0], [1], [0, 0, 1, 1], [], []>, precision = #tpu.contract_precision<fp32>} : vector<11x11xf32>, vector<11x11xf32>, vector<11x11xf32> -> vector<11x11xf32>
    %801 = tpu.transpose %799, [1, 0] : vector<11x11xf32> -> vector<11x11xf32>
    %802 = tpu.transpose %800, [1, 0] : vector<11x11xf32> -> vector<11x11xf32>
    %803 = arith.mulf %799, %801 : vector<11x11xf32>
    %804 = vector.shape_cast %803 : vector<11x11xf32> to vector<1x11x11xf32>
    %cst_163 = arith.constant dense<0.000000e+00> : vector<1xf32>
    %805 = vector.multi_reduction <add>, %804, %cst_163 [1, 2] : vector<1x11x11xf32> to vector<1xf32>
    %806 = vector.shape_cast %805 : vector<1xf32> to vector<1x1x1xf32>
    %807 = vector.extract %806[0, 0, 0] : f32 from vector<1x1x1xf32>
    %cst_164 = arith.constant 0.00826446246 : f32
    %808 = arith.mulf %807, %cst_164 : f32
    %c108 = arith.constant 108 : index
    %809 = memref.load %arg4[%c108] : memref<120xf32, #tpu.memory_space<smem>>
    %810 = arith.mulf %809, %808 : f32
    %811 = arith.addf %798, %810 : f32
    %812 = arith.mulf %808, %808 : f32
    %c109 = arith.constant 109 : index
    %813 = memref.load %arg4[%c109] : memref<120xf32, #tpu.memory_space<smem>>
    %814 = arith.mulf %813, %812 : f32
    %815 = arith.addf %811, %814 : f32
    %816 = arith.mulf %812, %808 : f32
    %c110 = arith.constant 110 : index
    %817 = memref.load %arg4[%c110] : memref<120xf32, #tpu.memory_space<smem>>
    %818 = arith.mulf %817, %816 : f32
    %819 = arith.addf %815, %818 : f32
    %820 = arith.mulf %816, %808 : f32
    %c111 = arith.constant 111 : index
    %821 = memref.load %arg4[%c111] : memref<120xf32, #tpu.memory_space<smem>>
    %822 = arith.mulf %821, %820 : f32
    %823 = arith.addf %819, %822 : f32
    %824 = arith.mulf %800, %801 : vector<11x11xf32>
    %825 = vector.shape_cast %824 : vector<11x11xf32> to vector<1x11x11xf32>
    %cst_165 = arith.constant dense<0.000000e+00> : vector<1xf32>
    %826 = vector.multi_reduction <add>, %825, %cst_165 [1, 2] : vector<1x11x11xf32> to vector<1xf32>
    %827 = vector.shape_cast %826 : vector<1xf32> to vector<1x1x1xf32>
    %828 = vector.extract %827[0, 0, 0] : f32 from vector<1x1x1xf32>
    %cst_166 = arith.constant 0.00826446246 : f32
    %829 = arith.mulf %828, %cst_166 : f32
    %c112 = arith.constant 112 : index
    %830 = memref.load %arg4[%c112] : memref<120xf32, #tpu.memory_space<smem>>
    %831 = arith.mulf %830, %829 : f32
    %832 = arith.addf %823, %831 : f32
    %833 = arith.mulf %829, %829 : f32
    %c113 = arith.constant 113 : index
    %834 = memref.load %arg4[%c113] : memref<120xf32, #tpu.memory_space<smem>>
    %835 = arith.mulf %834, %833 : f32
    %836 = arith.addf %832, %835 : f32
    %837 = arith.mulf %833, %829 : f32
    %c114 = arith.constant 114 : index
    %838 = memref.load %arg4[%c114] : memref<120xf32, #tpu.memory_space<smem>>
    %839 = arith.mulf %838, %837 : f32
    %840 = arith.addf %836, %839 : f32
    %841 = arith.mulf %837, %829 : f32
    %c115 = arith.constant 115 : index
    %842 = memref.load %arg4[%c115] : memref<120xf32, #tpu.memory_space<smem>>
    %843 = arith.mulf %842, %841 : f32
    %844 = arith.addf %840, %843 : f32
    %845 = arith.mulf %800, %802 : vector<11x11xf32>
    %846 = vector.shape_cast %845 : vector<11x11xf32> to vector<1x11x11xf32>
    %cst_167 = arith.constant dense<0.000000e+00> : vector<1xf32>
    %847 = vector.multi_reduction <add>, %846, %cst_167 [1, 2] : vector<1x11x11xf32> to vector<1xf32>
    %848 = vector.shape_cast %847 : vector<1xf32> to vector<1x1x1xf32>
    %849 = vector.extract %848[0, 0, 0] : f32 from vector<1x1x1xf32>
    %cst_168 = arith.constant 0.00826446246 : f32
    %850 = arith.mulf %849, %cst_168 : f32
    %c116 = arith.constant 116 : index
    %851 = memref.load %arg4[%c116] : memref<120xf32, #tpu.memory_space<smem>>
    %852 = arith.mulf %851, %850 : f32
    %853 = arith.addf %844, %852 : f32
    %854 = arith.mulf %850, %850 : f32
    %c117 = arith.constant 117 : index
    %855 = memref.load %arg4[%c117] : memref<120xf32, #tpu.memory_space<smem>>
    %856 = arith.mulf %855, %854 : f32
    %857 = arith.addf %853, %856 : f32
    %858 = arith.mulf %854, %850 : f32
    %c118 = arith.constant 118 : index
    %859 = memref.load %arg4[%c118] : memref<120xf32, #tpu.memory_space<smem>>
    %860 = arith.mulf %859, %858 : f32
    %861 = arith.addf %857, %860 : f32
    %862 = arith.mulf %858, %850 : f32
    %c119 = arith.constant 119 : index
    %863 = memref.load %arg4[%c119] : memref<120xf32, #tpu.memory_space<smem>>
    %864 = arith.mulf %863, %862 : f32
    %865 = arith.addf %861, %864 : f32
    %866 = vector.broadcast %865 : f32 to vector<1x1xf32>
    %cst_169 = arith.constant 0.000000e+00 : f32
    %867 = vector.broadcast %cst_169 : f32 to vector<1x1xf32>
    %868 = arith.cmpf olt, %866, %867 : vector<1x1xf32>
    %cst_170 = arith.constant 0.000000e+00 : f32
    %869 = vector.broadcast %cst_170 : f32 to vector<1x1xf32>
    %870 = arith.subf %869, %866 : vector<1x1xf32>
    %871 = arith.select %868, %866, %870 : vector<1x1xi1>, vector<1x1xf32>
    %872 = math.exp %871 : vector<1x1xf32>
    %cst_171 = arith.constant 1.000000e+00 : f32
    %873 = vector.broadcast %cst_171 : f32 to vector<1x1xf32>
    %874 = arith.addf %873, %872 : vector<1x1xf32>
    %875 = arith.divf %872, %874 : vector<1x1xf32>
    %cst_172 = arith.constant 1.000000e+00 : f32
    %876 = vector.broadcast %cst_172 : f32 to vector<1x1xf32>
    %877 = arith.addf %876, %872 : vector<1x1xf32>
    %cst_173 = arith.constant 1.000000e+00 : f32
    %878 = vector.broadcast %cst_173 : f32 to vector<1x1xf32>
    %879 = arith.divf %878, %877 : vector<1x1xf32>
    %880 = arith.select %868, %875, %879 : vector<1x1xi1>, vector<1x1xf32>
    %881 = vector.shape_cast %880 : vector<1x1xf32> to vector<1x1x1xf32>
    %c0_174 = arith.constant 0 : index
    %c0_175 = arith.constant 0 : index
    %c0_176 = arith.constant 0 : index
    %882 = vector.load %arg5[%c0_174, %c0_175, %c0_176] : memref<1x1x1xf32, #tpu.memory_space<vmem>>, vector<1x1x1xf32>
    tpu.vector_store %arg5[%c0_174, %c0_175, %c0_176], %881 {strides = array<i32>} : memref<1x1x1xf32, #tpu.memory_space<vmem>>, vector<1x1x1xf32>,
    return
  }
  func.func @transform_0(%arg0: i32) -> (i32, i32, i32, i32) {
    %c0_i32 = arith.constant 0 : i32
    %c0_i32_0 = arith.constant 0 : i32
    %c0_i32_1 = arith.constant 0 : i32
    %c0_i32_2 = arith.constant 0 : i32
    return %arg0, %c0_i32, %c0_i32_0, %c0_i32_1 : i32, i32, i32, i32
  }
  func.func @transform_1(%arg0: i32) -> (i32, i32) {
    %c0_i32 = arith.constant 0 : i32
    %c0_i32_0 = arith.constant 0 : i32
    %c0_i32_1 = arith.constant 0 : i32
    return %c0_i32, %c0_i32_0 : i32, i32
  }
  func.func @transform_2(%arg0: i32) -> (i32, i32) {
    %c0_i32 = arith.constant 0 : i32
    %c0_i32_0 = arith.constant 0 : i32
    %c0_i32_1 = arith.constant 0 : i32
    return %c0_i32, %c0_i32_0 : i32, i32
  }
  func.func @transform_3(%arg0: i32) -> i32 {
    %c0_i32 = arith.constant 0 : i32
    %c0_i32_0 = arith.constant 0 : i32
    return %c0_i32 : i32
  }
  func.func @transform_4(%arg0: i32) -> (i32, i32, i32) {
    %c0_i32 = arith.constant 0 : i32
    %c0_i32_0 = arith.constant 0 : i32
    %c0_i32_1 = arith.constant 0 : i32
    return %arg0, %c0_i32, %c0_i32_0 : i32, i32, i32
  }
}

</mosaic_0001>

<llo_original>
// kernel: sum_term_forward.1
$region0: #{sum_term_forward.1}
  #allocation0 [shape = 'u32[]', space=smem, size = 0x4, offset = 0x4, fixed_abs, tag = 'smem constant byte address 0x4 - core index']
  #allocation1 [shape = 'u32[144,128]{1,0:T(1,128)}', space=vmem, size = 0x12000, scoped, tag = 'internal scratch']
  %s0 = inlined_call_operand.vmem [shape: f32[2,6,16,110], index: 0, kind: input, shape index: {}]
  %s1 = inlined_call_operand.vmem [shape: f32[36,110], index: 1, kind: input, shape index: {}]
  %s2 = inlined_call_operand.vmem [shape: f32[1,110], index: 2, kind: input, shape index: {}]
  %s3 = inlined_call_operand.vmem [shape: f32[120], index: 3, kind: input, shape index: {}]
  %s4 = inlined_call_operand.vmem [shape: f32[2,1,1], index: 4, kind: output, shape index: {}]
  %s5 = sld [smem:[#allocation0]]
  $region53: #{sum_term_forward.1} parent=0
    _
  %s7 = ssub.s32 1, %s5
  %s8 = scalar_select 0, %s7, %s5
  $region1: #{sum_term_forward.1} parent=0
    #allocation2 [shape = 'u8[512]{0}', space=smem, size = 0x200, scoped, tag = 'input window, operand 3, single buffered']
    #allocation3 [shape = 's32[2]{0}', space=sflag, size = 0x8, scoped, tag = 'scoped memory for sum_term_forward.1']
    %9 = vsyncpa [#allocation3], 0
    loop: start=0, step=1, limit=4
    $region2: #{sum_term_forward.1} parent=1 // loop_pre_header
      _
    $region3: #{sum_term_forward.1} parent=1 // loop_header
      %s11 = sphi 0, %s15
      %p12 = scmp.ge.s32.totalorder %s11, 4
      %s21 = sphi 0, %s23
      %s24 = sphi 0, %s21
      %s25 = sphi 0, %s24
      %s41 = sphi 0, %s25
      %s45 = sphi 0, %s45
      %s47 = sphi 0, %s45
      %s48 = sphi 0, %s47
      %s62 = sphi 0, %s48
      %s66 = sphi 0, %s66
      %s68 = sphi 0, %s66
      %s69 = sphi 0, %s68
      %s83 = sphi 0, %s69
      %s87 = sphi 0, %s87
      %s89 = sphi 0, %s87
      %s90 = sphi 0, %s89
      %s104 = sphi 0, %s90
      %s110 = sphi 0, %s112
      %s113 = sphi 0, %s110
      %s114 = sphi 0, %s113
      %s130 = sphi 0, %s114
    $region4: #{sum_term_forward.1} parent=1 // loop_header_branch
      %14 = sbr.rel (%p12) target = $region8
    $region5: #{sum_term_forward.1} parent=1 // loop_body
      %s16 = ssub.s32 %s11, 1
      %s17 = ssub.s32 %s11, 2
      %s18 = sadd.s32 %s11, 1
      %s19 = ssub.s32 %s11, %s18
      %p20 = scmp.eq.s32.totalorder %s19, 0
      %s22 = sadd.s32 %s21, 1
      %s23 = scalar_select %p20, %s21, %s22
      %p26 = pneg %p20
      %p27 = scmp.eq.s32.totalorder %s11, 1
      %p28 = por %p26, %p27
      %p29 = scmp.ne.s32.totalorder %s21, %s24
      %p30 = scmp.eq.s32.totalorder %s11, 0
      %p31 = por %p29, %p30
      %p32 = scmp.ne.s32.totalorder %s21, %s24
      %p33 = scmp.eq.s32.totalorder %s16, 1
      %p34 = por %p32, %p33
      %p35 = scmp.ne.s32.totalorder %s24, %s25
      %p36 = scmp.eq.s32.totalorder %s16, 0
      %p37 = por %p35, %p36
      %p38 = scmp.ne.s32.totalorder %s24, %s25
      %p39 = scmp.eq.s32.totalorder %s17, 1
      %p40 = por %p38, %p39
      %p42 = scmp.ne.s32.totalorder %s25, %s41
      %p43 = scmp.eq.s32.totalorder %s17, 0
      %p44 = por %p42, %p43
      %s46 = sadd.s32 %s45, 1
      %p49 = scmp.eq.s32.totalorder %s11, 1
      %p50 = scmp.ne.s32.totalorder %s45, %s47
      %p51 = scmp.eq.s32.totalorder %s11, 0
      %p52 = por %p50, %p51
      %p53 = scmp.ne.s32.totalorder %s45, %s47
      %p54 = scmp.eq.s32.totalorder %s16, 1
      %p55 = por %p53, %p54
      %p56 = scmp.ne.s32.totalorder %s47, %s48
      %p57 = scmp.eq.s32.totalorder %s16, 0
      %p58 = por %p56, %p57
      %p59 = scmp.ne.s32.totalorder %s47, %s48
      %p60 = scmp.eq.s32.totalorder %s17, 1
      %p61 = por %p59, %p60
      %p63 = scmp.ne.s32.totalorder %s48, %s62
      %p64 = scmp.eq.s32.totalorder %s17, 0
      %p65 = por %p63, %p64
      %s67 = sadd.s32 %s66, 1
      %p70 = scmp.eq.s32.totalorder %s11, 1
      %p71 = scmp.ne.s32.totalorder %s66, %s68
      %p72 = scmp.eq.s32.totalorder %s11, 0
      %p73 = por %p71, %p72
      %p74 = scmp.ne.s32.totalorder %s66, %s68
      %p75 = scmp.eq.s32.totalorder %s16, 1
      %p76 = por %p74, %p75
      %p77 = scmp.ne.s32.totalorder %s68, %s69
      %p78 = scmp.eq.s32.totalorder %s16, 0
      %p79 = por %p77, %p78
      %p80 = scmp.ne.s32.totalorder %s68, %s69
      %p81 = scmp.eq.s32.totalorder %s17, 1
      %p82 = por %p80, %p81
      %p84 = scmp.ne.s32.totalorder %s69, %s83
      %p85 = scmp.eq.s32.totalorder %s17, 0
      %p86 = por %p84, %p85
      %s88 = sadd.s32 %s87, 1
      %p91 = scmp.eq.s32.totalorder %s11, 1
      %p92 = scmp.ne.s32.totalorder %s87, %s89
      %p93 = scmp.eq.s32.totalorder %s11, 0
      %p94 = por %p92, %p93
      %p95 = scmp.ne.s32.totalorder %s87, %s89
      %p96 = scmp.eq.s32.totalorder %s16, 1
      %p97 = por %p95, %p96
      %p98 = scmp.ne.s32.totalorder %s89, %s90
      %p99 = scmp.eq.s32.totalorder %s16, 0
      %p100 = por %p98, %p99
      %p101 = scmp.ne.s32.totalorder %s89, %s90
      %p102 = scmp.eq.s32.totalorder %s17, 1
      %p103 = por %p101, %p102
      %p105 = scmp.ne.s32.totalorder %s90, %s104
      %p106 = scmp.eq.s32.totalorder %s17, 0
      %p107 = por %p105, %p106
      %s108 = ssub.s32 %s11, %s18
      %p109 = scmp.eq.s32.totalorder %s108, 0
      %s111 = sadd.s32 %s110, 1
      %s112 = scalar_select %p109, %s110, %s111
      %p115 = pneg %p109
      %p116 = scmp.eq.s32.totalorder %s11, 1
      %p117 = por %p115, %p116
      %p118 = scmp.ne.s32.totalorder %s110, %s113
      %p119 = scmp.eq.s32.totalorder %s11, 0
      %p120 = por %p118, %p119
      %p121 = scmp.ne.s32.totalorder %s110, %s113
      %p122 = scmp.eq.s32.totalorder %s16, 1
      %p123 = por %p121, %p122
      %p124 = scmp.ne.s32.totalorder %s113, %s114
      %p125 = scmp.eq.s32.totalorder %s16, 0
      %p126 = por %p124, %p125
      %p127 = scmp.ne.s32.totalorder %s113, %s114
      %p128 = scmp.eq.s32.totalorder %s17, 1
      %p129 = por %p127, %p128
      %p131 = scmp.ne.s32.totalorder %s114, %s130
      %p132 = scmp.eq.s32.totalorder %s17, 0
      %p133 = por %p131, %p132
      %p134 = scmp.le.s32.totalorder 1, %s11
      %p135 = scmp.lt.s32.totalorder %s11, 3
      %p136 = pnand %p134, %p135
      %p137 = pneg %p136
      // Predicated region
      $region9: #{sum_term_forward.1} parent=5 // pred_check
        _
      $region10: #{sum_term_forward.1} parent=5 // pred_check_branch
        %139 = sbr.rel (%p136) target = $region12
      $region11: #{sum_term_forward.1} parent=5 // pred_region
        %s140 = ssub.s32 %s11, 1
        // Predicated region
        $region13: #{sum_term_forward.1} parent=11 // pred_check
          %p141 = pneg %p58
        $region14: #{sum_term_forward.1} parent=11 // pred_check_branch
          %143 = sbr.rel (%p141) target = $region16
        $region15: #{sum_term_forward.1} parent=11 // pred_region
          _
        $region16: #{sum_term_forward.1} parent=11 // pred_fallthru
          _
        // Predicated region
        $region17: #{sum_term_forward.1} parent=11 // pred_check
          %p144 = pneg %p79
        $region18: #{sum_term_forward.1} parent=11 // pred_check_branch
          %146 = sbr.rel (%p144) target = $region20
        $region19: #{sum_term_forward.1} parent=11 // pred_region
          _
        $region20: #{sum_term_forward.1} parent=11 // pred_fallthru
          _
        // Predicated region
        $region21: #{sum_term_forward.1} parent=11 // pred_check
          %p147 = pneg %p100
        $region22: #{sum_term_forward.1} parent=11 // pred_check_branch
          %149 = sbr.rel (%p147) target = $region24
        $region23: #{sum_term_forward.1} parent=11 // pred_region
          %s151 = ssub.s32 16, 16
          %152 = vsyncadd [#allocation3], %s151
          %s154 = sshll.u32 %s3, 4
          %s155 = int_to_ptr.vmem [resolvable:$true] %s154
          %157 = dma.vmem_to_smem %s155, 16, [#allocation2], [#allocation3]
        $region24: #{sum_term_forward.1} parent=11 // pred_fallthru
          _
      $region12: #{sum_term_forward.1} parent=5 // pred_fallthru
        _
      %p158 = scmp.lt.s32.totalorder %s11, 2
      // Predicated region
      $region25: #{sum_term_forward.1} parent=5 // pred_check
        %p159 = pneg %p158
      $region26: #{sum_term_forward.1} parent=5 // pred_check_branch
        %161 = sbr.rel (%p159) target = $region28
      $region27: #{sum_term_forward.1} parent=5 // pred_region
        // Predicated region
        $region29: #{sum_term_forward.1} parent=27 // pred_check
          %p162 = pneg %p31
        $region30: #{sum_term_forward.1} parent=27 // pred_check_branch
          %164 = sbr.rel (%p162) target = $region32
        $region31: #{sum_term_forward.1} parent=27 // pred_region
          %p165 = scmp.lt.s32.totalorder %s11, 1
          %s166 = scalar_select %p165, %s11, 1
          %s167 = smul.addr %s166, 12
          %s168 = smul.addr %s167, 8
          %s169 = scalar_lea.vmem %s0, %s168
        $region32: #{sum_term_forward.1} parent=27 // pred_fallthru
          _
      $region28: #{sum_term_forward.1} parent=5 // pred_fallthru
        _
      %p170 = scmp.le.s32.totalorder 1, %s11
      %p171 = scmp.lt.s32.totalorder %s11, 3
      %p172 = pnand %p170, %p171
      %p173 = pneg %p172
      // Predicated region
      $region33: #{sum_term_forward.1} parent=5 // pred_check
        _
      $region34: #{sum_term_forward.1} parent=5 // pred_check_branch
        %175 = sbr.rel (%p172) target = $region36
      $region35: #{sum_term_forward.1} parent=5 // pred_region
        %s176 = ssub.s32 %s11, 1
        // Predicated region
        $region37: #{sum_term_forward.1} parent=35 // pred_check
          %p177 = pneg %p100
        $region38: #{sum_term_forward.1} parent=35 // pred_check_branch
          %179 = sbr.rel (%p177) target = $region40
        $region39: #{sum_term_forward.1} parent=35 // pred_region
          %180 = dma.done [#allocation3], 16
        $region40: #{sum_term_forward.1} parent=35 // pred_fallthru
          _
        %181 = sfence
        %p182 = scmp.lt.s32.totalorder %s16, 1
        %s183 = scalar_select %p182, %s16, 1
        %s184 = smul.addr %s183, 12
        %s185 = smul.addr %s184, 8
        %s186 = scalar_lea.vmem %s0, %s185
        %p187 = pneg %p37
        %p188 = pneg %p34
        %p189 = pneg %p58
        %p190 = pneg %p55
        %p191 = pneg %p79
        %p192 = pneg %p76
        %p193 = pneg %p100
        %p194 = pneg %p97
        %p195 = pneg %p126
        %p196 = pneg %p123
        %p197 = scmp.lt.s32.totalorder %s16, 1
        %s198 = scalar_select %p197, %s16, 1
        %s199 = scalar_lea.vmem %s4, %s198
        %p200 = scmp.lt.s32.totalorder %s16, 1
        %s201 = scalar_select %p200, %s16, 1
        %s202 = smul.addr %s201, 12
        %s203 = smul.addr %s202, 8
        %s204 = scalar_lea.vmem %s0, %s203
        %p205 = scmp.lt.s32.totalorder %s16, 1
        %s206 = scalar_select %p205, %s16, 1
        %s207 = scalar_lea.vmem %s4, %s206
        %v208 = vld [vmem:[%s2] sm:$0x1]
        %v209 = vld [vmem:[%s204] sm:$0xff]
        %v210 = vld [vmem:[%s204 + $0x8] sm:$0xff]
        %s211 = scalar_lea.vmem %s204, 16
        %v212 = vld [vmem:[%s211] sm:$0xff]
        %v213 = vld [vmem:[%s211 + $0x8] sm:$0xff]
        %s214 = scalar_lea.vmem %s204, 32
        %v215 = vld [vmem:[%s214] sm:$0xff]
        %v216 = vld [vmem:[%s214 + $0x8] sm:$0xff]
        %s217 = scalar_lea.vmem %s204, 48
        %v218 = vld [vmem:[%s217] sm:$0xff]
        %v219 = vld [vmem:[%s217 + $0x8] sm:$0xff]
        %s220 = scalar_lea.vmem %s204, 64
        %v221 = vld [vmem:[%s220] sm:$0xff]
        %v222 = vld [vmem:[%s220 + $0x8] sm:$0xff]
        %s223 = scalar_lea.vmem %s204, 80
        %v224 = vld [vmem:[%s223] sm:$0xff]
        %v225 = vld [vmem:[%s223 + $0x8] sm:$0xff]
        %v226 = vld [vmem:[%s1] sm:$0x1]
        %v227 = vlaneseq
        %v228 = vshrl.u32 %v227, 7
        %v229 = vsub.s32 0, %v228
        %v230 = vrot.slane %v226, %v229
        %v231 = vmul.f32 %v209, %v230
        %v232 = vmul.f32 %v210, %v230
        %v233 = vadd.f32 %v231, 0.0
        %v234 = vadd.f32 %v232, 0.0
        %v235 = vld [vmem:[%s1 + $0x1] sm:$0x1]
        %v236 = vlaneseq
        %v237 = vshrl.u32 %v236, 7
        %v238 = vsub.s32 0, %v237
        %v239 = vrot.slane %v235, %v238
        %v240 = vmul.f32 %v212, %v239
        %v241 = vmul.f32 %v213, %v239
        %v242 = vadd.f32 %v233, %v240
        %v243 = vadd.f32 %v234, %v241
        %v244 = vld [vmem:[%s1 + $0x2] sm:$0x1]
        %v245 = vlaneseq
        %v246 = vshrl.u32 %v245, 7
        %v247 = vsub.s32 0, %v246
        %v248 = vrot.slane %v244, %v247
        %v249 = vmul.f32 %v215, %v248
        %v250 = vmul.f32 %v216, %v248
        %v251 = vadd.f32 %v242, %v249
        %v252 = vadd.f32 %v243, %v250
        %v253 = vld [vmem:[%s1 + $0x3] sm:$0x1]
        %v254 = vlaneseq
        %v255 = vshrl.u32 %v254, 7
        %v256 = vsub.s32 0, %v255
        %v257 = vrot.slane %v253, %v256
        %v258 = vmul.f32 %v218, %v257
        %v259 = vmul.f32 %v219, %v257
        %v260 = vadd.f32 %v251, %v258
        %v261 = vadd.f32 %v252, %v259
        %v262 = vld [vmem:[%s1 + $0x4] sm:$0x1]
        %v263 = vlaneseq
        %v264 = vshrl.u32 %v263, 7
        %v265 = vsub.s32 0, %v264
        %v266 = vrot.slane %v262, %v265
        %v267 = vmul.f32 %v221, %v266
        %v268 = vmul.f32 %v222, %v266
        %v269 = vadd.f32 %v260, %v267
        %v270 = vadd.f32 %v261, %v268
        %v271 = vld [vmem:[%s1 + $0x5] sm:$0x1]
        %v272 = vlaneseq
        %v273 = vshrl.u32 %v272, 7
        %v274 = vsub.s32 0, %v273
        %v275 = vrot.slane %v271, %v274
        %v276 = vmul.f32 %v224, %v275
        %v277 = vmul.f32 %v225, %v275
        %v278 = vadd.f32 %v269, %v276
        %v279 = vadd.f32 %v270, %v277
        %v280 = vld [vmem:[%s1 + $0x6] sm:$0x1]
        %v281 = vlaneseq
        %v282 = vshrl.u32 %v281, 7
        %v283 = vsub.s32 0, %v282
        %v284 = vrot.slane %v280, %v283
        %v285 = vmul.f32 %v209, %v284
        %v286 = vmul.f32 %v210, %v284
        %vm289 = vcmask 1046528
        %v290 = vrot.slane %v285, 1
        %v291 = vrot.slane %v286, 1
        %v292 = vsel %vm289, %v290, %v291
        %v295 = vadd.f32 %v278, %v292
        %v296 = vadd.f32 %v279, %v291
        %v297 = vld [vmem:[%s1 + $0x7] sm:$0x1]
        %v298 = vlaneseq
        %v299 = vshrl.u32 %v298, 7
        %v300 = vsub.s32 0, %v299
        %v301 = vrot.slane %v297, %v300
        %v302 = vmul.f32 %v212, %v301
        %v303 = vmul.f32 %v213, %v301
        %v306 = vrot.slane %v302, 1
        %v307 = vrot.slane %v303, 1
        %v308 = vsel %vm289, %v306, %v307
        %v311 = vadd.f32 %v295, %v308
        %v312 = vadd.f32 %v296, %v307
        %v313 = vld [vmem:[%s1 + $0x8] sm:$0x1]
        %v314 = vlaneseq
        %v315 = vshrl.u32 %v314, 7
        %v316 = vsub.s32 0, %v315
        %v317 = vrot.slane %v313, %v316
        %v318 = vmul.f32 %v215, %v317
        %v319 = vmul.f32 %v216, %v317
        %v322 = vrot.slane %v318, 1
        %v323 = vrot.slane %v319, 1
        %v324 = vsel %vm289, %v322, %v323
        %v327 = vadd.f32 %v311, %v324
        %v328 = vadd.f32 %v312, %v323
        %v329 = vld [vmem:[%s1 + $0x9] sm:$0x1]
        %v330 = vlaneseq
        %v331 = vshrl.u32 %v330, 7
        %v332 = vsub.s32 0, %v331
        %v333 = vrot.slane %v329, %v332
        %v334 = vmul.f32 %v218, %v333
        %v335 = vmul.f32 %v219, %v333
        %v338 = vrot.slane %v334, 1
        %v339 = vrot.slane %v335, 1
        %v340 = vsel %vm289, %v338, %v339
        %v343 = vadd.f32 %v327, %v340
        %v344 = vadd.f32 %v328, %v339
        %v345 = vld [vmem:[%s1 + $0xa] sm:$0x1]
        %v346 = vlaneseq
        %v347 = vshrl.u32 %v346, 7
        %v348 = vsub.s32 0, %v347
        %v349 = vrot.slane %v345, %v348
        %v350 = vmul.f32 %v221, %v349
        %v351 = vmul.f32 %v222, %v349
        %v354 = vrot.slane %v350, 1
        %v355 = vrot.slane %v351, 1
        %v356 = vsel %vm289, %v354, %v355
        %v359 = vadd.f32 %v343, %v356
        %v360 = vadd.f32 %v344, %v355
        %v361 = vld [vmem:[%s1 + $0xb] sm:$0x1]
        %v362 = vlaneseq
        %v363 = vshrl.u32 %v362, 7
        %v364 = vsub.s32 0, %v363
        %v365 = vrot.slane %v361, %v364
        %v366 = vmul.f32 %v224, %v365
        %v367 = vmul.f32 %v225, %v365
        %v370 = vrot.slane %v366, 1
        %v371 = vrot.slane %v367, 1
        %v372 = vsel %vm289, %v370, %v371
        %v375 = vadd.f32 %v359, %v372
        %v376 = vadd.f32 %v360, %v371
        %v377 = vld [vmem:[%s1 + $0xc] sm:$0x1]
        %v378 = vlaneseq
        %v379 = vshrl.u32 %v378, 7
        %v380 = vsub.s32 0, %v379
        %v381 = vrot.slane %v377, %v380
        %v382 = vmul.f32 %v209, %v381
        %v383 = vmul.f32 %v210, %v381
        %vm386 = vcmask 1045504
        %v387 = vrot.slane %v382, 2
        %v388 = vrot.slane %v383, 2
        %v389 = vsel %vm386, %v387, %v388
        %v392 = vadd.f32 %v375, %v389
        %v393 = vadd.f32 %v376, %v388
        %v394 = vld [vmem:[%s1 + $0xd] sm:$0x1]
        %v395 = vlaneseq
        %v396 = vshrl.u32 %v395, 7
        %v397 = vsub.s32 0, %v396
        %v398 = vrot.slane %v394, %v397
        %v399 = vmul.f32 %v212, %v398
        %v400 = vmul.f32 %v213, %v398
        %v403 = vrot.slane %v399, 2
        %v404 = vrot.slane %v400, 2
        %v405 = vsel %vm386, %v403, %v404
        %v408 = vadd.f32 %v392, %v405
        %v409 = vadd.f32 %v393, %v404
        %v410 = vld [vmem:[%s1 + $0xe] sm:$0x1]
        %v411 = vlaneseq
        %v412 = vshrl.u32 %v411, 7
        %v413 = vsub.s32 0, %v412
        %v414 = vrot.slane %v410, %v413
        %v415 = vmul.f32 %v215, %v414
        %v416 = vmul.f32 %v216, %v414
        %v419 = vrot.slane %v415, 2
        %v420 = vrot.slane %v416, 2
        %v421 = vsel %vm386, %v419, %v420
        %v424 = vadd.f32 %v408, %v421
        %v425 = vadd.f32 %v409, %v420
        %v426 = vld [vmem:[%s1 + $0xf] sm:$0x1]
        %v427 = vlaneseq
        %v428 = vshrl.u32 %v427, 7
        %v429 = vsub.s32 0, %v428
        %v430 = vrot.slane %v426, %v429
        %v431 = vmul.f32 %v218, %v430
        %v432 = vmul.f32 %v219, %v430
        %v435 = vrot.slane %v431, 2
        %v436 = vrot.slane %v432, 2
        %v437 = vsel %vm386, %v435, %v436
        %v440 = vadd.f32 %v424, %v437
        %v441 = vadd.f32 %v425, %v436
        %v442 = vld [vmem:[%s1 + $0x10] sm:$0x1]
        %v443 = vlaneseq
        %v444 = vshrl.u32 %v443, 7
        %v445 = vsub.s32 0, %v444
        %v446 = vrot.slane %v442, %v445
        %v447 = vmul.f32 %v221, %v446
        %v448 = vmul.f32 %v222, %v446
        %v451 = vrot.slane %v447, 2
        %v452 = vrot.slane %v448, 2
        %v453 = vsel %vm386, %v451, %v452
        %v456 = vadd.f32 %v440, %v453
        %v457 = vadd.f32 %v441, %v452
        %v458 = vld [vmem:[%s1 + $0x11] sm:$0x1]
        %v459 = vlaneseq
        %v460 = vshrl.u32 %v459, 7
        %v461 = vsub.s32 0, %v460
        %v462 = vrot.slane %v458, %v461
        %v463 = vmul.f32 %v224, %v462
        %v464 = vmul.f32 %v225, %v462
        %v467 = vrot.slane %v463, 2
        %v468 = vrot.slane %v464, 2
        %v469 = vsel %vm386, %v467, %v468
        %v472 = vadd.f32 %v456, %v469
        %v473 = vadd.f32 %v457, %v468
        %v474 = vld [vmem:[%s1 + $0x12] sm:$0x1]
        %v475 = vlaneseq
        %v476 = vshrl.u32 %v475, 7
        %v477 = vsub.s32 0, %v476
        %v478 = vrot.slane %v474, %v477
        %v479 = vmul.f32 %v209, %v478
        %v480 = vmul.f32 %v210, %v478
        %vm483 = vcmask 1044480
        %v484 = vrot.slane %v479, 3
        %v485 = vrot.slane %v480, 3
        %v486 = vsel %vm483, %v484, %v485
        %v489 = vadd.f32 %v472, %v486
        %v490 = vadd.f32 %v473, %v485
        %v491 = vld [vmem:[%s1 + $0x13] sm:$0x1]
        %v492 = vlaneseq
        %v493 = vshrl.u32 %v492, 7
        %v494 = vsub.s32 0, %v493
        %v495 = vrot.slane %v491, %v494
        %v496 = vmul.f32 %v212, %v495
        %v497 = vmul.f32 %v213, %v495
        %v500 = vrot.slane %v496, 3
        %v501 = vrot.slane %v497, 3
        %v502 = vsel %vm483, %v500, %v501
        %v505 = vadd.f32 %v489, %v502
        %v506 = vadd.f32 %v490, %v501
        %v507 = vld [vmem:[%s1 + $0x14] sm:$0x1]
        %v508 = vlaneseq
        %v509 = vshrl.u32 %v508, 7
        %v510 = vsub.s32 0, %v509
        %v511 = vrot.slane %v507, %v510
        %v512 = vmul.f32 %v215, %v511
        %v513 = vmul.f32 %v216, %v511
        %v516 = vrot.slane %v512, 3
        %v517 = vrot.slane %v513, 3
        %v518 = vsel %vm483, %v516, %v517
        %v521 = vadd.f32 %v505, %v518
        %v522 = vadd.f32 %v506, %v517
        %v523 = vld [vmem:[%s1 + $0x15] sm:$0x1]
        %v524 = vlaneseq
        %v525 = vshrl.u32 %v524, 7
        %v526 = vsub.s32 0, %v525
        %v527 = vrot.slane %v523, %v526
        %v528 = vmul.f32 %v218, %v527
        %v529 = vmul.f32 %v219, %v527
        %v532 = vrot.slane %v528, 3
        %v533 = vrot.slane %v529, 3
        %v534 = vsel %vm483, %v532, %v533
        %v537 = vadd.f32 %v521, %v534
        %v538 = vadd.f32 %v522, %v533
        %v539 = vld [vmem:[%s1 + $0x16] sm:$0x1]
        %v540 = vlaneseq
        %v541 = vshrl.u32 %v540, 7
        %v542 = vsub.s32 0, %v541
        %v543 = vrot.slane %v539, %v542
        %v544 = vmul.f32 %v221, %v543
        %v545 = vmul.f32 %v222, %v543
        %v548 = vrot.slane %v544, 3
        %v549 = vrot.slane %v545, 3
        %v550 = vsel %vm483, %v548, %v549
        %v553 = vadd.f32 %v537, %v550
        %v554 = vadd.f32 %v538, %v549
        %v555 = vld [vmem:[%s1 + $0x17] sm:$0x1]
        %v556 = vlaneseq
        %v557 = vshrl.u32 %v556, 7
        %v558 = vsub.s32 0, %v557
        %v559 = vrot.slane %v555, %v558
        %v560 = vmul.f32 %v224, %v559
        %v561 = vmul.f32 %v225, %v559
        %v564 = vrot.slane %v560, 3
        %v565 = vrot.slane %v561, 3
        %v566 = vsel %vm483, %v564, %v565
        %v569 = vadd.f32 %v553, %v566
        %v570 = vadd.f32 %v554, %v565
        %v571 = vld [vmem:[%s1 + $0x18] sm:$0x1]
        %v572 = vlaneseq
        %v573 = vshrl.u32 %v572, 7
        %v574 = vsub.s32 0, %v573
        %v575 = vrot.slane %v571, %v574
        %v576 = vmul.f32 %v209, %v575
        %v577 = vmul.f32 %v210, %v575
        %vm580 = vcmask 1043456
        %v581 = vrot.slane %v576, 4
        %v582 = vrot.slane %v577, 4
        %v583 = vsel %vm580, %v581, %v582
        %v586 = vadd.f32 %v569, %v583
        %v587 = vadd.f32 %v570, %v582
        %v588 = vld [vmem:[%s1 + $0x19] sm:$0x1]
        %v589 = vlaneseq
        %v590 = vshrl.u32 %v589, 7
        %v591 = vsub.s32 0, %v590
        %v592 = vrot.slane %v588, %v591
        %v593 = vmul.f32 %v212, %v592
        %v594 = vmul.f32 %v213, %v592
        %v597 = vrot.slane %v593, 4
        %v598 = vrot.slane %v594, 4
        %v599 = vsel %vm580, %v597, %v598
        %v602 = vadd.f32 %v586, %v599
        %v603 = vadd.f32 %v587, %v598
        %v604 = vld [vmem:[%s1 + $0x1a] sm:$0x1]
        %v605 = vlaneseq
        %v606 = vshrl.u32 %v605, 7
        %v607 = vsub.s32 0, %v606
        %v608 = vrot.slane %v604, %v607
        %v609 = vmul.f32 %v215, %v608
        %v610 = vmul.f32 %v216, %v608
        %v613 = vrot.slane %v609, 4
        %v614 = vrot.slane %v610, 4
        %v615 = vsel %vm580, %v613, %v614
        %v618 = vadd.f32 %v602, %v615
        %v619 = vadd.f32 %v603, %v614
        %v620 = vld [vmem:[%s1 + $0x1b] sm:$0x1]
        %v621 = vlaneseq
        %v622 = vshrl.u32 %v621, 7
        %v623 = vsub.s32 0, %v622
        %v624 = vrot.slane %v620, %v623
        %v625 = vmul.f32 %v218, %v624
        %v626 = vmul.f32 %v219, %v624
        %v629 = vrot.slane %v625, 4
        %v630 = vrot.slane %v626, 4
        %v631 = vsel %vm580, %v629, %v630
        %v634 = vadd.f32 %v618, %v631
        %v635 = vadd.f32 %v619, %v630
        %v636 = vld [vmem:[%s1 + $0x1c] sm:$0x1]
        %v637 = vlaneseq
        %v638 = vshrl.u32 %v637, 7
        %v639 = vsub.s32 0, %v638
        %v640 = vrot.slane %v636, %v639
        %v641 = vmul.f32 %v221, %v640
        %v642 = vmul.f32 %v222, %v640
        %v645 = vrot.slane %v641, 4
        %v646 = vrot.slane %v642, 4
        %v647 = vsel %vm580, %v645, %v646
        %v650 = vadd.f32 %v634, %v647
        %v651 = vadd.f32 %v635, %v646
        %v652 = vld [vmem:[%s1 + $0x1d] sm:$0x1]
        %v653 = vlaneseq
        %v654 = vshrl.u32 %v653, 7
        %v655 = vsub.s32 0, %v654
        %v656 = vrot.slane %v652, %v655
        %v657 = vmul.f32 %v224, %v656
        %v658 = vmul.f32 %v225, %v656
        %v661 = vrot.slane %v657, 4
        %v662 = vrot.slane %v658, 4
        %v663 = vsel %vm580, %v661, %v662
        %v666 = vadd.f32 %v650, %v663
        %v667 = vadd.f32 %v651, %v662
        %v668 = vld [vmem:[%s1 + $0x1e] sm:$0x1]
        %v669 = vlaneseq
        %v670 = vshrl.u32 %v669, 7
        %v671 = vsub.s32 0, %v670
        %v672 = vrot.slane %v668, %v671
        %v673 = vmul.f32 %v209, %v672
        %v674 = vmul.f32 %v210, %v672
        %vm677 = vcmask 1042432
        %v678 = vrot.slane %v673, 5
        %v679 = vrot.slane %v674, 5
        %v680 = vsel %vm677, %v678, %v679
        %v683 = vadd.f32 %v666, %v680
        %v684 = vadd.f32 %v667, %v679
        %v685 = vld [vmem:[%s1 + $0x1f] sm:$0x1]
        %v686 = vlaneseq
        %v687 = vshrl.u32 %v686, 7
        %v688 = vsub.s32 0, %v687
        %v689 = vrot.slane %v685, %v688
        %v690 = vmul.f32 %v212, %v689
        %v691 = vmul.f32 %v213, %v689
        %v694 = vrot.slane %v690, 5
        %v695 = vrot.slane %v691, 5
        %v696 = vsel %vm677, %v694, %v695
        %v699 = vadd.f32 %v683, %v696
        %v700 = vadd.f32 %v684, %v695
        %v701 = vld [vmem:[%s1 + $0x20] sm:$0x1]
        %v702 = vlaneseq
        %v703 = vshrl.u32 %v702, 7
        %v704 = vsub.s32 0, %v703
        %v705 = vrot.slane %v701, %v704
        %v706 = vmul.f32 %v215, %v705
        %v707 = vmul.f32 %v216, %v705
        %v710 = vrot.slane %v706, 5
        %v711 = vrot.slane %v707, 5
        %v712 = vsel %vm677, %v710, %v711
        %v715 = vadd.f32 %v699, %v712
        %v716 = vadd.f32 %v700, %v711
        %v717 = vld [vmem:[%s1 + $0x21] sm:$0x1]
        %v718 = vlaneseq
        %v719 = vshrl.u32 %v718, 7
        %v720 = vsub.s32 0, %v719
        %v721 = vrot.slane %v717, %v720
        %v722 = vmul.f32 %v218, %v721
        %v723 = vmul.f32 %v219, %v721
        %v726 = vrot.slane %v722, 5
        %v727 = vrot.slane %v723, 5
        %v728 = vsel %vm677, %v726, %v727
        %v731 = vadd.f32 %v715, %v728
        %v732 = vadd.f32 %v716, %v727
        %v733 = vld [vmem:[%s1 + $0x22] sm:$0x1]
        %v734 = vlaneseq
        %v735 = vshrl.u32 %v734, 7
        %v736 = vsub.s32 0, %v735
        %v737 = vrot.slane %v733, %v736
        %v738 = vmul.f32 %v221, %v737
        %v739 = vmul.f32 %v222, %v737
        %v742 = vrot.slane %v738, 5
        %v743 = vrot.slane %v739, 5
        %v744 = vsel %vm677, %v742, %v743
        %v747 = vadd.f32 %v731, %v744
        %v748 = vadd.f32 %v732, %v743
        %v749 = vld [vmem:[%s1 + $0x23] sm:$0x1]
        %v750 = vlaneseq
        %v751 = vshrl.u32 %v750, 7
        %v752 = vsub.s32 0, %v751
        %v753 = vrot.slane %v749, %v752
        %v754 = vmul.f32 %v224, %v753
        %v755 = vmul.f32 %v225, %v753
        %v758 = vrot.slane %v754, 5
        %v759 = vrot.slane %v755, 5
        %v760 = vsel %vm677, %v758, %v759
        %v763 = vadd.f32 %v747, %v760
        %v764 = vadd.f32 %v748, %v759
        %v766 = vlaneseq
        %v767 = vshrl.u32 %v766, 7
        %v768 = vsub.s32 0, %v767
        %v769 = vrot.slane %v208, %v768
        %v771 = vadd.f32 %v763, %v769
        %v772 = vadd.f32 %v764, %v769
        %vm773 = vcmask 89088
        %v775 = vsel %vm773, %v771, 0
        %v778 = vsel %vm773, %v772, 0
        %v780 = vsel %vm677, %v772, 0
        %782 = vmatprep.subr.mxu0 0.0
        %v783 = vand.u32 %v771, 4294901760
        %784 = vmatpush1.msra.mxu0 %v783
        %785 = vmatprep.subr.mxu0 0.0
        %v786 = vand.u32 %v780, 4294901760
        %787 = vmatpush1.msra.mxu0 %v786
        %788 = vmatprep.subr.mxu0 0.0
        %789 = vmatpush1.msra.mxu0 0.0
        %790 = vmatprep.subr.mxu0 0.0
        %791 = vmatpush1.msra.mxu0 0.0
        %792 = vmatprep.subr.mxu0 0.0
        %793 = vmatpush1.msra.mxu0 0.0
        %794 = vmatprep.subr.mxu0 0.0
        %795 = vmatpush1.msra.mxu0 0.0
        %796 = vmatprep.subr.mxu0 0.0
        %797 = vmatpush1.msra.mxu0 0.0
        %798 = vmatprep.subr.mxu0 0.0
        %799 = vmatpush1.msra.mxu0 0.0
        %800 = vmatprep.subr.mxu0 0.0
        %801 = vmatpush1.msra.mxu0 0.0
        %802 = vmatprep.subr.mxu0 0.0
        %803 = vmatpush1.msra.mxu0 0.0
        %804 = vmatprep.subr.mxu0 0.0
        %805 = vmatpush1.msra.mxu0 0.0
        %806 = vmatprep.subr.mxu0 0.0
        %807 = vmatpush1.msra.mxu0 0.0
        %808 = vmatprep.subr.mxu0 0.0
        %809 = vmatpush1.msra.mxu0 0.0
        %810 = vmatprep.subr.mxu0 0.0
        %811 = vmatpush1.msra.mxu0 0.0
        %812 = vmatprep.subr.mxu0 0.0
        %813 = vmatpush1.msra.mxu0 0.0
        %814 = vmatprep.subr.mxu0 0.0
        %815 = vmatpush1.msra.mxu0 0.0
        %816 = vmatprep.subr.mxu0 0.0
        %817 = vmatpush1.msra.mxu0 0.0
        %818 = vmatprep.subr.mxu0 0.0
        %819 = vmatpush1.msra.mxu0 0.0
        %820 = vmatprep.subr.mxu0 0.0
        %821 = vmatpush1.msra.mxu0 0.0
        %822 = vmatprep.subr.mxu0 0.0
        %823 = vmatpush1.msra.mxu0 0.0
        %824 = vmatprep.subr.mxu0 0.0
        %825 = vmatpush1.msra.mxu0 0.0
        %826 = vmatprep.subr.mxu0 0.0
        %827 = vmatpush1.msra.mxu0 0.0
        %828 = vmatprep.subr.mxu0 0.0
        %829 = vmatpush1.msra.mxu0 0.0
        %830 = vmatprep.subr.mxu0 0.0
        %831 = vmatpush1.msra.mxu0 0.0
        %832 = vmatprep.subr.mxu0 0.0
        %833 = vmatpush1.msra.mxu0 0.0
        %834 = vmatprep.subr.mxu0 0.0
        %835 = vmatpush1.msra.mxu0 0.0
        %836 = vmatprep.subr.mxu0 0.0
        %837 = vmatpush1.msra.mxu0 0.0
        %838 = vmatprep.subr.mxu0 0.0
        %839 = vmatpush1.msra.mxu0 0.0
        %840 = vmatprep.subr.mxu0 0.0
        %841 = vmatpush1.msra.mxu0 0.0
        %842 = vmatprep.subr.mxu0 0.0
        %843 = vmatpush1.msra.mxu0 0.0
        %844 = vmatprep.subr.mxu0 0.0
        %845 = vmatpush1.msra.mxu0 0.0
        %846 = vmatprep.subr.mxu0 0.0
        %847 = vmatpush1.msra.mxu0 0.0
        %848 = vmatprep.mubr.f32.mxu0 0.0
        %v849 = vand.u32 %v775, 4294901760
        %v850 = vsub.f32 %v775, %v849
        %v851 = vand.u32 %v850, 4294901760
        %v852 = vsub.f32 %v850, %v851
        %v853 = vand.u32 %v852, 4294901760
        %854 = vmatmul.mubr.f32.gmra.mrb[0].mxu0 %v853
        %v855 = vpop.f32.mrb[0].mxu0
        %v856 = vadd.f32 0.0, %v855
        %v857 = vpop.f32.mrb[0].mxu0
        %858 = vmatprep.mubr.f32.mxu0 0.0
        %v859 = vand.u32 %v778, 4294901760
        %v860 = vsub.f32 %v778, %v859
        %v861 = vand.u32 %v860, 4294901760
        %v862 = vsub.f32 %v860, %v861
        %v863 = vand.u32 %v862, 4294901760
        %864 = vmatmul.mubr.f32.gmra.mrb[0].mxu0 %v863
        %v865 = vpop.f32.mrb[0].mxu0
        %v866 = vadd.f32 0.0, %v865
        %v867 = vpop.f32.mrb[0].mxu0
        %868 = vdwg.mxu0
        %869 = vmatprep.subr.mxu0 0.0
        %v870 = vand.u32 %v771, 4294901760
        %v871 = vsub.f32 %v771, %v870
        %v872 = vand.u32 %v871, 4294901760
        %v873 = vsub.f32 %v871, %v872
        %v874 = vand.u32 %v873, 4294901760
        %875 = vmatpush1.msra.mxu0 %v874
        %876 = vmatprep.subr.mxu0 0.0
        %v877 = vand.u32 %v780, 4294901760
        %v878 = vsub.f32 %v780, %v877
        %v879 = vand.u32 %v878, 4294901760
        %v880 = vsub.f32 %v878, %v879
        %v881 = vand.u32 %v880, 4294901760
        %882 = vmatpush1.msra.mxu0 %v881
        %883 = vmatprep.subr.mxu0 0.0
        %884 = vmatpush1.msra.mxu0 0.0
        %885 = vmatprep.subr.mxu0 0.0
        %886 = vmatpush1.msra.mxu0 0.0
        %887 = vmatprep.subr.mxu0 0.0
        %888 = vmatpush1.msra.mxu0 0.0
        %889 = vmatprep.subr.mxu0 0.0
        %890 = vmatpush1.msra.mxu0 0.0
        %891 = vmatprep.subr.mxu0 0.0
        %892 = vmatpush1.msra.mxu0 0.0
        %893 = vmatprep.subr.mxu0 0.0
        %894 = vmatpush1.msra.mxu0 0.0
        %895 = vmatprep.subr.mxu0 0.0
        %896 = vmatpush1.msra.mxu0 0.0
        %897 = vmatprep.subr.mxu0 0.0
        %898 = vmatpush1.msra.mxu0 0.0
        %899 = vmatprep.subr.mxu0 0.0
        %900 = vmatpush1.msra.mxu0 0.0
        %901 = vmatprep.subr.mxu0 0.0
        %902 = vmatpush1.msra.mxu0 0.0
        %903 = vmatprep.subr.mxu0 0.0
        %904 = vmatpush1.msra.mxu0 0.0
        %905 = vmatprep.subr.mxu0 0.0
        %906 = vmatpush1.msra.mxu0 0.0
        %907 = vmatprep.subr.mxu0 0.0
        %908 = vmatpush1.msra.mxu0 0.0
        %909 = vmatprep.subr.mxu0 0.0
        %910 = vmatpush1.msra.mxu0 0.0
        %911 = vmatprep.subr.mxu0 0.0
        %912 = vmatpush1.msra.mxu0 0.0
        %913 = vmatprep.subr.mxu0 0.0
        %914 = vmatpush1.msra.mxu0 0.0
        %915 = vmatprep.subr.mxu0 0.0
        %916 = vmatpush1.msra.mxu0 0.0
        %917 = vmatprep.subr.mxu0 0.0
        %918 = vmatpush1.msra.mxu0 0.0
        %919 = vmatprep.subr.mxu0 0.0
        %920 = vmatpush1.msra.mxu0 0.0
        %921 = vmatprep.subr.mxu0 0.0
        %922 = vmatpush1.msra.mxu0 0.0
        %923 = vmatprep.subr.mxu0 0.0
        %924 = vmatpush1.msra.mxu0 0.0
        %925 = vmatprep.subr.mxu0 0.0
        %926 = vmatpush1.msra.mxu0 0.0
        %927 = vmatprep.subr.mxu0 0.0
        %928 = vmatpush1.msra.mxu0 0.0
        %929 = vmatprep.subr.mxu0 0.0
        %930 = vmatpush1.msra.mxu0 0.0
        %931 = vmatprep.subr.mxu0 0.0
        %932 = vmatpush1.msra.mxu0 0.0
        %933 = vmatprep.subr.mxu0 0.0
        %934 = vmatpush1.msra.mxu0 0.0
        %935 = vmatprep.subr.mxu0 0.0
        %936 = vmatpush1.msra.mxu0 0.0
        %937 = vmatprep.subr.mxu0 0.0
        %938 = vmatpush1.msra.mxu0 0.0
        %939 = vmatprep.subr.mxu0 0.0
        %940 = vmatpush1.msra.mxu0 0.0
        %941 = vmatprep.subr.mxu0 0.0
        %942 = vmatpush1.msra.mxu0 0.0
        %943 = vmatprep.mubr.f32.mxu0 0.0
        %v944 = vand.u32 %v775, 4294901760
        %945 = vmatmul.mubr.f32.gmra.mrb[0].mxu0 %v944
        %v946 = vpop.f32.mrb[0].mxu0
        %v947 = vadd.f32 %v856, %v946
        %v948 = vpop.f32.mrb[0].mxu0
        %949 = vmatprep.mubr.f32.mxu0 0.0
        %v950 = vand.u32 %v778, 4294901760
        %951 = vmatmul.mubr.f32.gmra.mrb[0].mxu0 %v950
        %v952 = vpop.f32.mrb[0].mxu0
        %v953 = vadd.f32 %v866, %v952
        %v954 = vpop.f32.mrb[0].mxu0
        %955 = vdwg.mxu0
        %956 = vmatprep.subr.mxu0 0.0
        %v957 = vand.u32 %v771, 4294901760
        %v958 = vsub.f32 %v771, %v957
        %959 = vmatpush1.msra.mxu0 %v958
        %960 = vmatprep.subr.mxu0 0.0
        %v961 = vand.u32 %v780, 4294901760
        %v962 = vsub.f32 %v780, %v961
        %963 = vmatpush1.msra.mxu0 %v962
        %964 = vmatprep.subr.mxu0 0.0
        %965 = vmatpush1.msra.mxu0 0.0
        %966 = vmatprep.subr.mxu0 0.0
        %967 = vmatpush1.msra.mxu0 0.0
        %968 = vmatprep.subr.mxu0 0.0
        %969 = vmatpush1.msra.mxu0 0.0
        %970 = vmatprep.subr.mxu0 0.0
        %971 = vmatpush1.msra.mxu0 0.0
        %972 = vmatprep.subr.mxu0 0.0
        %973 = vmatpush1.msra.mxu0 0.0
        %974 = vmatprep.subr.mxu0 0.0
        %975 = vmatpush1.msra.mxu0 0.0
        %976 = vmatprep.subr.mxu0 0.0
        %977 = vmatpush1.msra.mxu0 0.0
        %978 = vmatprep.subr.mxu0 0.0
        %979 = vmatpush1.msra.mxu0 0.0
        %980 = vmatprep.subr.mxu0 0.0
        %981 = vmatpush1.msra.mxu0 0.0
        %982 = vmatprep.subr.mxu0 0.0
        %983 = vmatpush1.msra.mxu0 0.0
        %984 = vmatprep.subr.mxu0 0.0
        %985 = vmatpush1.msra.mxu0 0.0
        %986 = vmatprep.subr.mxu0 0.0
        %987 = vmatpush1.msra.mxu0 0.0
        %988 = vmatprep.subr.mxu0 0.0
        %989 = vmatpush1.msra.mxu0 0.0
        %990 = vmatprep.subr.mxu0 0.0
        %991 = vmatpush1.msra.mxu0 0.0
        %992 = vmatprep.subr.mxu0 0.0
        %993 = vmatpush1.msra.mxu0 0.0
        %994 = vmatprep.subr.mxu0 0.0
        %995 = vmatpush1.msra.mxu0 0.0
        %996 = vmatprep.subr.mxu0 0.0
        %997 = vmatpush1.msra.mxu0 0.0
        %998 = vmatprep.subr.mxu0 0.0
        %999 = vmatpush1.msra.mxu0 0.0
        %1000 = vmatprep.subr.mxu0 0.0
        %1001 = vmatpush1.msra.mxu0 0.0
        %1002 = vmatprep.subr.mxu0 0.0
        %1003 = vmatpush1.msra.mxu0 0.0
        %1004 = vmatprep.subr.mxu0 0.0
        %1005 = vmatpush1.msra.mxu0 0.0
        %1006 = vmatprep.subr.mxu0 0.0
        %1007 = vmatpush1.msra.mxu0 0.0
        %1008 = vmatprep.subr.mxu0 0.0
        %1009 = vmatpush1.msra.mxu0 0.0
        %1010 = vmatprep.subr.mxu0 0.0
        %1011 = vmatpush1.msra.mxu0 0.0
        %1012 = vmatprep.subr.mxu0 0.0
        %1013 = vmatpush1.msra.mxu0 0.0
        %1014 = vmatprep.subr.mxu0 0.0
        %1015 = vmatpush1.msra.mxu0 0.0
        %1016 = vmatprep.subr.mxu0 0.0
        %1017 = vmatpush1.msra.mxu0 0.0
        %1018 = vmatprep.subr.mxu0 0.0
        %1019 = vmatpush1.msra.mxu0 0.0
        %1020 = vmatprep.subr.mxu0 0.0
        %1021 = vmatpush1.msra.mxu0 0.0
        %1022 = vmatprep.subr.mxu0 0.0
        %1023 = vmatpush1.msra.mxu0 0.0
        %1024 = vmatprep.mubr.f32.mxu0 0.0
        %v1025 = vand.u32 %v775, 4294901760
        %v1026 = vsub.f32 %v775, %v1025
        %1027 = vmatmul.mubr.f32.gmra.mrb[0].mxu0 %v1026
        %v1028 = vpop.f32.mrb[0].mxu0
        %v1029 = vadd.f32 %v947, %v1028
        %v1030 = vpop.f32.mrb[0].mxu0
        %1031 = vmatprep.mubr.f32.mxu0 0.0
        %v1032 = vand.u32 %v778, 4294901760
        %v1033 = vsub.f32 %v778, %v1032
        %1034 = vmatmul.mubr.f32.gmra.mrb[0].mxu0 %v1033
        %v1035 = vpop.f32.mrb[0].mxu0
        %v1036 = vadd.f32 %v953, %v1035
        %v1037 = vpop.f32.mrb[0].mxu0
        %1038 = vdwg.mxu0
        %1039 = vmatprep.subr.mxu0 0.0
        %v1040 = vand.u32 %v771, 4294901760
        %1041 = vmatpush1.msra.mxu0 %v1040
        %1042 = vmatprep.subr.mxu0 0.0
        %v1043 = vand.u32 %v780, 4294901760
        %1044 = vmatpush1.msra.mxu0 %v1043
        %1045 = vmatprep.subr.mxu0 0.0
        %1046 = vmatpush1.msra.mxu0 0.0
        %1047 = vmatprep.subr.mxu0 0.0
        %1048 = vmatpush1.msra.mxu0 0.0
        %1049 = vmatprep.subr.mxu0 0.0
        %1050 = vmatpush1.msra.mxu0 0.0
        %1051 = vmatprep.subr.mxu0 0.0
        %1052 = vmatpush1.msra.mxu0 0.0
        %1053 = vmatprep.subr.mxu0 0.0
        %1054 = vmatpush1.msra.mxu0 0.0
        %1055 = vmatprep.subr.mxu0 0.0
        %1056 = vmatpush1.msra.mxu0 0.0
        %1057 = vmatprep.subr.mxu0 0.0
        %1058 = vmatpush1.msra.mxu0 0.0
        %1059 = vmatprep.subr.mxu0 0.0
        %1060 = vmatpush1.msra.mxu0 0.0
        %1061 = vmatprep.subr.mxu0 0.0
        %1062 = vmatpush1.msra.mxu0 0.0
        %1063 = vmatprep.subr.mxu0 0.0
        %1064 = vmatpush1.msra.mxu0 0.0
        %1065 = vmatprep.subr.mxu0 0.0
        %1066 = vmatpush1.msra.mxu0 0.0
        %1067 = vmatprep.subr.mxu0 0.0
        %1068 = vmatpush1.msra.mxu0 0.0
        %1069 = vmatprep.subr.mxu0 0.0
        %1070 = vmatpush1.msra.mxu0 0.0
        %1071 = vmatprep.subr.mxu0 0.0
        %1072 = vmatpush1.msra.mxu0 0.0
        %1073 = vmatprep.subr.mxu0 0.0
        %1074 = vmatpush1.msra.mxu0 0.0
        %1075 = vmatprep.subr.mxu0 0.0
        %1076 = vmatpush1.msra.mxu0 0.0
        %1077 = vmatprep.subr.mxu0 0.0
        %1078 = vmatpush1.msra.mxu0 0.0
        %1079 = vmatprep.subr.mxu0 0.0
        %1080 = vmatpush1.msra.mxu0 0.0
        %1081 = vmatprep.subr.mxu0 0.0
        %1082 = vmatpush1.msra.mxu0 0.0
        %1083 = vmatprep.subr.mxu0 0.0
        %1084 = vmatpush1.msra.mxu0 0.0
        %1085 = vmatprep.subr.mxu0 0.0
        %1086 = vmatpush1.msra.mxu0 0.0
        %1087 = vmatprep.subr.mxu0 0.0
        %1088 = vmatpush1.msra.mxu0 0.0
        %1089 = vmatprep.subr.mxu0 0.0
        %1090 = vmatpush1.msra.mxu0 0.0
        %1091 = vmatprep.subr.mxu0 0.0
        %1092 = vmatpush1.msra.mxu0 0.0
        %1093 = vmatprep.subr.mxu0 0.0
        %1094 = vmatpush1.msra.mxu0 0.0
        %1095 = vmatprep.subr.mxu0 0.0
        %1096 = vmatpush1.msra.mxu0 0.0
        %1097 = vmatprep.subr.mxu0 0.0
        %1098 = vmatpush1.msra.mxu0 0.0
        %1099 = vmatprep.subr.mxu0 0.0
        %1100 = vmatpush1.msra.mxu0 0.0
        %1101 = vmatprep.subr.mxu0 0.0
        %1102 = vmatpush1.msra.mxu0 0.0
        %1103 = vmatprep.subr.mxu0 0.0
        %1104 = vmatpush1.msra.mxu0 0.0
        %1105 = vmatprep.mubr.f32.mxu0 0.0
        %v1106 = vand.u32 %v775, 4294901760
        %v1107 = vsub.f32 %v775, %v1106
        %v1108 = vand.u32 %v1107, 4294901760
        %1109 = vmatmul.mubr.f32.gmra.mrb[0].mxu0 %v1108
        %v1110 = vpop.f32.mrb[0].mxu0
        %v1111 = vadd.f32 %v1029, %v1110
        %v1112 = vpop.f32.mrb[0].mxu0
        %1113 = vmatprep.mubr.f32.mxu0 0.0
        %v1114 = vand.u32 %v778, 4294901760
        %v1115 = vsub.f32 %v778, %v1114
        %v1116 = vand.u32 %v1115, 4294901760
        %1117 = vmatmul.mubr.f32.gmra.mrb[0].mxu0 %v1116
        %v1118 = vpop.f32.mrb[0].mxu0
        %v1119 = vadd.f32 %v1036, %v1118
        %v1120 = vpop.f32.mrb[0].mxu0
        %1121 = vdwg.mxu0
        %1122 = vmatprep.subr.mxu0 0.0
        %v1123 = vand.u32 %v771, 4294901760
        %v1124 = vsub.f32 %v771, %v1123
        %v1125 = vand.u32 %v1124, 4294901760
        %1126 = vmatpush1.msra.mxu0 %v1125
        %1127 = vmatprep.subr.mxu0 0.0
        %v1128 = vand.u32 %v780, 4294901760
        %v1129 = vsub.f32 %v780, %v1128
        %v1130 = vand.u32 %v1129, 4294901760
        %1131 = vmatpush1.msra.mxu0 %v1130
        %1132 = vmatprep.subr.mxu0 0.0
        %1133 = vmatpush1.msra.mxu0 0.0
        %1134 = vmatprep.subr.mxu0 0.0
        %1135 = vmatpush1.msra.mxu0 0.0
        %1136 = vmatprep.subr.mxu0 0.0
        %1137 = vmatpush1.msra.mxu0 0.0
        %1138 = vmatprep.subr.mxu0 0.0
        %1139 = vmatpush1.msra.mxu0 0.0
        %1140 = vmatprep.subr.mxu0 0.0
        %1141 = vmatpush1.msra.mxu0 0.0
        %1142 = vmatprep.subr.mxu0 0.0
        %1143 = vmatpush1.msra.mxu0 0.0
        %1144 = vmatprep.subr.mxu0 0.0
        %1145 = vmatpush1.msra.mxu0 0.0
        %1146 = vmatprep.subr.mxu0 0.0
        %1147 = vmatpush1.msra.mxu0 0.0
        %1148 = vmatprep.subr.mxu0 0.0
        %1149 = vmatpush1.msra.mxu0 0.0
        %1150 = vmatprep.subr.mxu0 0.0
        %1151 = vmatpush1.msra.mxu0 0.0
        %1152 = vmatprep.subr.mxu0 0.0
        %1153 = vmatpush1.msra.mxu0 0.0
        %1154 = vmatprep.subr.mxu0 0.0
        %1155 = vmatpush1.msra.mxu0 0.0
        %1156 = vmatprep.subr.mxu0 0.0
        %1157 = vmatpush1.msra.mxu0 0.0
        %1158 = vmatprep.subr.mxu0 0.0
        %1159 = vmatpush1.msra.mxu0 0.0
        %1160 = vmatprep.subr.mxu0 0.0
        %1161 = vmatpush1.msra.mxu0 0.0
        %1162 = vmatprep.subr.mxu0 0.0
        %1163 = vmatpush1.msra.mxu0 0.0
        %1164 = vmatprep.subr.mxu0 0.0
        %1165 = vmatpush1.msra.mxu0 0.0
        %1166 = vmatprep.subr.mxu0 0.0
        %1167 = vmatpush1.msra.mxu0 0.0
        %1168 = vmatprep.subr.mxu0 0.0
        %1169 = vmatpush1.msra.mxu0 0.0
        %1170 = vmatprep.subr.mxu0 0.0
        %1171 = vmatpush1.msra.mxu0 0.0
        %1172 = vmatprep.subr.mxu0 0.0
        %1173 = vmatpush1.msra.mxu0 0.0
        %1174 = vmatprep.subr.mxu0 0.0
        %1175 = vmatpush1.msra.mxu0 0.0
        %1176 = vmatprep.subr.mxu0 0.0
        %1177 = vmatpush1.msra.mxu0 0.0
        %1178 = vmatprep.subr.mxu0 0.0
        %1179 = vmatpush1.msra.mxu0 0.0
        %1180 = vmatprep.subr.mxu0 0.0
        %1181 = vmatpush1.msra.mxu0 0.0
        %1182 = vmatprep.subr.mxu0 0.0
        %1183 = vmatpush1.msra.mxu0 0.0
        %1184 = vmatprep.subr.mxu0 0.0
        %1185 = vmatpush1.msra.mxu0 0.0
        %1186 = vmatprep.subr.mxu0 0.0
        %1187 = vmatpush1.msra.mxu0 0.0
        %1188 = vmatprep.subr.mxu0 0.0
        %1189 = vmatpush1.msra.mxu0 0.0
        %1190 = vmatprep.subr.mxu0 0.0
        %1191 = vmatpush1.msra.mxu0 0.0
        %1192 = vmatprep.mubr.f32.mxu0 0.0
        %v1193 = vand.u32 %v775, 4294901760
        %1194 = vmatmul.mubr.f32.gmra.mrb[0].mxu0 %v1193
        %v1195 = vpop.f32.mrb[0].mxu0
        %v1196 = vadd.f32 %v1111, %v1195
        %v1197 = vpop.f32.mrb[0].mxu0
        %1198 = vmatprep.mubr.f32.mxu0 0.0
        %v1199 = vand.u32 %v778, 4294901760
        %1200 = vmatmul.mubr.f32.gmra.mrb[0].mxu0 %v1199
        %v1201 = vpop.f32.mrb[0].mxu0
        %v1202 = vadd.f32 %v1119, %v1201
        %v1203 = vpop.f32.mrb[0].mxu0
        %1204 = vdwg.mxu0
        %1205 = vmatprep.subr.mxu0 0.0
        %v1206 = vand.u32 %v771, 4294901760
        %1207 = vmatpush1.msra.mxu0 %v1206
        %1208 = vmatprep.subr.mxu0 0.0
        %v1209 = vand.u32 %v780, 4294901760
        %1210 = vmatpush1.msra.mxu0 %v1209
        %1211 = vmatprep.subr.mxu0 0.0
        %1212 = vmatpush1.msra.mxu0 0.0
        %1213 = vmatprep.subr.mxu0 0.0
        %1214 = vmatpush1.msra.mxu0 0.0
        %1215 = vmatprep.subr.mxu0 0.0
        %1216 = vmatpush1.msra.mxu0 0.0
        %1217 = vmatprep.subr.mxu0 0.0
        %1218 = vmatpush1.msra.mxu0 0.0
        %1219 = vmatprep.subr.mxu0 0.0
        %1220 = vmatpush1.msra.mxu0 0.0
        %1221 = vmatprep.subr.mxu0 0.0
        %1222 = vmatpush1.msra.mxu0 0.0
        %1223 = vmatprep.subr.mxu0 0.0
        %1224 = vmatpush1.msra.mxu0 0.0
        %1225 = vmatprep.subr.mxu0 0.0
        %1226 = vmatpush1.msra.mxu0 0.0
        %1227 = vmatprep.subr.mxu0 0.0
        %1228 = vmatpush1.msra.mxu0 0.0
        %1229 = vmatprep.subr.mxu0 0.0
        %1230 = vmatpush1.msra.mxu0 0.0
        %1231 = vmatprep.subr.mxu0 0.0
        %1232 = vmatpush1.msra.mxu0 0.0
        %1233 = vmatprep.subr.mxu0 0.0
        %1234 = vmatpush1.msra.mxu0 0.0
        %1235 = vmatprep.subr.mxu0 0.0
        %1236 = vmatpush1.msra.mxu0 0.0
        %1237 = vmatprep.subr.mxu0 0.0
        %1238 = vmatpush1.msra.mxu0 0.0
        %1239 = vmatprep.subr.mxu0 0.0
        %1240 = vmatpush1.msra.mxu0 0.0
        %1241 = vmatprep.subr.mxu0 0.0
        %1242 = vmatpush1.msra.mxu0 0.0
        %1243 = vmatprep.subr.mxu0 0.0
        %1244 = vmatpush1.msra.mxu0 0.0
        %1245 = vmatprep.subr.mxu0 0.0
        %1246 = vmatpush1.msra.mxu0 0.0
        %1247 = vmatprep.subr.mxu0 0.0
        %1248 = vmatpush1.msra.mxu0 0.0
        %1249 = vmatprep.subr.mxu0 0.0
        %1250 = vmatpush1.msra.mxu0 0.0
        %1251 = vmatprep.subr.mxu0 0.0
        %1252 = vmatpush1.msra.mxu0 0.0
        %1253 = vmatprep.subr.mxu0 0.0
        %1254 = vmatpush1.msra.mxu0 0.0
        %1255 = vmatprep.subr.mxu0 0.0
        %1256 = vmatpush1.msra.mxu0 0.0
        %1257 = vmatprep.subr.mxu0 0.0
        %1258 = vmatpush1.msra.mxu0 0.0
        %1259 = vmatprep.subr.mxu0 0.0
        %1260 = vmatpush1.msra.mxu0 0.0
        %1261 = vmatprep.subr.mxu0 0.0
        %1262 = vmatpush1.msra.mxu0 0.0
        %1263 = vmatprep.subr.mxu0 0.0
        %1264 = vmatpush1.msra.mxu0 0.0
        %1265 = vmatprep.subr.mxu0 0.0
        %1266 = vmatpush1.msra.mxu0 0.0
        %1267 = vmatprep.subr.mxu0 0.0
        %1268 = vmatpush1.msra.mxu0 0.0
        %1269 = vmatprep.subr.mxu0 0.0
        %1270 = vmatpush1.msra.mxu0 0.0
        %1271 = vmatprep.mubr.f32.mxu0 0.0
        %v1272 = vand.u32 %v775, 4294901760
        %1273 = vmatmul.mubr.f32.gmra.mrb[0].mxu0 %v1272
        %v1274 = vpop.f32.mrb[0].mxu0
        %v1275 = vadd.f32 %v1196, %v1274
        %v1276 = vpop.f32.mrb[0].mxu0
        %1277 = vmatprep.mubr.f32.mxu0 0.0
        %v1278 = vand.u32 %v778, 4294901760
        %1279 = vmatmul.mubr.f32.gmra.mrb[0].mxu0 %v1278
        %v1280 = vpop.f32.mrb[0].mxu0
        %v1281 = vadd.f32 %v1202, %v1280
        %v1282 = vpop.f32.mrb[0].mxu0
        %1283 = vdwg.mxu0
        %1284 = vxpose.xlu0.b32.start [1/16] %v771, 128
        %1285 = vxpose.xlu0.b32.cont [2/16] %v772, 128
        %1286 = vxpose.xlu0.b32.cont [3/16] 0.0, 128
        %1287 = vxpose.xlu0.b32.cont [4/16] 0.0, 128
        %1288 = vxpose.xlu0.b32.cont [5/16] 0.0, 128
        %1289 = vxpose.xlu0.b32.cont [6/16] 0.0, 128
        %1290 = vxpose.xlu0.b32.cont [7/16] 0.0, 128
        %1291 = vxpose.xlu0.b32.cont [8/16] 0.0, 128
        %1292 = vxpose.xlu0.b32.cont [9/16] 0.0, 128
        %1293 = vxpose.xlu0.b32.cont [10/16] 0.0, 128
        %1294 = vxpose.xlu0.b32.cont [11/16] 0.0, 128
        %1295 = vxpose.xlu0.b32.cont [12/16] 0.0, 128
        %1296 = vxpose.xlu0.b32.cont [13/16] 0.0, 128
        %1297 = vxpose.xlu0.b32.cont [14/16] 0.0, 128
        %1298 = vxpose.xlu0.b32.cont [15/16] 0.0, 128
        %1299 = vxpose.xlu0.b32.end [16/16] 0.0, 128
        %v1300 = vpop.trf.xlu0
        %v1301 = vpop.trf.xlu0
        %v1302 = vpop.trf.xlu0
        %v1303 = vpop.trf.xlu0
        %v1304 = vpop.trf.xlu0
        %v1305 = vpop.trf.xlu0
        %v1306 = vpop.trf.xlu0
        %v1307 = vpop.trf.xlu0
        %v1308 = vpop.trf.xlu0
        %v1309 = vpop.trf.xlu0
        %v1310 = vpop.trf.xlu0
        %v1311 = vpop.trf.xlu0
        %v1312 = vpop.trf.xlu0
        %v1313 = vpop.trf.xlu0
        %v1314 = vpop.trf.xlu0
        %v1315 = vpop.trf.xlu0
        %1316 = vxpose.xlu0.b32.start [1/16] %v1275, 128
        %1317 = vxpose.xlu0.b32.cont [2/16] %v1281, 128
        %1318 = vxpose.xlu0.b32.cont [3/16] 0.0, 128
        %1319 = vxpose.xlu0.b32.cont [4/16] 0.0, 128
        %1320 = vxpose.xlu0.b32.cont [5/16] 0.0, 128
        %1321 = vxpose.xlu0.b32.cont [6/16] 0.0, 128
        %1322 = vxpose.xlu0.b32.cont [7/16] 0.0, 128
        %1323 = vxpose.xlu0.b32.cont [8/16] 0.0, 128
        %1324 = vxpose.xlu0.b32.cont [9/16] 0.0, 128
        %1325 = vxpose.xlu0.b32.cont [10/16] 0.0, 128
        %1326 = vxpose.xlu0.b32.cont [11/16] 0.0, 128
        %1327 = vxpose.xlu0.b32.cont [12/16] 0.0, 128
        %1328 = vxpose.xlu0.b32.cont [13/16] 0.0, 128
        %1329 = vxpose.xlu0.b32.cont [14/16] 0.0, 128
        %1330 = vxpose.xlu0.b32.cont [15/16] 0.0, 128
        %1331 = vxpose.xlu0.b32.end [16/16] 0.0, 128
        %v1332 = vpop.trf.xlu0
        %v1333 = vpop.trf.xlu0
        %v1334 = vpop.trf.xlu0
        %v1335 = vpop.trf.xlu0
        %v1336 = vpop.trf.xlu0
        %v1337 = vpop.trf.xlu0
        %v1338 = vpop.trf.xlu0
        %v1339 = vpop.trf.xlu0
        %v1340 = vpop.trf.xlu0
        %v1341 = vpop.trf.xlu0
        %v1342 = vpop.trf.xlu0
        %v1343 = vpop.trf.xlu0
        %v1344 = vpop.trf.xlu0
        %v1345 = vpop.trf.xlu0
        %v1346 = vpop.trf.xlu0
        %v1347 = vpop.trf.xlu0
        %v1348 = vmul.f32 %v771, %v1300
        %v1349 = vmul.f32 %v772, %v1301
        %v1350 = vsel %vm773, %v1348, 0.0
        %vm1351 = vcmask 83968
        %v1352 = vsel %vm1351, %v1349, 0.0
        %v1353 = vadd.f32 %v1350, %v1352
        %1354 = vadd.xlane.f32.xlu0 %v1353
        %v1355 = vpop.xlane.xlu0 %1354
        %v1356 = vrot.slane %v1355, 4
        %v1357 = vadd.f32 %v1355, %v1356
        %v1358 = vrot.slane %v1357, 2
        %v1359 = vadd.f32 %v1357, %v1358
        %v1360 = vrot.slane %v1359, 1
        %v1361 = vadd.f32 %v1359, %v1360
        %s1362 = vtos %v1361
        %s1363 = smul.f32 %s1362, 0.008264462
        %s1364 = sld [smem:[#allocation2]]
        %s1365 = smul.f32 %s1364, %s1363
        %s1366 = sadd.f32 %s1365, 0.0
        %s1367 = smul.f32 %s1363, %s1363
        %s1368 = sld [smem:[#allocation2 + $0x1]]
        %s1369 = smul.f32 %s1368, %s1367
        %s1370 = sadd.f32 %s1366, %s1369
        %s1371 = smul.f32 %s1367, %s1363
        %s1372 = sld [smem:[#allocation2 + $0x2]]
        %s1373 = smul.f32 %s1372, %s1371
        %s1374 = sadd.f32 %s1370, %s1373
        %s1375 = smul.f32 %s1371, %s1363
        %s1376 = sld [smem:[#allocation2 + $0x3]]
        %s1377 = smul.f32 %s1376, %s1375
        %s1378 = sadd.f32 %s1374, %s1377
        %v1379 = vmul.f32 %v1275, %v1300
        %v1380 = vmul.f32 %v1281, %v1301
        %v1381 = vsel %vm773, %v1379, 0.0
        %v1382 = vsel %vm1351, %v1380, 0.0
        %v1383 = vadd.f32 %v1381, %v1382
        %1384 = vadd.xlane.f32.xlu0 %v1383
        %v1385 = vpop.xlane.xlu0 %1384
        %v1386 = vrot.slane %v1385, 4
        %v1387 = vadd.f32 %v1385, %v1386
        %v1388 = vrot.slane %v1387, 2
        %v1389 = vadd.f32 %v1387, %v1388
        %v1390 = vrot.slane %v1389, 1
        %v1391 = vadd.f32 %v1389, %v1390
        %s1392 = vtos %v1391
        %s1393 = smul.f32 %s1392, 0.008264462
        %s1394 = sld [smem:[#allocation2 + $0x4]]
        %s1395 = smul.f32 %s1394, %s1393
        %s1396 = sadd.f32 %s1378, %s1395
        %s1397 = smul.f32 %s1393, %s1393
        %s1398 = sld [smem:[#allocation2 + $0x5]]
        %s1399 = smul.f32 %s1398, %s1397
        %s1400 = sadd.f32 %s1396, %s1399
        %s1401 = smul.f32 %s1397, %s1393
        %s1402 = sld [smem:[#allocation2 + $0x6]]
        %s1403 = smul.f32 %s1402, %s1401
        %s1404 = sadd.f32 %s1400, %s1403
        %s1405 = smul.f32 %s1401, %s1393
        %s1406 = sld [smem:[#allocation2 + $0x7]]
        %s1407 = smul.f32 %s1406, %s1405
        %s1408 = sadd.f32 %s1404, %s1407
        %v1409 = vmul.f32 %v1275, %v1332
        %v1410 = vmul.f32 %v1281, %v1333
        %v1411 = vsel %vm773, %v1409, 0.0
        %v1412 = vsel %vm1351, %v1410, 0.0
        %v1413 = vadd.f32 %v1411, %v1412
        %1414 = vadd.xlane.f32.xlu0 %v1413
        %v1415 = vpop.xlane.xlu0 %1414
        %v1416 = vrot.slane %v1415, 4
        %v1417 = vadd.f32 %v1415, %v1416
        %v1418 = vrot.slane %v1417, 2
        %v1419 = vadd.f32 %v1417, %v1418
        %v1420 = vrot.slane %v1419, 1
        %v1421 = vadd.f32 %v1419, %v1420
        %s1422 = vtos %v1421
        %s1423 = smul.f32 %s1422, 0.008264462
        %s1424 = sld [smem:[#allocation2 + $0x8]]
        %s1425 = smul.f32 %s1424, %s1423
        %s1426 = sadd.f32 %s1408, %s1425
        %s1427 = smul.f32 %s1423, %s1423
        %s1428 = sld [smem:[#allocation2 + $0x9]]
        %s1429 = smul.f32 %s1428, %s1427
        %s1430 = sadd.f32 %s1426, %s1429
        %s1431 = smul.f32 %s1427, %s1423
        %s1432 = sld [smem:[#allocation2 + $0xa]]
        %s1433 = smul.f32 %s1432, %s1431
        %s1434 = sadd.f32 %s1430, %s1433
        %s1435 = smul.f32 %s1431, %s1423
        %s1436 = sld [smem:[#allocation2 + $0xb]]
        %s1437 = smul.f32 %s1436, %s1435
        %s1438 = sadd.f32 %s1434, %s1437
        %1439 = vrot.lane.b32.xlu0 %v771, 117
        %v1440 = vpop.permute.xlu0 %1439
        %1441 = vrot.lane.b32.xlu0 %v772, 117
        %v1442 = vpop.permute.xlu0 %1441
        %v1444 = vsel %vm773, %v1440, 0
        %v1446 = vsel %vm773, %v1442, 0
        %v1448 = vsel %vm677, %v1442, 0
        %1450 = vmatprep.subr.mxu0 0.0
        %v1451 = vand.u32 %v1440, 4294901760
        %1452 = vmatpush1.msra.mxu0 %v1451
        %1453 = vmatprep.subr.mxu0 0.0
        %v1454 = vand.u32 %v1448, 4294901760
        %1455 = vmatpush1.msra.mxu0 %v1454
        %1456 = vmatprep.subr.mxu0 0.0
        %1457 = vmatpush1.msra.mxu0 0.0
        %1458 = vmatprep.subr.mxu0 0.0
        %1459 = vmatpush1.msra.mxu0 0.0
        %1460 = vmatprep.subr.mxu0 0.0
        %1461 = vmatpush1.msra.mxu0 0.0
        %1462 = vmatprep.subr.mxu0 0.0
        %1463 = vmatpush1.msra.mxu0 0.0
        %1464 = vmatprep.subr.mxu0 0.0
        %1465 = vmatpush1.msra.mxu0 0.0
        %1466 = vmatprep.subr.mxu0 0.0
        %1467 = vmatpush1.msra.mxu0 0.0
        %1468 = vmatprep.subr.mxu0 0.0
        %1469 = vmatpush1.msra.mxu0 0.0
        %1470 = vmatprep.subr.mxu0 0.0
        %1471 = vmatpush1.msra.mxu0 0.0
        %1472 = vmatprep.subr.mxu0 0.0
        %1473 = vmatpush1.msra.mxu0 0.0
        %1474 = vmatprep.subr.mxu0 0.0
        %1475 = vmatpush1.msra.mxu0 0.0
        %1476 = vmatprep.subr.mxu0 0.0
        %1477 = vmatpush1.msra.mxu0 0.0
        %1478 = vmatprep.subr.mxu0 0.0
        %1479 = vmatpush1.msra.mxu0 0.0
        %1480 = vmatprep.subr.mxu0 0.0
        %1481 = vmatpush1.msra.mxu0 0.0
        %1482 = vmatprep.subr.mxu0 0.0
        %1483 = vmatpush1.msra.mxu0 0.0
        %1484 = vmatprep.subr.mxu0 0.0
        %1485 = vmatpush1.msra.mxu0 0.0
        %1486 = vmatprep.subr.mxu0 0.0
        %1487 = vmatpush1.msra.mxu0 0.0
        %1488 = vmatprep.subr.mxu0 0.0
        %1489 = vmatpush1.msra.mxu0 0.0
        %1490 = vmatprep.subr.mxu0 0.0
        %1491 = vmatpush1.msra.mxu0 0.0
        %1492 = vmatprep.subr.mxu0 0.0
        %1493 = vmatpush1.msra.mxu0 0.0
        %1494 = vmatprep.subr.mxu0 0.0
        %1495 = vmatpush1.msra.mxu0 0.0
        %1496 = vmatprep.subr.mxu0 0.0
        %1497 = vmatpush1.msra.mxu0 0.0
        %1498 = vmatprep.subr.mxu0 0.0
        %1499 = vmatpush1.msra.mxu0 0.0
        %1500 = vmatprep.subr.mxu0 0.0
        %1501 = vmatpush1.msra.mxu0 0.0
        %1502 = vmatprep.subr.mxu0 0.0
        %1503 = vmatpush1.msra.mxu0 0.0
        %1504 = vmatprep.subr.mxu0 0.0
        %1505 = vmatpush1.msra.mxu0 0.0
        %1506 = vmatprep.subr.mxu0 0.0
        %1507 = vmatpush1.msra.mxu0 0.0
        %1508 = vmatprep.subr.mxu0 0.0
        %1509 = vmatpush1.msra.mxu0 0.0
        %1510 = vmatprep.subr.mxu0 0.0
        %1511 = vmatpush1.msra.mxu0 0.0
        %1512 = vmatprep.subr.mxu0 0.0
        %1513 = vmatpush1.msra.mxu0 0.0
        %1514 = vmatprep.subr.mxu0 0.0
        %1515 = vmatpush1.msra.mxu0 0.0
        %1516 = vmatprep.mubr.f32.mxu0 0.0
        %v1517 = vand.u32 %v1444, 4294901760
        %v1518 = vsub.f32 %v1444, %v1517
        %v1519 = vand.u32 %v1518, 4294901760
        %v1520 = vsub.f32 %v1518, %v1519
        %v1521 = vand.u32 %v1520, 4294901760
        %1522 = vmatmul.mubr.f32.gmra.mrb[0].mxu0 %v1521
        %v1523 = vpop.f32.mrb[0].mxu0
        %v1524 = vadd.f32 0.0, %v1523
        %v1525 = vpop.f32.mrb[0].mxu0
        %1526 = vmatprep.mubr.f32.mxu0 0.0
        %v1527 = vand.u32 %v1446, 4294901760
        %v1528 = vsub.f32 %v1446, %v1527
        %v1529 = vand.u32 %v1528, 4294901760
        %v1530 = vsub.f32 %v1528, %v1529
        %v1531 = vand.u32 %v1530, 4294901760
        %1532 = vmatmul.mubr.f32.gmra.mrb[0].mxu0 %v1531
        %v1533 = vpop.f32.mrb[0].mxu0
        %v1534 = vadd.f32 0.0, %v1533
        %v1535 = vpop.f32.mrb[0].mxu0
        %1536 = vdwg.mxu0
        %1537 = vmatprep.subr.mxu0 0.0
        %v1538 = vand.u32 %v1440, 4294901760
        %v1539 = vsub.f32 %v1440, %v1538
        %v1540 = vand.u32 %v1539, 4294901760
        %v1541 = vsub.f32 %v1539, %v1540
        %v1542 = vand.u32 %v1541, 4294901760
        %1543 = vmatpush1.msra.mxu0 %v1542
        %1544 = vmatprep.subr.mxu0 0.0
        %v1545 = vand.u32 %v1448, 4294901760
        %v1546 = vsub.f32 %v1448, %v1545
        %v1547 = vand.u32 %v1546, 4294901760
        %v1548 = vsub.f32 %v1546, %v1547
        %v1549 = vand.u32 %v1548, 4294901760
        %1550 = vmatpush1.msra.mxu0 %v1549
        %1551 = vmatprep.subr.mxu0 0.0
        %1552 = vmatpush1.msra.mxu0 0.0
        %1553 = vmatprep.subr.mxu0 0.0
        %1554 = vmatpush1.msra.mxu0 0.0
        %1555 = vmatprep.subr.mxu0 0.0
        %1556 = vmatpush1.msra.mxu0 0.0
        %1557 = vmatprep.subr.mxu0 0.0
        %1558 = vmatpush1.msra.mxu0 0.0
        %1559 = vmatprep.subr.mxu0 0.0
        %1560 = vmatpush1.msra.mxu0 0.0
        %1561 = vmatprep.subr.mxu0 0.0
        %1562 = vmatpush1.msra.mxu0 0.0
        %1563 = vmatprep.subr.mxu0 0.0
        %1564 = vmatpush1.msra.mxu0 0.0
        %1565 = vmatprep.subr.mxu0 0.0
        %1566 = vmatpush1.msra.mxu0 0.0
        %1567 = vmatprep.subr.mxu0 0.0
        %1568 = vmatpush1.msra.mxu0 0.0
        %1569 = vmatprep.subr.mxu0 0.0
        %1570 = vmatpush1.msra.mxu0 0.0
        %1571 = vmatprep.subr.mxu0 0.0
        %1572 = vmatpush1.msra.mxu0 0.0
        %1573 = vmatprep.subr.mxu0 0.0
        %1574 = vmatpush1.msra.mxu0 0.0
        %1575 = vmatprep.subr.mxu0 0.0
        %1576 = vmatpush1.msra.mxu0 0.0
        %1577 = vmatprep.subr.mxu0 0.0
        %1578 = vmatpush1.msra.mxu0 0.0
        %1579 = vmatprep.subr.mxu0 0.0
        %1580 = vmatpush1.msra.mxu0 0.0
        %1581 = vmatprep.subr.mxu0 0.0
        %1582 = vmatpush1.msra.mxu0 0.0
        %1583 = vmatprep.subr.mxu0 0.0
        %1584 = vmatpush1.msra.mxu0 0.0
        %1585 = vmatprep.subr.mxu0 0.0
        %1586 = vmatpush1.msra.mxu0 0.0
        %1587 = vmatprep.subr.mxu0 0.0
        %1588 = vmatpush1.msra.mxu0 0.0
        %1589 = vmatprep.subr.mxu0 0.0
        %1590 = vmatpush1.msra.mxu0 0.0
        %1591 = vmatprep.subr.mxu0 0.0
        %1592 = vmatpush1.msra.mxu0 0.0
        %1593 = vmatprep.subr.mxu0 0.0
        %1594 = vmatpush1.msra.mxu0 0.0
        %1595 = vmatprep.subr.mxu0 0.0
        %1596 = vmatpush1.msra.mxu0 0.0
        %1597 = vmatprep.subr.mxu0 0.0
        %1598 = vmatpush1.msra.mxu0 0.0
        %1599 = vmatprep.subr.mxu0 0.0
        %1600 = vmatpush1.msra.mxu0 0.0
        %1601 = vmatprep.subr.mxu0 0.0
        %1602 = vmatpush1.msra.mxu0 0.0
        %1603 = vmatprep.subr.mxu0 0.0
        %1604 = vmatpush1.msra.mxu0 0.0
        %1605 = vmatprep.subr.mxu0 0.0
        %1606 = vmatpush1.msra.mxu0 0.0
        %1607 = vmatprep.subr.mxu0 0.0
        %1608 = vmatpush1.msra.mxu0 0.0
        %1609 = vmatprep.subr.mxu0 0.0
        %1610 = vmatpush1.msra.mxu0 0.0
        %1611 = vmatprep.mubr.f32.mxu0 0.0
        %v1612 = vand.u32 %v1444, 4294901760
        %1613 = vmatmul.mubr.f32.gmra.mrb[0].mxu0 %v1612
        %v1614 = vpop.f32.mrb[0].mxu0
        %v1615 = vadd.f32 %v1524, %v1614
        %v1616 = vpop.f32.mrb[0].mxu0
        %1617 = vmatprep.mubr.f32.mxu0 0.0
        %v1618 = vand.u32 %v1446, 4294901760
        %1619 = vmatmul.mubr.f32.gmra.mrb[0].mxu0 %v1618
        %v1620 = vpop.f32.mrb[0].mxu0
        %v1621 = vadd.f32 %v1534, %v1620
        %v1622 = vpop.f32.mrb[0].mxu0
        %1623 = vdwg.mxu0
        %1624 = vmatprep.subr.mxu0 0.0
        %v1625 = vand.u32 %v1440, 4294901760
        %v1626 = vsub.f32 %v1440, %v1625
        %1627 = vmatpush1.msra.mxu0 %v1626
        %1628 = vmatprep.subr.mxu0 0.0
        %v1629 = vand.u32 %v1448, 4294901760
        %v1630 = vsub.f32 %v1448, %v1629
        %1631 = vmatpush1.msra.mxu0 %v1630
        %1632 = vmatprep.subr.mxu0 0.0
        %1633 = vmatpush1.msra.mxu0 0.0
        %1634 = vmatprep.subr.mxu0 0.0
        %1635 = vmatpush1.msra.mxu0 0.0
        %1636 = vmatprep.subr.mxu0 0.0
        %1637 = vmatpush1.msra.mxu0 0.0
        %1638 = vmatprep.subr.mxu0 0.0
        %1639 = vmatpush1.msra.mxu0 0.0
        %1640 = vmatprep.subr.mxu0 0.0
        %1641 = vmatpush1.msra.mxu0 0.0
        %1642 = vmatprep.subr.mxu0 0.0
        %1643 = vmatpush1.msra.mxu0 0.0
        %1644 = vmatprep.subr.mxu0 0.0
        %1645 = vmatpush1.msra.mxu0 0.0
        %1646 = vmatprep.subr.mxu0 0.0
        %1647 = vmatpush1.msra.mxu0 0.0
        %1648 = vmatprep.subr.mxu0 0.0
        %1649 = vmatpush1.msra.mxu0 0.0
        %1650 = vmatprep.subr.mxu0 0.0
        %1651 = vmatpush1.msra.mxu0 0.0
        %1652 = vmatprep.subr.mxu0 0.0
        %1653 = vmatpush1.msra.mxu0 0.0
        %1654 = vmatprep.subr.mxu0 0.0
        %1655 = vmatpush1.msra.mxu0 0.0
        %1656 = vmatprep.subr.mxu0 0.0
        %1657 = vmatpush1.msra.mxu0 0.0
        %1658 = vmatprep.subr.mxu0 0.0
        %1659 = vmatpush1.msra.mxu0 0.0
        %1660 = vmatprep.subr.mxu0 0.0
        %1661 = vmatpush1.msra.mxu0 0.0
        %1662 = vmatprep.subr.mxu0 0.0
        %1663 = vmatpush1.msra.mxu0 0.0
        %1664 = vmatprep.subr.mxu0 0.0
        %1665 = vmatpush1.msra.mxu0 0.0
        %1666 = vmatprep.subr.mxu0 0.0
        %1667 = vmatpush1.msra.mxu0 0.0
        %1668 = vmatprep.subr.mxu0 0.0
        %1669 = vmatpush1.msra.mxu0 0.0
        %1670 = vmatprep.subr.mxu0 0.0
        %1671 = vmatpush1.msra.mxu0 0.0
        %1672 = vmatprep.subr.mxu0 0.0
        %1673 = vmatpush1.msra.mxu0 0.0
        %1674 = vmatprep.subr.mxu0 0.0
        %1675 = vmatpush1.msra.mxu0 0.0
        %1676 = vmatprep.subr.mxu0 0.0
        %1677 = vmatpush1.msra.mxu0 0.0
        %1678 = vmatprep.subr.mxu0 0.0
        %1679 = vmatpush1.msra.mxu0 0.0
        %1680 = vmatprep.subr.mxu0 0.0
        %1681 = vmatpush1.msra.mxu0 0.0
        %1682 = vmatprep.subr.mxu0 0.0
        %1683 = vmatpush1.msra.mxu0 0.0
        %1684 = vmatprep.subr.mxu0 0.0
        %1685 = vmatpush1.msra.mxu0 0.0
        %1686 = vmatprep.subr.mxu0 0.0
        %1687 = vmatpush1.msra.mxu0 0.0
        %1688 = vmatprep.subr.mxu0 0.0
        %1689 = vmatpush1.msra.mxu0 0.0
        %1690 = vmatprep.subr.mxu0 0.0
        %1691 = vmatpush1.msra.mxu0 0.0
        %1692 = vmatprep.mubr.f32.mxu0 0.0
        %v1693 = vand.u32 %v1444, 4294901760
        %v1694 = vsub.f32 %v1444, %v1693
        %1695 = vmatmul.mubr.f32.gmra.mrb[0].mxu0 %v1694
        %v1696 = vpop.f32.mrb[0].mxu0
        %v1697 = vadd.f32 %v1615, %v1696
        %v1698 = vpop.f32.mrb[0].mxu0
        %1699 = vmatprep.mubr.f32.mxu0 0.0
        %v1700 = vand.u32 %v1446, 4294901760
        %v1701 = vsub.f32 %v1446, %v1700
        %1702 = vmatmul.mubr.f32.gmra.mrb[0].mxu0 %v1701
        %v1703 = vpop.f32.mrb[0].mxu0
        %v1704 = vadd.f32 %v1621, %v1703
        %v1705 = vpop.f32.mrb[0].mxu0
        %1706 = vdwg.mxu0
        %1707 = vmatprep.subr.mxu0 0.0
        %v1708 = vand.u32 %v1440, 4294901760
        %1709 = vmatpush1.msra.mxu0 %v1708
        %1710 = vmatprep.subr.mxu0 0.0
        %v1711 = vand.u32 %v1448, 4294901760
        %1712 = vmatpush1.msra.mxu0 %v1711
        %1713 = vmatprep.subr.mxu0 0.0
        %1714 = vmatpush1.msra.mxu0 0.0
        %1715 = vmatprep.subr.mxu0 0.0
        %1716 = vmatpush1.msra.mxu0 0.0
        %1717 = vmatprep.subr.mxu0 0.0
        %1718 = vmatpush1.msra.mxu0 0.0
        %1719 = vmatprep.subr.mxu0 0.0
        %1720 = vmatpush1.msra.mxu0 0.0
        %1721 = vmatprep.subr.mxu0 0.0
        %1722 = vmatpush1.msra.mxu0 0.0
        %1723 = vmatprep.subr.mxu0 0.0
        %1724 = vmatpush1.msra.mxu0 0.0
        %1725 = vmatprep.subr.mxu0 0.0
        %1726 = vmatpush1.msra.mxu0 0.0
        %1727 = vmatprep.subr.mxu0 0.0
        %1728 = vmatpush1.msra.mxu0 0.0
        %1729 = vmatprep.subr.mxu0 0.0
        %1730 = vmatpush1.msra.mxu0 0.0
        %1731 = vmatprep.subr.mxu0 0.0
        %1732 = vmatpush1.msra.mxu0 0.0
        %1733 = vmatprep.subr.mxu0 0.0
        %1734 = vmatpush1.msra.mxu0 0.0
        %1735 = vmatprep.subr.mxu0 0.0
        %1736 = vmatpush1.msra.mxu0 0.0
        %1737 = vmatprep.subr.mxu0 0.0
        %1738 = vmatpush1.msra.mxu0 0.0
        %1739 = vmatprep.subr.mxu0 0.0
        %1740 = vmatpush1.msra.mxu0 0.0
        %1741 = vmatprep.subr.mxu0 0.0
        %1742 = vmatpush1.msra.mxu0 0.0
        %1743 = vmatprep.subr.mxu0 0.0
        %1744 = vmatpush1.msra.mxu0 0.0
        %1745 = vmatprep.subr.mxu0 0.0
        %1746 = vmatpush1.msra.mxu0 0.0
        %1747 = vmatprep.subr.mxu0 0.0
        %1748 = vmatpush1.msra.mxu0 0.0
        %1749 = vmatprep.subr.mxu0 0.0
        %1750 = vmatpush1.msra.mxu0 0.0
        %1751 = vmatprep.subr.mxu0 0.0
        %1752 = vmatpush1.msra.mxu0 0.0
        %1753 = vmatprep.subr.mxu0 0.0
        %1754 = vmatpush1.msra.mxu0 0.0
        %1755 = vmatprep.subr.mxu0 0.0
        %1756 = vmatpush1.msra.mxu0 0.0
        %1757 = vmatprep.subr.mxu0 0.0
        %1758 = vmatpush1.msra.mxu0 0.0
        %1759 = vmatprep.subr.mxu0 0.0
        %1760 = vmatpush1.msra.mxu0 0.0
        %1761 = vmatprep.subr.mxu0 0.0
        %1762 = vmatpush1.msra.mxu0 0.0
        %1763 = vmatprep.subr.mxu0 0.0
        %1764 = vmatpush1.msra.mxu0 0.0
        %1765 = vmatprep.subr.mxu0 0.0
        %1766 = vmatpush1.msra.mxu0 0.0
        %1767 = vmatprep.subr.mxu0 0.0
        %1768 = vmatpush1.msra.mxu0 0.0
        %1769 = vmatprep.subr.mxu0 0.0
        %1770 = vmatpush1.msra.mxu0 0.0
        %1771 = vmatprep.subr.mxu0 0.0
        %1772 = vmatpush1.msra.mxu0 0.0
        %1773 = vmatprep.mubr.f32.mxu0 0.0
        %v1774 = vand.u32 %v1444, 4294901760
        %v1775 = vsub.f32 %v1444, %v1774
        %v1776 = vand.u32 %v1775, 4294901760
        %1777 = vmatmul.mubr.f32.gmra.mrb[0].mxu0 %v1776
        %v1778 = vpop.f32.mrb[0].mxu0
        %v1779 = vadd.f32 %v1697, %v1778
        %v1780 = vpop.f32.mrb[0].mxu0
        %1781 = vmatprep.mubr.f32.mxu0 0.0
        %v1782 = vand.u32 %v1446, 4294901760
        %v1783 = vsub.f32 %v1446, %v1782
        %v1784 = vand.u32 %v1783, 4294901760
        %1785 = vmatmul.mubr.f32.gmra.mrb[0].mxu0 %v1784
        %v1786 = vpop.f32.mrb[0].mxu0
        %v1787 = vadd.f32 %v1704, %v1786
        %v1788 = vpop.f32.mrb[0].mxu0
        %1789 = vdwg.mxu0
        %1790 = vmatprep.subr.mxu0 0.0
        %v1791 = vand.u32 %v1440, 4294901760
        %v1792 = vsub.f32 %v1440, %v1791
        %v1793 = vand.u32 %v1792, 4294901760
        %1794 = vmatpush1.msra.mxu0 %v1793
        %1795 = vmatprep.subr.mxu0 0.0
        %v1796 = vand.u32 %v1448, 4294901760
        %v1797 = vsub.f32 %v1448, %v1796
        %v1798 = vand.u32 %v1797, 4294901760
        %1799 = vmatpush1.msra.mxu0 %v1798
        %1800 = vmatprep.subr.mxu0 0.0
        %1801 = vmatpush1.msra.mxu0 0.0
        %1802 = vmatprep.subr.mxu0 0.0
        %1803 = vmatpush1.msra.mxu0 0.0
        %1804 = vmatprep.subr.mxu0 0.0
        %1805 = vmatpush1.msra.mxu0 0.0
        %1806 = vmatprep.subr.mxu0 0.0
        %1807 = vmatpush1.msra.mxu0 0.0
        %1808 = vmatprep.subr.mxu0 0.0
        %1809 = vmatpush1.msra.mxu0 0.0
        %1810 = vmatprep.subr.mxu0 0.0
        %1811 = vmatpush1.msra.mxu0 0.0
        %1812 = vmatprep.subr.mxu0 0.0
        %1813 = vmatpush1.msra.mxu0 0.0
        %1814 = vmatprep.subr.mxu0 0.0
        %1815 = vmatpush1.msra.mxu0 0.0
        %1816 = vmatprep.subr.mxu0 0.0
        %1817 = vmatpush1.msra.mxu0 0.0
        %1818 = vmatprep.subr.mxu0 0.0
        %1819 = vmatpush1.msra.mxu0 0.0
        %1820 = vmatprep.subr.mxu0 0.0
        %1821 = vmatpush1.msra.mxu0 0.0
        %1822 = vmatprep.subr.mxu0 0.0
        %1823 = vmatpush1.msra.mxu0 0.0
        %1824 = vmatprep.subr.mxu0 0.0
        %1825 = vmatpush1.msra.mxu0 0.0
        %1826 = vmatprep.subr.mxu0 0.0
        %1827 = vmatpush1.msra.mxu0 0.0
        %1828 = vmatprep.subr.mxu0 0.0
        %1829 = vmatpush1.msra.mxu0 0.0
        %1830 = vmatprep.subr.mxu0 0.0
        %1831 = vmatpush1.msra.mxu0 0.0
        %1832 = vmatprep.subr.mxu0 0.0
        %1833 = vmatpush1.msra.mxu0 0.0
        %1834 = vmatprep.subr.mxu0 0.0
        %1835 = vmatpush1.msra.mxu0 0.0
        %1836 = vmatprep.subr.mxu0 0.0
        %1837 = vmatpush1.msra.mxu0 0.0
        %1838 = vmatprep.subr.mxu0 0.0
        %1839 = vmatpush1.msra.mxu0 0.0
        %1840 = vmatprep.subr.mxu0 0.0
        %1841 = vmatpush1.msra.mxu0 0.0
        %1842 = vmatprep.subr.mxu0 0.0
        %1843 = vmatpush1.msra.mxu0 0.0
        %1844 = vmatprep.subr.mxu0 0.0
        %1845 = vmatpush1.msra.mxu0 0.0
        %1846 = vmatprep.subr.mxu0 0.0
        %1847 = vmatpush1.msra.mxu0 0.0
        %1848 = vmatprep.subr.mxu0 0.0
        %1849 = vmatpush1.msra.mxu0 0.0
        %1850 = vmatprep.subr.mxu0 0.0
        %1851 = vmatpush1.msra.mxu0 0.0
        %1852 = vmatprep.subr.mxu0 0.0
        %1853 = vmatpush1.msra.mxu0 0.0
        %1854 = vmatprep.subr.mxu0 0.0
        %1855 = vmatpush1.msra.mxu0 0.0
        %1856 = vmatprep.subr.mxu0 0.0
        %1857 = vmatpush1.msra.mxu0 0.0
        %1858 = vmatprep.subr.mxu0 0.0
        %1859 = vmatpush1.msra.mxu0 0.0
        %1860 = vmatprep.mubr.f32.mxu0 0.0
        %v1861 = vand.u32 %v1444, 4294901760
        %1862 = vmatmul.mubr.f32.gmra.mrb[0].mxu0 %v1861
        %v1863 = vpop.f32.mrb[0].mxu0
        %v1864 = vadd.f32 %v1779, %v1863
        %v1865 = vpop.f32.mrb[0].mxu0
        %1866 = vmatprep.mubr.f32.mxu0 0.0
        %v1867 = vand.u32 %v1446, 4294901760
        %1868 = vmatmul.mubr.f32.gmra.mrb[0].mxu0 %v1867
        %v1869 = vpop.f32.mrb[0].mxu0
        %v1870 = vadd.f32 %v1787, %v1869
        %v1871 = vpop.f32.mrb[0].mxu0
        %1872 = vdwg.mxu0
        %1873 = vmatprep.subr.mxu0 0.0
        %v1874 = vand.u32 %v1440, 4294901760
        %1875 = vmatpush1.msra.mxu0 %v1874
        %1876 = vmatprep.subr.mxu0 0.0
        %v1877 = vand.u32 %v1448, 4294901760
        %1878 = vmatpush1.msra.mxu0 %v1877
        %1879 = vmatprep.subr.mxu0 0.0
        %1880 = vmatpush1.msra.mxu0 0.0
        %1881 = vmatprep.subr.mxu0 0.0
        %1882 = vmatpush1.msra.mxu0 0.0
        %1883 = vmatprep.subr.mxu0 0.0
        %1884 = vmatpush1.msra.mxu0 0.0
        %1885 = vmatprep.subr.mxu0 0.0
        %1886 = vmatpush1.msra.mxu0 0.0
        %1887 = vmatprep.subr.mxu0 0.0
        %1888 = vmatpush1.msra.mxu0 0.0
        %1889 = vmatprep.subr.mxu0 0.0
        %1890 = vmatpush1.msra.mxu0 0.0
        %1891 = vmatprep.subr.mxu0 0.0
        %1892 = vmatpush1.msra.mxu0 0.0
        %1893 = vmatprep.subr.mxu0 0.0
        %1894 = vmatpush1.msra.mxu0 0.0
        %1895 = vmatprep.subr.mxu0 0.0
        %1896 = vmatpush1.msra.mxu0 0.0
        %1897 = vmatprep.subr.mxu0 0.0
        %1898 = vmatpush1.msra.mxu0 0.0
        %1899 = vmatprep.subr.mxu0 0.0
        %1900 = vmatpush1.msra.mxu0 0.0
        %1901 = vmatprep.subr.mxu0 0.0
        %1902 = vmatpush1.msra.mxu0 0.0
        %1903 = vmatprep.subr.mxu0 0.0
        %1904 = vmatpush1.msra.mxu0 0.0
        %1905 = vmatprep.subr.mxu0 0.0
        %1906 = vmatpush1.msra.mxu0 0.0
        %1907 = vmatprep.subr.mxu0 0.0
        %1908 = vmatpush1.msra.mxu0 0.0
        %1909 = vmatprep.subr.mxu0 0.0
        %1910 = vmatpush1.msra.mxu0 0.0
        %1911 = vmatprep.subr.mxu0 0.0
        %1912 = vmatpush1.msra.mxu0 0.0
        %1913 = vmatprep.subr.mxu0 0.0
        %1914 = vmatpush1.msra.mxu0 0.0
        %1915 = vmatprep.subr.mxu0 0.0
        %1916 = vmatpush1.msra.mxu0 0.0
        %1917 = vmatprep.subr.mxu0 0.0
        %1918 = vmatpush1.msra.mxu0 0.0
        %1919 = vmatprep.subr.mxu0 0.0
        %1920 = vmatpush1.msra.mxu0 0.0
        %1921 = vmatprep.subr.mxu0 0.0
        %1922 = vmatpush1.msra.mxu0 0.0
        %1923 = vmatprep.subr.mxu0 0.0
        %1924 = vmatpush1.msra.mxu0 0.0
        %1925 = vmatprep.subr.mxu0 0.0
        %1926 = vmatpush1.msra.mxu0 0.0
        %1927 = vmatprep.subr.mxu0 0.0
        %1928 = vmatpush1.msra.mxu0 0.0
        %1929 = vmatprep.subr.mxu0 0.0
        %1930 = vmatpush1.msra.mxu0 0.0
        %1931 = vmatprep.subr.mxu0 0.0
        %1932 = vmatpush1.msra.mxu0 0.0
        %1933 = vmatprep.subr.mxu0 0.0
        %1934 = vmatpush1.msra.mxu0 0.0
        %1935 = vmatprep.subr.mxu0 0.0
        %1936 = vmatpush1.msra.mxu0 0.0
        %1937 = vmatprep.subr.mxu0 0.0
        %1938 = vmatpush1.msra.mxu0 0.0
        %1939 = vmatprep.mubr.f32.mxu0 0.0
        %v1940 = vand.u32 %v1444, 4294901760
        %1941 = vmatmul.mubr.f32.gmra.mrb[0].mxu0 %v1940
        %v1942 = vpop.f32.mrb[0].mxu0
        %v1943 = vadd.f32 %v1864, %v1942
        %v1944 = vpop.f32.mrb[0].mxu0
        %1945 = vmatprep.mubr.f32.mxu0 0.0
        %v1946 = vand.u32 %v1446, 4294901760
        %1947 = vmatmul.mubr.f32.gmra.mrb[0].mxu0 %v1946
        %v1948 = vpop.f32.mrb[0].mxu0
        %v1949 = vadd.f32 %v1870, %v1948
        %v1950 = vpop.f32.mrb[0].mxu0
        %1951 = vdwg.mxu0
        %1953 = vxpose.xlu0.b32.start [1/16] %v1440, 128
        %1954 = vxpose.xlu0.b32.cont [2/16] %v1442, 128
        %1955 = vxpose.xlu0.b32.cont [3/16] 0.0, 128
        %1956 = vxpose.xlu0.b32.cont [4/16] 0.0, 128
        %1957 = vxpose.xlu0.b32.cont [5/16] 0.0, 128
        %1958 = vxpose.xlu0.b32.cont [6/16] 0.0, 128
        %1959 = vxpose.xlu0.b32.cont [7/16] 0.0, 128
        %1960 = vxpose.xlu0.b32.cont [8/16] 0.0, 128
        %1961 = vxpose.xlu0.b32.cont [9/16] 0.0, 128
        %1962 = vxpose.xlu0.b32.cont [10/16] 0.0, 128
        %1963 = vxpose.xlu0.b32.cont [11/16] 0.0, 128
        %1964 = vxpose.xlu0.b32.cont [12/16] 0.0, 128
        %1965 = vxpose.xlu0.b32.cont [13/16] 0.0, 128
        %1966 = vxpose.xlu0.b32.cont [14/16] 0.0, 128
        %1967 = vxpose.xlu0.b32.cont [15/16] 0.0, 128
        %1968 = vxpose.xlu0.b32.end [16/16] 0.0, 128
        %v1969 = vpop.trf.xlu0
        %v1970 = vpop.trf.xlu0
        %v1971 = vpop.trf.xlu0
        %v1972 = vpop.trf.xlu0
        %v1973 = vpop.trf.xlu0
        %v1974 = vpop.trf.xlu0
        %v1975 = vpop.trf.xlu0
        %v1976 = vpop.trf.xlu0
        %v1977 = vpop.trf.xlu0
        %v1978 = vpop.trf.xlu0
        %v1979 = vpop.trf.xlu0
        %v1980 = vpop.trf.xlu0
        %v1981 = vpop.trf.xlu0
        %v1982 = vpop.trf.xlu0
        %v1983 = vpop.trf.xlu0
        %v1984 = vpop.trf.xlu0
        %1985 = vxpose.xlu0.b32.start [1/16] %v1943, 128
        %1986 = vxpose.xlu0.b32.cont [2/16] %v1949, 128
        %1987 = vxpose.xlu0.b32.cont [3/16] 0.0, 128
        %1988 = vxpose.xlu0.b32.cont [4/16] 0.0, 128
        %1989 = vxpose.xlu0.b32.cont [5/16] 0.0, 128
        %1990 = vxpose.xlu0.b32.cont [6/16] 0.0, 128
        %1991 = vxpose.xlu0.b32.cont [7/16] 0.0, 128
        %1992 = vxpose.xlu0.b32.cont [8/16] 0.0, 128
        %1993 = vxpose.xlu0.b32.cont [9/16] 0.0, 128
        %1994 = vxpose.xlu0.b32.cont [10/16] 0.0, 128
        %1995 = vxpose.xlu0.b32.cont [11/16] 0.0, 128
        %1996 = vxpose.xlu0.b32.cont [12/16] 0.0, 128
        %1997 = vxpose.xlu0.b32.cont [13/16] 0.0, 128
        %1998 = vxpose.xlu0.b32.cont [14/16] 0.0, 128
        %1999 = vxpose.xlu0.b32.cont [15/16] 0.0, 128
        %2000 = vxpose.xlu0.b32.end [16/16] 0.0, 128
        %v2001 = vpop.trf.xlu0
        %v2002 = vpop.trf.xlu0
        %v2003 = vpop.trf.xlu0
        %v2004 = vpop.trf.xlu0
        %v2005 = vpop.trf.xlu0
        %v2006 = vpop.trf.xlu0
        %v2007 = vpop.trf.xlu0
        %v2008 = vpop.trf.xlu0
        %v2009 = vpop.trf.xlu0
        %v2010 = vpop.trf.xlu0
        %v2011 = vpop.trf.xlu0
        %v2012 = vpop.trf.xlu0
        %v2013 = vpop.trf.xlu0
        %v2014 = vpop.trf.xlu0
        %v2015 = vpop.trf.xlu0
        %v2016 = vpop.trf.xlu0
        %2019 = vrot.lane.b32.xlu0 %v1969, 11
        %v2020 = vpop.permute.xlu0 %2019
        %2021 = vrot.lane.b32.xlu0 %v1970, 11
        %v2022 = vpop.permute.xlu0 %2021
        %v2025 = vmul.f32 %v771, %v2020
        %v2026 = vmul.f32 %v772, %v2022
        %2029 = vrot.lane.b32.xlu0 %v2025, 117
        %v2030 = vpop.permute.xlu0 %2029
        %2031 = vrot.lane.b32.xlu0 %v2026, 117
        %v2032 = vpop.permute.xlu0 %2031
        %v2035 = vsel %vm773, %v2030, 0.0
        %v2036 = vsel %vm1351, %v2032, 0.0
        %v2037 = vadd.f32 %v2035, %v2036
        %2038 = vadd.xlane.f32.xlu0 %v2037
        %v2039 = vpop.xlane.xlu0 %2038
        %v2040 = vrot.slane %v2039, 4
        %v2041 = vadd.f32 %v2039, %v2040
        %v2042 = vrot.slane %v2041, 2
        %v2043 = vadd.f32 %v2041, %v2042
        %v2044 = vrot.slane %v2043, 1
        %v2045 = vadd.f32 %v2043, %v2044
        %s2046 = vtos %v2045
        %s2047 = smul.f32 %s2046, 0.008264462
        %s2048 = sld [smem:[#allocation2 + $0xc]]
        %s2049 = smul.f32 %s2048, %s2047
        %s2050 = sadd.f32 %s1438, %s2049
        %s2051 = smul.f32 %s2047, %s2047
        %s2052 = sld [smem:[#allocation2 + $0xd]]
        %s2053 = smul.f32 %s2052, %s2051
        %s2054 = sadd.f32 %s2050, %s2053
        %s2055 = smul.f32 %s2051, %s2047
        %s2056 = sld [smem:[#allocation2 + $0xe]]
        %s2057 = smul.f32 %s2056, %s2055
        %s2058 = sadd.f32 %s2054, %s2057
        %s2059 = smul.f32 %s2055, %s2047
        %s2060 = sld [smem:[#allocation2 + $0xf]]
        %s2061 = smul.f32 %s2060, %s2059
        %s2062 = sadd.f32 %s2058, %s2061
        %v2063 = vmul.f32 %v1943, %v1969
        %v2064 = vmul.f32 %v1949, %v1970
        %v2065 = vsel %vm773, %v2063, 0.0
        %v2066 = vsel %vm1351, %v2064, 0.0
        %v2067 = vadd.f32 %v2065, %v2066
        %2068 = vadd.xlane.f32.xlu0 %v2067
        %v2069 = vpop.xlane.xlu0 %2068
        %v2070 = vrot.slane %v2069, 4
        %v2071 = vadd.f32 %v2069, %v2070
        %v2072 = vrot.slane %v2071, 2
        %v2073 = vadd.f32 %v2071, %v2072
        %v2074 = vrot.slane %v2073, 1
        %v2075 = vadd.f32 %v2073, %v2074
        %s2076 = vtos %v2075
        %s2077 = smul.f32 %s2076, 0.008264462
        %s2078 = sld [smem:[#allocation2 + $0x10]]
        %s2079 = smul.f32 %s2078, %s2077
        %s2080 = sadd.f32 %s2062, %s2079
        %s2081 = smul.f32 %s2077, %s2077
        %s2082 = sld [smem:[#allocation2 + $0x11]]
        %s2083 = smul.f32 %s2082, %s2081
        %s2084 = sadd.f32 %s2080, %s2083
        %s2085 = smul.f32 %s2081, %s2077
        %s2086 = sld [smem:[#allocation2 + $0x12]]
        %s2087 = smul.f32 %s2086, %s2085
        %s2088 = sadd.f32 %s2084, %s2087
        %s2089 = smul.f32 %s2085, %s2077
        %s2090 = sld [smem:[#allocation2 + $0x13]]
        %s2091 = smul.f32 %s2090, %s2089
        %s2092 = sadd.f32 %s2088, %s2091
        %v2093 = vmul.f32 %v1943, %v2001
        %v2094 = vmul.f32 %v1949, %v2002
        %v2095 = vsel %vm773, %v2093, 0.0
        %v2096 = vsel %vm1351, %v2094, 0.0
        %v2097 = vadd.f32 %v2095, %v2096
        %2098 = vadd.xlane.f32.xlu0 %v2097
        %v2099 = vpop.xlane.xlu0 %2098
        %v2100 = vrot.slane %v2099, 4
        %v2101 = vadd.f32 %v2099, %v2100
        %v2102 = vrot.slane %v2101, 2
        %v2103 = vadd.f32 %v2101, %v2102
        %v2104 = vrot.slane %v2103, 1
        %v2105 = vadd.f32 %v2103, %v2104
        %s2106 = vtos %v2105
        %s2107 = smul.f32 %s2106, 0.008264462
        %s2108 = sld [smem:[#allocation2 + $0x14]]
        %s2109 = smul.f32 %s2108, %s2107
        %s2110 = sadd.f32 %s2092, %s2109
        %s2111 = smul.f32 %s2107, %s2107
        %s2112 = sld [smem:[#allocation2 + $0x15]]
        %s2113 = smul.f32 %s2112, %s2111
        %s2114 = sadd.f32 %s2110, %s2113
        %s2115 = smul.f32 %s2111, %s2107
        %s2116 = sld [smem:[#allocation2 + $0x16]]
        %s2117 = smul.f32 %s2116, %s2115
        %s2118 = sadd.f32 %s2114, %s2117
        %s2119 = smul.f32 %s2115, %s2107
        %s2120 = sld [smem:[#allocation2 + $0x17]]
        %s2121 = smul.f32 %s2120, %s2119
        %s2122 = sadd.f32 %s2118, %s2121
        %2123 = vrot.lane.b32.xlu0 %v771, 106
        %v2124 = vpop.permute.xlu0 %2123
        %2125 = vrot.lane.b32.xlu0 %v772, 106
        %v2126 = vpop.permute.xlu0 %2125
        %v2128 = vsel %vm773, %v2124, 0
        %v2130 = vsel %vm773, %v2126, 0
        %v2132 = vsel %vm677, %v2126, 0
        %2134 = vmatprep.subr.mxu0 0.0
        %v2135 = vand.u32 %v2124, 4294901760
        %2136 = vmatpush1.msra.mxu0 %v2135
        %2137 = vmatprep.subr.mxu0 0.0
        %v2138 = vand.u32 %v2132, 4294901760
        %2139 = vmatpush1.msra.mxu0 %v2138
        %2140 = vmatprep.subr.mxu0 0.0
        %2141 = vmatpush1.msra.mxu0 0.0
        %2142 = vmatprep.subr.mxu0 0.0
        %2143 = vmatpush1.msra.mxu0 0.0
        %2144 = vmatprep.subr.mxu0 0.0
        %2145 = vmatpush1.msra.mxu0 0.0
        %2146 = vmatprep.subr.mxu0 0.0
        %2147 = vmatpush1.msra.mxu0 0.0
        %2148 = vmatprep.subr.mxu0 0.0
        %2149 = vmatpush1.msra.mxu0 0.0
        %2150 = vmatprep.subr.mxu0 0.0
        %2151 = vmatpush1.msra.mxu0 0.0
        %2152 = vmatprep.subr.mxu0 0.0
        %2153 = vmatpush1.msra.mxu0 0.0
        %2154 = vmatprep.subr.mxu0 0.0
        %2155 = vmatpush1.msra.mxu0 0.0
        %2156 = vmatprep.subr.mxu0 0.0
        %2157 = vmatpush1.msra.mxu0 0.0
        %2158 = vmatprep.subr.mxu0 0.0
        %2159 = vmatpush1.msra.mxu0 0.0
        %2160 = vmatprep.subr.mxu0 0.0
        %2161 = vmatpush1.msra.mxu0 0.0
        %2162 = vmatprep.subr.mxu0 0.0
        %2163 = vmatpush1.msra.mxu0 0.0
        %2164 = vmatprep.subr.mxu0 0.0
        %2165 = vmatpush1.msra.mxu0 0.0
        %2166 = vmatprep.subr.mxu0 0.0
        %2167 = vmatpush1.msra.mxu0 0.0
        %2168 = vmatprep.subr.mxu0 0.0
        %2169 = vmatpush1.msra.mxu0 0.0
        %2170 = vmatprep.subr.mxu0 0.0
        %2171 = vmatpush1.msra.mxu0 0.0
        %2172 = vmatprep.subr.mxu0 0.0
        %2173 = vmatpush1.msra.mxu0 0.0
        %2174 = vmatprep.subr.mxu0 0.0
        %2175 = vmatpush1.msra.mxu0 0.0
        %2176 = vmatprep.subr.mxu0 0.0
        %2177 = vmatpush1.msra.mxu0 0.0
        %2178 = vmatprep.subr.mxu0 0.0
        %2179 = vmatpush1.msra.mxu0 0.0
        %2180 = vmatprep.subr.mxu0 0.0
        %2181 = vmatpush1.msra.mxu0 0.0
        %2182 = vmatprep.subr.mxu0 0.0
        %2183 = vmatpush1.msra.mxu0 0.0
        %2184 = vmatprep.subr.mxu0 0.0
        %2185 = vmatpush1.msra.mxu0 0.0
        %2186 = vmatprep.subr.mxu0 0.0
        %2187 = vmatpush1.msra.mxu0 0.0
        %2188 = vmatprep.subr.mxu0 0.0
        %2189 = vmatpush1.msra.mxu0 0.0
        %2190 = vmatprep.subr.mxu0 0.0
        %2191 = vmatpush1.msra.mxu0 0.0
        %2192 = vmatprep.subr.mxu0 0.0
        %2193 = vmatpush1.msra.mxu0 0.0
        %2194 = vmatprep.subr.mxu0 0.0
        %2195 = vmatpush1.msra.mxu0 0.0
        %2196 = vmatprep.subr.mxu0 0.0
        %2197 = vmatpush1.msra.mxu0 0.0
        %2198 = vmatprep.subr.mxu0 0.0
        %2199 = vmatpush1.msra.mxu0 0.0
        %2200 = vmatprep.mubr.f32.mxu0 0.0
        %v2201 = vand.u32 %v2128, 4294901760
        %v2202 = vsub.f32 %v2128, %v2201
        %v2203 = vand.u32 %v2202, 4294901760
        %v2204 = vsub.f32 %v2202, %v2203
        %v2205 = vand.u32 %v2204, 4294901760
        %2206 = vmatmul.mubr.f32.gmra.mrb[0].mxu0 %v2205
        %v2207 = vpop.f32.mrb[0].mxu0
        %v2208 = vadd.f32 0.0, %v2207
        %v2209 = vpop.f32.mrb[0].mxu0
        %2210 = vmatprep.mubr.f32.mxu0 0.0
        %v2211 = vand.u32 %v2130, 4294901760
        %v2212 = vsub.f32 %v2130, %v2211
        %v2213 = vand.u32 %v2212, 4294901760
        %v2214 = vsub.f32 %v2212, %v2213
        %v2215 = vand.u32 %v2214, 4294901760
        %2216 = vmatmul.mubr.f32.gmra.mrb[0].mxu0 %v2215
        %v2217 = vpop.f32.mrb[0].mxu0
        %v2218 = vadd.f32 0.0, %v2217
        %v2219 = vpop.f32.mrb[0].mxu0
        %2220 = vdwg.mxu0
        %2221 = vmatprep.subr.mxu0 0.0
        %v2222 = vand.u32 %v2124, 4294901760
        %v2223 = vsub.f32 %v2124, %v2222
        %v2224 = vand.u32 %v2223, 4294901760
        %v2225 = vsub.f32 %v2223, %v2224
        %v2226 = vand.u32 %v2225, 4294901760
        %2227 = vmatpush1.msra.mxu0 %v2226
        %2228 = vmatprep.subr.mxu0 0.0
        %v2229 = vand.u32 %v2132, 4294901760
        %v2230 = vsub.f32 %v2132, %v2229
        %v2231 = vand.u32 %v2230, 4294901760
        %v2232 = vsub.f32 %v2230, %v2231
        %v2233 = vand.u32 %v2232, 4294901760
        %2234 = vmatpush1.msra.mxu0 %v2233
        %2235 = vmatprep.subr.mxu0 0.0
        %2236 = vmatpush1.msra.mxu0 0.0
        %2237 = vmatprep.subr.mxu0 0.0
        %2238 = vmatpush1.msra.mxu0 0.0
        %2239 = vmatprep.subr.mxu0 0.0
        %2240 = vmatpush1.msra.mxu0 0.0
        %2241 = vmatprep.subr.mxu0 0.0
        %2242 = vmatpush1.msra.mxu0 0.0
        %2243 = vmatprep.subr.mxu0 0.0
        %2244 = vmatpush1.msra.mxu0 0.0
        %2245 = vmatprep.subr.mxu0 0.0
        %2246 = vmatpush1.msra.mxu0 0.0
        %2247 = vmatprep.subr.mxu0 0.0
        %2248 = vmatpush1.msra.mxu0 0.0
        %2249 = vmatprep.subr.mxu0 0.0
        %2250 = vmatpush1.msra.mxu0 0.0
        %2251 = vmatprep.subr.mxu0 0.0
        %2252 = vmatpush1.msra.mxu0 0.0
        %2253 = vmatprep.subr.mxu0 0.0
        %2254 = vmatpush1.msra.mxu0 0.0
        %2255 = vmatprep.subr.mxu0 0.0
        %2256 = vmatpush1.msra.mxu0 0.0
        %2257 = vmatprep.subr.mxu0 0.0
        %2258 = vmatpush1.msra.mxu0 0.0
        %2259 = vmatprep.subr.mxu0 0.0
        %2260 = vmatpush1.msra.mxu0 0.0
        %2261 = vmatprep.subr.mxu0 0.0
        %2262 = vmatpush1.msra.mxu0 0.0
        %2263 = vmatprep.subr.mxu0 0.0
        %2264 = vmatpush1.msra.mxu0 0.0
        %2265 = vmatprep.subr.mxu0 0.0
        %2266 = vmatpush1.msra.mxu0 0.0
        %2267 = vmatprep.subr.mxu0 0.0
        %2268 = vmatpush1.msra.mxu0 0.0
        %2269 = vmatprep.subr.mxu0 0.0
        %2270 = vmatpush1.msra.mxu0 0.0
        %2271 = vmatprep.subr.mxu0 0.0
        %2272 = vmatpush1.msra.mxu0 0.0
        %2273 = vmatprep.subr.mxu0 0.0
        %2274 = vmatpush1.msra.mxu0 0.0
        %2275 = vmatprep.subr.mxu0 0.0
        %2276 = vmatpush1.msra.mxu0 0.0
        %2277 = vmatprep.subr.mxu0 0.0
        %2278 = vmatpush1.msra.mxu0 0.0
        %2279 = vmatprep.subr.mxu0 0.0
        %2280 = vmatpush1.msra.mxu0 0.0
        %2281 = vmatprep.subr.mxu0 0.0
        %2282 = vmatpush1.msra.mxu0 0.0
        %2283 = vmatprep.subr.mxu0 0.0
        %2284 = vmatpush1.msra.mxu0 0.0
        %2285 = vmatprep.subr.mxu0 0.0
        %2286 = vmatpush1.msra.mxu0 0.0
        %2287 = vmatprep.subr.mxu0 0.0
        %2288 = vmatpush1.msra.mxu0 0.0
        %2289 = vmatprep.subr.mxu0 0.0
        %2290 = vmatpush1.msra.mxu0 0.0
        %2291 = vmatprep.subr.mxu0 0.0
        %2292 = vmatpush1.msra.mxu0 0.0
        %2293 = vmatprep.subr.mxu0 0.0
        %2294 = vmatpush1.msra.mxu0 0.0
        %2295 = vmatprep.mubr.f32.mxu0 0.0
        %v2296 = vand.u32 %v2128, 4294901760
        %2297 = vmatmul.mubr.f32.gmra.mrb[0].mxu0 %v2296
        %v2298 = vpop.f32.mrb[0].mxu0
        %v2299 = vadd.f32 %v2208, %v2298
        %v2300 = vpop.f32.mrb[0].mxu0
        %2301 = vmatprep.mubr.f32.mxu0 0.0
        %v2302 = vand.u32 %v2130, 4294901760
        %2303 = vmatmul.mubr.f32.gmra.mrb[0].mxu0 %v2302
        %v2304 = vpop.f32.mrb[0].mxu0
        %v2305 = vadd.f32 %v2218, %v2304
        %v2306 = vpop.f32.mrb[0].mxu0
        %2307 = vdwg.mxu0
        %2308 = vmatprep.subr.mxu0 0.0
        %v2309 = vand.u32 %v2124, 4294901760
        %v2310 = vsub.f32 %v2124, %v2309
        %2311 = vmatpush1.msra.mxu0 %v2310
        %2312 = vmatprep.subr.mxu0 0.0
        %v2313 = vand.u32 %v2132, 4294901760
        %v2314 = vsub.f32 %v2132, %v2313
        %2315 = vmatpush1.msra.mxu0 %v2314
        %2316 = vmatprep.subr.mxu0 0.0
        %2317 = vmatpush1.msra.mxu0 0.0
        %2318 = vmatprep.subr.mxu0 0.0
        %2319 = vmatpush1.msra.mxu0 0.0
        %2320 = vmatprep.subr.mxu0 0.0
        %2321 = vmatpush1.msra.mxu0 0.0
        %2322 = vmatprep.subr.mxu0 0.0
        %2323 = vmatpush1.msra.mxu0 0.0
        %2324 = vmatprep.subr.mxu0 0.0
        %2325 = vmatpush1.msra.mxu0 0.0
        %2326 = vmatprep.subr.mxu0 0.0
        %2327 = vmatpush1.msra.mxu0 0.0
        %2328 = vmatprep.subr.mxu0 0.0
        %2329 = vmatpush1.msra.mxu0 0.0
        %2330 = vmatprep.subr.mxu0 0.0
        %2331 = vmatpush1.msra.mxu0 0.0
        %2332 = vmatprep.subr.mxu0 0.0
        %2333 = vmatpush1.msra.mxu0 0.0
        %2334 = vmatprep.subr.mxu0 0.0
        %2335 = vmatpush1.msra.mxu0 0.0
        %2336 = vmatprep.subr.mxu0 0.0
        %2337 = vmatpush1.msra.mxu0 0.0
        %2338 = vmatprep.subr.mxu0 0.0
        %2339 = vmatpush1.msra.mxu0 0.0
        %2340 = vmatprep.subr.mxu0 0.0
        %2341 = vmatpush1.msra.mxu0 0.0
        %2342 = vmatprep.subr.mxu0 0.0
        %2343 = vmatpush1.msra.mxu0 0.0
        %2344 = vmatprep.subr.mxu0 0.0
        %2345 = vmatpush1.msra.mxu0 0.0
        %2346 = vmatprep.subr.mxu0 0.0
        %2347 = vmatpush1.msra.mxu0 0.0
        %2348 = vmatprep.subr.mxu0 0.0
        %2349 = vmatpush1.msra.mxu0 0.0
        %2350 = vmatprep.subr.mxu0 0.0
        %2351 = vmatpush1.msra.mxu0 0.0
        %2352 = vmatprep.subr.mxu0 0.0
        %2353 = vmatpush1.msra.mxu0 0.0
        %2354 = vmatprep.subr.mxu0 0.0
        %2355 = vmatpush1.msra.mxu0 0.0
        %2356 = vmatprep.subr.mxu0 0.0
        %2357 = vmatpush1.msra.mxu0 0.0
        %2358 = vmatprep.subr.mxu0 0.0
        %2359 = vmatpush1.msra.mxu0 0.0
        %2360 = vmatprep.subr.mxu0 0.0
        %2361 = vmatpush1.msra.mxu0 0.0
        %2362 = vmatprep.subr.mxu0 0.0
        %2363 = vmatpush1.msra.mxu0 0.0
        %2364 = vmatprep.subr.mxu0 0.0
        %2365 = vmatpush1.msra.mxu0 0.0
        %2366 = vmatprep.subr.mxu0 0.0
        %2367 = vmatpush1.msra.mxu0 0.0
        %2368 = vmatprep.subr.mxu0 0.0
        %2369 = vmatpush1.msra.mxu0 0.0
        %2370 = vmatprep.subr.mxu0 0.0
        %2371 = vmatpush1.msra.mxu0 0.0
        %2372 = vmatprep.subr.mxu0 0.0
        %2373 = vmatpush1.msra.mxu0 0.0
        %2374 = vmatprep.subr.mxu0 0.0
        %2375 = vmatpush1.msra.mxu0 0.0
        %2376 = vmatprep.mubr.f32.mxu0 0.0
        %v2377 = vand.u32 %v2128, 4294901760
        %v2378 = vsub.f32 %v2128, %v2377
        %2379 = vmatmul.mubr.f32.gmra.mrb[0].mxu0 %v2378
        %v2380 = vpop.f32.mrb[0].mxu0
        %v2381 = vadd.f32 %v2299, %v2380
        %v2382 = vpop.f32.mrb[0].mxu0
        %2383 = vmatprep.mubr.f32.mxu0 0.0
        %v2384 = vand.u32 %v2130, 4294901760
        %v2385 = vsub.f32 %v2130, %v2384
        %2386 = vmatmul.mubr.f32.gmra.mrb[0].mxu0 %v2385
        %v2387 = vpop.f32.mrb[0].mxu0
        %v2388 = vadd.f32 %v2305, %v2387
        %v2389 = vpop.f32.mrb[0].mxu0
        %2390 = vdwg.mxu0
        %2391 = vmatprep.subr.mxu0 0.0
        %v2392 = vand.u32 %v2124, 4294901760
        %2393 = vmatpush1.msra.mxu0 %v2392
        %2394 = vmatprep.subr.mxu0 0.0
        %v2395 = vand.u32 %v2132, 4294901760
        %2396 = vmatpush1.msra.mxu0 %v2395
        %2397 = vmatprep.subr.mxu0 0.0
        %2398 = vmatpush1.msra.mxu0 0.0
        %2399 = vmatprep.subr.mxu0 0.0
        %2400 = vmatpush1.msra.mxu0 0.0
        %2401 = vmatprep.subr.mxu0 0.0
        %2402 = vmatpush1.msra.mxu0 0.0
        %2403 = vmatprep.subr.mxu0 0.0
        %2404 = vmatpush1.msra.mxu0 0.0
        %2405 = vmatprep.subr.mxu0 0.0
        %2406 = vmatpush1.msra.mxu0 0.0
        %2407 = vmatprep.subr.mxu0 0.0
        %2408 = vmatpush1.msra.mxu0 0.0
        %2409 = vmatprep.subr.mxu0 0.0
        %2410 = vmatpush1.msra.mxu0 0.0
        %2411 = vmatprep.subr.mxu0 0.0
        %2412 = vmatpush1.msra.mxu0 0.0
        %2413 = vmatprep.subr.mxu0 0.0
        %2414 = vmatpush1.msra.mxu0 0.0
        %2415 = vmatprep.subr.mxu0 0.0
        %2416 = vmatpush1.msra.mxu0 0.0
        %2417 = vmatprep.subr.mxu0 0.0
        %2418 = vmatpush1.msra.mxu0 0.0
        %2419 = vmatprep.subr.mxu0 0.0
        %2420 = vmatpush1.msra.mxu0 0.0
        %2421 = vmatprep.subr.mxu0 0.0
        %2422 = vmatpush1.msra.mxu0 0.0
        %2423 = vmatprep.subr.mxu0 0.0
        %2424 = vmatpush1.msra.mxu0 0.0
        %2425 = vmatprep.subr.mxu0 0.0
        %2426 = vmatpush1.msra.mxu0 0.0
        %2427 = vmatprep.subr.mxu0 0.0
        %2428 = vmatpush1.msra.mxu0 0.0
        %2429 = vmatprep.subr.mxu0 0.0
        %2430 = vmatpush1.msra.mxu0 0.0
        %2431 = vmatprep.subr.mxu0 0.0
        %2432 = vmatpush1.msra.mxu0 0.0
        %2433 = vmatprep.subr.mxu0 0.0
        %2434 = vmatpush1.msra.mxu0 0.0
        %2435 = vmatprep.subr.mxu0 0.0
        %2436 = vmatpush1.msra.mxu0 0.0
        %2437 = vmatprep.subr.mxu0 0.0
        %2438 = vmatpush1.msra.mxu0 0.0
        %2439 = vmatprep.subr.mxu0 0.0
        %2440 = vmatpush1.msra.mxu0 0.0
        %2441 = vmatprep.subr.mxu0 0.0
        %2442 = vmatpush1.msra.mxu0 0.0
        %2443 = vmatprep.subr.mxu0 0.0
        %2444 = vmatpush1.msra.mxu0 0.0
        %2445 = vmatprep.subr.mxu0 0.0
        %2446 = vmatpush1.msra.mxu0 0.0
        %2447 = vmatprep.subr.mxu0 0.0
        %2448 = vmatpush1.msra.mxu0 0.0
        %2449 = vmatprep.subr.mxu0 0.0
        %2450 = vmatpush1.msra.mxu0 0.0
        %2451 = vmatprep.subr.mxu0 0.0
        %2452 = vmatpush1.msra.mxu0 0.0
        %2453 = vmatprep.subr.mxu0 0.0
        %2454 = vmatpush1.msra.mxu0 0.0
        %2455 = vmatprep.subr.mxu0 0.0
        %2456 = vmatpush1.msra.mxu0 0.0
        %2457 = vmatprep.mubr.f32.mxu0 0.0
        %v2458 = vand.u32 %v2128, 4294901760
        %v2459 = vsub.f32 %v2128, %v2458
        %v2460 = vand.u32 %v2459, 4294901760
        %2461 = vmatmul.mubr.f32.gmra.mrb[0].mxu0 %v2460
        %v2462 = vpop.f32.mrb[0].mxu0
        %v2463 = vadd.f32 %v2381, %v2462
        %v2464 = vpop.f32.mrb[0].mxu0
        %2465 = vmatprep.mubr.f32.mxu0 0.0
        %v2466 = vand.u32 %v2130, 4294901760
        %v2467 = vsub.f32 %v2130, %v2466
        %v2468 = vand.u32 %v2467, 4294901760
        %2469 = vmatmul.mubr.f32.gmra.mrb[0].mxu0 %v2468
        %v2470 = vpop.f32.mrb[0].mxu0
        %v2471 = vadd.f32 %v2388, %v2470
        %v2472 = vpop.f32.mrb[0].mxu0
        %2473 = vdwg.mxu0
        %2474 = vmatprep.subr.mxu0 0.0
        %v2475 = vand.u32 %v2124, 4294901760
        %v2476 = vsub.f32 %v2124, %v2475
        %v2477 = vand.u32 %v2476, 4294901760
        %2478 = vmatpush1.msra.mxu0 %v2477
        %2479 = vmatprep.subr.mxu0 0.0
        %v2480 = vand.u32 %v2132, 4294901760
        %v2481 = vsub.f32 %v2132, %v2480
        %v2482 = vand.u32 %v2481, 4294901760
        %2483 = vmatpush1.msra.mxu0 %v2482
        %2484 = vmatprep.subr.mxu0 0.0
        %2485 = vmatpush1.msra.mxu0 0.0
        %2486 = vmatprep.subr.mxu0 0.0
        %2487 = vmatpush1.msra.mxu0 0.0
        %2488 = vmatprep.subr.mxu0 0.0
        %2489 = vmatpush1.msra.mxu0 0.0
        %2490 = vmatprep.subr.mxu0 0.0
        %2491 = vmatpush1.msra.mxu0 0.0
        %2492 = vmatprep.subr.mxu0 0.0
        %2493 = vmatpush1.msra.mxu0 0.0
        %2494 = vmatprep.subr.mxu0 0.0
        %2495 = vmatpush1.msra.mxu0 0.0
        %2496 = vmatprep.subr.mxu0 0.0
        %2497 = vmatpush1.msra.mxu0 0.0
        %2498 = vmatprep.subr.mxu0 0.0
        %2499 = vmatpush1.msra.mxu0 0.0
        %2500 = vmatprep.subr.mxu0 0.0
        %2501 = vmatpush1.msra.mxu0 0.0
        %2502 = vmatprep.subr.mxu0 0.0
        %2503 = vmatpush1.msra.mxu0 0.0
        %2504 = vmatprep.subr.mxu0 0.0
        %2505 = vmatpush1.msra.mxu0 0.0
        %2506 = vmatprep.subr.mxu0 0.0
        %2507 = vmatpush1.msra.mxu0 0.0
        %2508 = vmatprep.subr.mxu0 0.0
        %2509 = vmatpush1.msra.mxu0 0.0
        %2510 = vmatprep.subr.mxu0 0.0
        %2511 = vmatpush1.msra.mxu0 0.0
        %2512 = vmatprep.subr.mxu0 0.0
        %2513 = vmatpush1.msra.mxu0 0.0
        %2514 = vmatprep.subr.mxu0 0.0
        %2515 = vmatpush1.msra.mxu0 0.0
        %2516 = vmatprep.subr.mxu0 0.0
        %2517 = vmatpush1.msra.mxu0 0.0
        %2518 = vmatprep.subr.mxu0 0.0
        %2519 = vmatpush1.msra.mxu0 0.0
        %2520 = vmatprep.subr.mxu0 0.0
        %2521 = vmatpush1.msra.mxu0 0.0
        %2522 = vmatprep.subr.mxu0 0.0
        %2523 = vmatpush1.msra.mxu0 0.0
        %2524 = vmatprep.subr.mxu0 0.0
        %2525 = vmatpush1.msra.mxu0 0.0
        %2526 = vmatprep.subr.mxu0 0.0
        %2527 = vmatpush1.msra.mxu0 0.0
        %2528 = vmatprep.subr.mxu0 0.0
        %2529 = vmatpush1.msra.mxu0 0.0
        %2530 = vmatprep.subr.mxu0 0.0
        %2531 = vmatpush1.msra.mxu0 0.0
        %2532 = vmatprep.subr.mxu0 0.0
        %2533 = vmatpush1.msra.mxu0 0.0
        %2534 = vmatprep.subr.mxu0 0.0
        %2535 = vmatpush1.msra.mxu0 0.0
        %2536 = vmatprep.subr.mxu0 0.0
        %2537 = vmatpush1.msra.mxu0 0.0
        %2538 = vmatprep.subr.mxu0 0.0
        %2539 = vmatpush1.msra.mxu0 0.0
        %2540 = vmatprep.subr.mxu0 0.0
        %2541 = vmatpush1.msra.mxu0 0.0
        %2542 = vmatprep.subr.mxu0 0.0
        %2543 = vmatpush1.msra.mxu0 0.0
        %2544 = vmatprep.mubr.f32.mxu0 0.0
        %v2545 = vand.u32 %v2128, 4294901760
        %2546 = vmatmul.mubr.f32.gmra.mrb[0].mxu0 %v2545
        %v2547 = vpop.f32.mrb[0].mxu0
        %v2548 = vadd.f32 %v2463, %v2547
        %v2549 = vpop.f32.mrb[0].mxu0
        %2550 = vmatprep.mubr.f32.mxu0 0.0
        %v2551 = vand.u32 %v2130, 4294901760
        %2552 = vmatmul.mubr.f32.gmra.mrb[0].mxu0 %v2551
        %v2553 = vpop.f32.mrb[0].mxu0
        %v2554 = vadd.f32 %v2471, %v2553
        %v2555 = vpop.f32.mrb[0].mxu0
        %2556 = vdwg.mxu0
        %2557 = vmatprep.subr.mxu0 0.0
        %v2558 = vand.u32 %v2124, 4294901760
        %2559 = vmatpush1.msra.mxu0 %v2558
        %2560 = vmatprep.subr.mxu0 0.0
        %v2561 = vand.u32 %v2132, 4294901760
        %2562 = vmatpush1.msra.mxu0 %v2561
        %2563 = vmatprep.subr.mxu0 0.0
        %2564 = vmatpush1.msra.mxu0 0.0
        %2565 = vmatprep.subr.mxu0 0.0
        %2566 = vmatpush1.msra.mxu0 0.0
        %2567 = vmatprep.subr.mxu0 0.0
        %2568 = vmatpush1.msra.mxu0 0.0
        %2569 = vmatprep.subr.mxu0 0.0
        %2570 = vmatpush1.msra.mxu0 0.0
        %2571 = vmatprep.subr.mxu0 0.0
        %2572 = vmatpush1.msra.mxu0 0.0
        %2573 = vmatprep.subr.mxu0 0.0
        %2574 = vmatpush1.msra.mxu0 0.0
        %2575 = vmatprep.subr.mxu0 0.0
        %2576 = vmatpush1.msra.mxu0 0.0
        %2577 = vmatprep.subr.mxu0 0.0
        %2578 = vmatpush1.msra.mxu0 0.0
        %2579 = vmatprep.subr.mxu0 0.0
        %2580 = vmatpush1.msra.mxu0 0.0
        %2581 = vmatprep.subr.mxu0 0.0
        %2582 = vmatpush1.msra.mxu0 0.0
        %2583 = vmatprep.subr.mxu0 0.0
        %2584 = vmatpush1.msra.mxu0 0.0
        %2585 = vmatprep.subr.mxu0 0.0
        %2586 = vmatpush1.msra.mxu0 0.0
        %2587 = vmatprep.subr.mxu0 0.0
        %2588 = vmatpush1.msra.mxu0 0.0
        %2589 = vmatprep.subr.mxu0 0.0
        %2590 = vmatpush1.msra.mxu0 0.0
        %2591 = vmatprep.subr.mxu0 0.0
        %2592 = vmatpush1.msra.mxu0 0.0
        %2593 = vmatprep.subr.mxu0 0.0
        %2594 = vmatpush1.msra.mxu0 0.0
        %2595 = vmatprep.subr.mxu0 0.0
        %2596 = vmatpush1.msra.mxu0 0.0
        %2597 = vmatprep.subr.mxu0 0.0
        %2598 = vmatpush1.msra.mxu0 0.0
        %2599 = vmatprep.subr.mxu0 0.0
        %2600 = vmatpush1.msra.mxu0 0.0
        %2601 = vmatprep.subr.mxu0 0.0
        %2602 = vmatpush1.msra.mxu0 0.0
        %2603 = vmatprep.subr.mxu0 0.0
        %2604 = vmatpush1.msra.mxu0 0.0
        %2605 = vmatprep.subr.mxu0 0.0
        %2606 = vmatpush1.msra.mxu0 0.0
        %2607 = vmatprep.subr.mxu0 0.0
        %2608 = vmatpush1.msra.mxu0 0.0
        %2609 = vmatprep.subr.mxu0 0.0
        %2610 = vmatpush1.msra.mxu0 0.0
        %2611 = vmatprep.subr.mxu0 0.0
        %2612 = vmatpush1.msra.mxu0 0.0
        %2613 = vmatprep.subr.mxu0 0.0
        %2614 = vmatpush1.msra.mxu0 0.0
        %2615 = vmatprep.subr.mxu0 0.0
        %2616 = vmatpush1.msra.mxu0 0.0
        %2617 = vmatprep.subr.mxu0 0.0
        %2618 = vmatpush1.msra.mxu0 0.0
        %2619 = vmatprep.subr.mxu0 0.0
        %2620 = vmatpush1.msra.mxu0 0.0
        %2621 = vmatprep.subr.mxu0 0.0
        %2622 = vmatpush1.msra.mxu0 0.0
        %2623 = vmatprep.mubr.f32.mxu0 0.0
        %v2624 = vand.u32 %v2128, 4294901760
        %2625 = vmatmul.mubr.f32.gmra.mrb[0].mxu0 %v2624
        %v2626 = vpop.f32.mrb[0].mxu0
        %v2627 = vadd.f32 %v2548, %v2626
        %v2628 = vpop.f32.mrb[0].mxu0
        %2629 = vmatprep.mubr.f32.mxu0 0.0
        %v2630 = vand.u32 %v2130, 4294901760
        %2631 = vmatmul.mubr.f32.gmra.mrb[0].mxu0 %v2630
        %v2632 = vpop.f32.mrb[0].mxu0
        %v2633 = vadd.f32 %v2554, %v2632
        %v2634 = vpop.f32.mrb[0].mxu0
        %2635 = vdwg.mxu0
        %2637 = vxpose.xlu0.b32.start [1/16] %v2124, 128
        %2638 = vxpose.xlu0.b32.cont [2/16] %v2126, 128
        %2639 = vxpose.xlu0.b32.cont [3/16] 0.0, 128
        %2640 = vxpose.xlu0.b32.cont [4/16] 0.0, 128
        %2641 = vxpose.xlu0.b32.cont [5/16] 0.0, 128
        %2642 = vxpose.xlu0.b32.cont [6/16] 0.0, 128
        %2643 = vxpose.xlu0.b32.cont [7/16] 0.0, 128
        %2644 = vxpose.xlu0.b32.cont [8/16] 0.0, 128
        %2645 = vxpose.xlu0.b32.cont [9/16] 0.0, 128
        %2646 = vxpose.xlu0.b32.cont [10/16] 0.0, 128
        %2647 = vxpose.xlu0.b32.cont [11/16] 0.0, 128
        %2648 = vxpose.xlu0.b32.cont [12/16] 0.0, 128
        %2649 = vxpose.xlu0.b32.cont [13/16] 0.0, 128
        %2650 = vxpose.xlu0.b32.cont [14/16] 0.0, 128
        %2651 = vxpose.xlu0.b32.cont [15/16] 0.0, 128
        %2652 = vxpose.xlu0.b32.end [16/16] 0.0, 128
        %v2653 = vpop.trf.xlu0
        %v2654 = vpop.trf.xlu0
        %v2655 = vpop.trf.xlu0
        %v2656 = vpop.trf.xlu0
        %v2657 = vpop.trf.xlu0
        %v2658 = vpop.trf.xlu0
        %v2659 = vpop.trf.xlu0
        %v2660 = vpop.trf.xlu0
        %v2661 = vpop.trf.xlu0
        %v2662 = vpop.trf.xlu0
        %v2663 = vpop.trf.xlu0
        %v2664 = vpop.trf.xlu0
        %v2665 = vpop.trf.xlu0
        %v2666 = vpop.trf.xlu0
        %v2667 = vpop.trf.xlu0
        %v2668 = vpop.trf.xlu0
        %2669 = vxpose.xlu0.b32.start [1/16] %v2627, 128
        %2670 = vxpose.xlu0.b32.cont [2/16] %v2633, 128
        %2671 = vxpose.xlu0.b32.cont [3/16] 0.0, 128
        %2672 = vxpose.xlu0.b32.cont [4/16] 0.0, 128
        %2673 = vxpose.xlu0.b32.cont [5/16] 0.0, 128
        %2674 = vxpose.xlu0.b32.cont [6/16] 0.0, 128
        %2675 = vxpose.xlu0.b32.cont [7/16] 0.0, 128
        %2676 = vxpose.xlu0.b32.cont [8/16] 0.0, 128
        %2677 = vxpose.xlu0.b32.cont [9/16] 0.0, 128
        %2678 = vxpose.xlu0.b32.cont [10/16] 0.0, 128
        %2679 = vxpose.xlu0.b32.cont [11/16] 0.0, 128
        %2680 = vxpose.xlu0.b32.cont [12/16] 0.0, 128
        %2681 = vxpose.xlu0.b32.cont [13/16] 0.0, 128
        %2682 = vxpose.xlu0.b32.cont [14/16] 0.0, 128
        %2683 = vxpose.xlu0.b32.cont [15/16] 0.0, 128
        %2684 = vxpose.xlu0.b32.end [16/16] 0.0, 128
        %v2685 = vpop.trf.xlu0
        %v2686 = vpop.trf.xlu0
        %v2687 = vpop.trf.xlu0
        %v2688 = vpop.trf.xlu0
        %v2689 = vpop.trf.xlu0
        %v2690 = vpop.trf.xlu0
        %v2691 = vpop.trf.xlu0
        %v2692 = vpop.trf.xlu0
        %v2693 = vpop.trf.xlu0
        %v2694 = vpop.trf.xlu0
        %v2695 = vpop.trf.xlu0
        %v2696 = vpop.trf.xlu0
        %v2697 = vpop.trf.xlu0
        %v2698 = vpop.trf.xlu0
        %v2699 = vpop.trf.xlu0
        %v2700 = vpop.trf.xlu0
        %2703 = vrot.lane.b32.xlu0 %v2653, 22
        %v2704 = vpop.permute.xlu0 %2703
        %2705 = vrot.lane.b32.xlu0 %v2654, 22
        %v2706 = vpop.permute.xlu0 %2705
        %v2709 = vmul.f32 %v771, %v2704
        %v2710 = vmul.f32 %v772, %v2706
        %2713 = vrot.lane.b32.xlu0 %v2709, 106
        %v2714 = vpop.permute.xlu0 %2713
        %2715 = vrot.lane.b32.xlu0 %v2710, 106
        %v2716 = vpop.permute.xlu0 %2715
        %v2719 = vsel %vm773, %v2714, 0.0
        %v2720 = vsel %vm1351, %v2716, 0.0
        %v2721 = vadd.f32 %v2719, %v2720
        %2722 = vadd.xlane.f32.xlu0 %v2721
        %v2723 = vpop.xlane.xlu0 %2722
        %v2724 = vrot.slane %v2723, 4
        %v2725 = vadd.f32 %v2723, %v2724
        %v2726 = vrot.slane %v2725, 2
        %v2727 = vadd.f32 %v2725, %v2726
        %v2728 = vrot.slane %v2727, 1
        %v2729 = vadd.f32 %v2727, %v2728
        %s2730 = vtos %v2729
        %s2731 = smul.f32 %s2730, 0.008264462
        %s2732 = sld [smem:[#allocation2 + $0x18]]
        %s2733 = smul.f32 %s2732, %s2731
        %s2734 = sadd.f32 %s2122, %s2733
        %s2735 = smul.f32 %s2731, %s2731
        %s2736 = sld [smem:[#allocation2 + $0x19]]
        %s2737 = smul.f32 %s2736, %s2735
        %s2738 = sadd.f32 %s2734, %s2737
        %s2739 = smul.f32 %s2735, %s2731
        %s2740 = sld [smem:[#allocation2 + $0x1a]]
        %s2741 = smul.f32 %s2740, %s2739
        %s2742 = sadd.f32 %s2738, %s2741
        %s2743 = smul.f32 %s2739, %s2731
        %s2744 = sld [smem:[#allocation2 + $0x1b]]
        %s2745 = smul.f32 %s2744, %s2743
        %s2746 = sadd.f32 %s2742, %s2745
        %v2747 = vmul.f32 %v2627, %v2653
        %v2748 = vmul.f32 %v2633, %v2654
        %v2749 = vsel %vm773, %v2747, 0.0
        %v2750 = vsel %vm1351, %v2748, 0.0
        %v2751 = vadd.f32 %v2749, %v2750
        %2752 = vadd.xlane.f32.xlu0 %v2751
        %v2753 = vpop.xlane.xlu0 %2752
        %v2754 = vrot.slane %v2753, 4
        %v2755 = vadd.f32 %v2753, %v2754
        %v2756 = vrot.slane %v2755, 2
        %v2757 = vadd.f32 %v2755, %v2756
        %v2758 = vrot.slane %v2757, 1
        %v2759 = vadd.f32 %v2757, %v2758
        %s2760 = vtos %v2759
        %s2761 = smul.f32 %s2760, 0.008264462
        %s2762 = sld [smem:[#allocation2 + $0x1c]]
        %s2763 = smul.f32 %s2762, %s2761
        %s2764 = sadd.f32 %s2746, %s2763
        %s2765 = smul.f32 %s2761, %s2761
        %s2766 = sld [smem:[#allocation2 + $0x1d]]
        %s2767 = smul.f32 %s2766, %s2765
        %s2768 = sadd.f32 %s2764, %s2767
        %s2769 = smul.f32 %s2765, %s2761
        %s2770 = sld [smem:[#allocation2 + $0x1e]]
        %s2771 = smul.f32 %s2770, %s2769
        %s2772 = sadd.f32 %s2768, %s2771
        %s2773 = smul.f32 %s2769, %s2761
        %s2774 = sld [smem:[#allocation2 + $0x1f]]
        %s2775 = smul.f32 %s2774, %s2773
        %s2776 = sadd.f32 %s2772, %s2775
        %v2777 = vmul.f32 %v2627, %v2685
        %v2778 = vmul.f32 %v2633, %v2686
        %v2779 = vsel %vm773, %v2777, 0.0
        %v2780 = vsel %vm1351, %v2778, 0.0
        %v2781 = vadd.f32 %v2779, %v2780
        %2782 = vadd.xlane.f32.xlu0 %v2781
        %v2783 = vpop.xlane.xlu0 %2782
        %v2784 = vrot.slane %v2783, 4
        %v2785 = vadd.f32 %v2783, %v2784
        %v2786 = vrot.slane %v2785, 2
        %v2787 = vadd.f32 %v2785, %v2786
        %v2788 = vrot.slane %v2787, 1
        %v2789 = vadd.f32 %v2787, %v2788
        %s2790 = vtos %v2789
        %s2791 = smul.f32 %s2790, 0.008264462
        %s2792 = sld [smem:[#allocation2 + $0x20]]
        %s2793 = smul.f32 %s2792, %s2791
        %s2794 = sadd.f32 %s2776, %s2793
        %s2795 = smul.f32 %s2791, %s2791
        %s2796 = sld [smem:[#allocation2 + $0x21]]
        %s2797 = smul.f32 %s2796, %s2795
        %s2798 = sadd.f32 %s2794, %s2797
        %s2799 = smul.f32 %s2795, %s2791
        %s2800 = sld [smem:[#allocation2 + $0x22]]
        %s2801 = smul.f32 %s2800, %s2799
        %s2802 = sadd.f32 %s2798, %s2801
        %s2803 = smul.f32 %s2799, %s2791
        %s2804 = sld [smem:[#allocation2 + $0x23]]
        %s2805 = smul.f32 %s2804, %s2803
        %s2806 = sadd.f32 %s2802, %s2805
        %2807 = vrot.lane.b32.xlu0 %v771, 95
        %v2808 = vpop.permute.xlu0 %2807
        %2809 = vrot.lane.b32.xlu0 %v772, 95
        %v2810 = vpop.permute.xlu0 %2809
        %v2812 = vsel %vm773, %v2808, 0
        %v2814 = vsel %vm773, %v2810, 0
        %v2816 = vsel %vm677, %v2810, 0
        %2818 = vmatprep.subr.mxu0 0.0
        %v2819 = vand.u32 %v2808, 4294901760
        %2820 = vmatpush1.msra.mxu0 %v2819
        %2821 = vmatprep.subr.mxu0 0.0
        %v2822 = vand.u32 %v2816, 4294901760
        %2823 = vmatpush1.msra.mxu0 %v2822
        %2824 = vmatprep.subr.mxu0 0.0
        %2825 = vmatpush1.msra.mxu0 0.0
        %2826 = vmatprep.subr.mxu0 0.0
        %2827 = vmatpush1.msra.mxu0 0.0
        %2828 = vmatprep.subr.mxu0 0.0
        %2829 = vmatpush1.msra.mxu0 0.0
        %2830 = vmatprep.subr.mxu0 0.0
        %2831 = vmatpush1.msra.mxu0 0.0
        %2832 = vmatprep.subr.mxu0 0.0
        %2833 = vmatpush1.msra.mxu0 0.0
        %2834 = vmatprep.subr.mxu0 0.0
        %2835 = vmatpush1.msra.mxu0 0.0
        %2836 = vmatprep.subr.mxu0 0.0
        %2837 = vmatpush1.msra.mxu0 0.0
        %2838 = vmatprep.subr.mxu0 0.0
        %2839 = vmatpush1.msra.mxu0 0.0
        %2840 = vmatprep.subr.mxu0 0.0
        %2841 = vmatpush1.msra.mxu0 0.0
        %2842 = vmatprep.subr.mxu0 0.0
        %2843 = vmatpush1.msra.mxu0 0.0
        %2844 = vmatprep.subr.mxu0 0.0
        %2845 = vmatpush1.msra.mxu0 0.0
        %2846 = vmatprep.subr.mxu0 0.0
        %2847 = vmatpush1.msra.mxu0 0.0
        %2848 = vmatprep.subr.mxu0 0.0
        %2849 = vmatpush1.msra.mxu0 0.0
        %2850 = vmatprep.subr.mxu0 0.0
        %2851 = vmatpush1.msra.mxu0 0.0
        %2852 = vmatprep.subr.mxu0 0.0
        %2853 = vmatpush1.msra.mxu0 0.0
        %2854 = vmatprep.subr.mxu0 0.0
        %2855 = vmatpush1.msra.mxu0 0.0
        %2856 = vmatprep.subr.mxu0 0.0
        %2857 = vmatpush1.msra.mxu0 0.0
        %2858 = vmatprep.subr.mxu0 0.0
        %2859 = vmatpush1.msra.mxu0 0.0
        %2860 = vmatprep.subr.mxu0 0.0
        %2861 = vmatpush1.msra.mxu0 0.0
        %2862 = vmatprep.subr.mxu0 0.0
        %2863 = vmatpush1.msra.mxu0 0.0
        %2864 = vmatprep.subr.mxu0 0.0
        %2865 = vmatpush1.msra.mxu0 0.0
        %2866 = vmatprep.subr.mxu0 0.0
        %2867 = vmatpush1.msra.mxu0 0.0
        %2868 = vmatprep.subr.mxu0 0.0
        %2869 = vmatpush1.msra.mxu0 0.0
        %2870 = vmatprep.subr.mxu0 0.0
        %2871 = vmatpush1.msra.mxu0 0.0
        %2872 = vmatprep.subr.mxu0 0.0
        %2873 = vmatpush1.msra.mxu0 0.0
        %2874 = vmatprep.subr.mxu0 0.0
        %2875 = vmatpush1.msra.mxu0 0.0
        %2876 = vmatprep.subr.mxu0 0.0
        %2877 = vmatpush1.msra.mxu0 0.0
        %2878 = vmatprep.subr.mxu0 0.0
        %2879 = vmatpush1.msra.mxu0 0.0
        %2880 = vmatprep.subr.mxu0 0.0
        %2881 = vmatpush1.msra.mxu0 0.0
        %2882 = vmatprep.subr.mxu0 0.0
        %2883 = vmatpush1.msra.mxu0 0.0
        %2884 = vmatprep.mubr.f32.mxu0 0.0
        %v2885 = vand.u32 %v2812, 4294901760
        %v2886 = vsub.f32 %v2812, %v2885
        %v2887 = vand.u32 %v2886, 4294901760
        %v2888 = vsub.f32 %v2886, %v2887
        %v2889 = vand.u32 %v2888, 4294901760
        %2890 = vmatmul.mubr.f32.gmra.mrb[0].mxu0 %v2889
        %v2891 = vpop.f32.mrb[0].mxu0
        %v2892 = vadd.f32 0.0, %v2891
        %v2893 = vpop.f32.mrb[0].mxu0
        %2894 = vmatprep.mubr.f32.mxu0 0.0
        %v2895 = vand.u32 %v2814, 4294901760
        %v2896 = vsub.f32 %v2814, %v2895
        %v2897 = vand.u32 %v2896, 4294901760
        %v2898 = vsub.f32 %v2896, %v2897
        %v2899 = vand.u32 %v2898, 4294901760
        %2900 = vmatmul.mubr.f32.gmra.mrb[0].mxu0 %v2899
        %v2901 = vpop.f32.mrb[0].mxu0
        %v2902 = vadd.f32 0.0, %v2901
        %v2903 = vpop.f32.mrb[0].mxu0
        %2904 = vdwg.mxu0
        %2905 = vmatprep.subr.mxu0 0.0
        %v2906 = vand.u32 %v2808, 4294901760
        %v2907 = vsub.f32 %v2808, %v2906
        %v2908 = vand.u32 %v2907, 4294901760
        %v2909 = vsub.f32 %v2907, %v2908
        %v2910 = vand.u32 %v2909, 4294901760
        %2911 = vmatpush1.msra.mxu0 %v2910
        %2912 = vmatprep.subr.mxu0 0.0
        %v2913 = vand.u32 %v2816, 4294901760
        %v2914 = vsub.f32 %v2816, %v2913
        %v2915 = vand.u32 %v2914, 4294901760
        %v2916 = vsub.f32 %v2914, %v2915
        %v2917 = vand.u32 %v2916, 4294901760
        %2918 = vmatpush1.msra.mxu0 %v2917
        %2919 = vmatprep.subr.mxu0 0.0
        %2920 = vmatpush1.msra.mxu0 0.0
        %2921 = vmatprep.subr.mxu0 0.0
        %2922 = vmatpush1.msra.mxu0 0.0
        %2923 = vmatprep.subr.mxu0 0.0
        %2924 = vmatpush1.msra.mxu0 0.0
        %2925 = vmatprep.subr.mxu0 0.0
        %2926 = vmatpush1.msra.mxu0 0.0
        %2927 = vmatprep.subr.mxu0 0.0
        %2928 = vmatpush1.msra.mxu0 0.0
        %2929 = vmatprep.subr.mxu0 0.0
        %2930 = vmatpush1.msra.mxu0 0.0
        %2931 = vmatprep.subr.mxu0 0.0
        %2932 = vmatpush1.msra.mxu0 0.0
        %2933 = vmatprep.subr.mxu0 0.0
        %2934 = vmatpush1.msra.mxu0 0.0
        %2935 = vmatprep.subr.mxu0 0.0
        %2936 = vmatpush1.msra.mxu0 0.0
        %2937 = vmatprep.subr.mxu0 0.0
        %2938 = vmatpush1.msra.mxu0 0.0
        %2939 = vmatprep.subr.mxu0 0.0
        %2940 = vmatpush1.msra.mxu0 0.0
        %2941 = vmatprep.subr.mxu0 0.0
        %2942 = vmatpush1.msra.mxu0 0.0
        %2943 = vmatprep.subr.mxu0 0.0
        %2944 = vmatpush1.msra.mxu0 0.0
        %2945 = vmatprep.subr.mxu0 0.0
        %2946 = vmatpush1.msra.mxu0 0.0
        %2947 = vmatprep.subr.mxu0 0.0
        %2948 = vmatpush1.msra.mxu0 0.0
        %2949 = vmatprep.subr.mxu0 0.0
        %2950 = vmatpush1.msra.mxu0 0.0
        %2951 = vmatprep.subr.mxu0 0.0
        %2952 = vmatpush1.msra.mxu0 0.0
        %2953 = vmatprep.subr.mxu0 0.0
        %2954 = vmatpush1.msra.mxu0 0.0
        %2955 = vmatprep.subr.mxu0 0.0
        %2956 = vmatpush1.msra.mxu0 0.0
        %2957 = vmatprep.subr.mxu0 0.0
        %2958 = vmatpush1.msra.mxu0 0.0
        %2959 = vmatprep.subr.mxu0 0.0
        %2960 = vmatpush1.msra.mxu0 0.0
        %2961 = vmatprep.subr.mxu0 0.0
        %2962 = vmatpush1.msra.mxu0 0.0
        %2963 = vmatprep.subr.mxu0 0.0
        %2964 = vmatpush1.msra.mxu0 0.0
        %2965 = vmatprep.subr.mxu0 0.0
        %2966 = vmatpush1.msra.mxu0 0.0
        %2967 = vmatprep.subr.mxu0 0.0
        %2968 = vmatpush1.msra.mxu0 0.0
        %2969 = vmatprep.subr.mxu0 0.0
        %2970 = vmatpush1.msra.mxu0 0.0
        %2971 = vmatprep.subr.mxu0 0.0
        %2972 = vmatpush1.msra.mxu0 0.0
        %2973 = vmatprep.subr.mxu0 0.0
        %2974 = vmatpush1.msra.mxu0 0.0
        %2975 = vmatprep.subr.mxu0 0.0
        %2976 = vmatpush1.msra.mxu0 0.0
        %2977 = vmatprep.subr.mxu0 0.0
        %2978 = vmatpush1.msra.mxu0 0.0
        %2979 = vmatprep.mubr.f32.mxu0 0.0
        %v2980 = vand.u32 %v2812, 4294901760
        %2981 = vmatmul.mubr.f32.gmra.mrb[0].mxu0 %v2980
        %v2982 = vpop.f32.mrb[0].mxu0
        %v2983 = vadd.f32 %v2892, %v2982
        %v2984 = vpop.f32.mrb[0].mxu0
        %2985 = vmatprep.mubr.f32.mxu0 0.0
        %v2986 = vand.u32 %v2814, 4294901760
        %2987 = vmatmul.mubr.f32.gmra.mrb[0].mxu0 %v2986
        %v2988 = vpop.f32.mrb[0].mxu0
        %v2989 = vadd.f32 %v2902, %v2988
        %v2990 = vpop.f32.mrb[0].mxu0
        %2991 = vdwg.mxu0
        %2992 = vmatprep.subr.mxu0 0.0
        %v2993 = vand.u32 %v2808, 4294901760
        %v2994 = vsub.f32 %v2808, %v2993
        %2995 = vmatpush1.msra.mxu0 %v2994
        %2996 = vmatprep.subr.mxu0 0.0
        %v2997 = vand.u32 %v2816, 4294901760
        %v2998 = vsub.f32 %v2816, %v2997
        %2999 = vmatpush1.msra.mxu0 %v2998
        %3000 = vmatprep.subr.mxu0 0.0
        %3001 = vmatpush1.msra.mxu0 0.0
        %3002 = vmatprep.subr.mxu0 0.0
        %3003 = vmatpush1.msra.mxu0 0.0
        %3004 = vmatprep.subr.mxu0 0.0
        %3005 = vmatpush1.msra.mxu0 0.0
        %3006 = vmatprep.subr.mxu0 0.0
        %3007 = vmatpush1.msra.mxu0 0.0
        %3008 = vmatprep.subr.mxu0 0.0
        %3009 = vmatpush1.msra.mxu0 0.0
        %3010 = vmatprep.subr.mxu0 0.0
        %3011 = vmatpush1.msra.mxu0 0.0
        %3012 = vmatprep.subr.mxu0 0.0
        %3013 = vmatpush1.msra.mxu0 0.0
        %3014 = vmatprep.subr.mxu0 0.0
        %3015 = vmatpush1.msra.mxu0 0.0
        %3016 = vmatprep.subr.mxu0 0.0
        %3017 = vmatpush1.msra.mxu0 0.0
        %3018 = vmatprep.subr.mxu0 0.0
        %3019 = vmatpush1.msra.mxu0 0.0
        %3020 = vmatprep.subr.mxu0 0.0
        %3021 = vmatpush1.msra.mxu0 0.0
        %3022 = vmatprep.subr.mxu0 0.0
        %3023 = vmatpush1.msra.mxu0 0.0
        %3024 = vmatprep.subr.mxu0 0.0
        %3025 = vmatpush1.msra.mxu0 0.0
        %3026 = vmatprep.subr.mxu0 0.0
        %3027 = vmatpush1.msra.mxu0 0.0
        %3028 = vmatprep.subr.mxu0 0.0
        %3029 = vmatpush1.msra.mxu0 0.0
        %3030 = vmatprep.subr.mxu0 0.0
        %3031 = vmatpush1.msra.mxu0 0.0
        %3032 = vmatprep.subr.mxu0 0.0
        %3033 = vmatpush1.msra.mxu0 0.0
        %3034 = vmatprep.subr.mxu0 0.0
        %3035 = vmatpush1.msra.mxu0 0.0
        %3036 = vmatprep.subr.mxu0 0.0
        %3037 = vmatpush1.msra.mxu0 0.0
        %3038 = vmatprep.subr.mxu0 0.0
        %3039 = vmatpush1.msra.mxu0 0.0
        %3040 = vmatprep.subr.mxu0 0.0
        %3041 = vmatpush1.msra.mxu0 0.0
        %3042 = vmatprep.subr.mxu0 0.0
        %3043 = vmatpush1.msra.mxu0 0.0
        %3044 = vmatprep.subr.mxu0 0.0
        %3045 = vmatpush1.msra.mxu0 0.0
        %3046 = vmatprep.subr.mxu0 0.0
        %3047 = vmatpush1.msra.mxu0 0.0
        %3048 = vmatprep.subr.mxu0 0.0
        %3049 = vmatpush1.msra.mxu0 0.0
        %3050 = vmatprep.subr.mxu0 0.0
        %3051 = vmatpush1.msra.mxu0 0.0
        %3052 = vmatprep.subr.mxu0 0.0
        %3053 = vmatpush1.msra.mxu0 0.0
        %3054 = vmatprep.subr.mxu0 0.0
        %3055 = vmatpush1.msra.mxu0 0.0
        %3056 = vmatprep.subr.mxu0 0.0
        %3057 = vmatpush1.msra.mxu0 0.0
        %3058 = vmatprep.subr.mxu0 0.0
        %3059 = vmatpush1.msra.mxu0 0.0
        %3060 = vmatprep.mubr.f32.mxu0 0.0
        %v3061 = vand.u32 %v2812, 4294901760
        %v3062 = vsub.f32 %v2812, %v3061
        %3063 = vmatmul.mubr.f32.gmra.mrb[0].mxu0 %v3062
        %v3064 = vpop.f32.mrb[0].mxu0
        %v3065 = vadd.f32 %v2983, %v3064
        %v3066 = vpop.f32.mrb[0].mxu0
        %3067 = vmatprep.mubr.f32.mxu0 0.0
        %v3068 = vand.u32 %v2814, 4294901760
        %v3069 = vsub.f32 %v2814, %v3068
        %3070 = vmatmul.mubr.f32.gmra.mrb[0].mxu0 %v3069
        %v3071 = vpop.f32.mrb[0].mxu0
        %v3072 = vadd.f32 %v2989, %v3071
        %v3073 = vpop.f32.mrb[0].mxu0
        %3074 = vdwg.mxu0
        %3075 = vmatprep.subr.mxu0 0.0
        %v3076 = vand.u32 %v2808, 4294901760
        %3077 = vmatpush1.msra.mxu0 %v3076
        %3078 = vmatprep.subr.mxu0 0.0
        %v3079 = vand.u32 %v2816, 4294901760
        %3080 = vmatpush1.msra.mxu0 %v3079
        %3081 = vmatprep.subr.mxu0 0.0
        %3082 = vmatpush1.msra.mxu0 0.0
        %3083 = vmatprep.subr.mxu0 0.0
        %3084 = vmatpush1.msra.mxu0 0.0
        %3085 = vmatprep.subr.mxu0 0.0
        %3086 = vmatpush1.msra.mxu0 0.0
        %3087 = vmatprep.subr.mxu0 0.0
        %3088 = vmatpush1.msra.mxu0 0.0
        %3089 = vmatprep.subr.mxu0 0.0
        %3090 = vmatpush1.msra.mxu0 0.0
        %3091 = vmatprep.subr.mxu0 0.0
        %3092 = vmatpush1.msra.mxu0 0.0
        %3093 = vmatprep.subr.mxu0 0.0
        %3094 = vmatpush1.msra.mxu0 0.0
        %3095 = vmatprep.subr.mxu0 0.0
        %3096 = vmatpush1.msra.mxu0 0.0
        %3097 = vmatprep.subr.mxu0 0.0
        %3098 = vmatpush1.msra.mxu0 0.0
        %3099 = vmatprep.subr.mxu0 0.0
        %3100 = vmatpush1.msra.mxu0 0.0
        %3101 = vmatprep.subr.mxu0 0.0
        %3102 = vmatpush1.msra.mxu0 0.0
        %3103 = vmatprep.subr.mxu0 0.0
        %3104 = vmatpush1.msra.mxu0 0.0
        %3105 = vmatprep.subr.mxu0 0.0
        %3106 = vmatpush1.msra.mxu0 0.0
        %3107 = vmatprep.subr.mxu0 0.0
        %3108 = vmatpush1.msra.mxu0 0.0
        %3109 = vmatprep.subr.mxu0 0.0
        %3110 = vmatpush1.msra.mxu0 0.0
        %3111 = vmatprep.subr.mxu0 0.0
        %3112 = vmatpush1.msra.mxu0 0.0
        %3113 = vmatprep.subr.mxu0 0.0
        %3114 = vmatpush1.msra.mxu0 0.0
        %3115 = vmatprep.subr.mxu0 0.0
        %3116 = vmatpush1.msra.mxu0 0.0
        %3117 = vmatprep.subr.mxu0 0.0
        %3118 = vmatpush1.msra.mxu0 0.0
        %3119 = vmatprep.subr.mxu0 0.0
        %3120 = vmatpush1.msra.mxu0 0.0
        %3121 = vmatprep.subr.mxu0 0.0
        %3122 = vmatpush1.msra.mxu0 0.0
        %3123 = vmatprep.subr.mxu0 0.0
        %3124 = vmatpush1.msra.mxu0 0.0
        %3125 = vmatprep.subr.mxu0 0.0
        %3126 = vmatpush1.msra.mxu0 0.0
        %3127 = vmatprep.subr.mxu0 0.0
        %3128 = vmatpush1.msra.mxu0 0.0
        %3129 = vmatprep.subr.mxu0 0.0
        %3130 = vmatpush1.msra.mxu0 0.0
        %3131 = vmatprep.subr.mxu0 0.0
        %3132 = vmatpush1.msra.mxu0 0.0
        %3133 = vmatprep.subr.mxu0 0.0
        %3134 = vmatpush1.msra.mxu0 0.0
        %3135 = vmatprep.subr.mxu0 0.0
        %3136 = vmatpush1.msra.mxu0 0.0
        %3137 = vmatprep.subr.mxu0 0.0
        %3138 = vmatpush1.msra.mxu0 0.0
        %3139 = vmatprep.subr.mxu0 0.0
        %3140 = vmatpush1.msra.mxu0 0.0
        %3141 = vmatprep.mubr.f32.mxu0 0.0
        %v3142 = vand.u32 %v2812, 4294901760
        %v3143 = vsub.f32 %v2812, %v3142
        %v3144 = vand.u32 %v3143, 4294901760
        %3145 = vmatmul.mubr.f32.gmra.mrb[0].mxu0 %v3144
        %v3146 = vpop.f32.mrb[0].mxu0
        %v3147 = vadd.f32 %v3065, %v3146
        %v3148 = vpop.f32.mrb[0].mxu0
        %3149 = vmatprep.mubr.f32.mxu0 0.0
        %v3150 = vand.u32 %v2814, 4294901760
        %v3151 = vsub.f32 %v2814, %v3150
        %v3152 = vand.u32 %v3151, 4294901760
        %3153 = vmatmul.mubr.f32.gmra.mrb[0].mxu0 %v3152
        %v3154 = vpop.f32.mrb[0].mxu0
        %v3155 = vadd.f32 %v3072, %v3154
        %v3156 = vpop.f32.mrb[0].mxu0
        %3157 = vdwg.mxu0
        %3158 = vmatprep.subr.mxu0 0.0
        %v3159 = vand.u32 %v2808, 4294901760
        %v3160 = vsub.f32 %v2808, %v3159
        %v3161 = vand.u32 %v3160, 4294901760
        %3162 = vmatpush1.msra.mxu0 %v3161
        %3163 = vmatprep.subr.mxu0 0.0
        %v3164 = vand.u32 %v2816, 4294901760
        %v3165 = vsub.f32 %v2816, %v3164
        %v3166 = vand.u32 %v3165, 4294901760
        %3167 = vmatpush1.msra.mxu0 %v3166
        %3168 = vmatprep.subr.mxu0 0.0
        %3169 = vmatpush1.msra.mxu0 0.0
        %3170 = vmatprep.subr.mxu0 0.0
        %3171 = vmatpush1.msra.mxu0 0.0
        %3172 = vmatprep.subr.mxu0 0.0
        %3173 = vmatpush1.msra.mxu0 0.0
        %3174 = vmatprep.subr.mxu0 0.0
        %3175 = vmatpush1.msra.mxu0 0.0
        %3176 = vmatprep.subr.mxu0 0.0
        %3177 = vmatpush1.msra.mxu0 0.0
        %3178 = vmatprep.subr.mxu0 0.0
        %3179 = vmatpush1.msra.mxu0 0.0
        %3180 = vmatprep.subr.mxu0 0.0
        %3181 = vmatpush1.msra.mxu0 0.0
        %3182 = vmatprep.subr.mxu0 0.0
        %3183 = vmatpush1.msra.mxu0 0.0
        %3184 = vmatprep.subr.mxu0 0.0
        %3185 = vmatpush1.msra.mxu0 0.0
        %3186 = vmatprep.subr.mxu0 0.0
        %3187 = vmatpush1.msra.mxu0 0.0
        %3188 = vmatprep.subr.mxu0 0.0
        %3189 = vmatpush1.msra.mxu0 0.0
        %3190 = vmatprep.subr.mxu0 0.0
        %3191 = vmatpush1.msra.mxu0 0.0
        %3192 = vmatprep.subr.mxu0 0.0
        %3193 = vmatpush1.msra.mxu0 0.0
        %3194 = vmatprep.subr.mxu0 0.0
        %3195 = vmatpush1.msra.mxu0 0.0
        %3196 = vmatprep.subr.mxu0 0.0
        %3197 = vmatpush1.msra.mxu0 0.0
        %3198 = vmatprep.subr.mxu0 0.0
        %3199 = vmatpush1.msra.mxu0 0.0
        %3200 = vmatprep.subr.mxu0 0.0
        %3201 = vmatpush1.msra.mxu0 0.0
        %3202 = vmatprep.subr.mxu0 0.0
        %3203 = vmatpush1.msra.mxu0 0.0
        %3204 = vmatprep.subr.mxu0 0.0
        %3205 = vmatpush1.msra.mxu0 0.0
        %3206 = vmatprep.subr.mxu0 0.0
        %3207 = vmatpush1.msra.mxu0 0.0
        %3208 = vmatprep.subr.mxu0 0.0
        %3209 = vmatpush1.msra.mxu0 0.0
        %3210 = vmatprep.subr.mxu0 0.0
        %3211 = vmatpush1.msra.mxu0 0.0
        %3212 = vmatprep.subr.mxu0 0.0
        %3213 = vmatpush1.msra.mxu0 0.0
        %3214 = vmatprep.subr.mxu0 0.0
        %3215 = vmatpush1.msra.mxu0 0.0
        %3216 = vmatprep.subr.mxu0 0.0
        %3217 = vmatpush1.msra.mxu0 0.0
        %3218 = vmatprep.subr.mxu0 0.0
        %3219 = vmatpush1.msra.mxu0 0.0
        %3220 = vmatprep.subr.mxu0 0.0
        %3221 = vmatpush1.msra.mxu0 0.0
        %3222 = vmatprep.subr.mxu0 0.0
        %3223 = vmatpush1.msra.mxu0 0.0
        %3224 = vmatprep.subr.mxu0 0.0
        %3225 = vmatpush1.msra.mxu0 0.0
        %3226 = vmatprep.subr.mxu0 0.0
        %3227 = vmatpush1.msra.mxu0 0.0
        %3228 = vmatprep.mubr.f32.mxu0 0.0
        %v3229 = vand.u32 %v2812, 4294901760
        %3230 = vmatmul.mubr.f32.gmra.mrb[0].mxu0 %v3229
        %v3231 = vpop.f32.mrb[0].mxu0
        %v3232 = vadd.f32 %v3147, %v3231
        %v3233 = vpop.f32.mrb[0].mxu0
        %3234 = vmatprep.mubr.f32.mxu0 0.0
        %v3235 = vand.u32 %v2814, 4294901760
        %3236 = vmatmul.mubr.f32.gmra.mrb[0].mxu0 %v3235
        %v3237 = vpop.f32.mrb[0].mxu0
        %v3238 = vadd.f32 %v3155, %v3237
        %v3239 = vpop.f32.mrb[0].mxu0
        %3240 = vdwg.mxu0
        %3241 = vmatprep.subr.mxu0 0.0
        %v3242 = vand.u32 %v2808, 4294901760
        %3243 = vmatpush1.msra.mxu0 %v3242
        %3244 = vmatprep.subr.mxu0 0.0
        %v3245 = vand.u32 %v2816, 4294901760
        %3246 = vmatpush1.msra.mxu0 %v3245
        %3247 = vmatprep.subr.mxu0 0.0
        %3248 = vmatpush1.msra.mxu0 0.0
        %3249 = vmatprep.subr.mxu0 0.0
        %3250 = vmatpush1.msra.mxu0 0.0
        %3251 = vmatprep.subr.mxu0 0.0
        %3252 = vmatpush1.msra.mxu0 0.0
        %3253 = vmatprep.subr.mxu0 0.0
        %3254 = vmatpush1.msra.mxu0 0.0
        %3255 = vmatprep.subr.mxu0 0.0
        %3256 = vmatpush1.msra.mxu0 0.0
        %3257 = vmatprep.subr.mxu0 0.0
        %3258 = vmatpush1.msra.mxu0 0.0
        %3259 = vmatprep.subr.mxu0 0.0
        %3260 = vmatpush1.msra.mxu0 0.0
        %3261 = vmatprep.subr.mxu0 0.0
        %3262 = vmatpush1.msra.mxu0 0.0
        %3263 = vmatprep.subr.mxu0 0.0
        %3264 = vmatpush1.msra.mxu0 0.0
        %3265 = vmatprep.subr.mxu0 0.0
        %3266 = vmatpush1.msra.mxu0 0.0
        %3267 = vmatprep.subr.mxu0 0.0
        %3268 = vmatpush1.msra.mxu0 0.0
        %3269 = vmatprep.subr.mxu0 0.0
        %3270 = vmatpush1.msra.mxu0 0.0
        %3271 = vmatprep.subr.mxu0 0.0
        %3272 = vmatpush1.msra.mxu0 0.0
        %3273 = vmatprep.subr.mxu0 0.0
        %3274 = vmatpush1.msra.mxu0 0.0
        %3275 = vmatprep.subr.mxu0 0.0
        %3276 = vmatpush1.msra.mxu0 0.0
        %3277 = vmatprep.subr.mxu0 0.0
        %3278 = vmatpush1.msra.mxu0 0.0
        %3279 = vmatprep.subr.mxu0 0.0
        %3280 = vmatpush1.msra.mxu0 0.0
        %3281 = vmatprep.subr.mxu0 0.0
        %3282 = vmatpush1.msra.mxu0 0.0
        %3283 = vmatprep.subr.mxu0 0.0
        %3284 = vmatpush1.msra.mxu0 0.0
        %3285 = vmatprep.subr.mxu0 0.0
        %3286 = vmatpush1.msra.mxu0 0.0
        %3287 = vmatprep.subr.mxu0 0.0
        %3288 = vmatpush1.msra.mxu0 0.0
        %3289 = vmatprep.subr.mxu0 0.0
        %3290 = vmatpush1.msra.mxu0 0.0
        %3291 = vmatprep.subr.mxu0 0.0
        %3292 = vmatpush1.msra.mxu0 0.0
        %3293 = vmatprep.subr.mxu0 0.0
        %3294 = vmatpush1.msra.mxu0 0.0
        %3295 = vmatprep.subr.mxu0 0.0
        %3296 = vmatpush1.msra.mxu0 0.0
        %3297 = vmatprep.subr.mxu0 0.0
        %3298 = vmatpush1.msra.mxu0 0.0
        %3299 = vmatprep.subr.mxu0 0.0
        %3300 = vmatpush1.msra.mxu0 0.0
        %3301 = vmatprep.subr.mxu0 0.0
        %3302 = vmatpush1.msra.mxu0 0.0
        %3303 = vmatprep.subr.mxu0 0.0
        %3304 = vmatpush1.msra.mxu0 0.0
        %3305 = vmatprep.subr.mxu0 0.0
        %3306 = vmatpush1.msra.mxu0 0.0
        %3307 = vmatprep.mubr.f32.mxu0 0.0
        %v3308 = vand.u32 %v2812, 4294901760
        %3309 = vmatmul.mubr.f32.gmra.mrb[0].mxu0 %v3308
        %v3310 = vpop.f32.mrb[0].mxu0
        %v3311 = vadd.f32 %v3232, %v3310
        %v3312 = vpop.f32.mrb[0].mxu0
        %3313 = vmatprep.mubr.f32.mxu0 0.0
        %v3314 = vand.u32 %v2814, 4294901760
        %3315 = vmatmul.mubr.f32.gmra.mrb[0].mxu0 %v3314
        %v3316 = vpop.f32.mrb[0].mxu0
        %v3317 = vadd.f32 %v3238, %v3316
        %v3318 = vpop.f32.mrb[0].mxu0
        %3319 = vdwg.mxu0
        %3321 = vxpose.xlu0.b32.start [1/16] %v2808, 128
        %3322 = vxpose.xlu0.b32.cont [2/16] %v2810, 128
        %3323 = vxpose.xlu0.b32.cont [3/16] 0.0, 128
        %3324 = vxpose.xlu0.b32.cont [4/16] 0.0, 128
        %3325 = vxpose.xlu0.b32.cont [5/16] 0.0, 128
        %3326 = vxpose.xlu0.b32.cont [6/16] 0.0, 128
        %3327 = vxpose.xlu0.b32.cont [7/16] 0.0, 128
        %3328 = vxpose.xlu0.b32.cont [8/16] 0.0, 128
        %3329 = vxpose.xlu0.b32.cont [9/16] 0.0, 128
        %3330 = vxpose.xlu0.b32.cont [10/16] 0.0, 128
        %3331 = vxpose.xlu0.b32.cont [11/16] 0.0, 128
        %3332 = vxpose.xlu0.b32.cont [12/16] 0.0, 128
        %3333 = vxpose.xlu0.b32.cont [13/16] 0.0, 128
        %3334 = vxpose.xlu0.b32.cont [14/16] 0.0, 128
        %3335 = vxpose.xlu0.b32.cont [15/16] 0.0, 128
        %3336 = vxpose.xlu0.b32.end [16/16] 0.0, 128
        %v3337 = vpop.trf.xlu0
        %v3338 = vpop.trf.xlu0
        %v3339 = vpop.trf.xlu0
        %v3340 = vpop.trf.xlu0
        %v3341 = vpop.trf.xlu0
        %v3342 = vpop.trf.xlu0
        %v3343 = vpop.trf.xlu0
        %v3344 = vpop.trf.xlu0
        %v3345 = vpop.trf.xlu0
        %v3346 = vpop.trf.xlu0
        %v3347 = vpop.trf.xlu0
        %v3348 = vpop.trf.xlu0
        %v3349 = vpop.trf.xlu0
        %v3350 = vpop.trf.xlu0
        %v3351 = vpop.trf.xlu0
        %v3352 = vpop.trf.xlu0
        %3353 = vxpose.xlu0.b32.start [1/16] %v3311, 128
        %3354 = vxpose.xlu0.b32.cont [2/16] %v3317, 128
        %3355 = vxpose.xlu0.b32.cont [3/16] 0.0, 128
        %3356 = vxpose.xlu0.b32.cont [4/16] 0.0, 128
        %3357 = vxpose.xlu0.b32.cont [5/16] 0.0, 128
        %3358 = vxpose.xlu0.b32.cont [6/16] 0.0, 128
        %3359 = vxpose.xlu0.b32.cont [7/16] 0.0, 128
        %3360 = vxpose.xlu0.b32.cont [8/16] 0.0, 128
        %3361 = vxpose.xlu0.b32.cont [9/16] 0.0, 128
        %3362 = vxpose.xlu0.b32.cont [10/16] 0.0, 128
        %3363 = vxpose.xlu0.b32.cont [11/16] 0.0, 128
        %3364 = vxpose.xlu0.b32.cont [12/16] 0.0, 128
        %3365 = vxpose.xlu0.b32.cont [13/16] 0.0, 128
        %3366 = vxpose.xlu0.b32.cont [14/16] 0.0, 128
        %3367 = vxpose.xlu0.b32.cont [15/16] 0.0, 128
        %3368 = vxpose.xlu0.b32.end [16/16] 0.0, 128
        %v3369 = vpop.trf.xlu0
        %v3370 = vpop.trf.xlu0
        %v3371 = vpop.trf.xlu0
        %v3372 = vpop.trf.xlu0
        %v3373 = vpop.trf.xlu0
        %v3374 = vpop.trf.xlu0
        %v3375 = vpop.trf.xlu0
        %v3376 = vpop.trf.xlu0
        %v3377 = vpop.trf.xlu0
        %v3378 = vpop.trf.xlu0
        %v3379 = vpop.trf.xlu0
        %v3380 = vpop.trf.xlu0
        %v3381 = vpop.trf.xlu0
        %v3382 = vpop.trf.xlu0
        %v3383 = vpop.trf.xlu0
        %v3384 = vpop.trf.xlu0
        %3387 = vrot.lane.b32.xlu0 %v3337, 33
        %v3388 = vpop.permute.xlu0 %3387
        %3389 = vrot.lane.b32.xlu0 %v3338, 33
        %v3390 = vpop.permute.xlu0 %3389
        %v3393 = vmul.f32 %v771, %v3388
        %v3394 = vmul.f32 %v772, %v3390
        %3397 = vrot.lane.b32.xlu0 %v3393, 95
        %v3398 = vpop.permute.xlu0 %3397
        %3399 = vrot.lane.b32.xlu0 %v3394, 95
        %v3400 = vpop.permute.xlu0 %3399
        %v3403 = vsel %vm773, %v3398, 0.0
        %v3404 = vsel %vm1351, %v3400, 0.0
        %v3405 = vadd.f32 %v3403, %v3404
        %3406 = vadd.xlane.f32.xlu0 %v3405
        %v3407 = vpop.xlane.xlu0 %3406
        %v3408 = vrot.slane %v3407, 4
        %v3409 = vadd.f32 %v3407, %v3408
        %v3410 = vrot.slane %v3409, 2
        %v3411 = vadd.f32 %v3409, %v3410
        %v3412 = vrot.slane %v3411, 1
        %v3413 = vadd.f32 %v3411, %v3412
        %s3414 = vtos %v3413
        %s3415 = smul.f32 %s3414, 0.008264462
        %s3416 = sld [smem:[#allocation2 + $0x24]]
        %s3417 = smul.f32 %s3416, %s3415
        %s3418 = sadd.f32 %s2806, %s3417
        %s3419 = smul.f32 %s3415, %s3415
        %s3420 = sld [smem:[#allocation2 + $0x25]]
        %s3421 = smul.f32 %s3420, %s3419
        %s3422 = sadd.f32 %s3418, %s3421
        %s3423 = smul.f32 %s3419, %s3415
        %s3424 = sld [smem:[#allocation2 + $0x26]]
        %s3425 = smul.f32 %s3424, %s3423
        %s3426 = sadd.f32 %s3422, %s3425
        %s3427 = smul.f32 %s3423, %s3415
        %s3428 = sld [smem:[#allocation2 + $0x27]]
        %s3429 = smul.f32 %s3428, %s3427
        %s3430 = sadd.f32 %s3426, %s3429
        %v3431 = vmul.f32 %v3311, %v3337
        %v3432 = vmul.f32 %v3317, %v3338
        %v3433 = vsel %vm773, %v3431, 0.0
        %v3434 = vsel %vm1351, %v3432, 0.0
        %v3435 = vadd.f32 %v3433, %v3434
        %3436 = vadd.xlane.f32.xlu0 %v3435
        %v3437 = vpop.xlane.xlu0 %3436
        %v3438 = vrot.slane %v3437, 4
        %v3439 = vadd.f32 %v3437, %v3438
        %v3440 = vrot.slane %v3439, 2
        %v3441 = vadd.f32 %v3439, %v3440
        %v3442 = vrot.slane %v3441, 1
        %v3443 = vadd.f32 %v3441, %v3442
        %s3444 = vtos %v3443
        %s3445 = smul.f32 %s3444, 0.008264462
        %s3446 = sld [smem:[#allocation2 + $0x28]]
        %s3447 = smul.f32 %s3446, %s3445
        %s3448 = sadd.f32 %s3430, %s3447
        %s3449 = smul.f32 %s3445, %s3445
        %s3450 = sld [smem:[#allocation2 + $0x29]]
        %s3451 = smul.f32 %s3450, %s3449
        %s3452 = sadd.f32 %s3448, %s3451
        %s3453 = smul.f32 %s3449, %s3445
        %s3454 = sld [smem:[#allocation2 + $0x2a]]
        %s3455 = smul.f32 %s3454, %s3453
        %s3456 = sadd.f32 %s3452, %s3455
        %s3457 = smul.f32 %s3453, %s3445
        %s3458 = sld [smem:[#allocation2 + $0x2b]]
        %s3459 = smul.f32 %s3458, %s3457
        %s3460 = sadd.f32 %s3456, %s3459
        %v3461 = vmul.f32 %v3311, %v3369
        %v3462 = vmul.f32 %v3317, %v3370
        %v3463 = vsel %vm773, %v3461, 0.0
        %v3464 = vsel %vm1351, %v3462, 0.0
        %v3465 = vadd.f32 %v3463, %v3464
        %3466 = vadd.xlane.f32.xlu0 %v3465
        %v3467 = vpop.xlane.xlu0 %3466
        %v3468 = vrot.slane %v3467, 4
        %v3469 = vadd.f32 %v3467, %v3468
        %v3470 = vrot.slane %v3469, 2
        %v3471 = vadd.f32 %v3469, %v3470
        %v3472 = vrot.slane %v3471, 1
        %v3473 = vadd.f32 %v3471, %v3472
        %s3474 = vtos %v3473
        %s3475 = smul.f32 %s3474, 0.008264462
        %s3476 = sld [smem:[#allocation2 + $0x2c]]
        %s3477 = smul.f32 %s3476, %s3475
        %s3478 = sadd.f32 %s3460, %s3477
        %s3479 = smul.f32 %s3475, %s3475
        %s3480 = sld [smem:[#allocation2 + $0x2d]]
        %s3481 = smul.f32 %s3480, %s3479
        %s3482 = sadd.f32 %s3478, %s3481
        %s3483 = smul.f32 %s3479, %s3475
        %s3484 = sld [smem:[#allocation2 + $0x2e]]
        %s3485 = smul.f32 %s3484, %s3483
        %s3486 = sadd.f32 %s3482, %s3485
        %s3487 = smul.f32 %s3483, %s3475
        %s3488 = sld [smem:[#allocation2 + $0x2f]]
        %s3489 = smul.f32 %s3488, %s3487
        %s3490 = sadd.f32 %s3486, %s3489
        %3491 = vrot.lane.b32.xlu0 %v771, 84
        %v3492 = vpop.permute.xlu0 %3491
        %3493 = vrot.lane.b32.xlu0 %v772, 84
        %v3494 = vpop.permute.xlu0 %3493
        %v3496 = vsel %vm773, %v3492, 0
        %v3498 = vsel %vm773, %v3494, 0
        %v3500 = vsel %vm677, %v3494, 0
        %3502 = vmatprep.subr.mxu0 0.0
        %v3503 = vand.u32 %v3492, 4294901760
        %3504 = vmatpush1.msra.mxu0 %v3503
        %3505 = vmatprep.subr.mxu0 0.0
        %v3506 = vand.u32 %v3500, 4294901760
        %3507 = vmatpush1.msra.mxu0 %v3506
        %3508 = vmatprep.subr.mxu0 0.0
        %3509 = vmatpush1.msra.mxu0 0.0
        %3510 = vmatprep.subr.mxu0 0.0
        %3511 = vmatpush1.msra.mxu0 0.0
        %3512 = vmatprep.subr.mxu0 0.0
        %3513 = vmatpush1.msra.mxu0 0.0
        %3514 = vmatprep.subr.mxu0 0.0
        %3515 = vmatpush1.msra.mxu0 0.0
        %3516 = vmatprep.subr.mxu0 0.0
        %3517 = vmatpush1.msra.mxu0 0.0
        %3518 = vmatprep.subr.mxu0 0.0
        %3519 = vmatpush1.msra.mxu0 0.0
        %3520 = vmatprep.subr.mxu0 0.0
        %3521 = vmatpush1.msra.mxu0 0.0
        %3522 = vmatprep.subr.mxu0 0.0
        %3523 = vmatpush1.msra.mxu0 0.0
        %3524 = vmatprep.subr.mxu0 0.0
        %3525 = vmatpush1.msra.mxu0 0.0
        %3526 = vmatprep.subr.mxu0 0.0
        %3527 = vmatpush1.msra.mxu0 0.0
        %3528 = vmatprep.subr.mxu0 0.0
        %3529 = vmatpush1.msra.mxu0 0.0
        %3530 = vmatprep.subr.mxu0 0.0
        %3531 = vmatpush1.msra.mxu0 0.0
        %3532 = vmatprep.subr.mxu0 0.0
        %3533 = vmatpush1.msra.mxu0 0.0
        %3534 = vmatprep.subr.mxu0 0.0
        %3535 = vmatpush1.msra.mxu0 0.0
        %3536 = vmatprep.subr.mxu0 0.0
        %3537 = vmatpush1.msra.mxu0 0.0
        %3538 = vmatprep.subr.mxu0 0.0
        %3539 = vmatpush1.msra.mxu0 0.0
        %3540 = vmatprep.subr.mxu0 0.0
        %3541 = vmatpush1.msra.mxu0 0.0
        %3542 = vmatprep.subr.mxu0 0.0
        %3543 = vmatpush1.msra.mxu0 0.0
        %3544 = vmatprep.subr.mxu0 0.0
        %3545 = vmatpush1.msra.mxu0 0.0
        %3546 = vmatprep.subr.mxu0 0.0
        %3547 = vmatpush1.msra.mxu0 0.0
        %3548 = vmatprep.subr.mxu0 0.0
        %3549 = vmatpush1.msra.mxu0 0.0
        %3550 = vmatprep.subr.mxu0 0.0
        %3551 = vmatpush1.msra.mxu0 0.0
        %3552 = vmatprep.subr.mxu0 0.0
        %3553 = vmatpush1.msra.mxu0 0.0
        %3554 = vmatprep.subr.mxu0 0.0
        %3555 = vmatpush1.msra.mxu0 0.0
        %3556 = vmatprep.subr.mxu0 0.0
        %3557 = vmatpush1.msra.mxu0 0.0
        %3558 = vmatprep.subr.mxu0 0.0
        %3559 = vmatpush1.msra.mxu0 0.0
        %3560 = vmatprep.subr.mxu0 0.0
        %3561 = vmatpush1.msra.mxu0 0.0
        %3562 = vmatprep.subr.mxu0 0.0
        %3563 = vmatpush1.msra.mxu0 0.0
        %3564 = vmatprep.subr.mxu0 0.0
        %3565 = vmatpush1.msra.mxu0 0.0
        %3566 = vmatprep.subr.mxu0 0.0
        %3567 = vmatpush1.msra.mxu0 0.0
        %3568 = vmatprep.mubr.f32.mxu0 0.0
        %v3569 = vand.u32 %v3496, 4294901760
        %v3570 = vsub.f32 %v3496, %v3569
        %v3571 = vand.u32 %v3570, 4294901760
        %v3572 = vsub.f32 %v3570, %v3571
        %v3573 = vand.u32 %v3572, 4294901760
        %3574 = vmatmul.mubr.f32.gmra.mrb[0].mxu0 %v3573
        %v3575 = vpop.f32.mrb[0].mxu0
        %v3576 = vadd.f32 0.0, %v3575
        %v3577 = vpop.f32.mrb[0].mxu0
        %3578 = vmatprep.mubr.f32.mxu0 0.0
        %v3579 = vand.u32 %v3498, 4294901760
        %v3580 = vsub.f32 %v3498, %v3579
        %v3581 = vand.u32 %v3580, 4294901760
        %v3582 = vsub.f32 %v3580, %v3581
        %v3583 = vand.u32 %v3582, 4294901760
        %3584 = vmatmul.mubr.f32.gmra.mrb[0].mxu0 %v3583
        %v3585 = vpop.f32.mrb[0].mxu0
        %v3586 = vadd.f32 0.0, %v3585
        %v3587 = vpop.f32.mrb[0].mxu0
        %3588 = vdwg.mxu0
        %3589 = vmatprep.subr.mxu0 0.0
        %v3590 = vand.u32 %v3492, 4294901760
        %v3591 = vsub.f32 %v3492, %v3590
        %v3592 = vand.u32 %v3591, 4294901760
        %v3593 = vsub.f32 %v3591, %v3592
        %v3594 = vand.u32 %v3593, 4294901760
        %3595 = vmatpush1.msra.mxu0 %v3594
        %3596 = vmatprep.subr.mxu0 0.0
        %v3597 = vand.u32 %v3500, 4294901760
        %v3598 = vsub.f32 %v3500, %v3597
        %v3599 = vand.u32 %v3598, 4294901760
        %v3600 = vsub.f32 %v3598, %v3599
        %v3601 = vand.u32 %v3600, 4294901760
        %3602 = vmatpush1.msra.mxu0 %v3601
        %3603 = vmatprep.subr.mxu0 0.0
        %3604 = vmatpush1.msra.mxu0 0.0
        %3605 = vmatprep.subr.mxu0 0.0
        %3606 = vmatpush1.msra.mxu0 0.0
        %3607 = vmatprep.subr.mxu0 0.0
        %3608 = vmatpush1.msra.mxu0 0.0
        %3609 = vmatprep.subr.mxu0 0.0
        %3610 = vmatpush1.msra.mxu0 0.0
        %3611 = vmatprep.subr.mxu0 0.0
        %3612 = vmatpush1.msra.mxu0 0.0
        %3613 = vmatprep.subr.mxu0 0.0
        %3614 = vmatpush1.msra.mxu0 0.0
        %3615 = vmatprep.subr.mxu0 0.0
        %3616 = vmatpush1.msra.mxu0 0.0
        %3617 = vmatprep.subr.mxu0 0.0
        %3618 = vmatpush1.msra.mxu0 0.0
        %3619 = vmatprep.subr.mxu0 0.0
        %3620 = vmatpush1.msra.mxu0 0.0
        %3621 = vmatprep.subr.mxu0 0.0
        %3622 = vmatpush1.msra.mxu0 0.0
        %3623 = vmatprep.subr.mxu0 0.0
        %3624 = vmatpush1.msra.mxu0 0.0
        %3625 = vmatprep.subr.mxu0 0.0
        %3626 = vmatpush1.msra.mxu0 0.0
        %3627 = vmatprep.subr.mxu0 0.0
        %3628 = vmatpush1.msra.mxu0 0.0
        %3629 = vmatprep.subr.mxu0 0.0
        %3630 = vmatpush1.msra.mxu0 0.0
        %3631 = vmatprep.subr.mxu0 0.0
        %3632 = vmatpush1.msra.mxu0 0.0
        %3633 = vmatprep.subr.mxu0 0.0
        %3634 = vmatpush1.msra.mxu0 0.0
        %3635 = vmatprep.subr.mxu0 0.0
        %3636 = vmatpush1.msra.mxu0 0.0
        %3637 = vmatprep.subr.mxu0 0.0
        %3638 = vmatpush1.msra.mxu0 0.0
        %3639 = vmatprep.subr.mxu0 0.0
        %3640 = vmatpush1.msra.mxu0 0.0
        %3641 = vmatprep.subr.mxu0 0.0
        %3642 = vmatpush1.msra.mxu0 0.0
        %3643 = vmatprep.subr.mxu0 0.0
        %3644 = vmatpush1.msra.mxu0 0.0
        %3645 = vmatprep.subr.mxu0 0.0
        %3646 = vmatpush1.msra.mxu0 0.0
        %3647 = vmatprep.subr.mxu0 0.0
        %3648 = vmatpush1.msra.mxu0 0.0
        %3649 = vmatprep.subr.mxu0 0.0
        %3650 = vmatpush1.msra.mxu0 0.0
        %3651 = vmatprep.subr.mxu0 0.0
        %3652 = vmatpush1.msra.mxu0 0.0
        %3653 = vmatprep.subr.mxu0 0.0
        %3654 = vmatpush1.msra.mxu0 0.0
        %3655 = vmatprep.subr.mxu0 0.0
        %3656 = vmatpush1.msra.mxu0 0.0
        %3657 = vmatprep.subr.mxu0 0.0
        %3658 = vmatpush1.msra.mxu0 0.0
        %3659 = vmatprep.subr.mxu0 0.0
        %3660 = vmatpush1.msra.mxu0 0.0
        %3661 = vmatprep.subr.mxu0 0.0
        %3662 = vmatpush1.msra.mxu0 0.0
        %3663 = vmatprep.mubr.f32.mxu0 0.0
        %v3664 = vand.u32 %v3496, 4294901760
        %3665 = vmatmul.mubr.f32.gmra.mrb[0].mxu0 %v3664
        %v3666 = vpop.f32.mrb[0].mxu0
        %v3667 = vadd.f32 %v3576, %v3666
        %v3668 = vpop.f32.mrb[0].mxu0
        %3669 = vmatprep.mubr.f32.mxu0 0.0
        %v3670 = vand.u32 %v3498, 4294901760
        %3671 = vmatmul.mubr.f32.gmra.mrb[0].mxu0 %v3670
        %v3672 = vpop.f32.mrb[0].mxu0
        %v3673 = vadd.f32 %v3586, %v3672
        %v3674 = vpop.f32.mrb[0].mxu0
        %3675 = vdwg.mxu0
        %3676 = vmatprep.subr.mxu0 0.0
        %v3677 = vand.u32 %v3492, 4294901760
        %v3678 = vsub.f32 %v3492, %v3677
        %3679 = vmatpush1.msra.mxu0 %v3678
        %3680 = vmatprep.subr.mxu0 0.0
        %v3681 = vand.u32 %v3500, 4294901760
        %v3682 = vsub.f32 %v3500, %v3681
        %3683 = vmatpush1.msra.mxu0 %v3682
        %3684 = vmatprep.subr.mxu0 0.0
        %3685 = vmatpush1.msra.mxu0 0.0
        %3686 = vmatprep.subr.mxu0 0.0
        %3687 = vmatpush1.msra.mxu0 0.0
        %3688 = vmatprep.subr.mxu0 0.0
        %3689 = vmatpush1.msra.mxu0 0.0
        %3690 = vmatprep.subr.mxu0 0.0
        %3691 = vmatpush1.msra.mxu0 0.0
        %3692 = vmatprep.subr.mxu0 0.0
        %3693 = vmatpush1.msra.mxu0 0.0
        %3694 = vmatprep.subr.mxu0 0.0
        %3695 = vmatpush1.msra.mxu0 0.0
        %3696 = vmatprep.subr.mxu0 0.0
        %3697 = vmatpush1.msra.mxu0 0.0
        %3698 = vmatprep.subr.mxu0 0.0
        %3699 = vmatpush1.msra.mxu0 0.0
        %3700 = vmatprep.subr.mxu0 0.0
        %3701 = vmatpush1.msra.mxu0 0.0
        %3702 = vmatprep.subr.mxu0 0.0
        %3703 = vmatpush1.msra.mxu0 0.0
        %3704 = vmatprep.subr.mxu0 0.0
        %3705 = vmatpush1.msra.mxu0 0.0
        %3706 = vmatprep.subr.mxu0 0.0
        %3707 = vmatpush1.msra.mxu0 0.0
        %3708 = vmatprep.subr.mxu0 0.0
        %3709 = vmatpush1.msra.mxu0 0.0
        %3710 = vmatprep.subr.mxu0 0.0
        %3711 = vmatpush1.msra.mxu0 0.0
        %3712 = vmatprep.subr.mxu0 0.0
        %3713 = vmatpush1.msra.mxu0 0.0
        %3714 = vmatprep.subr.mxu0 0.0
        %3715 = vmatpush1.msra.mxu0 0.0
        %3716 = vmatprep.subr.mxu0 0.0
        %3717 = vmatpush1.msra.mxu0 0.0
        %3718 = vmatprep.subr.mxu0 0.0
        %3719 = vmatpush1.msra.mxu0 0.0
        %3720 = vmatprep.subr.mxu0 0.0
        %3721 = vmatpush1.msra.mxu0 0.0
        %3722 = vmatprep.subr.mxu0 0.0
        %3723 = vmatpush1.msra.mxu0 0.0
        %3724 = vmatprep.subr.mxu0 0.0
        %3725 = vmatpush1.msra.mxu0 0.0
        %3726 = vmatprep.subr.mxu0 0.0
        %3727 = vmatpush1.msra.mxu0 0.0
        %3728 = vmatprep.subr.mxu0 0.0
        %3729 = vmatpush1.msra.mxu0 0.0
        %3730 = vmatprep.subr.mxu0 0.0
        %3731 = vmatpush1.msra.mxu0 0.0
        %3732 = vmatprep.subr.mxu0 0.0
        %3733 = vmatpush1.msra.mxu0 0.0
        %3734 = vmatprep.subr.mxu0 0.0
        %3735 = vmatpush1.msra.mxu0 0.0
        %3736 = vmatprep.subr.mxu0 0.0
        %3737 = vmatpush1.msra.mxu0 0.0
        %3738 = vmatprep.subr.mxu0 0.0
        %3739 = vmatpush1.msra.mxu0 0.0
        %3740 = vmatprep.subr.mxu0 0.0
        %3741 = vmatpush1.msra.mxu0 0.0
        %3742 = vmatprep.subr.mxu0 0.0
        %3743 = vmatpush1.msra.mxu0 0.0
        %3744 = vmatprep.mubr.f32.mxu0 0.0
        %v3745 = vand.u32 %v3496, 4294901760
        %v3746 = vsub.f32 %v3496, %v3745
        %3747 = vmatmul.mubr.f32.gmra.mrb[0].mxu0 %v3746
        %v3748 = vpop.f32.mrb[0].mxu0
        %v3749 = vadd.f32 %v3667, %v3748
        %v3750 = vpop.f32.mrb[0].mxu0
        %3751 = vmatprep.mubr.f32.mxu0 0.0
        %v3752 = vand.u32 %v3498, 4294901760
        %v3753 = vsub.f32 %v3498, %v3752
        %3754 = vmatmul.mubr.f32.gmra.mrb[0].mxu0 %v3753
        %v3755 = vpop.f32.mrb[0].mxu0
        %v3756 = vadd.f32 %v3673, %v3755
        %v3757 = vpop.f32.mrb[0].mxu0
        %3758 = vdwg.mxu0
        %3759 = vmatprep.subr.mxu0 0.0
        %v3760 = vand.u32 %v3492, 4294901760
        %3761 = vmatpush1.msra.mxu0 %v3760
        %3762 = vmatprep.subr.mxu0 0.0
        %v3763 = vand.u32 %v3500, 4294901760
        %3764 = vmatpush1.msra.mxu0 %v3763
        %3765 = vmatprep.subr.mxu0 0.0
        %3766 = vmatpush1.msra.mxu0 0.0
        %3767 = vmatprep.subr.mxu0 0.0
        %3768 = vmatpush1.msra.mxu0 0.0
        %3769 = vmatprep.subr.mxu0 0.0
        %3770 = vmatpush1.msra.mxu0 0.0
        %3771 = vmatprep.subr.mxu0 0.0
        %3772 = vmatpush1.msra.mxu0 0.0
        %3773 = vmatprep.subr.mxu0 0.0
        %3774 = vmatpush1.msra.mxu0 0.0
        %3775 = vmatprep.subr.mxu0 0.0
        %3776 = vmatpush1.msra.mxu0 0.0
        %3777 = vmatprep.subr.mxu0 0.0
        %3778 = vmatpush1.msra.mxu0 0.0
        %3779 = vmatprep.subr.mxu0 0.0
        %3780 = vmatpush1.msra.mxu0 0.0
        %3781 = vmatprep.subr.mxu0 0.0
        %3782 = vmatpush1.msra.mxu0 0.0
        %3783 = vmatprep.subr.mxu0 0.0
        %3784 = vmatpush1.msra.mxu0 0.0
        %3785 = vmatprep.subr.mxu0 0.0
        %3786 = vmatpush1.msra.mxu0 0.0
        %3787 = vmatprep.subr.mxu0 0.0
        %3788 = vmatpush1.msra.mxu0 0.0
        %3789 = vmatprep.subr.mxu0 0.0
        %3790 = vmatpush1.msra.mxu0 0.0
        %3791 = vmatprep.subr.mxu0 0.0
        %3792 = vmatpush1.msra.mxu0 0.0
        %3793 = vmatprep.subr.mxu0 0.0
        %3794 = vmatpush1.msra.mxu0 0.0
        %3795 = vmatprep.subr.mxu0 0.0
        %3796 = vmatpush1.msra.mxu0 0.0
        %3797 = vmatprep.subr.mxu0 0.0
        %3798 = vmatpush1.msra.mxu0 0.0
        %3799 = vmatprep.subr.mxu0 0.0
        %3800 = vmatpush1.msra.mxu0 0.0
        %3801 = vmatprep.subr.mxu0 0.0
        %3802 = vmatpush1.msra.mxu0 0.0
        %3803 = vmatprep.subr.mxu0 0.0
        %3804 = vmatpush1.msra.mxu0 0.0
        %3805 = vmatprep.subr.mxu0 0.0
        %3806 = vmatpush1.msra.mxu0 0.0
        %3807 = vmatprep.subr.mxu0 0.0
        %3808 = vmatpush1.msra.mxu0 0.0
        %3809 = vmatprep.subr.mxu0 0.0
        %3810 = vmatpush1.msra.mxu0 0.0
        %3811 = vmatprep.subr.mxu0 0.0
        %3812 = vmatpush1.msra.mxu0 0.0
        %3813 = vmatprep.subr.mxu0 0.0
        %3814 = vmatpush1.msra.mxu0 0.0
        %3815 = vmatprep.subr.mxu0 0.0
        %3816 = vmatpush1.msra.mxu0 0.0
        %3817 = vmatprep.subr.mxu0 0.0
        %3818 = vmatpush1.msra.mxu0 0.0
        %3819 = vmatprep.subr.mxu0 0.0
        %3820 = vmatpush1.msra.mxu0 0.0
        %3821 = vmatprep.subr.mxu0 0.0
        %3822 = vmatpush1.msra.mxu0 0.0
        %3823 = vmatprep.subr.mxu0 0.0
        %3824 = vmatpush1.msra.mxu0 0.0
        %3825 = vmatprep.mubr.f32.mxu0 0.0
        %v3826 = vand.u32 %v3496, 4294901760
        %v3827 = vsub.f32 %v3496, %v3826
        %v3828 = vand.u32 %v3827, 4294901760
        %3829 = vmatmul.mubr.f32.gmra.mrb[0].mxu0 %v3828
        %v3830 = vpop.f32.mrb[0].mxu0
        %v3831 = vadd.f32 %v3749, %v3830
        %v3832 = vpop.f32.mrb[0].mxu0
        %3833 = vmatprep.mubr.f32.mxu0 0.0
        %v3834 = vand.u32 %v3498, 4294901760
        %v3835 = vsub.f32 %v3498, %v3834
        %v3836 = vand.u32 %v3835, 4294901760
        %3837 = vmatmul.mubr.f32.gmra.mrb[0].mxu0 %v3836
        %v3838 = vpop.f32.mrb[0].mxu0
        %v3839 = vadd.f32 %v3756, %v3838
        %v3840 = vpop.f32.mrb[0].mxu0
        %3841 = vdwg.mxu0
        %3842 = vmatprep.subr.mxu0 0.0
        %v3843 = vand.u32 %v3492, 4294901760
        %v3844 = vsub.f32 %v3492, %v3843
        %v3845 = vand.u32 %v3844, 4294901760
        %3846 = vmatpush1.msra.mxu0 %v3845
        %3847 = vmatprep.subr.mxu0 0.0
        %v3848 = vand.u32 %v3500, 4294901760
        %v3849 = vsub.f32 %v3500, %v3848
        %v3850 = vand.u32 %v3849, 4294901760
        %3851 = vmatpush1.msra.mxu0 %v3850
        %3852 = vmatprep.subr.mxu0 0.0
        %3853 = vmatpush1.msra.mxu0 0.0
        %3854 = vmatprep.subr.mxu0 0.0
        %3855 = vmatpush1.msra.mxu0 0.0
        %3856 = vmatprep.subr.mxu0 0.0
        %3857 = vmatpush1.msra.mxu0 0.0
        %3858 = vmatprep.subr.mxu0 0.0
        %3859 = vmatpush1.msra.mxu0 0.0
        %3860 = vmatprep.subr.mxu0 0.0
        %3861 = vmatpush1.msra.mxu0 0.0
        %3862 = vmatprep.subr.mxu0 0.0
        %3863 = vmatpush1.msra.mxu0 0.0
        %3864 = vmatprep.subr.mxu0 0.0
        %3865 = vmatpush1.msra.mxu0 0.0
        %3866 = vmatprep.subr.mxu0 0.0
        %3867 = vmatpush1.msra.mxu0 0.0
        %3868 = vmatprep.subr.mxu0 0.0
        %3869 = vmatpush1.msra.mxu0 0.0
        %3870 = vmatprep.subr.mxu0 0.0
        %3871 = vmatpush1.msra.mxu0 0.0
        %3872 = vmatprep.subr.mxu0 0.0
        %3873 = vmatpush1.msra.mxu0 0.0
        %3874 = vmatprep.subr.mxu0 0.0
        %3875 = vmatpush1.msra.mxu0 0.0
        %3876 = vmatprep.subr.mxu0 0.0
        %3877 = vmatpush1.msra.mxu0 0.0
        %3878 = vmatprep.subr.mxu0 0.0
        %3879 = vmatpush1.msra.mxu0 0.0
        %3880 = vmatprep.subr.mxu0 0.0
        %3881 = vmatpush1.msra.mxu0 0.0
        %3882 = vmatprep.subr.mxu0 0.0
        %3883 = vmatpush1.msra.mxu0 0.0
        %3884 = vmatprep.subr.mxu0 0.0
        %3885 = vmatpush1.msra.mxu0 0.0
        %3886 = vmatprep.subr.mxu0 0.0
        %3887 = vmatpush1.msra.mxu0 0.0
        %3888 = vmatprep.subr.mxu0 0.0
        %3889 = vmatpush1.msra.mxu0 0.0
        %3890 = vmatprep.subr.mxu0 0.0
        %3891 = vmatpush1.msra.mxu0 0.0
        %3892 = vmatprep.subr.mxu0 0.0
        %3893 = vmatpush1.msra.mxu0 0.0
        %3894 = vmatprep.subr.mxu0 0.0
        %3895 = vmatpush1.msra.mxu0 0.0
        %3896 = vmatprep.subr.mxu0 0.0
        %3897 = vmatpush1.msra.mxu0 0.0
        %3898 = vmatprep.subr.mxu0 0.0
        %3899 = vmatpush1.msra.mxu0 0.0
        %3900 = vmatprep.subr.mxu0 0.0
        %3901 = vmatpush1.msra.mxu0 0.0
        %3902 = vmatprep.subr.mxu0 0.0
        %3903 = vmatpush1.msra.mxu0 0.0
        %3904 = vmatprep.subr.mxu0 0.0
        %3905 = vmatpush1.msra.mxu0 0.0
        %3906 = vmatprep.subr.mxu0 0.0
        %3907 = vmatpush1.msra.mxu0 0.0
        %3908 = vmatprep.subr.mxu0 0.0
        %3909 = vmatpush1.msra.mxu0 0.0
        %3910 = vmatprep.subr.mxu0 0.0
        %3911 = vmatpush1.msra.mxu0 0.0
        %3912 = vmatprep.mubr.f32.mxu0 0.0
        %v3913 = vand.u32 %v3496, 4294901760
        %3914 = vmatmul.mubr.f32.gmra.mrb[0].mxu0 %v3913
        %v3915 = vpop.f32.mrb[0].mxu0
        %v3916 = vadd.f32 %v3831, %v3915
        %v3917 = vpop.f32.mrb[0].mxu0
        %3918 = vmatprep.mubr.f32.mxu0 0.0
        %v3919 = vand.u32 %v3498, 4294901760
        %3920 = vmatmul.mubr.f32.gmra.mrb[0].mxu0 %v3919
        %v3921 = vpop.f32.mrb[0].mxu0
        %v3922 = vadd.f32 %v3839, %v3921
        %v3923 = vpop.f32.mrb[0].mxu0
        %3924 = vdwg.mxu0
        %3925 = vmatprep.subr.mxu0 0.0
        %v3926 = vand.u32 %v3492, 4294901760
        %3927 = vmatpush1.msra.mxu0 %v3926
        %3928 = vmatprep.subr.mxu0 0.0
        %v3929 = vand.u32 %v3500, 4294901760
        %3930 = vmatpush1.msra.mxu0 %v3929
        %3931 = vmatprep.subr.mxu0 0.0
        %3932 = vmatpush1.msra.mxu0 0.0
        %3933 = vmatprep.subr.mxu0 0.0
        %3934 = vmatpush1.msra.mxu0 0.0
        %3935 = vmatprep.subr.mxu0 0.0
        %3936 = vmatpush1.msra.mxu0 0.0
        %3937 = vmatprep.subr.mxu0 0.0
        %3938 = vmatpush1.msra.mxu0 0.0
        %3939 = vmatprep.subr.mxu0 0.0
        %3940 = vmatpush1.msra.mxu0 0.0
        %3941 = vmatprep.subr.mxu0 0.0
        %3942 = vmatpush1.msra.mxu0 0.0
        %3943 = vmatprep.subr.mxu0 0.0
        %3944 = vmatpush1.msra.mxu0 0.0
        %3945 = vmatprep.subr.mxu0 0.0
        %3946 = vmatpush1.msra.mxu0 0.0
        %3947 = vmatprep.subr.mxu0 0.0
        %3948 = vmatpush1.msra.mxu0 0.0
        %3949 = vmatprep.subr.mxu0 0.0
        %3950 = vmatpush1.msra.mxu0 0.0
        %3951 = vmatprep.subr.mxu0 0.0
        %3952 = vmatpush1.msra.mxu0 0.0
        %3953 = vmatprep.subr.mxu0 0.0
        %3954 = vmatpush1.msra.mxu0 0.0
        %3955 = vmatprep.subr.mxu0 0.0
        %3956 = vmatpush1.msra.mxu0 0.0
        %3957 = vmatprep.subr.mxu0 0.0
        %3958 = vmatpush1.msra.mxu0 0.0
        %3959 = vmatprep.subr.mxu0 0.0
        %3960 = vmatpush1.msra.mxu0 0.0
        %3961 = vmatprep.subr.mxu0 0.0
        %3962 = vmatpush1.msra.mxu0 0.0
        %3963 = vmatprep.subr.mxu0 0.0
        %3964 = vmatpush1.msra.mxu0 0.0
        %3965 = vmatprep.subr.mxu0 0.0
        %3966 = vmatpush1.msra.mxu0 0.0
        %3967 = vmatprep.subr.mxu0 0.0
        %3968 = vmatpush1.msra.mxu0 0.0
        %3969 = vmatprep.subr.mxu0 0.0
        %3970 = vmatpush1.msra.mxu0 0.0
        %3971 = vmatprep.subr.mxu0 0.0
        %3972 = vmatpush1.msra.mxu0 0.0
        %3973 = vmatprep.subr.mxu0 0.0
        %3974 = vmatpush1.msra.mxu0 0.0
        %3975 = vmatprep.subr.mxu0 0.0
        %3976 = vmatpush1.msra.mxu0 0.0
        %3977 = vmatprep.subr.mxu0 0.0
        %3978 = vmatpush1.msra.mxu0 0.0
        %3979 = vmatprep.subr.mxu0 0.0
        %3980 = vmatpush1.msra.mxu0 0.0
        %3981 = vmatprep.subr.mxu0 0.0
        %3982 = vmatpush1.msra.mxu0 0.0
        %3983 = vmatprep.subr.mxu0 0.0
        %3984 = vmatpush1.msra.mxu0 0.0
        %3985 = vmatprep.subr.mxu0 0.0
        %3986 = vmatpush1.msra.mxu0 0.0
        %3987 = vmatprep.subr.mxu0 0.0
        %3988 = vmatpush1.msra.mxu0 0.0
        %3989 = vmatprep.subr.mxu0 0.0
        %3990 = vmatpush1.msra.mxu0 0.0
        %3991 = vmatprep.mubr.f32.mxu0 0.0
        %v3992 = vand.u32 %v3496, 4294901760
        %3993 = vmatmul.mubr.f32.gmra.mrb[0].mxu0 %v3992
        %v3994 = vpop.f32.mrb[0].mxu0
        %v3995 = vadd.f32 %v3916, %v3994
        %v3996 = vpop.f32.mrb[0].mxu0
        %3997 = vmatprep.mubr.f32.mxu0 0.0
        %v3998 = vand.u32 %v3498, 4294901760
        %3999 = vmatmul.mubr.f32.gmra.mrb[0].mxu0 %v3998
        %v4000 = vpop.f32.mrb[0].mxu0
        %v4001 = vadd.f32 %v3922, %v4000
        %v4002 = vpop.f32.mrb[0].mxu0
        %4003 = vdwg.mxu0
        %4005 = vxpose.xlu0.b32.start [1/16] %v3492, 128
        %4006 = vxpose.xlu0.b32.cont [2/16] %v3494, 128
        %4007 = vxpose.xlu0.b32.cont [3/16] 0.0, 128
        %4008 = vxpose.xlu0.b32.cont [4/16] 0.0, 128
        %4009 = vxpose.xlu0.b32.cont [5/16] 0.0, 128
        %4010 = vxpose.xlu0.b32.cont [6/16] 0.0, 128
        %4011 = vxpose.xlu0.b32.cont [7/16] 0.0, 128
        %4012 = vxpose.xlu0.b32.cont [8/16] 0.0, 128
        %4013 = vxpose.xlu0.b32.cont [9/16] 0.0, 128
        %4014 = vxpose.xlu0.b32.cont [10/16] 0.0, 128
        %4015 = vxpose.xlu0.b32.cont [11/16] 0.0, 128
        %4016 = vxpose.xlu0.b32.cont [12/16] 0.0, 128
        %4017 = vxpose.xlu0.b32.cont [13/16] 0.0, 128
        %4018 = vxpose.xlu0.b32.cont [14/16] 0.0, 128
        %4019 = vxpose.xlu0.b32.cont [15/16] 0.0, 128
        %4020 = vxpose.xlu0.b32.end [16/16] 0.0, 128
        %v4021 = vpop.trf.xlu0
        %v4022 = vpop.trf.xlu0
        %v4023 = vpop.trf.xlu0
        %v4024 = vpop.trf.xlu0
        %v4025 = vpop.trf.xlu0
        %v4026 = vpop.trf.xlu0
        %v4027 = vpop.trf.xlu0
        %v4028 = vpop.trf.xlu0
        %v4029 = vpop.trf.xlu0
        %v4030 = vpop.trf.xlu0
        %v4031 = vpop.trf.xlu0
        %v4032 = vpop.trf.xlu0
        %v4033 = vpop.trf.xlu0
        %v4034 = vpop.trf.xlu0
        %v4035 = vpop.trf.xlu0
        %v4036 = vpop.trf.xlu0
        %4037 = vxpose.xlu0.b32.start [1/16] %v3995, 128
        %4038 = vxpose.xlu0.b32.cont [2/16] %v4001, 128
        %4039 = vxpose.xlu0.b32.cont [3/16] 0.0, 128
        %4040 = vxpose.xlu0.b32.cont [4/16] 0.0, 128
        %4041 = vxpose.xlu0.b32.cont [5/16] 0.0, 128
        %4042 = vxpose.xlu0.b32.cont [6/16] 0.0, 128
        %4043 = vxpose.xlu0.b32.cont [7/16] 0.0, 128
        %4044 = vxpose.xlu0.b32.cont [8/16] 0.0, 128
        %4045 = vxpose.xlu0.b32.cont [9/16] 0.0, 128
        %4046 = vxpose.xlu0.b32.cont [10/16] 0.0, 128
        %4047 = vxpose.xlu0.b32.cont [11/16] 0.0, 128
        %4048 = vxpose.xlu0.b32.cont [12/16] 0.0, 128
        %4049 = vxpose.xlu0.b32.cont [13/16] 0.0, 128
        %4050 = vxpose.xlu0.b32.cont [14/16] 0.0, 128
        %4051 = vxpose.xlu0.b32.cont [15/16] 0.0, 128
        %4052 = vxpose.xlu0.b32.end [16/16] 0.0, 128
        %v4053 = vpop.trf.xlu0
        %v4054 = vpop.trf.xlu0
        %v4055 = vpop.trf.xlu0
        %v4056 = vpop.trf.xlu0
        %v4057 = vpop.trf.xlu0
        %v4058 = vpop.trf.xlu0
        %v4059 = vpop.trf.xlu0
        %v4060 = vpop.trf.xlu0
        %v4061 = vpop.trf.xlu0
        %v4062 = vpop.trf.xlu0
        %v4063 = vpop.trf.xlu0
        %v4064 = vpop.trf.xlu0
        %v4065 = vpop.trf.xlu0
        %v4066 = vpop.trf.xlu0
        %v4067 = vpop.trf.xlu0
        %v4068 = vpop.trf.xlu0
        %4071 = vrot.lane.b32.xlu0 %v4021, 44
        %v4072 = vpop.permute.xlu0 %4071
        %4073 = vrot.lane.b32.xlu0 %v4022, 44
        %v4074 = vpop.permute.xlu0 %4073
        %v4077 = vmul.f32 %v771, %v4072
        %v4078 = vmul.f32 %v772, %v4074
        %4081 = vrot.lane.b32.xlu0 %v4077, 84
        %v4082 = vpop.permute.xlu0 %4081
        %4083 = vrot.lane.b32.xlu0 %v4078, 84
        %v4084 = vpop.permute.xlu0 %4083
        %v4087 = vsel %vm773, %v4082, 0.0
        %v4088 = vsel %vm1351, %v4084, 0.0
        %v4089 = vadd.f32 %v4087, %v4088
        %4090 = vadd.xlane.f32.xlu0 %v4089
        %v4091 = vpop.xlane.xlu0 %4090
        %v4092 = vrot.slane %v4091, 4
        %v4093 = vadd.f32 %v4091, %v4092
        %v4094 = vrot.slane %v4093, 2
        %v4095 = vadd.f32 %v4093, %v4094
        %v4096 = vrot.slane %v4095, 1
        %v4097 = vadd.f32 %v4095, %v4096
        %s4098 = vtos %v4097
        %s4099 = smul.f32 %s4098, 0.008264462
        %s4100 = sld [smem:[#allocation2 + $0x30]]
        %s4101 = smul.f32 %s4100, %s4099
        %s4102 = sadd.f32 %s3490, %s4101
        %s4103 = smul.f32 %s4099, %s4099
        %s4104 = sld [smem:[#allocation2 + $0x31]]
        %s4105 = smul.f32 %s4104, %s4103
        %s4106 = sadd.f32 %s4102, %s4105
        %s4107 = smul.f32 %s4103, %s4099
        %s4108 = sld [smem:[#allocation2 + $0x32]]
        %s4109 = smul.f32 %s4108, %s4107
        %s4110 = sadd.f32 %s4106, %s4109
        %s4111 = smul.f32 %s4107, %s4099
        %s4112 = sld [smem:[#allocation2 + $0x33]]
        %s4113 = smul.f32 %s4112, %s4111
        %s4114 = sadd.f32 %s4110, %s4113
        %v4115 = vmul.f32 %v3995, %v4021
        %v4116 = vmul.f32 %v4001, %v4022
        %v4117 = vsel %vm773, %v4115, 0.0
        %v4118 = vsel %vm1351, %v4116, 0.0
        %v4119 = vadd.f32 %v4117, %v4118
        %4120 = vadd.xlane.f32.xlu0 %v4119
        %v4121 = vpop.xlane.xlu0 %4120
        %v4122 = vrot.slane %v4121, 4
        %v4123 = vadd.f32 %v4121, %v4122
        %v4124 = vrot.slane %v4123, 2
        %v4125 = vadd.f32 %v4123, %v4124
        %v4126 = vrot.slane %v4125, 1
        %v4127 = vadd.f32 %v4125, %v4126
        %s4128 = vtos %v4127
        %s4129 = smul.f32 %s4128, 0.008264462
        %s4130 = sld [smem:[#allocation2 + $0x34]]
        %s4131 = smul.f32 %s4130, %s4129
        %s4132 = sadd.f32 %s4114, %s4131
        %s4133 = smul.f32 %s4129, %s4129
        %s4134 = sld [smem:[#allocation2 + $0x35]]
        %s4135 = smul.f32 %s4134, %s4133
        %s4136 = sadd.f32 %s4132, %s4135
        %s4137 = smul.f32 %s4133, %s4129
        %s4138 = sld [smem:[#allocation2 + $0x36]]
        %s4139 = smul.f32 %s4138, %s4137
        %s4140 = sadd.f32 %s4136, %s4139
        %s4141 = smul.f32 %s4137, %s4129
        %s4142 = sld [smem:[#allocation2 + $0x37]]
        %s4143 = smul.f32 %s4142, %s4141
        %s4144 = sadd.f32 %s4140, %s4143
        %v4145 = vmul.f32 %v3995, %v4053
        %v4146 = vmul.f32 %v4001, %v4054
        %v4147 = vsel %vm773, %v4145, 0.0
        %v4148 = vsel %vm1351, %v4146, 0.0
        %v4149 = vadd.f32 %v4147, %v4148
        %4150 = vadd.xlane.f32.xlu0 %v4149
        %v4151 = vpop.xlane.xlu0 %4150
        %v4152 = vrot.slane %v4151, 4
        %v4153 = vadd.f32 %v4151, %v4152
        %v4154 = vrot.slane %v4153, 2
        %v4155 = vadd.f32 %v4153, %v4154
        %v4156 = vrot.slane %v4155, 1
        %v4157 = vadd.f32 %v4155, %v4156
        %s4158 = vtos %v4157
        %s4159 = smul.f32 %s4158, 0.008264462
        %s4160 = sld [smem:[#allocation2 + $0x38]]
        %s4161 = smul.f32 %s4160, %s4159
        %s4162 = sadd.f32 %s4144, %s4161
        %s4163 = smul.f32 %s4159, %s4159
        %s4164 = sld [smem:[#allocation2 + $0x39]]
        %s4165 = smul.f32 %s4164, %s4163
        %s4166 = sadd.f32 %s4162, %s4165
        %s4167 = smul.f32 %s4163, %s4159
        %s4168 = sld [smem:[#allocation2 + $0x3a]]
        %s4169 = smul.f32 %s4168, %s4167
        %s4170 = sadd.f32 %s4166, %s4169
        %s4171 = smul.f32 %s4167, %s4159
        %s4172 = sld [smem:[#allocation2 + $0x3b]]
        %s4173 = smul.f32 %s4172, %s4171
        %s4174 = sadd.f32 %s4170, %s4173
        %4175 = vrot.lane.b32.xlu0 %v771, 73
        %v4176 = vpop.permute.xlu0 %4175
        %4177 = vrot.lane.b32.xlu0 %v772, 73
        %v4178 = vpop.permute.xlu0 %4177
        %v4180 = vsel %vm773, %v4176, 0
        %v4182 = vsel %vm773, %v4178, 0
        %v4184 = vsel %vm677, %v4178, 0
        %4186 = vmatprep.subr.mxu0 0.0
        %v4187 = vand.u32 %v4176, 4294901760
        %4188 = vmatpush1.msra.mxu0 %v4187
        %4189 = vmatprep.subr.mxu0 0.0
        %v4190 = vand.u32 %v4184, 4294901760
        %4191 = vmatpush1.msra.mxu0 %v4190
        %4192 = vmatprep.subr.mxu0 0.0
        %4193 = vmatpush1.msra.mxu0 0.0
        %4194 = vmatprep.subr.mxu0 0.0
        %4195 = vmatpush1.msra.mxu0 0.0
        %4196 = vmatprep.subr.mxu0 0.0
        %4197 = vmatpush1.msra.mxu0 0.0
        %4198 = vmatprep.subr.mxu0 0.0
        %4199 = vmatpush1.msra.mxu0 0.0
        %4200 = vmatprep.subr.mxu0 0.0
        %4201 = vmatpush1.msra.mxu0 0.0
        %4202 = vmatprep.subr.mxu0 0.0
        %4203 = vmatpush1.msra.mxu0 0.0
        %4204 = vmatprep.subr.mxu0 0.0
        %4205 = vmatpush1.msra.mxu0 0.0
        %4206 = vmatprep.subr.mxu0 0.0
        %4207 = vmatpush1.msra.mxu0 0.0
        %4208 = vmatprep.subr.mxu0 0.0
        %4209 = vmatpush1.msra.mxu0 0.0
        %4210 = vmatprep.subr.mxu0 0.0
        %4211 = vmatpush1.msra.mxu0 0.0
        %4212 = vmatprep.subr.mxu0 0.0
        %4213 = vmatpush1.msra.mxu0 0.0
        %4214 = vmatprep.subr.mxu0 0.0
        %4215 = vmatpush1.msra.mxu0 0.0
        %4216 = vmatprep.subr.mxu0 0.0
        %4217 = vmatpush1.msra.mxu0 0.0
        %4218 = vmatprep.subr.mxu0 0.0
        %4219 = vmatpush1.msra.mxu0 0.0
        %4220 = vmatprep.subr.mxu0 0.0
        %4221 = vmatpush1.msra.mxu0 0.0
        %4222 = vmatprep.subr.mxu0 0.0
        %4223 = vmatpush1.msra.mxu0 0.0
        %4224 = vmatprep.subr.mxu0 0.0
        %4225 = vmatpush1.msra.mxu0 0.0
        %4226 = vmatprep.subr.mxu0 0.0
        %4227 = vmatpush1.msra.mxu0 0.0
        %4228 = vmatprep.subr.mxu0 0.0
        %4229 = vmatpush1.msra.mxu0 0.0
        %4230 = vmatprep.subr.mxu0 0.0
        %4231 = vmatpush1.msra.mxu0 0.0
        %4232 = vmatprep.subr.mxu0 0.0
        %4233 = vmatpush1.msra.mxu0 0.0
        %4234 = vmatprep.subr.mxu0 0.0
        %4235 = vmatpush1.msra.mxu0 0.0
        %4236 = vmatprep.subr.mxu0 0.0
        %4237 = vmatpush1.msra.mxu0 0.0
        %4238 = vmatprep.subr.mxu0 0.0
        %4239 = vmatpush1.msra.mxu0 0.0
        %4240 = vmatprep.subr.mxu0 0.0
        %4241 = vmatpush1.msra.mxu0 0.0
        %4242 = vmatprep.subr.mxu0 0.0
        %4243 = vmatpush1.msra.mxu0 0.0
        %4244 = vmatprep.subr.mxu0 0.0
        %4245 = vmatpush1.msra.mxu0 0.0
        %4246 = vmatprep.subr.mxu0 0.0
        %4247 = vmatpush1.msra.mxu0 0.0
        %4248 = vmatprep.subr.mxu0 0.0
        %4249 = vmatpush1.msra.mxu0 0.0
        %4250 = vmatprep.subr.mxu0 0.0
        %4251 = vmatpush1.msra.mxu0 0.0
        %4252 = vmatprep.mubr.f32.mxu0 0.0
        %v4253 = vand.u32 %v4180, 4294901760
        %v4254 = vsub.f32 %v4180, %v4253
        %v4255 = vand.u32 %v4254, 4294901760
        %v4256 = vsub.f32 %v4254, %v4255
        %v4257 = vand.u32 %v4256, 4294901760
        %4258 = vmatmul.mubr.f32.gmra.mrb[0].mxu0 %v4257
        %v4259 = vpop.f32.mrb[0].mxu0
        %v4260 = vadd.f32 0.0, %v4259
        %v4261 = vpop.f32.mrb[0].mxu0
        %4262 = vmatprep.mubr.f32.mxu0 0.0
        %v4263 = vand.u32 %v4182, 4294901760
        %v4264 = vsub.f32 %v4182, %v4263
        %v4265 = vand.u32 %v4264, 4294901760
        %v4266 = vsub.f32 %v4264, %v4265
        %v4267 = vand.u32 %v4266, 4294901760
        %4268 = vmatmul.mubr.f32.gmra.mrb[0].mxu0 %v4267
        %v4269 = vpop.f32.mrb[0].mxu0
        %v4270 = vadd.f32 0.0, %v4269
        %v4271 = vpop.f32.mrb[0].mxu0
        %4272 = vdwg.mxu0
        %4273 = vmatprep.subr.mxu0 0.0
        %v4274 = vand.u32 %v4176, 4294901760
        %v4275 = vsub.f32 %v4176, %v4274
        %v4276 = vand.u32 %v4275, 4294901760
        %v4277 = vsub.f32 %v4275, %v4276
        %v4278 = vand.u32 %v4277, 4294901760
        %4279 = vmatpush1.msra.mxu0 %v4278
        %4280 = vmatprep.subr.mxu0 0.0
        %v4281 = vand.u32 %v4184, 4294901760
        %v4282 = vsub.f32 %v4184, %v4281
        %v4283 = vand.u32 %v4282, 4294901760
        %v4284 = vsub.f32 %v4282, %v4283
        %v4285 = vand.u32 %v4284, 4294901760
        %4286 = vmatpush1.msra.mxu0 %v4285
        %4287 = vmatprep.subr.mxu0 0.0
        %4288 = vmatpush1.msra.mxu0 0.0
        %4289 = vmatprep.subr.mxu0 0.0
        %4290 = vmatpush1.msra.mxu0 0.0
        %4291 = vmatprep.subr.mxu0 0.0
        %4292 = vmatpush1.msra.mxu0 0.0
        %4293 = vmatprep.subr.mxu0 0.0
        %4294 = vmatpush1.msra.mxu0 0.0
        %4295 = vmatprep.subr.mxu0 0.0
        %4296 = vmatpush1.msra.mxu0 0.0
        %4297 = vmatprep.subr.mxu0 0.0
        %4298 = vmatpush1.msra.mxu0 0.0
        %4299 = vmatprep.subr.mxu0 0.0
        %4300 = vmatpush1.msra.mxu0 0.0
        %4301 = vmatprep.subr.mxu0 0.0
        %4302 = vmatpush1.msra.mxu0 0.0
        %4303 = vmatprep.subr.mxu0 0.0
        %4304 = vmatpush1.msra.mxu0 0.0
        %4305 = vmatprep.subr.mxu0 0.0
        %4306 = vmatpush1.msra.mxu0 0.0
        %4307 = vmatprep.subr.mxu0 0.0
        %4308 = vmatpush1.msra.mxu0 0.0
        %4309 = vmatprep.subr.mxu0 0.0
        %4310 = vmatpush1.msra.mxu0 0.0
        %4311 = vmatprep.subr.mxu0 0.0
        %4312 = vmatpush1.msra.mxu0 0.0
        %4313 = vmatprep.subr.mxu0 0.0
        %4314 = vmatpush1.msra.mxu0 0.0
        %4315 = vmatprep.subr.mxu0 0.0
        %4316 = vmatpush1.msra.mxu0 0.0
        %4317 = vmatprep.subr.mxu0 0.0
        %4318 = vmatpush1.msra.mxu0 0.0
        %4319 = vmatprep.subr.mxu0 0.0
        %4320 = vmatpush1.msra.mxu0 0.0
        %4321 = vmatprep.subr.mxu0 0.0
        %4322 = vmatpush1.msra.mxu0 0.0
        %4323 = vmatprep.subr.mxu0 0.0
        %4324 = vmatpush1.msra.mxu0 0.0
        %4325 = vmatprep.subr.mxu0 0.0
        %4326 = vmatpush1.msra.mxu0 0.0
        %4327 = vmatprep.subr.mxu0 0.0
        %4328 = vmatpush1.msra.mxu0 0.0
        %4329 = vmatprep.subr.mxu0 0.0
        %4330 = vmatpush1.msra.mxu0 0.0
        %4331 = vmatprep.subr.mxu0 0.0
        %4332 = vmatpush1.msra.mxu0 0.0
        %4333 = vmatprep.subr.mxu0 0.0
        %4334 = vmatpush1.msra.mxu0 0.0
        %4335 = vmatprep.subr.mxu0 0.0
        %4336 = vmatpush1.msra.mxu0 0.0
        %4337 = vmatprep.subr.mxu0 0.0
        %4338 = vmatpush1.msra.mxu0 0.0
        %4339 = vmatprep.subr.mxu0 0.0
        %4340 = vmatpush1.msra.mxu0 0.0
        %4341 = vmatprep.subr.mxu0 0.0
        %4342 = vmatpush1.msra.mxu0 0.0
        %4343 = vmatprep.subr.mxu0 0.0
        %4344 = vmatpush1.msra.mxu0 0.0
        %4345 = vmatprep.subr.mxu0 0.0
        %4346 = vmatpush1.msra.mxu0 0.0
        %4347 = vmatprep.mubr.f32.mxu0 0.0
        %v4348 = vand.u32 %v4180, 4294901760
        %4349 = vmatmul.mubr.f32.gmra.mrb[0].mxu0 %v4348
        %v4350 = vpop.f32.mrb[0].mxu0
        %v4351 = vadd.f32 %v4260, %v4350
        %v4352 = vpop.f32.mrb[0].mxu0
        %4353 = vmatprep.mubr.f32.mxu0 0.0
        %v4354 = vand.u32 %v4182, 4294901760
        %4355 = vmatmul.mubr.f32.gmra.mrb[0].mxu0 %v4354
        %v4356 = vpop.f32.mrb[0].mxu0
        %v4357 = vadd.f32 %v4270, %v4356
        %v4358 = vpop.f32.mrb[0].mxu0
        %4359 = vdwg.mxu0
        %4360 = vmatprep.subr.mxu0 0.0
        %v4361 = vand.u32 %v4176, 4294901760
        %v4362 = vsub.f32 %v4176, %v4361
        %4363 = vmatpush1.msra.mxu0 %v4362
        %4364 = vmatprep.subr.mxu0 0.0
        %v4365 = vand.u32 %v4184, 4294901760
        %v4366 = vsub.f32 %v4184, %v4365
        %4367 = vmatpush1.msra.mxu0 %v4366
        %4368 = vmatprep.subr.mxu0 0.0
        %4369 = vmatpush1.msra.mxu0 0.0
        %4370 = vmatprep.subr.mxu0 0.0
        %4371 = vmatpush1.msra.mxu0 0.0
        %4372 = vmatprep.subr.mxu0 0.0
        %4373 = vmatpush1.msra.mxu0 0.0
        %4374 = vmatprep.subr.mxu0 0.0
        %4375 = vmatpush1.msra.mxu0 0.0
        %4376 = vmatprep.subr.mxu0 0.0
        %4377 = vmatpush1.msra.mxu0 0.0
        %4378 = vmatprep.subr.mxu0 0.0
        %4379 = vmatpush1.msra.mxu0 0.0
        %4380 = vmatprep.subr.mxu0 0.0
        %4381 = vmatpush1.msra.mxu0 0.0
        %4382 = vmatprep.subr.mxu0 0.0
        %4383 = vmatpush1.msra.mxu0 0.0
        %4384 = vmatprep.subr.mxu0 0.0
        %4385 = vmatpush1.msra.mxu0 0.0
        %4386 = vmatprep.subr.mxu0 0.0
        %4387 = vmatpush1.msra.mxu0 0.0
        %4388 = vmatprep.subr.mxu0 0.0
        %4389 = vmatpush1.msra.mxu0 0.0
        %4390 = vmatprep.subr.mxu0 0.0
        %4391 = vmatpush1.msra.mxu0 0.0
        %4392 = vmatprep.subr.mxu0 0.0
        %4393 = vmatpush1.msra.mxu0 0.0
        %4394 = vmatprep.subr.mxu0 0.0
        %4395 = vmatpush1.msra.mxu0 0.0
        %4396 = vmatprep.subr.mxu0 0.0
        %4397 = vmatpush1.msra.mxu0 0.0
        %4398 = vmatprep.subr.mxu0 0.0
        %4399 = vmatpush1.msra.mxu0 0.0
        %4400 = vmatprep.subr.mxu0 0.0
        %4401 = vmatpush1.msra.mxu0 0.0
        %4402 = vmatprep.subr.mxu0 0.0
        %4403 = vmatpush1.msra.mxu0 0.0
        %4404 = vmatprep.subr.mxu0 0.0
        %4405 = vmatpush1.msra.mxu0 0.0
        %4406 = vmatprep.subr.mxu0 0.0
        %4407 = vmatpush1.msra.mxu0 0.0
        %4408 = vmatprep.subr.mxu0 0.0
        %4409 = vmatpush1.msra.mxu0 0.0
        %4410 = vmatprep.subr.mxu0 0.0
        %4411 = vmatpush1.msra.mxu0 0.0
        %4412 = vmatprep.subr.mxu0 0.0
        %4413 = vmatpush1.msra.mxu0 0.0
        %4414 = vmatprep.subr.mxu0 0.0
        %4415 = vmatpush1.msra.mxu0 0.0
        %4416 = vmatprep.subr.mxu0 0.0
        %4417 = vmatpush1.msra.mxu0 0.0
        %4418 = vmatprep.subr.mxu0 0.0
        %4419 = vmatpush1.msra.mxu0 0.0
        %4420 = vmatprep.subr.mxu0 0.0
        %4421 = vmatpush1.msra.mxu0 0.0
        %4422 = vmatprep.subr.mxu0 0.0
        %4423 = vmatpush1.msra.mxu0 0.0
        %4424 = vmatprep.subr.mxu0 0.0
        %4425 = vmatpush1.msra.mxu0 0.0
        %4426 = vmatprep.subr.mxu0 0.0
        %4427 = vmatpush1.msra.mxu0 0.0
        %4428 = vmatprep.mubr.f32.mxu0 0.0
        %v4429 = vand.u32 %v4180, 4294901760
        %v4430 = vsub.f32 %v4180, %v4429
        %4431 = vmatmul.mubr.f32.gmra.mrb[0].mxu0 %v4430
        %v4432 = vpop.f32.mrb[0].mxu0
        %v4433 = vadd.f32 %v4351, %v4432
        %v4434 = vpop.f32.mrb[0].mxu0
        %4435 = vmatprep.mubr.f32.mxu0 0.0
        %v4436 = vand.u32 %v4182, 4294901760
        %v4437 = vsub.f32 %v4182, %v4436
        %4438 = vmatmul.mubr.f32.gmra.mrb[0].mxu0 %v4437
        %v4439 = vpop.f32.mrb[0].mxu0
        %v4440 = vadd.f32 %v4357, %v4439
        %v4441 = vpop.f32.mrb[0].mxu0
        %4442 = vdwg.mxu0
        %4443 = vmatprep.subr.mxu0 0.0
        %v4444 = vand.u32 %v4176, 4294901760
        %4445 = vmatpush1.msra.mxu0 %v4444
        %4446 = vmatprep.subr.mxu0 0.0
        %v4447 = vand.u32 %v4184, 4294901760
        %4448 = vmatpush1.msra.mxu0 %v4447
        %4449 = vmatprep.subr.mxu0 0.0
        %4450 = vmatpush1.msra.mxu0 0.0
        %4451 = vmatprep.subr.mxu0 0.0
        %4452 = vmatpush1.msra.mxu0 0.0
        %4453 = vmatprep.subr.mxu0 0.0
        %4454 = vmatpush1.msra.mxu0 0.0
        %4455 = vmatprep.subr.mxu0 0.0
        %4456 = vmatpush1.msra.mxu0 0.0
        %4457 = vmatprep.subr.mxu0 0.0
        %4458 = vmatpush1.msra.mxu0 0.0
        %4459 = vmatprep.subr.mxu0 0.0
        %4460 = vmatpush1.msra.mxu0 0.0
        %4461 = vmatprep.subr.mxu0 0.0
        %4462 = vmatpush1.msra.mxu0 0.0
        %4463 = vmatprep.subr.mxu0 0.0
        %4464 = vmatpush1.msra.mxu0 0.0
        %4465 = vmatprep.subr.mxu0 0.0
        %4466 = vmatpush1.msra.mxu0 0.0
        %4467 = vmatprep.subr.mxu0 0.0
        %4468 = vmatpush1.msra.mxu0 0.0
        %4469 = vmatprep.subr.mxu0 0.0
        %4470 = vmatpush1.msra.mxu0 0.0
        %4471 = vmatprep.subr.mxu0 0.0
        %4472 = vmatpush1.msra.mxu0 0.0
        %4473 = vmatprep.subr.mxu0 0.0
        %4474 = vmatpush1.msra.mxu0 0.0
        %4475 = vmatprep.subr.mxu0 0.0
        %4476 = vmatpush1.msra.mxu0 0.0
        %4477 = vmatprep.subr.mxu0 0.0
        %4478 = vmatpush1.msra.mxu0 0.0
        %4479 = vmatprep.subr.mxu0 0.0
        %4480 = vmatpush1.msra.mxu0 0.0
        %4481 = vmatprep.subr.mxu0 0.0
        %4482 = vmatpush1.msra.mxu0 0.0
        %4483 = vmatprep.subr.mxu0 0.0
        %4484 = vmatpush1.msra.mxu0 0.0
        %4485 = vmatprep.subr.mxu0 0.0
        %4486 = vmatpush1.msra.mxu0 0.0
        %4487 = vmatprep.subr.mxu0 0.0
        %4488 = vmatpush1.msra.mxu0 0.0
        %4489 = vmatprep.subr.mxu0 0.0
        %4490 = vmatpush1.msra.mxu0 0.0
        %4491 = vmatprep.subr.mxu0 0.0
        %4492 = vmatpush1.msra.mxu0 0.0
        %4493 = vmatprep.subr.mxu0 0.0
        %4494 = vmatpush1.msra.mxu0 0.0
        %4495 = vmatprep.subr.mxu0 0.0
        %4496 = vmatpush1.msra.mxu0 0.0
        %4497 = vmatprep.subr.mxu0 0.0
        %4498 = vmatpush1.msra.mxu0 0.0
        %4499 = vmatprep.subr.mxu0 0.0
        %4500 = vmatpush1.msra.mxu0 0.0
        %4501 = vmatprep.subr.mxu0 0.0
        %4502 = vmatpush1.msra.mxu0 0.0
        %4503 = vmatprep.subr.mxu0 0.0
        %4504 = vmatpush1.msra.mxu0 0.0
        %4505 = vmatprep.subr.mxu0 0.0
        %4506 = vmatpush1.msra.mxu0 0.0
        %4507 = vmatprep.subr.mxu0 0.0
        %4508 = vmatpush1.msra.mxu0 0.0
        %4509 = vmatprep.mubr.f32.mxu0 0.0
        %v4510 = vand.u32 %v4180, 4294901760
        %v4511 = vsub.f32 %v4180, %v4510
        %v4512 = vand.u32 %v4511, 4294901760
        %4513 = vmatmul.mubr.f32.gmra.mrb[0].mxu0 %v4512
        %v4514 = vpop.f32.mrb[0].mxu0
        %v4515 = vadd.f32 %v4433, %v4514
        %v4516 = vpop.f32.mrb[0].mxu0
        %4517 = vmatprep.mubr.f32.mxu0 0.0
        %v4518 = vand.u32 %v4182, 4294901760
        %v4519 = vsub.f32 %v4182, %v4518
        %v4520 = vand.u32 %v4519, 4294901760
        %4521 = vmatmul.mubr.f32.gmra.mrb[0].mxu0 %v4520
        %v4522 = vpop.f32.mrb[0].mxu0
        %v4523 = vadd.f32 %v4440, %v4522
        %v4524 = vpop.f32.mrb[0].mxu0
        %4525 = vdwg.mxu0
        %4526 = vmatprep.subr.mxu0 0.0
        %v4527 = vand.u32 %v4176, 4294901760
        %v4528 = vsub.f32 %v4176, %v4527
        %v4529 = vand.u32 %v4528, 4294901760
        %4530 = vmatpush1.msra.mxu0 %v4529
        %4531 = vmatprep.subr.mxu0 0.0
        %v4532 = vand.u32 %v4184, 4294901760
        %v4533 = vsub.f32 %v4184, %v4532
        %v4534 = vand.u32 %v4533, 4294901760
        %4535 = vmatpush1.msra.mxu0 %v4534
        %4536 = vmatprep.subr.mxu0 0.0
        %4537 = vmatpush1.msra.mxu0 0.0
        %4538 = vmatprep.subr.mxu0 0.0
        %4539 = vmatpush1.msra.mxu0 0.0
        %4540 = vmatprep.subr.mxu0 0.0
        %4541 = vmatpush1.msra.mxu0 0.0
        %4542 = vmatprep.subr.mxu0 0.0
        %4543 = vmatpush1.msra.mxu0 0.0
        %4544 = vmatprep.subr.mxu0 0.0
        %4545 = vmatpush1.msra.mxu0 0.0
        %4546 = vmatprep.subr.mxu0 0.0
        %4547 = vmatpush1.msra.mxu0 0.0
        %4548 = vmatprep.subr.mxu0 0.0
        %4549 = vmatpush1.msra.mxu0 0.0
        %4550 = vmatprep.subr.mxu0 0.0
        %4551 = vmatpush1.msra.mxu0 0.0
        %4552 = vmatprep.subr.mxu0 0.0
        %4553 = vmatpush1.msra.mxu0 0.0
        %4554 = vmatprep.subr.mxu0 0.0
        %4555 = vmatpush1.msra.mxu0 0.0
        %4556 = vmatprep.subr.mxu0 0.0
        %4557 = vmatpush1.msra.mxu0 0.0
        %4558 = vmatprep.subr.mxu0 0.0
        %4559 = vmatpush1.msra.mxu0 0.0
        %4560 = vmatprep.subr.mxu0 0.0
        %4561 = vmatpush1.msra.mxu0 0.0
        %4562 = vmatprep.subr.mxu0 0.0
        %4563 = vmatpush1.msra.mxu0 0.0
        %4564 = vmatprep.subr.mxu0 0.0
        %4565 = vmatpush1.msra.mxu0 0.0
        %4566 = vmatprep.subr.mxu0 0.0
        %4567 = vmatpush1.msra.mxu0 0.0
        %4568 = vmatprep.subr.mxu0 0.0
        %4569 = vmatpush1.msra.mxu0 0.0
        %4570 = vmatprep.subr.mxu0 0.0
        %4571 = vmatpush1.msra.mxu0 0.0
        %4572 = vmatprep.subr.mxu0 0.0
        %4573 = vmatpush1.msra.mxu0 0.0
        %4574 = vmatprep.subr.mxu0 0.0
        %4575 = vmatpush1.msra.mxu0 0.0
        %4576 = vmatprep.subr.mxu0 0.0
        %4577 = vmatpush1.msra.mxu0 0.0
        %4578 = vmatprep.subr.mxu0 0.0
        %4579 = vmatpush1.msra.mxu0 0.0
        %4580 = vmatprep.subr.mxu0 0.0
        %4581 = vmatpush1.msra.mxu0 0.0
        %4582 = vmatprep.subr.mxu0 0.0
        %4583 = vmatpush1.msra.mxu0 0.0
        %4584 = vmatprep.subr.mxu0 0.0
        %4585 = vmatpush1.msra.mxu0 0.0
        %4586 = vmatprep.subr.mxu0 0.0
        %4587 = vmatpush1.msra.mxu0 0.0
        %4588 = vmatprep.subr.mxu0 0.0
        %4589 = vmatpush1.msra.mxu0 0.0
        %4590 = vmatprep.subr.mxu0 0.0
        %4591 = vmatpush1.msra.mxu0 0.0
        %4592 = vmatprep.subr.mxu0 0.0
        %4593 = vmatpush1.msra.mxu0 0.0
        %4594 = vmatprep.subr.mxu0 0.0
        %4595 = vmatpush1.msra.mxu0 0.0
        %4596 = vmatprep.mubr.f32.mxu0 0.0
        %v4597 = vand.u32 %v4180, 4294901760
        %4598 = vmatmul.mubr.f32.gmra.mrb[0].mxu0 %v4597
        %v4599 = vpop.f32.mrb[0].mxu0
        %v4600 = vadd.f32 %v4515, %v4599
        %v4601 = vpop.f32.mrb[0].mxu0
        %4602 = vmatprep.mubr.f32.mxu0 0.0
        %v4603 = vand.u32 %v4182, 4294901760
        %4604 = vmatmul.mubr.f32.gmra.mrb[0].mxu0 %v4603
        %v4605 = vpop.f32.mrb[0].mxu0
        %v4606 = vadd.f32 %v4523, %v4605
        %v4607 = vpop.f32.mrb[0].mxu0
        %4608 = vdwg.mxu0
        %4609 = vmatprep.subr.mxu0 0.0
        %v4610 = vand.u32 %v4176, 4294901760
        %4611 = vmatpush1.msra.mxu0 %v4610
        %4612 = vmatprep.subr.mxu0 0.0
        %v4613 = vand.u32 %v4184, 4294901760
        %4614 = vmatpush1.msra.mxu0 %v4613
        %4615 = vmatprep.subr.mxu0 0.0
        %4616 = vmatpush1.msra.mxu0 0.0
        %4617 = vmatprep.subr.mxu0 0.0
        %4618 = vmatpush1.msra.mxu0 0.0
        %4619 = vmatprep.subr.mxu0 0.0
        %4620 = vmatpush1.msra.mxu0 0.0
        %4621 = vmatprep.subr.mxu0 0.0
        %4622 = vmatpush1.msra.mxu0 0.0
        %4623 = vmatprep.subr.mxu0 0.0
        %4624 = vmatpush1.msra.mxu0 0.0
        %4625 = vmatprep.subr.mxu0 0.0
        %4626 = vmatpush1.msra.mxu0 0.0
        %4627 = vmatprep.subr.mxu0 0.0
        %4628 = vmatpush1.msra.mxu0 0.0
        %4629 = vmatprep.subr.mxu0 0.0
        %4630 = vmatpush1.msra.mxu0 0.0
        %4631 = vmatprep.subr.mxu0 0.0
        %4632 = vmatpush1.msra.mxu0 0.0
        %4633 = vmatprep.subr.mxu0 0.0
        %4634 = vmatpush1.msra.mxu0 0.0
        %4635 = vmatprep.subr.mxu0 0.0
        %4636 = vmatpush1.msra.mxu0 0.0
        %4637 = vmatprep.subr.mxu0 0.0
        %4638 = vmatpush1.msra.mxu0 0.0
        %4639 = vmatprep.subr.mxu0 0.0
        %4640 = vmatpush1.msra.mxu0 0.0
        %4641 = vmatprep.subr.mxu0 0.0
        %4642 = vmatpush1.msra.mxu0 0.0
        %4643 = vmatprep.subr.mxu0 0.0
        %4644 = vmatpush1.msra.mxu0 0.0
        %4645 = vmatprep.subr.mxu0 0.0
        %4646 = vmatpush1.msra.mxu0 0.0
        %4647 = vmatprep.subr.mxu0 0.0
        %4648 = vmatpush1.msra.mxu0 0.0
        %4649 = vmatprep.subr.mxu0 0.0
        %4650 = vmatpush1.msra.mxu0 0.0
        %4651 = vmatprep.subr.mxu0 0.0
        %4652 = vmatpush1.msra.mxu0 0.0
        %4653 = vmatprep.subr.mxu0 0.0
        %4654 = vmatpush1.msra.mxu0 0.0
        %4655 = vmatprep.subr.mxu0 0.0
        %4656 = vmatpush1.msra.mxu0 0.0
        %4657 = vmatprep.subr.mxu0 0.0
        %4658 = vmatpush1.msra.mxu0 0.0
        %4659 = vmatprep.subr.mxu0 0.0
        %4660 = vmatpush1.msra.mxu0 0.0
        %4661 = vmatprep.subr.mxu0 0.0
        %4662 = vmatpush1.msra.mxu0 0.0
        %4663 = vmatprep.subr.mxu0 0.0
        %4664 = vmatpush1.msra.mxu0 0.0
        %4665 = vmatprep.subr.mxu0 0.0
        %4666 = vmatpush1.msra.mxu0 0.0
        %4667 = vmatprep.subr.mxu0 0.0
        %4668 = vmatpush1.msra.mxu0 0.0
        %4669 = vmatprep.subr.mxu0 0.0
        %4670 = vmatpush1.msra.mxu0 0.0
        %4671 = vmatprep.subr.mxu0 0.0
        %4672 = vmatpush1.msra.mxu0 0.0
        %4673 = vmatprep.subr.mxu0 0.0
        %4674 = vmatpush1.msra.mxu0 0.0
        %4675 = vmatprep.mubr.f32.mxu0 0.0
        %v4676 = vand.u32 %v4180, 4294901760
        %4677 = vmatmul.mubr.f32.gmra.mrb[0].mxu0 %v4676
        %v4678 = vpop.f32.mrb[0].mxu0
        %v4679 = vadd.f32 %v4600, %v4678
        %v4680 = vpop.f32.mrb[0].mxu0
        %4681 = vmatprep.mubr.f32.mxu0 0.0
        %v4682 = vand.u32 %v4182, 4294901760
        %4683 = vmatmul.mubr.f32.gmra.mrb[0].mxu0 %v4682
        %v4684 = vpop.f32.mrb[0].mxu0
        %v4685 = vadd.f32 %v4606, %v4684
        %v4686 = vpop.f32.mrb[0].mxu0
        %4687 = vdwg.mxu0
        %4689 = vxpose.xlu0.b32.start [1/16] %v4176, 128
        %4690 = vxpose.xlu0.b32.cont [2/16] %v4178, 128
        %4691 = vxpose.xlu0.b32.cont [3/16] 0.0, 128
        %4692 = vxpose.xlu0.b32.cont [4/16] 0.0, 128
        %4693 = vxpose.xlu0.b32.cont [5/16] 0.0, 128
        %4694 = vxpose.xlu0.b32.cont [6/16] 0.0, 128
        %4695 = vxpose.xlu0.b32.cont [7/16] 0.0, 128
        %4696 = vxpose.xlu0.b32.cont [8/16] 0.0, 128
        %4697 = vxpose.xlu0.b32.cont [9/16] 0.0, 128
        %4698 = vxpose.xlu0.b32.cont [10/16] 0.0, 128
        %4699 = vxpose.xlu0.b32.cont [11/16] 0.0, 128
        %4700 = vxpose.xlu0.b32.cont [12/16] 0.0, 128
        %4701 = vxpose.xlu0.b32.cont [13/16] 0.0, 128
        %4702 = vxpose.xlu0.b32.cont [14/16] 0.0, 128
        %4703 = vxpose.xlu0.b32.cont [15/16] 0.0, 128
        %4704 = vxpose.xlu0.b32.end [16/16] 0.0, 128
        %v4705 = vpop.trf.xlu0
        %v4706 = vpop.trf.xlu0
        %v4707 = vpop.trf.xlu0
        %v4708 = vpop.trf.xlu0
        %v4709 = vpop.trf.xlu0
        %v4710 = vpop.trf.xlu0
        %v4711 = vpop.trf.xlu0
        %v4712 = vpop.trf.xlu0
        %v4713 = vpop.trf.xlu0
        %v4714 = vpop.trf.xlu0
        %v4715 = vpop.trf.xlu0
        %v4716 = vpop.trf.xlu0
        %v4717 = vpop.trf.xlu0
        %v4718 = vpop.trf.xlu0
        %v4719 = vpop.trf.xlu0
        %v4720 = vpop.trf.xlu0
        %4721 = vxpose.xlu0.b32.start [1/16] %v4679, 128
        %4722 = vxpose.xlu0.b32.cont [2/16] %v4685, 128
        %4723 = vxpose.xlu0.b32.cont [3/16] 0.0, 128
        %4724 = vxpose.xlu0.b32.cont [4/16] 0.0, 128
        %4725 = vxpose.xlu0.b32.cont [5/16] 0.0, 128
        %4726 = vxpose.xlu0.b32.cont [6/16] 0.0, 128
        %4727 = vxpose.xlu0.b32.cont [7/16] 0.0, 128
        %4728 = vxpose.xlu0.b32.cont [8/16] 0.0, 128
        %4729 = vxpose.xlu0.b32.cont [9/16] 0.0, 128
        %4730 = vxpose.xlu0.b32.cont [10/16] 0.0, 128
        %4731 = vxpose.xlu0.b32.cont [11/16] 0.0, 128
        %4732 = vxpose.xlu0.b32.cont [12/16] 0.0, 128
        %4733 = vxpose.xlu0.b32.cont [13/16] 0.0, 128
        %4734 = vxpose.xlu0.b32.cont [14/16] 0.0, 128
        %4735 = vxpose.xlu0.b32.cont [15/16] 0.0, 128
        %4736 = vxpose.xlu0.b32.end [16/16] 0.0, 128
        %v4737 = vpop.trf.xlu0
        %v4738 = vpop.trf.xlu0
        %v4739 = vpop.trf.xlu0
        %v4740 = vpop.trf.xlu0
        %v4741 = vpop.trf.xlu0
        %v4742 = vpop.trf.xlu0
        %v4743 = vpop.trf.xlu0
        %v4744 = vpop.trf.xlu0
        %v4745 = vpop.trf.xlu0
        %v4746 = vpop.trf.xlu0
        %v4747 = vpop.trf.xlu0
        %v4748 = vpop.trf.xlu0
        %v4749 = vpop.trf.xlu0
        %v4750 = vpop.trf.xlu0
        %v4751 = vpop.trf.xlu0
        %v4752 = vpop.trf.xlu0
        %4755 = vrot.lane.b32.xlu0 %v4705, 55
        %v4756 = vpop.permute.xlu0 %4755
        %4757 = vrot.lane.b32.xlu0 %v4706, 55
        %v4758 = vpop.permute.xlu0 %4757
        %v4761 = vmul.f32 %v771, %v4756
        %v4762 = vmul.f32 %v772, %v4758
        %4765 = vrot.lane.b32.xlu0 %v4761, 73
        %v4766 = vpop.permute.xlu0 %4765
        %4767 = vrot.lane.b32.xlu0 %v4762, 73
        %v4768 = vpop.permute.xlu0 %4767
        %v4771 = vsel %vm773, %v4766, 0.0
        %v4772 = vsel %vm1351, %v4768, 0.0
        %v4773 = vadd.f32 %v4771, %v4772
        %4774 = vadd.xlane.f32.xlu0 %v4773
        %v4775 = vpop.xlane.xlu0 %4774
        %v4776 = vrot.slane %v4775, 4
        %v4777 = vadd.f32 %v4775, %v4776
        %v4778 = vrot.slane %v4777, 2
        %v4779 = vadd.f32 %v4777, %v4778
        %v4780 = vrot.slane %v4779, 1
        %v4781 = vadd.f32 %v4779, %v4780
        %s4782 = vtos %v4781
        %s4783 = smul.f32 %s4782, 0.008264462
        %s4784 = sld [smem:[#allocation2 + $0x3c]]
        %s4785 = smul.f32 %s4784, %s4783
        %s4786 = sadd.f32 %s4174, %s4785
        %s4787 = smul.f32 %s4783, %s4783
        %s4788 = sld [smem:[#allocation2 + $0x3d]]
        %s4789 = smul.f32 %s4788, %s4787
        %s4790 = sadd.f32 %s4786, %s4789
        %s4791 = smul.f32 %s4787, %s4783
        %s4792 = sld [smem:[#allocation2 + $0x3e]]
        %s4793 = smul.f32 %s4792, %s4791
        %s4794 = sadd.f32 %s4790, %s4793
        %s4795 = smul.f32 %s4791, %s4783
        %s4796 = sld [smem:[#allocation2 + $0x3f]]
        %s4797 = smul.f32 %s4796, %s4795
        %s4798 = sadd.f32 %s4794, %s4797
        %v4799 = vmul.f32 %v4679, %v4705
        %v4800 = vmul.f32 %v4685, %v4706
        %v4801 = vsel %vm773, %v4799, 0.0
        %v4802 = vsel %vm1351, %v4800, 0.0
        %v4803 = vadd.f32 %v4801, %v4802
        %4804 = vadd.xlane.f32.xlu0 %v4803
        %v4805 = vpop.xlane.xlu0 %4804
        %v4806 = vrot.slane %v4805, 4
        %v4807 = vadd.f32 %v4805, %v4806
        %v4808 = vrot.slane %v4807, 2
        %v4809 = vadd.f32 %v4807, %v4808
        %v4810 = vrot.slane %v4809, 1
        %v4811 = vadd.f32 %v4809, %v4810
        %s4812 = vtos %v4811
        %s4813 = smul.f32 %s4812, 0.008264462
        %s4814 = sld [smem:[#allocation2 + $0x40]]
        %s4815 = smul.f32 %s4814, %s4813
        %s4816 = sadd.f32 %s4798, %s4815
        %s4817 = smul.f32 %s4813, %s4813
        %s4818 = sld [smem:[#allocation2 + $0x41]]
        %s4819 = smul.f32 %s4818, %s4817
        %s4820 = sadd.f32 %s4816, %s4819
        %s4821 = smul.f32 %s4817, %s4813
        %s4822 = sld [smem:[#allocation2 + $0x42]]
        %s4823 = smul.f32 %s4822, %s4821
        %s4824 = sadd.f32 %s4820, %s4823
        %s4825 = smul.f32 %s4821, %s4813
        %s4826 = sld [smem:[#allocation2 + $0x43]]
        %s4827 = smul.f32 %s4826, %s4825
        %s4828 = sadd.f32 %s4824, %s4827
        %v4829 = vmul.f32 %v4679, %v4737
        %v4830 = vmul.f32 %v4685, %v4738
        %v4831 = vsel %vm773, %v4829, 0.0
        %v4832 = vsel %vm1351, %v4830, 0.0
        %v4833 = vadd.f32 %v4831, %v4832
        %4834 = vadd.xlane.f32.xlu0 %v4833
        %v4835 = vpop.xlane.xlu0 %4834
        %v4836 = vrot.slane %v4835, 4
        %v4837 = vadd.f32 %v4835, %v4836
        %v4838 = vrot.slane %v4837, 2
        %v4839 = vadd.f32 %v4837, %v4838
        %v4840 = vrot.slane %v4839, 1
        %v4841 = vadd.f32 %v4839, %v4840
        %s4842 = vtos %v4841
        %s4843 = smul.f32 %s4842, 0.008264462
        %s4844 = sld [smem:[#allocation2 + $0x44]]
        %s4845 = smul.f32 %s4844, %s4843
        %s4846 = sadd.f32 %s4828, %s4845
        %s4847 = smul.f32 %s4843, %s4843
        %s4848 = sld [smem:[#allocation2 + $0x45]]
        %s4849 = smul.f32 %s4848, %s4847
        %s4850 = sadd.f32 %s4846, %s4849
        %s4851 = smul.f32 %s4847, %s4843
        %s4852 = sld [smem:[#allocation2 + $0x46]]
        %s4853 = smul.f32 %s4852, %s4851
        %s4854 = sadd.f32 %s4850, %s4853
        %s4855 = smul.f32 %s4851, %s4843
        %s4856 = sld [smem:[#allocation2 + $0x47]]
        %s4857 = smul.f32 %s4856, %s4855
        %s4858 = sadd.f32 %s4854, %s4857
        %4859 = vrot.lane.b32.xlu0 %v771, 62
        %v4860 = vpop.permute.xlu0 %4859
        %4861 = vrot.lane.b32.xlu0 %v772, 62
        %v4862 = vpop.permute.xlu0 %4861
        %v4864 = vsel %vm773, %v4860, 0
        %v4866 = vsel %vm773, %v4862, 0
        %v4868 = vsel %vm677, %v4862, 0
        %4870 = vmatprep.subr.mxu0 0.0
        %v4871 = vand.u32 %v4860, 4294901760
        %4872 = vmatpush1.msra.mxu0 %v4871
        %4873 = vmatprep.subr.mxu0 0.0
        %v4874 = vand.u32 %v4868, 4294901760
        %4875 = vmatpush1.msra.mxu0 %v4874
        %4876 = vmatprep.subr.mxu0 0.0
        %4877 = vmatpush1.msra.mxu0 0.0
        %4878 = vmatprep.subr.mxu0 0.0
        %4879 = vmatpush1.msra.mxu0 0.0
        %4880 = vmatprep.subr.mxu0 0.0
        %4881 = vmatpush1.msra.mxu0 0.0
        %4882 = vmatprep.subr.mxu0 0.0
        %4883 = vmatpush1.msra.mxu0 0.0
        %4884 = vmatprep.subr.mxu0 0.0
        %4885 = vmatpush1.msra.mxu0 0.0
        %4886 = vmatprep.subr.mxu0 0.0
        %4887 = vmatpush1.msra.mxu0 0.0
        %4888 = vmatprep.subr.mxu0 0.0
        %4889 = vmatpush1.msra.mxu0 0.0
        %4890 = vmatprep.subr.mxu0 0.0
        %4891 = vmatpush1.msra.mxu0 0.0
        %4892 = vmatprep.subr.mxu0 0.0
        %4893 = vmatpush1.msra.mxu0 0.0
        %4894 = vmatprep.subr.mxu0 0.0
        %4895 = vmatpush1.msra.mxu0 0.0
        %4896 = vmatprep.subr.mxu0 0.0
        %4897 = vmatpush1.msra.mxu0 0.0
        %4898 = vmatprep.subr.mxu0 0.0
        %4899 = vmatpush1.msra.mxu0 0.0
        %4900 = vmatprep.subr.mxu0 0.0
        %4901 = vmatpush1.msra.mxu0 0.0
        %4902 = vmatprep.subr.mxu0 0.0
        %4903 = vmatpush1.msra.mxu0 0.0
        %4904 = vmatprep.subr.mxu0 0.0
        %4905 = vmatpush1.msra.mxu0 0.0
        %4906 = vmatprep.subr.mxu0 0.0
        %4907 = vmatpush1.msra.mxu0 0.0
        %4908 = vmatprep.subr.mxu0 0.0
        %4909 = vmatpush1.msra.mxu0 0.0
        %4910 = vmatprep.subr.mxu0 0.0
        %4911 = vmatpush1.msra.mxu0 0.0
        %4912 = vmatprep.subr.mxu0 0.0
        %4913 = vmatpush1.msra.mxu0 0.0
        %4914 = vmatprep.subr.mxu0 0.0
        %4915 = vmatpush1.msra.mxu0 0.0
        %4916 = vmatprep.subr.mxu0 0.0
        %4917 = vmatpush1.msra.mxu0 0.0
        %4918 = vmatprep.subr.mxu0 0.0
        %4919 = vmatpush1.msra.mxu0 0.0
        %4920 = vmatprep.subr.mxu0 0.0
        %4921 = vmatpush1.msra.mxu0 0.0
        %4922 = vmatprep.subr.mxu0 0.0
        %4923 = vmatpush1.msra.mxu0 0.0
        %4924 = vmatprep.subr.mxu0 0.0
        %4925 = vmatpush1.msra.mxu0 0.0
        %4926 = vmatprep.subr.mxu0 0.0
        %4927 = vmatpush1.msra.mxu0 0.0
        %4928 = vmatprep.subr.mxu0 0.0
        %4929 = vmatpush1.msra.mxu0 0.0
        %4930 = vmatprep.subr.mxu0 0.0
        %4931 = vmatpush1.msra.mxu0 0.0
        %4932 = vmatprep.subr.mxu0 0.0
        %4933 = vmatpush1.msra.mxu0 0.0
        %4934 = vmatprep.subr.mxu0 0.0
        %4935 = vmatpush1.msra.mxu0 0.0
        %4936 = vmatprep.mubr.f32.mxu0 0.0
        %v4937 = vand.u32 %v4864, 4294901760
        %v4938 = vsub.f32 %v4864, %v4937
        %v4939 = vand.u32 %v4938, 4294901760
        %v4940 = vsub.f32 %v4938, %v4939
        %v4941 = vand.u32 %v4940, 4294901760
        %4942 = vmatmul.mubr.f32.gmra.mrb[0].mxu0 %v4941
        %v4943 = vpop.f32.mrb[0].mxu0
        %v4944 = vadd.f32 0.0, %v4943
        %v4945 = vpop.f32.mrb[0].mxu0
        %4946 = vmatprep.mubr.f32.mxu0 0.0
        %v4947 = vand.u32 %v4866, 4294901760
        %v4948 = vsub.f32 %v4866, %v4947
        %v4949 = vand.u32 %v4948, 4294901760
        %v4950 = vsub.f32 %v4948, %v4949
        %v4951 = vand.u32 %v4950, 4294901760
        %4952 = vmatmul.mubr.f32.gmra.mrb[0].mxu0 %v4951
        %v4953 = vpop.f32.mrb[0].mxu0
        %v4954 = vadd.f32 0.0, %v4953
        %v4955 = vpop.f32.mrb[0].mxu0
        %4956 = vdwg.mxu0
        %4957 = vmatprep.subr.mxu0 0.0
        %v4958 = vand.u32 %v4860, 4294901760
        %v4959 = vsub.f32 %v4860, %v4958
        %v4960 = vand.u32 %v4959, 4294901760
        %v4961 = vsub.f32 %v4959, %v4960
        %v4962 = vand.u32 %v4961, 4294901760
        %4963 = vmatpush1.msra.mxu0 %v4962
        %4964 = vmatprep.subr.mxu0 0.0
        %v4965 = vand.u32 %v4868, 4294901760
        %v4966 = vsub.f32 %v4868, %v4965
        %v4967 = vand.u32 %v4966, 4294901760
        %v4968 = vsub.f32 %v4966, %v4967
        %v4969 = vand.u32 %v4968, 4294901760
        %4970 = vmatpush1.msra.mxu0 %v4969
        %4971 = vmatprep.subr.mxu0 0.0
        %4972 = vmatpush1.msra.mxu0 0.0
        %4973 = vmatprep.subr.mxu0 0.0
        %4974 = vmatpush1.msra.mxu0 0.0
        %4975 = vmatprep.subr.mxu0 0.0
        %4976 = vmatpush1.msra.mxu0 0.0
        %4977 = vmatprep.subr.mxu0 0.0
        %4978 = vmatpush1.msra.mxu0 0.0
        %4979 = vmatprep.subr.mxu0 0.0
        %4980 = vmatpush1.msra.mxu0 0.0
        %4981 = vmatprep.subr.mxu0 0.0
        %4982 = vmatpush1.msra.mxu0 0.0
        %4983 = vmatprep.subr.mxu0 0.0
        %4984 = vmatpush1.msra.mxu0 0.0
        %4985 = vmatprep.subr.mxu0 0.0
        %4986 = vmatpush1.msra.mxu0 0.0
        %4987 = vmatprep.subr.mxu0 0.0
        %4988 = vmatpush1.msra.mxu0 0.0
        %4989 = vmatprep.subr.mxu0 0.0
        %4990 = vmatpush1.msra.mxu0 0.0
        %4991 = vmatprep.subr.mxu0 0.0
        %4992 = vmatpush1.msra.mxu0 0.0
        %4993 = vmatprep.subr.mxu0 0.0
        %4994 = vmatpush1.msra.mxu0 0.0
        %4995 = vmatprep.subr.mxu0 0.0
        %4996 = vmatpush1.msra.mxu0 0.0
        %4997 = vmatprep.subr.mxu0 0.0
        %4998 = vmatpush1.msra.mxu0 0.0
        %4999 = vmatprep.subr.mxu0 0.0
        %5000 = vmatpush1.msra.mxu0 0.0
        %5001 = vmatprep.subr.mxu0 0.0
        %5002 = vmatpush1.msra.mxu0 0.0
        %5003 = vmatprep.subr.mxu0 0.0
        %5004 = vmatpush1.msra.mxu0 0.0
        %5005 = vmatprep.subr.mxu0 0.0
        %5006 = vmatpush1.msra.mxu0 0.0
        %5007 = vmatprep.subr.mxu0 0.0
        %5008 = vmatpush1.msra.mxu0 0.0
        %5009 = vmatprep.subr.mxu0 0.0
        %5010 = vmatpush1.msra.mxu0 0.0
        %5011 = vmatprep.subr.mxu0 0.0
        %5012 = vmatpush1.msra.mxu0 0.0
        %5013 = vmatprep.subr.mxu0 0.0
        %5014 = vmatpush1.msra.mxu0 0.0
        %5015 = vmatprep.subr.mxu0 0.0
        %5016 = vmatpush1.msra.mxu0 0.0
        %5017 = vmatprep.subr.mxu0 0.0
        %5018 = vmatpush1.msra.mxu0 0.0
        %5019 = vmatprep.subr.mxu0 0.0
        %5020 = vmatpush1.msra.mxu0 0.0
        %5021 = vmatprep.subr.mxu0 0.0
        %5022 = vmatpush1.msra.mxu0 0.0
        %5023 = vmatprep.subr.mxu0 0.0
        %5024 = vmatpush1.msra.mxu0 0.0
        %5025 = vmatprep.subr.mxu0 0.0
        %5026 = vmatpush1.msra.mxu0 0.0
        %5027 = vmatprep.subr.mxu0 0.0
        %5028 = vmatpush1.msra.mxu0 0.0
        %5029 = vmatprep.subr.mxu0 0.0
        %5030 = vmatpush1.msra.mxu0 0.0
        %5031 = vmatprep.mubr.f32.mxu0 0.0
        %v5032 = vand.u32 %v4864, 4294901760
        %5033 = vmatmul.mubr.f32.gmra.mrb[0].mxu0 %v5032
        %v5034 = vpop.f32.mrb[0].mxu0
        %v5035 = vadd.f32 %v4944, %v5034
        %v5036 = vpop.f32.mrb[0].mxu0
        %5037 = vmatprep.mubr.f32.mxu0 0.0
        %v5038 = vand.u32 %v4866, 4294901760
        %5039 = vmatmul.mubr.f32.gmra.mrb[0].mxu0 %v5038
        %v5040 = vpop.f32.mrb[0].mxu0
        %v5041 = vadd.f32 %v4954, %v5040
        %v5042 = vpop.f32.mrb[0].mxu0
        %5043 = vdwg.mxu0
        %5044 = vmatprep.subr.mxu0 0.0
        %v5045 = vand.u32 %v4860, 4294901760
        %v5046 = vsub.f32 %v4860, %v5045
        %5047 = vmatpush1.msra.mxu0 %v5046
        %5048 = vmatprep.subr.mxu0 0.0
        %v5049 = vand.u32 %v4868, 4294901760
        %v5050 = vsub.f32 %v4868, %v5049
        %5051 = vmatpush1.msra.mxu0 %v5050
        %5052 = vmatprep.subr.mxu0 0.0
        %5053 = vmatpush1.msra.mxu0 0.0
        %5054 = vmatprep.subr.mxu0 0.0
        %5055 = vmatpush1.msra.mxu0 0.0
        %5056 = vmatprep.subr.mxu0 0.0
        %5057 = vmatpush1.msra.mxu0 0.0
        %5058 = vmatprep.subr.mxu0 0.0
        %5059 = vmatpush1.msra.mxu0 0.0
        %5060 = vmatprep.subr.mxu0 0.0
        %5061 = vmatpush1.msra.mxu0 0.0
        %5062 = vmatprep.subr.mxu0 0.0
        %5063 = vmatpush1.msra.mxu0 0.0
        %5064 = vmatprep.subr.mxu0 0.0
        %5065 = vmatpush1.msra.mxu0 0.0
        %5066 = vmatprep.subr.mxu0 0.0
        %5067 = vmatpush1.msra.mxu0 0.0
        %5068 = vmatprep.subr.mxu0 0.0
        %5069 = vmatpush1.msra.mxu0 0.0
        %5070 = vmatprep.subr.mxu0 0.0
        %5071 = vmatpush1.msra.mxu0 0.0
        %5072 = vmatprep.subr.mxu0 0.0
        %5073 = vmatpush1.msra.mxu0 0.0
        %5074 = vmatprep.subr.mxu0 0.0
        %5075 = vmatpush1.msra.mxu0 0.0
        %5076 = vmatprep.subr.mxu0 0.0
        %5077 = vmatpush1.msra.mxu0 0.0
        %5078 = vmatprep.subr.mxu0 0.0
        %5079 = vmatpush1.msra.mxu0 0.0
        %5080 = vmatprep.subr.mxu0 0.0
        %5081 = vmatpush1.msra.mxu0 0.0
        %5082 = vmatprep.subr.mxu0 0.0
        %5083 = vmatpush1.msra.mxu0 0.0
        %5084 = vmatprep.subr.mxu0 0.0
        %5085 = vmatpush1.msra.mxu0 0.0
        %5086 = vmatprep.subr.mxu0 0.0
        %5087 = vmatpush1.msra.mxu0 0.0
        %5088 = vmatprep.subr.mxu0 0.0
        %5089 = vmatpush1.msra.mxu0 0.0
        %5090 = vmatprep.subr.mxu0 0.0
        %5091 = vmatpush1.msra.mxu0 0.0
        %5092 = vmatprep.subr.mxu0 0.0
        %5093 = vmatpush1.msra.mxu0 0.0
        %5094 = vmatprep.subr.mxu0 0.0
        %5095 = vmatpush1.msra.mxu0 0.0
        %5096 = vmatprep.subr.mxu0 0.0
        %5097 = vmatpush1.msra.mxu0 0.0
        %5098 = vmatprep.subr.mxu0 0.0
        %5099 = vmatpush1.msra.mxu0 0.0
        %5100 = vmatprep.subr.mxu0 0.0
        %5101 = vmatpush1.msra.mxu0 0.0
        %5102 = vmatprep.subr.mxu0 0.0
        %5103 = vmatpush1.msra.mxu0 0.0
        %5104 = vmatprep.subr.mxu0 0.0
        %5105 = vmatpush1.msra.mxu0 0.0
        %5106 = vmatprep.subr.mxu0 0.0
        %5107 = vmatpush1.msra.mxu0 0.0
        %5108 = vmatprep.subr.mxu0 0.0
        %5109 = vmatpush1.msra.mxu0 0.0
        %5110 = vmatprep.subr.mxu0 0.0
        %5111 = vmatpush1.msra.mxu0 0.0
        %5112 = vmatprep.mubr.f32.mxu0 0.0
        %v5113 = vand.u32 %v4864, 4294901760
        %v5114 = vsub.f32 %v4864, %v5113
        %5115 = vmatmul.mubr.f32.gmra.mrb[0].mxu0 %v5114
        %v5116 = vpop.f32.mrb[0].mxu0
        %v5117 = vadd.f32 %v5035, %v5116
        %v5118 = vpop.f32.mrb[0].mxu0
        %5119 = vmatprep.mubr.f32.mxu0 0.0
        %v5120 = vand.u32 %v4866, 4294901760
        %v5121 = vsub.f32 %v4866, %v5120
        %5122 = vmatmul.mubr.f32.gmra.mrb[0].mxu0 %v5121
        %v5123 = vpop.f32.mrb[0].mxu0
        %v5124 = vadd.f32 %v5041, %v5123
        %v5125 = vpop.f32.mrb[0].mxu0
        %5126 = vdwg.mxu0
        %5127 = vmatprep.subr.mxu0 0.0
        %v5128 = vand.u32 %v4860, 4294901760
        %5129 = vmatpush1.msra.mxu0 %v5128
        %5130 = vmatprep.subr.mxu0 0.0
        %v5131 = vand.u32 %v4868, 4294901760
        %5132 = vmatpush1.msra.mxu0 %v5131
        %5133 = vmatprep.subr.mxu0 0.0
        %5134 = vmatpush1.msra.mxu0 0.0
        %5135 = vmatprep.subr.mxu0 0.0
        %5136 = vmatpush1.msra.mxu0 0.0
        %5137 = vmatprep.subr.mxu0 0.0
        %5138 = vmatpush1.msra.mxu0 0.0
        %5139 = vmatprep.subr.mxu0 0.0
        %5140 = vmatpush1.msra.mxu0 0.0
        %5141 = vmatprep.subr.mxu0 0.0
        %5142 = vmatpush1.msra.mxu0 0.0
        %5143 = vmatprep.subr.mxu0 0.0
        %5144 = vmatpush1.msra.mxu0 0.0
        %5145 = vmatprep.subr.mxu0 0.0
        %5146 = vmatpush1.msra.mxu0 0.0
        %5147 = vmatprep.subr.mxu0 0.0
        %5148 = vmatpush1.msra.mxu0 0.0
        %5149 = vmatprep.subr.mxu0 0.0
        %5150 = vmatpush1.msra.mxu0 0.0
        %5151 = vmatprep.subr.mxu0 0.0
        %5152 = vmatpush1.msra.mxu0 0.0
        %5153 = vmatprep.subr.mxu0 0.0
        %5154 = vmatpush1.msra.mxu0 0.0
        %5155 = vmatprep.subr.mxu0 0.0
        %5156 = vmatpush1.msra.mxu0 0.0
        %5157 = vmatprep.subr.mxu0 0.0
        %5158 = vmatpush1.msra.mxu0 0.0
        %5159 = vmatprep.subr.mxu0 0.0
        %5160 = vmatpush1.msra.mxu0 0.0
        %5161 = vmatprep.subr.mxu0 0.0
        %5162 = vmatpush1.msra.mxu0 0.0
        %5163 = vmatprep.subr.mxu0 0.0
        %5164 = vmatpush1.msra.mxu0 0.0
        %5165 = vmatprep.subr.mxu0 0.0
        %5166 = vmatpush1.msra.mxu0 0.0
        %5167 = vmatprep.subr.mxu0 0.0
        %5168 = vmatpush1.msra.mxu0 0.0
        %5169 = vmatprep.subr.mxu0 0.0
        %5170 = vmatpush1.msra.mxu0 0.0
        %5171 = vmatprep.subr.mxu0 0.0
        %5172 = vmatpush1.msra.mxu0 0.0
        %5173 = vmatprep.subr.mxu0 0.0
        %5174 = vmatpush1.msra.mxu0 0.0
        %5175 = vmatprep.subr.mxu0 0.0
        %5176 = vmatpush1.msra.mxu0 0.0
        %5177 = vmatprep.subr.mxu0 0.0
        %5178 = vmatpush1.msra.mxu0 0.0
        %5179 = vmatprep.subr.mxu0 0.0
        %5180 = vmatpush1.msra.mxu0 0.0
        %5181 = vmatprep.subr.mxu0 0.0
        %5182 = vmatpush1.msra.mxu0 0.0
        %5183 = vmatprep.subr.mxu0 0.0
        %5184 = vmatpush1.msra.mxu0 0.0
        %5185 = vmatprep.subr.mxu0 0.0
        %5186 = vmatpush1.msra.mxu0 0.0
        %5187 = vmatprep.subr.mxu0 0.0
        %5188 = vmatpush1.msra.mxu0 0.0
        %5189 = vmatprep.subr.mxu0 0.0
        %5190 = vmatpush1.msra.mxu0 0.0
        %5191 = vmatprep.subr.mxu0 0.0
        %5192 = vmatpush1.msra.mxu0 0.0
        %5193 = vmatprep.mubr.f32.mxu0 0.0
        %v5194 = vand.u32 %v4864, 4294901760
        %v5195 = vsub.f32 %v4864, %v5194
        %v5196 = vand.u32 %v5195, 4294901760
        %5197 = vmatmul.mubr.f32.gmra.mrb[0].mxu0 %v5196
        %v5198 = vpop.f32.mrb[0].mxu0
        %v5199 = vadd.f32 %v5117, %v5198
        %v5200 = vpop.f32.mrb[0].mxu0
        %5201 = vmatprep.mubr.f32.mxu0 0.0
        %v5202 = vand.u32 %v4866, 4294901760
        %v5203 = vsub.f32 %v4866, %v5202
        %v5204 = vand.u32 %v5203, 4294901760
        %5205 = vmatmul.mubr.f32.gmra.mrb[0].mxu0 %v5204
        %v5206 = vpop.f32.mrb[0].mxu0
        %v5207 = vadd.f32 %v5124, %v5206
        %v5208 = vpop.f32.mrb[0].mxu0
        %5209 = vdwg.mxu0
        %5210 = vmatprep.subr.mxu0 0.0
        %v5211 = vand.u32 %v4860, 4294901760
        %v5212 = vsub.f32 %v4860, %v5211
        %v5213 = vand.u32 %v5212, 4294901760
        %5214 = vmatpush1.msra.mxu0 %v5213
        %5215 = vmatprep.subr.mxu0 0.0
        %v5216 = vand.u32 %v4868, 4294901760
        %v5217 = vsub.f32 %v4868, %v5216
        %v5218 = vand.u32 %v5217, 4294901760
        %5219 = vmatpush1.msra.mxu0 %v5218
        %5220 = vmatprep.subr.mxu0 0.0
        %5221 = vmatpush1.msra.mxu0 0.0
        %5222 = vmatprep.subr.mxu0 0.0
        %5223 = vmatpush1.msra.mxu0 0.0
        %5224 = vmatprep.subr.mxu0 0.0
        %5225 = vmatpush1.msra.mxu0 0.0
        %5226 = vmatprep.subr.mxu0 0.0
        %5227 = vmatpush1.msra.mxu0 0.0
        %5228 = vmatprep.subr.mxu0 0.0
        %5229 = vmatpush1.msra.mxu0 0.0
        %5230 = vmatprep.subr.mxu0 0.0
        %5231 = vmatpush1.msra.mxu0 0.0
        %5232 = vmatprep.subr.mxu0 0.0
        %5233 = vmatpush1.msra.mxu0 0.0
        %5234 = vmatprep.subr.mxu0 0.0
        %5235 = vmatpush1.msra.mxu0 0.0
        %5236 = vmatprep.subr.mxu0 0.0
        %5237 = vmatpush1.msra.mxu0 0.0
        %5238 = vmatprep.subr.mxu0 0.0
        %5239 = vmatpush1.msra.mxu0 0.0
        %5240 = vmatprep.subr.mxu0 0.0
        %5241 = vmatpush1.msra.mxu0 0.0
        %5242 = vmatprep.subr.mxu0 0.0
        %5243 = vmatpush1.msra.mxu0 0.0
        %5244 = vmatprep.subr.mxu0 0.0
        %5245 = vmatpush1.msra.mxu0 0.0
        %5246 = vmatprep.subr.mxu0 0.0
        %5247 = vmatpush1.msra.mxu0 0.0
        %5248 = vmatprep.subr.mxu0 0.0
        %5249 = vmatpush1.msra.mxu0 0.0
        %5250 = vmatprep.subr.mxu0 0.0
        %5251 = vmatpush1.msra.mxu0 0.0
        %5252 = vmatprep.subr.mxu0 0.0
        %5253 = vmatpush1.msra.mxu0 0.0
        %5254 = vmatprep.subr.mxu0 0.0
        %5255 = vmatpush1.msra.mxu0 0.0
        %5256 = vmatprep.subr.mxu0 0.0
        %5257 = vmatpush1.msra.mxu0 0.0
        %5258 = vmatprep.subr.mxu0 0.0
        %5259 = vmatpush1.msra.mxu0 0.0
        %5260 = vmatprep.subr.mxu0 0.0
        %5261 = vmatpush1.msra.mxu0 0.0
        %5262 = vmatprep.subr.mxu0 0.0
        %5263 = vmatpush1.msra.mxu0 0.0
        %5264 = vmatprep.subr.mxu0 0.0
        %5265 = vmatpush1.msra.mxu0 0.0
        %5266 = vmatprep.subr.mxu0 0.0
        %5267 = vmatpush1.msra.mxu0 0.0
        %5268 = vmatprep.subr.mxu0 0.0
        %5269 = vmatpush1.msra.mxu0 0.0
        %5270 = vmatprep.subr.mxu0 0.0
        %5271 = vmatpush1.msra.mxu0 0.0
        %5272 = vmatprep.subr.mxu0 0.0
        %5273 = vmatpush1.msra.mxu0 0.0
        %5274 = vmatprep.subr.mxu0 0.0
        %5275 = vmatpush1.msra.mxu0 0.0
        %5276 = vmatprep.subr.mxu0 0.0
        %5277 = vmatpush1.msra.mxu0 0.0
        %5278 = vmatprep.subr.mxu0 0.0
        %5279 = vmatpush1.msra.mxu0 0.0
        %5280 = vmatprep.mubr.f32.mxu0 0.0
        %v5281 = vand.u32 %v4864, 4294901760
        %5282 = vmatmul.mubr.f32.gmra.mrb[0].mxu0 %v5281
        %v5283 = vpop.f32.mrb[0].mxu0
        %v5284 = vadd.f32 %v5199, %v5283
        %v5285 = vpop.f32.mrb[0].mxu0
        %5286 = vmatprep.mubr.f32.mxu0 0.0
        %v5287 = vand.u32 %v4866, 4294901760
        %5288 = vmatmul.mubr.f32.gmra.mrb[0].mxu0 %v5287
        %v5289 = vpop.f32.mrb[0].mxu0
        %v5290 = vadd.f32 %v5207, %v5289
        %v5291 = vpop.f32.mrb[0].mxu0
        %5292 = vdwg.mxu0
        %5293 = vmatprep.subr.mxu0 0.0
        %v5294 = vand.u32 %v4860, 4294901760
        %5295 = vmatpush1.msra.mxu0 %v5294
        %5296 = vmatprep.subr.mxu0 0.0
        %v5297 = vand.u32 %v4868, 4294901760
        %5298 = vmatpush1.msra.mxu0 %v5297
        %5299 = vmatprep.subr.mxu0 0.0
        %5300 = vmatpush1.msra.mxu0 0.0
        %5301 = vmatprep.subr.mxu0 0.0
        %5302 = vmatpush1.msra.mxu0 0.0
        %5303 = vmatprep.subr.mxu0 0.0
        %5304 = vmatpush1.msra.mxu0 0.0
        %5305 = vmatprep.subr.mxu0 0.0
        %5306 = vmatpush1.msra.mxu0 0.0
        %5307 = vmatprep.subr.mxu0 0.0
        %5308 = vmatpush1.msra.mxu0 0.0
        %5309 = vmatprep.subr.mxu0 0.0
        %5310 = vmatpush1.msra.mxu0 0.0
        %5311 = vmatprep.subr.mxu0 0.0
        %5312 = vmatpush1.msra.mxu0 0.0
        %5313 = vmatprep.subr.mxu0 0.0
        %5314 = vmatpush1.msra.mxu0 0.0
        %5315 = vmatprep.subr.mxu0 0.0
        %5316 = vmatpush1.msra.mxu0 0.0
        %5317 = vmatprep.subr.mxu0 0.0
        %5318 = vmatpush1.msra.mxu0 0.0
        %5319 = vmatprep.subr.mxu0 0.0
        %5320 = vmatpush1.msra.mxu0 0.0
        %5321 = vmatprep.subr.mxu0 0.0
        %5322 = vmatpush1.msra.mxu0 0.0
        %5323 = vmatprep.subr.mxu0 0.0
        %5324 = vmatpush1.msra.mxu0 0.0
        %5325 = vmatprep.subr.mxu0 0.0
        %5326 = vmatpush1.msra.mxu0 0.0
        %5327 = vmatprep.subr.mxu0 0.0
        %5328 = vmatpush1.msra.mxu0 0.0
        %5329 = vmatprep.subr.mxu0 0.0
        %5330 = vmatpush1.msra.mxu0 0.0
        %5331 = vmatprep.subr.mxu0 0.0
        %5332 = vmatpush1.msra.mxu0 0.0
        %5333 = vmatprep.subr.mxu0 0.0
        %5334 = vmatpush1.msra.mxu0 0.0
        %5335 = vmatprep.subr.mxu0 0.0
        %5336 = vmatpush1.msra.mxu0 0.0
        %5337 = vmatprep.subr.mxu0 0.0
        %5338 = vmatpush1.msra.mxu0 0.0
        %5339 = vmatprep.subr.mxu0 0.0
        %5340 = vmatpush1.msra.mxu0 0.0
        %5341 = vmatprep.subr.mxu0 0.0
        %5342 = vmatpush1.msra.mxu0 0.0
        %5343 = vmatprep.subr.mxu0 0.0
        %5344 = vmatpush1.msra.mxu0 0.0
        %5345 = vmatprep.subr.mxu0 0.0
        %5346 = vmatpush1.msra.mxu0 0.0
        %5347 = vmatprep.subr.mxu0 0.0
        %5348 = vmatpush1.msra.mxu0 0.0
        %5349 = vmatprep.subr.mxu0 0.0
        %5350 = vmatpush1.msra.mxu0 0.0
        %5351 = vmatprep.subr.mxu0 0.0
        %5352 = vmatpush1.msra.mxu0 0.0
        %5353 = vmatprep.subr.mxu0 0.0
        %5354 = vmatpush1.msra.mxu0 0.0
        %5355 = vmatprep.subr.mxu0 0.0
        %5356 = vmatpush1.msra.mxu0 0.0
        %5357 = vmatprep.subr.mxu0 0.0
        %5358 = vmatpush1.msra.mxu0 0.0
        %5359 = vmatprep.mubr.f32.mxu0 0.0
        %v5360 = vand.u32 %v4864, 4294901760
        %5361 = vmatmul.mubr.f32.gmra.mrb[0].mxu0 %v5360
        %v5362 = vpop.f32.mrb[0].mxu0
        %v5363 = vadd.f32 %v5284, %v5362
        %v5364 = vpop.f32.mrb[0].mxu0
        %5365 = vmatprep.mubr.f32.mxu0 0.0
        %v5366 = vand.u32 %v4866, 4294901760
        %5367 = vmatmul.mubr.f32.gmra.mrb[0].mxu0 %v5366
        %v5368 = vpop.f32.mrb[0].mxu0
        %v5369 = vadd.f32 %v5290, %v5368
        %v5370 = vpop.f32.mrb[0].mxu0
        %5371 = vdwg.mxu0
        %5373 = vxpose.xlu0.b32.start [1/16] %v4860, 128
        %5374 = vxpose.xlu0.b32.cont [2/16] %v4862, 128
        %5375 = vxpose.xlu0.b32.cont [3/16] 0.0, 128
        %5376 = vxpose.xlu0.b32.cont [4/16] 0.0, 128
        %5377 = vxpose.xlu0.b32.cont [5/16] 0.0, 128
        %5378 = vxpose.xlu0.b32.cont [6/16] 0.0, 128
        %5379 = vxpose.xlu0.b32.cont [7/16] 0.0, 128
        %5380 = vxpose.xlu0.b32.cont [8/16] 0.0, 128
        %5381 = vxpose.xlu0.b32.cont [9/16] 0.0, 128
        %5382 = vxpose.xlu0.b32.cont [10/16] 0.0, 128
        %5383 = vxpose.xlu0.b32.cont [11/16] 0.0, 128
        %5384 = vxpose.xlu0.b32.cont [12/16] 0.0, 128
        %5385 = vxpose.xlu0.b32.cont [13/16] 0.0, 128
        %5386 = vxpose.xlu0.b32.cont [14/16] 0.0, 128
        %5387 = vxpose.xlu0.b32.cont [15/16] 0.0, 128
        %5388 = vxpose.xlu0.b32.end [16/16] 0.0, 128
        %v5389 = vpop.trf.xlu0
        %v5390 = vpop.trf.xlu0
        %v5391 = vpop.trf.xlu0
        %v5392 = vpop.trf.xlu0
        %v5393 = vpop.trf.xlu0
        %v5394 = vpop.trf.xlu0
        %v5395 = vpop.trf.xlu0
        %v5396 = vpop.trf.xlu0
        %v5397 = vpop.trf.xlu0
        %v5398 = vpop.trf.xlu0
        %v5399 = vpop.trf.xlu0
        %v5400 = vpop.trf.xlu0
        %v5401 = vpop.trf.xlu0
        %v5402 = vpop.trf.xlu0
        %v5403 = vpop.trf.xlu0
        %v5404 = vpop.trf.xlu0
        %5405 = vxpose.xlu0.b32.start [1/16] %v5363, 128
        %5406 = vxpose.xlu0.b32.cont [2/16] %v5369, 128
        %5407 = vxpose.xlu0.b32.cont [3/16] 0.0, 128
        %5408 = vxpose.xlu0.b32.cont [4/16] 0.0, 128
        %5409 = vxpose.xlu0.b32.cont [5/16] 0.0, 128
        %5410 = vxpose.xlu0.b32.cont [6/16] 0.0, 128
        %5411 = vxpose.xlu0.b32.cont [7/16] 0.0, 128
        %5412 = vxpose.xlu0.b32.cont [8/16] 0.0, 128
        %5413 = vxpose.xlu0.b32.cont [9/16] 0.0, 128
        %5414 = vxpose.xlu0.b32.cont [10/16] 0.0, 128
        %5415 = vxpose.xlu0.b32.cont [11/16] 0.0, 128
        %5416 = vxpose.xlu0.b32.cont [12/16] 0.0, 128
        %5417 = vxpose.xlu0.b32.cont [13/16] 0.0, 128
        %5418 = vxpose.xlu0.b32.cont [14/16] 0.0, 128
        %5419 = vxpose.xlu0.b32.cont [15/16] 0.0, 128
        %5420 = vxpose.xlu0.b32.end [16/16] 0.0, 128
        %v5421 = vpop.trf.xlu0
        %v5422 = vpop.trf.xlu0
        %v5423 = vpop.trf.xlu0
        %v5424 = vpop.trf.xlu0
        %v5425 = vpop.trf.xlu0
        %v5426 = vpop.trf.xlu0
        %v5427 = vpop.trf.xlu0
        %v5428 = vpop.trf.xlu0
        %v5429 = vpop.trf.xlu0
        %v5430 = vpop.trf.xlu0
        %v5431 = vpop.trf.xlu0
        %v5432 = vpop.trf.xlu0
        %v5433 = vpop.trf.xlu0
        %v5434 = vpop.trf.xlu0
        %v5435 = vpop.trf.xlu0
        %v5436 = vpop.trf.xlu0
        %5439 = vrot.lane.b32.xlu0 %v5389, 66
        %v5440 = vpop.permute.xlu0 %5439
        %5441 = vrot.lane.b32.xlu0 %v5390, 66
        %v5442 = vpop.permute.xlu0 %5441
        %v5445 = vmul.f32 %v771, %v5440
        %v5446 = vmul.f32 %v772, %v5442
        %5449 = vrot.lane.b32.xlu0 %v5445, 62
        %v5450 = vpop.permute.xlu0 %5449
        %5451 = vrot.lane.b32.xlu0 %v5446, 62
        %v5452 = vpop.permute.xlu0 %5451
        %v5455 = vsel %vm773, %v5450, 0.0
        %v5456 = vsel %vm1351, %v5452, 0.0
        %v5457 = vadd.f32 %v5455, %v5456
        %5458 = vadd.xlane.f32.xlu0 %v5457
        %v5459 = vpop.xlane.xlu0 %5458
        %v5460 = vrot.slane %v5459, 4
        %v5461 = vadd.f32 %v5459, %v5460
        %v5462 = vrot.slane %v5461, 2
        %v5463 = vadd.f32 %v5461, %v5462
        %v5464 = vrot.slane %v5463, 1
        %v5465 = vadd.f32 %v5463, %v5464
        %s5466 = vtos %v5465
        %s5467 = smul.f32 %s5466, 0.008264462
        %s5468 = sld [smem:[#allocation2 + $0x48]]
        %s5469 = smul.f32 %s5468, %s5467
        %s5470 = sadd.f32 %s4858, %s5469
        %s5471 = smul.f32 %s5467, %s5467
        %s5472 = sld [smem:[#allocation2 + $0x49]]
        %s5473 = smul.f32 %s5472, %s5471
        %s5474 = sadd.f32 %s5470, %s5473
        %s5475 = smul.f32 %s5471, %s5467
        %s5476 = sld [smem:[#allocation2 + $0x4a]]
        %s5477 = smul.f32 %s5476, %s5475
        %s5478 = sadd.f32 %s5474, %s5477
        %s5479 = smul.f32 %s5475, %s5467
        %s5480 = sld [smem:[#allocation2 + $0x4b]]
        %s5481 = smul.f32 %s5480, %s5479
        %s5482 = sadd.f32 %s5478, %s5481
        %v5483 = vmul.f32 %v5363, %v5389
        %v5484 = vmul.f32 %v5369, %v5390
        %v5485 = vsel %vm773, %v5483, 0.0
        %v5486 = vsel %vm1351, %v5484, 0.0
        %v5487 = vadd.f32 %v5485, %v5486
        %5488 = vadd.xlane.f32.xlu0 %v5487
        %v5489 = vpop.xlane.xlu0 %5488
        %v5490 = vrot.slane %v5489, 4
        %v5491 = vadd.f32 %v5489, %v5490
        %v5492 = vrot.slane %v5491, 2
        %v5493 = vadd.f32 %v5491, %v5492
        %v5494 = vrot.slane %v5493, 1
        %v5495 = vadd.f32 %v5493, %v5494
        %s5496 = vtos %v5495
        %s5497 = smul.f32 %s5496, 0.008264462
        %s5498 = sld [smem:[#allocation2 + $0x4c]]
        %s5499 = smul.f32 %s5498, %s5497
        %s5500 = sadd.f32 %s5482, %s5499
        %s5501 = smul.f32 %s5497, %s5497
        %s5502 = sld [smem:[#allocation2 + $0x4d]]
        %s5503 = smul.f32 %s5502, %s5501
        %s5504 = sadd.f32 %s5500, %s5503
        %s5505 = smul.f32 %s5501, %s5497
        %s5506 = sld [smem:[#allocation2 + $0x4e]]
        %s5507 = smul.f32 %s5506, %s5505
        %s5508 = sadd.f32 %s5504, %s5507
        %s5509 = smul.f32 %s5505, %s5497
        %s5510 = sld [smem:[#allocation2 + $0x4f]]
        %s5511 = smul.f32 %s5510, %s5509
        %s5512 = sadd.f32 %s5508, %s5511
        %v5513 = vmul.f32 %v5363, %v5421
        %v5514 = vmul.f32 %v5369, %v5422
        %v5515 = vsel %vm773, %v5513, 0.0
        %v5516 = vsel %vm1351, %v5514, 0.0
        %v5517 = vadd.f32 %v5515, %v5516
        %5518 = vadd.xlane.f32.xlu0 %v5517
        %v5519 = vpop.xlane.xlu0 %5518
        %v5520 = vrot.slane %v5519, 4
        %v5521 = vadd.f32 %v5519, %v5520
        %v5522 = vrot.slane %v5521, 2
        %v5523 = vadd.f32 %v5521, %v5522
        %v5524 = vrot.slane %v5523, 1
        %v5525 = vadd.f32 %v5523, %v5524
        %s5526 = vtos %v5525
        %s5527 = smul.f32 %s5526, 0.008264462
        %s5528 = sld [smem:[#allocation2 + $0x50]]
        %s5529 = smul.f32 %s5528, %s5527
        %s5530 = sadd.f32 %s5512, %s5529
        %s5531 = smul.f32 %s5527, %s5527
        %s5532 = sld [smem:[#allocation2 + $0x51]]
        %s5533 = smul.f32 %s5532, %s5531
        %s5534 = sadd.f32 %s5530, %s5533
        %s5535 = smul.f32 %s5531, %s5527
        %s5536 = sld [smem:[#allocation2 + $0x52]]
        %s5537 = smul.f32 %s5536, %s5535
        %s5538 = sadd.f32 %s5534, %s5537
        %s5539 = smul.f32 %s5535, %s5527
        %s5540 = sld [smem:[#allocation2 + $0x53]]
        %s5541 = smul.f32 %s5540, %s5539
        %s5542 = sadd.f32 %s5538, %s5541
        %5543 = vrot.lane.b32.xlu0 %v771, 51
        %v5544 = vpop.permute.xlu0 %5543
        %5545 = vrot.lane.b32.xlu0 %v772, 51
        %v5546 = vpop.permute.xlu0 %5545
        %v5548 = vsel %vm773, %v5544, 0
        %v5550 = vsel %vm773, %v5546, 0
        %v5552 = vsel %vm677, %v5546, 0
        %5554 = vmatprep.subr.mxu0 0.0
        %v5555 = vand.u32 %v5544, 4294901760
        %5556 = vmatpush1.msra.mxu0 %v5555
        %5557 = vmatprep.subr.mxu0 0.0
        %v5558 = vand.u32 %v5552, 4294901760
        %5559 = vmatpush1.msra.mxu0 %v5558
        %5560 = vmatprep.subr.mxu0 0.0
        %5561 = vmatpush1.msra.mxu0 0.0
        %5562 = vmatprep.subr.mxu0 0.0
        %5563 = vmatpush1.msra.mxu0 0.0
        %5564 = vmatprep.subr.mxu0 0.0
        %5565 = vmatpush1.msra.mxu0 0.0
        %5566 = vmatprep.subr.mxu0 0.0
        %5567 = vmatpush1.msra.mxu0 0.0
        %5568 = vmatprep.subr.mxu0 0.0
        %5569 = vmatpush1.msra.mxu0 0.0
        %5570 = vmatprep.subr.mxu0 0.0
        %5571 = vmatpush1.msra.mxu0 0.0
        %5572 = vmatprep.subr.mxu0 0.0
        %5573 = vmatpush1.msra.mxu0 0.0
        %5574 = vmatprep.subr.mxu0 0.0
        %5575 = vmatpush1.msra.mxu0 0.0
        %5576 = vmatprep.subr.mxu0 0.0
        %5577 = vmatpush1.msra.mxu0 0.0
        %5578 = vmatprep.subr.mxu0 0.0
        %5579 = vmatpush1.msra.mxu0 0.0
        %5580 = vmatprep.subr.mxu0 0.0
        %5581 = vmatpush1.msra.mxu0 0.0
        %5582 = vmatprep.subr.mxu0 0.0
        %5583 = vmatpush1.msra.mxu0 0.0
        %5584 = vmatprep.subr.mxu0 0.0
        %5585 = vmatpush1.msra.mxu0 0.0
        %5586 = vmatprep.subr.mxu0 0.0
        %5587 = vmatpush1.msra.mxu0 0.0
        %5588 = vmatprep.subr.mxu0 0.0
        %5589 = vmatpush1.msra.mxu0 0.0
        %5590 = vmatprep.subr.mxu0 0.0
        %5591 = vmatpush1.msra.mxu0 0.0
        %5592 = vmatprep.subr.mxu0 0.0
        %5593 = vmatpush1.msra.mxu0 0.0
        %5594 = vmatprep.subr.mxu0 0.0
        %5595 = vmatpush1.msra.mxu0 0.0
        %5596 = vmatprep.subr.mxu0 0.0
        %5597 = vmatpush1.msra.mxu0 0.0
        %5598 = vmatprep.subr.mxu0 0.0
        %5599 = vmatpush1.msra.mxu0 0.0
        %5600 = vmatprep.subr.mxu0 0.0
        %5601 = vmatpush1.msra.mxu0 0.0
        %5602 = vmatprep.subr.mxu0 0.0
        %5603 = vmatpush1.msra.mxu0 0.0
        %5604 = vmatprep.subr.mxu0 0.0
        %5605 = vmatpush1.msra.mxu0 0.0
        %5606 = vmatprep.subr.mxu0 0.0
        %5607 = vmatpush1.msra.mxu0 0.0
        %5608 = vmatprep.subr.mxu0 0.0
        %5609 = vmatpush1.msra.mxu0 0.0
        %5610 = vmatprep.subr.mxu0 0.0
        %5611 = vmatpush1.msra.mxu0 0.0
        %5612 = vmatprep.subr.mxu0 0.0
        %5613 = vmatpush1.msra.mxu0 0.0
        %5614 = vmatprep.subr.mxu0 0.0
        %5615 = vmatpush1.msra.mxu0 0.0
        %5616 = vmatprep.subr.mxu0 0.0
        %5617 = vmatpush1.msra.mxu0 0.0
        %5618 = vmatprep.subr.mxu0 0.0
        %5619 = vmatpush1.msra.mxu0 0.0
        %5620 = vmatprep.mubr.f32.mxu0 0.0
        %v5621 = vand.u32 %v5548, 4294901760
        %v5622 = vsub.f32 %v5548, %v5621
        %v5623 = vand.u32 %v5622, 4294901760
        %v5624 = vsub.f32 %v5622, %v5623
        %v5625 = vand.u32 %v5624, 4294901760
        %5626 = vmatmul.mubr.f32.gmra.mrb[0].mxu0 %v5625
        %v5627 = vpop.f32.mrb[0].mxu0
        %v5628 = vadd.f32 0.0, %v5627
        %v5629 = vpop.f32.mrb[0].mxu0
        %5630 = vmatprep.mubr.f32.mxu0 0.0
        %v5631 = vand.u32 %v5550, 4294901760
        %v5632 = vsub.f32 %v5550, %v5631
        %v5633 = vand.u32 %v5632, 4294901760
        %v5634 = vsub.f32 %v5632, %v5633
        %v5635 = vand.u32 %v5634, 4294901760
        %5636 = vmatmul.mubr.f32.gmra.mrb[0].mxu0 %v5635
        %v5637 = vpop.f32.mrb[0].mxu0
        %v5638 = vadd.f32 0.0, %v5637
        %v5639 = vpop.f32.mrb[0].mxu0
        %5640 = vdwg.mxu0
        %5641 = vmatprep.subr.mxu0 0.0
        %v5642 = vand.u32 %v5544, 4294901760
        %v5643 = vsub.f32 %v5544, %v5642
        %v5644 = vand.u32 %v5643, 4294901760
        %v5645 = vsub.f32 %v5643, %v5644
        %v5646 = vand.u32 %v5645, 4294901760
        %5647 = vmatpush1.msra.mxu0 %v5646
        %5648 = vmatprep.subr.mxu0 0.0
        %v5649 = vand.u32 %v5552, 4294901760
        %v5650 = vsub.f32 %v5552, %v5649
        %v5651 = vand.u32 %v5650, 4294901760
        %v5652 = vsub.f32 %v5650, %v5651
        %v5653 = vand.u32 %v5652, 4294901760
        %5654 = vmatpush1.msra.mxu0 %v5653
        %5655 = vmatprep.subr.mxu0 0.0
        %5656 = vmatpush1.msra.mxu0 0.0
        %5657 = vmatprep.subr.mxu0 0.0
        %5658 = vmatpush1.msra.mxu0 0.0
        %5659 = vmatprep.subr.mxu0 0.0
        %5660 = vmatpush1.msra.mxu0 0.0
        %5661 = vmatprep.subr.mxu0 0.0
        %5662 = vmatpush1.msra.mxu0 0.0
        %5663 = vmatprep.subr.mxu0 0.0
        %5664 = vmatpush1.msra.mxu0 0.0
        %5665 = vmatprep.subr.mxu0 0.0
        %5666 = vmatpush1.msra.mxu0 0.0
        %5667 = vmatprep.subr.mxu0 0.0
        %5668 = vmatpush1.msra.mxu0 0.0
        %5669 = vmatprep.subr.mxu0 0.0
        %5670 = vmatpush1.msra.mxu0 0.0
        %5671 = vmatprep.subr.mxu0 0.0
        %5672 = vmatpush1.msra.mxu0 0.0
        %5673 = vmatprep.subr.mxu0 0.0
        %5674 = vmatpush1.msra.mxu0 0.0
        %5675 = vmatprep.subr.mxu0 0.0
        %5676 = vmatpush1.msra.mxu0 0.0
        %5677 = vmatprep.subr.mxu0 0.0
        %5678 = vmatpush1.msra.mxu0 0.0
        %5679 = vmatprep.subr.mxu0 0.0
        %5680 = vmatpush1.msra.mxu0 0.0
        %5681 = vmatprep.subr.mxu0 0.0
        %5682 = vmatpush1.msra.mxu0 0.0
        %5683 = vmatprep.subr.mxu0 0.0
        %5684 = vmatpush1.msra.mxu0 0.0
        %5685 = vmatprep.subr.mxu0 0.0
        %5686 = vmatpush1.msra.mxu0 0.0
        %5687 = vmatprep.subr.mxu0 0.0
        %5688 = vmatpush1.msra.mxu0 0.0
        %5689 = vmatprep.subr.mxu0 0.0
        %5690 = vmatpush1.msra.mxu0 0.0
        %5691 = vmatprep.subr.mxu0 0.0
        %5692 = vmatpush1.msra.mxu0 0.0
        %5693 = vmatprep.subr.mxu0 0.0
        %5694 = vmatpush1.msra.mxu0 0.0
        %5695 = vmatprep.subr.mxu0 0.0
        %5696 = vmatpush1.msra.mxu0 0.0
        %5697 = vmatprep.subr.mxu0 0.0
        %5698 = vmatpush1.msra.mxu0 0.0
        %5699 = vmatprep.subr.mxu0 0.0
        %5700 = vmatpush1.msra.mxu0 0.0
        %5701 = vmatprep.subr.mxu0 0.0
        %5702 = vmatpush1.msra.mxu0 0.0
        %5703 = vmatprep.subr.mxu0 0.0
        %5704 = vmatpush1.msra.mxu0 0.0
        %5705 = vmatprep.subr.mxu0 0.0
        %5706 = vmatpush1.msra.mxu0 0.0
        %5707 = vmatprep.subr.mxu0 0.0
        %5708 = vmatpush1.msra.mxu0 0.0
        %5709 = vmatprep.subr.mxu0 0.0
        %5710 = vmatpush1.msra.mxu0 0.0
        %5711 = vmatprep.subr.mxu0 0.0
        %5712 = vmatpush1.msra.mxu0 0.0
        %5713 = vmatprep.subr.mxu0 0.0
        %5714 = vmatpush1.msra.mxu0 0.0
        %5715 = vmatprep.mubr.f32.mxu0 0.0
        %v5716 = vand.u32 %v5548, 4294901760
        %5717 = vmatmul.mubr.f32.gmra.mrb[0].mxu0 %v5716
        %v5718 = vpop.f32.mrb[0].mxu0
        %v5719 = vadd.f32 %v5628, %v5718
        %v5720 = vpop.f32.mrb[0].mxu0
        %5721 = vmatprep.mubr.f32.mxu0 0.0
        %v5722 = vand.u32 %v5550, 4294901760
        %5723 = vmatmul.mubr.f32.gmra.mrb[0].mxu0 %v5722
        %v5724 = vpop.f32.mrb[0].mxu0
        %v5725 = vadd.f32 %v5638, %v5724
        %v5726 = vpop.f32.mrb[0].mxu0
        %5727 = vdwg.mxu0
        %5728 = vmatprep.subr.mxu0 0.0
        %v5729 = vand.u32 %v5544, 4294901760
        %v5730 = vsub.f32 %v5544, %v5729
        %5731 = vmatpush1.msra.mxu0 %v5730
        %5732 = vmatprep.subr.mxu0 0.0
        %v5733 = vand.u32 %v5552, 4294901760
        %v5734 = vsub.f32 %v5552, %v5733
        %5735 = vmatpush1.msra.mxu0 %v5734
        %5736 = vmatprep.subr.mxu0 0.0
        %5737 = vmatpush1.msra.mxu0 0.0
        %5738 = vmatprep.subr.mxu0 0.0
        %5739 = vmatpush1.msra.mxu0 0.0
        %5740 = vmatprep.subr.mxu0 0.0
        %5741 = vmatpush1.msra.mxu0 0.0
        %5742 = vmatprep.subr.mxu0 0.0
        %5743 = vmatpush1.msra.mxu0 0.0
        %5744 = vmatprep.subr.mxu0 0.0
        %5745 = vmatpush1.msra.mxu0 0.0
        %5746 = vmatprep.subr.mxu0 0.0
        %5747 = vmatpush1.msra.mxu0 0.0
        %5748 = vmatprep.subr.mxu0 0.0
        %5749 = vmatpush1.msra.mxu0 0.0
        %5750 = vmatprep.subr.mxu0 0.0
        %5751 = vmatpush1.msra.mxu0 0.0
        %5752 = vmatprep.subr.mxu0 0.0
        %5753 = vmatpush1.msra.mxu0 0.0
        %5754 = vmatprep.subr.mxu0 0.0
        %5755 = vmatpush1.msra.mxu0 0.0
        %5756 = vmatprep.subr.mxu0 0.0
        %5757 = vmatpush1.msra.mxu0 0.0
        %5758 = vmatprep.subr.mxu0 0.0
        %5759 = vmatpush1.msra.mxu0 0.0
        %5760 = vmatprep.subr.mxu0 0.0
        %5761 = vmatpush1.msra.mxu0 0.0
        %5762 = vmatprep.subr.mxu0 0.0
        %5763 = vmatpush1.msra.mxu0 0.0
        %5764 = vmatprep.subr.mxu0 0.0
        %5765 = vmatpush1.msra.mxu0 0.0
        %5766 = vmatprep.subr.mxu0 0.0
        %5767 = vmatpush1.msra.mxu0 0.0
        %5768 = vmatprep.subr.mxu0 0.0
        %5769 = vmatpush1.msra.mxu0 0.0
        %5770 = vmatprep.subr.mxu0 0.0
        %5771 = vmatpush1.msra.mxu0 0.0
        %5772 = vmatprep.subr.mxu0 0.0
        %5773 = vmatpush1.msra.mxu0 0.0
        %5774 = vmatprep.subr.mxu0 0.0
        %5775 = vmatpush1.msra.mxu0 0.0
        %5776 = vmatprep.subr.mxu0 0.0
        %5777 = vmatpush1.msra.mxu0 0.0
        %5778 = vmatprep.subr.mxu0 0.0
        %5779 = vmatpush1.msra.mxu0 0.0
        %5780 = vmatprep.subr.mxu0 0.0
        %5781 = vmatpush1.msra.mxu0 0.0
        %5782 = vmatprep.subr.mxu0 0.0
        %5783 = vmatpush1.msra.mxu0 0.0
        %5784 = vmatprep.subr.mxu0 0.0
        %5785 = vmatpush1.msra.mxu0 0.0
        %5786 = vmatprep.subr.mxu0 0.0
        %5787 = vmatpush1.msra.mxu0 0.0
        %5788 = vmatprep.subr.mxu0 0.0
        %5789 = vmatpush1.msra.mxu0 0.0
        %5790 = vmatprep.subr.mxu0 0.0
        %5791 = vmatpush1.msra.mxu0 0.0
        %5792 = vmatprep.subr.mxu0 0.0
        %5793 = vmatpush1.msra.mxu0 0.0
        %5794 = vmatprep.subr.mxu0 0.0
        %5795 = vmatpush1.msra.mxu0 0.0
        %5796 = vmatprep.mubr.f32.mxu0 0.0
        %v5797 = vand.u32 %v5548, 4294901760
        %v5798 = vsub.f32 %v5548, %v5797
        %5799 = vmatmul.mubr.f32.gmra.mrb[0].mxu0 %v5798
        %v5800 = vpop.f32.mrb[0].mxu0
        %v5801 = vadd.f32 %v5719, %v5800
        %v5802 = vpop.f32.mrb[0].mxu0
        %5803 = vmatprep.mubr.f32.mxu0 0.0
        %v5804 = vand.u32 %v5550, 4294901760
        %v5805 = vsub.f32 %v5550, %v5804
        %5806 = vmatmul.mubr.f32.gmra.mrb[0].mxu0 %v5805
        %v5807 = vpop.f32.mrb[0].mxu0
        %v5808 = vadd.f32 %v5725, %v5807
        %v5809 = vpop.f32.mrb[0].mxu0
        %5810 = vdwg.mxu0
        %5811 = vmatprep.subr.mxu0 0.0
        %v5812 = vand.u32 %v5544, 4294901760
        %5813 = vmatpush1.msra.mxu0 %v5812
        %5814 = vmatprep.subr.mxu0 0.0
        %v5815 = vand.u32 %v5552, 4294901760
        %5816 = vmatpush1.msra.mxu0 %v5815
        %5817 = vmatprep.subr.mxu0 0.0
        %5818 = vmatpush1.msra.mxu0 0.0
        %5819 = vmatprep.subr.mxu0 0.0
        %5820 = vmatpush1.msra.mxu0 0.0
        %5821 = vmatprep.subr.mxu0 0.0
        %5822 = vmatpush1.msra.mxu0 0.0
        %5823 = vmatprep.subr.mxu0 0.0
        %5824 = vmatpush1.msra.mxu0 0.0
        %5825 = vmatprep.subr.mxu0 0.0
        %5826 = vmatpush1.msra.mxu0 0.0
        %5827 = vmatprep.subr.mxu0 0.0
        %5828 = vmatpush1.msra.mxu0 0.0
        %5829 = vmatprep.subr.mxu0 0.0
        %5830 = vmatpush1.msra.mxu0 0.0
        %5831 = vmatprep.subr.mxu0 0.0
        %5832 = vmatpush1.msra.mxu0 0.0
        %5833 = vmatprep.subr.mxu0 0.0
        %5834 = vmatpush1.msra.mxu0 0.0
        %5835 = vmatprep.subr.mxu0 0.0
        %5836 = vmatpush1.msra.mxu0 0.0
        %5837 = vmatprep.subr.mxu0 0.0
        %5838 = vmatpush1.msra.mxu0 0.0
        %5839 = vmatprep.subr.mxu0 0.0
        %5840 = vmatpush1.msra.mxu0 0.0
        %5841 = vmatprep.subr.mxu0 0.0
        %5842 = vmatpush1.msra.mxu0 0.0
        %5843 = vmatprep.subr.mxu0 0.0
        %5844 = vmatpush1.msra.mxu0 0.0
        %5845 = vmatprep.subr.mxu0 0.0
        %5846 = vmatpush1.msra.mxu0 0.0
        %5847 = vmatprep.subr.mxu0 0.0
        %5848 = vmatpush1.msra.mxu0 0.0
        %5849 = vmatprep.subr.mxu0 0.0
        %5850 = vmatpush1.msra.mxu0 0.0
        %5851 = vmatprep.subr.mxu0 0.0
        %5852 = vmatpush1.msra.mxu0 0.0
        %5853 = vmatprep.subr.mxu0 0.0
        %5854 = vmatpush1.msra.mxu0 0.0
        %5855 = vmatprep.subr.mxu0 0.0
        %5856 = vmatpush1.msra.mxu0 0.0
        %5857 = vmatprep.subr.mxu0 0.0
        %5858 = vmatpush1.msra.mxu0 0.0
        %5859 = vmatprep.subr.mxu0 0.0
        %5860 = vmatpush1.msra.mxu0 0.0
        %5861 = vmatprep.subr.mxu0 0.0
        %5862 = vmatpush1.msra.mxu0 0.0
        %5863 = vmatprep.subr.mxu0 0.0
        %5864 = vmatpush1.msra.mxu0 0.0
        %5865 = vmatprep.subr.mxu0 0.0
        %5866 = vmatpush1.msra.mxu0 0.0
        %5867 = vmatprep.subr.mxu0 0.0
        %5868 = vmatpush1.msra.mxu0 0.0
        %5869 = vmatprep.subr.mxu0 0.0
        %5870 = vmatpush1.msra.mxu0 0.0
        %5871 = vmatprep.subr.mxu0 0.0
        %5872 = vmatpush1.msra.mxu0 0.0
        %5873 = vmatprep.subr.mxu0 0.0
        %5874 = vmatpush1.msra.mxu0 0.0
        %5875 = vmatprep.subr.mxu0 0.0
        %5876 = vmatpush1.msra.mxu0 0.0
        %5877 = vmatprep.mubr.f32.mxu0 0.0
        %v5878 = vand.u32 %v5548, 4294901760
        %v5879 = vsub.f32 %v5548, %v5878
        %v5880 = vand.u32 %v5879, 4294901760
        %5881 = vmatmul.mubr.f32.gmra.mrb[0].mxu0 %v5880
        %v5882 = vpop.f32.mrb[0].mxu0
        %v5883 = vadd.f32 %v5801, %v5882
        %v5884 = vpop.f32.mrb[0].mxu0
        %5885 = vmatprep.mubr.f32.mxu0 0.0
        %v5886 = vand.u32 %v5550, 4294901760
        %v5887 = vsub.f32 %v5550, %v5886
        %v5888 = vand.u32 %v5887, 4294901760
        %5889 = vmatmul.mubr.f32.gmra.mrb[0].mxu0 %v5888
        %v5890 = vpop.f32.mrb[0].mxu0
        %v5891 = vadd.f32 %v5808, %v5890
        %v5892 = vpop.f32.mrb[0].mxu0
        %5893 = vdwg.mxu0
        %5894 = vmatprep.subr.mxu0 0.0
        %v5895 = vand.u32 %v5544, 4294901760
        %v5896 = vsub.f32 %v5544, %v5895
        %v5897 = vand.u32 %v5896, 4294901760
        %5898 = vmatpush1.msra.mxu0 %v5897
        %5899 = vmatprep.subr.mxu0 0.0
        %v5900 = vand.u32 %v5552, 4294901760
        %v5901 = vsub.f32 %v5552, %v5900
        %v5902 = vand.u32 %v5901, 4294901760
        %5903 = vmatpush1.msra.mxu0 %v5902
        %5904 = vmatprep.subr.mxu0 0.0
        %5905 = vmatpush1.msra.mxu0 0.0
        %5906 = vmatprep.subr.mxu0 0.0
        %5907 = vmatpush1.msra.mxu0 0.0
        %5908 = vmatprep.subr.mxu0 0.0
        %5909 = vmatpush1.msra.mxu0 0.0
        %5910 = vmatprep.subr.mxu0 0.0
        %5911 = vmatpush1.msra.mxu0 0.0
        %5912 = vmatprep.subr.mxu0 0.0
        %5913 = vmatpush1.msra.mxu0 0.0
        %5914 = vmatprep.subr.mxu0 0.0
        %5915 = vmatpush1.msra.mxu0 0.0
        %5916 = vmatprep.subr.mxu0 0.0
        %5917 = vmatpush1.msra.mxu0 0.0
        %5918 = vmatprep.subr.mxu0 0.0
        %5919 = vmatpush1.msra.mxu0 0.0
        %5920 = vmatprep.subr.mxu0 0.0
        %5921 = vmatpush1.msra.mxu0 0.0
        %5922 = vmatprep.subr.mxu0 0.0
        %5923 = vmatpush1.msra.mxu0 0.0
        %5924 = vmatprep.subr.mxu0 0.0
        %5925 = vmatpush1.msra.mxu0 0.0
        %5926 = vmatprep.subr.mxu0 0.0
        %5927 = vmatpush1.msra.mxu0 0.0
        %5928 = vmatprep.subr.mxu0 0.0
        %5929 = vmatpush1.msra.mxu0 0.0
        %5930 = vmatprep.subr.mxu0 0.0
        %5931 = vmatpush1.msra.mxu0 0.0
        %5932 = vmatprep.subr.mxu0 0.0
        %5933 = vmatpush1.msra.mxu0 0.0
        %5934 = vmatprep.subr.mxu0 0.0
        %5935 = vmatpush1.msra.mxu0 0.0
        %5936 = vmatprep.subr.mxu0 0.0
        %5937 = vmatpush1.msra.mxu0 0.0
        %5938 = vmatprep.subr.mxu0 0.0
        %5939 = vmatpush1.msra.mxu0 0.0
        %5940 = vmatprep.subr.mxu0 0.0
        %5941 = vmatpush1.msra.mxu0 0.0
        %5942 = vmatprep.subr.mxu0 0.0
        %5943 = vmatpush1.msra.mxu0 0.0
        %5944 = vmatprep.subr.mxu0 0.0
        %5945 = vmatpush1.msra.mxu0 0.0
        %5946 = vmatprep.subr.mxu0 0.0
        %5947 = vmatpush1.msra.mxu0 0.0
        %5948 = vmatprep.subr.mxu0 0.0
        %5949 = vmatpush1.msra.mxu0 0.0
        %5950 = vmatprep.subr.mxu0 0.0
        %5951 = vmatpush1.msra.mxu0 0.0
        %5952 = vmatprep.subr.mxu0 0.0
        %5953 = vmatpush1.msra.mxu0 0.0
        %5954 = vmatprep.subr.mxu0 0.0
        %5955 = vmatpush1.msra.mxu0 0.0
        %5956 = vmatprep.subr.mxu0 0.0
        %5957 = vmatpush1.msra.mxu0 0.0
        %5958 = vmatprep.subr.mxu0 0.0
        %5959 = vmatpush1.msra.mxu0 0.0
        %5960 = vmatprep.subr.mxu0 0.0
        %5961 = vmatpush1.msra.mxu0 0.0
        %5962 = vmatprep.subr.mxu0 0.0
        %5963 = vmatpush1.msra.mxu0 0.0
        %5964 = vmatprep.mubr.f32.mxu0 0.0
        %v5965 = vand.u32 %v5548, 4294901760
        %5966 = vmatmul.mubr.f32.gmra.mrb[0].mxu0 %v5965
        %v5967 = vpop.f32.mrb[0].mxu0
        %v5968 = vadd.f32 %v5883, %v5967
        %v5969 = vpop.f32.mrb[0].mxu0
        %5970 = vmatprep.mubr.f32.mxu0 0.0
        %v5971 = vand.u32 %v5550, 4294901760
        %5972 = vmatmul.mubr.f32.gmra.mrb[0].mxu0 %v5971
        %v5973 = vpop.f32.mrb[0].mxu0
        %v5974 = vadd.f32 %v5891, %v5973
        %v5975 = vpop.f32.mrb[0].mxu0
        %5976 = vdwg.mxu0
        %5977 = vmatprep.subr.mxu0 0.0
        %v5978 = vand.u32 %v5544, 4294901760
        %5979 = vmatpush1.msra.mxu0 %v5978
        %5980 = vmatprep.subr.mxu0 0.0
        %v5981 = vand.u32 %v5552, 4294901760
        %5982 = vmatpush1.msra.mxu0 %v5981
        %5983 = vmatprep.subr.mxu0 0.0
        %5984 = vmatpush1.msra.mxu0 0.0
        %5985 = vmatprep.subr.mxu0 0.0
        %5986 = vmatpush1.msra.mxu0 0.0
        %5987 = vmatprep.subr.mxu0 0.0
        %5988 = vmatpush1.msra.mxu0 0.0
        %5989 = vmatprep.subr.mxu0 0.0
        %5990 = vmatpush1.msra.mxu0 0.0
        %5991 = vmatprep.subr.mxu0 0.0
        %5992 = vmatpush1.msra.mxu0 0.0
        %5993 = vmatprep.subr.mxu0 0.0
        %5994 = vmatpush1.msra.mxu0 0.0
        %5995 = vmatprep.subr.mxu0 0.0
        %5996 = vmatpush1.msra.mxu0 0.0
        %5997 = vmatprep.subr.mxu0 0.0
        %5998 = vmatpush1.msra.mxu0 0.0
        %5999 = vmatprep.subr.mxu0 0.0
        %6000 = vmatpush1.msra.mxu0 0.0
        %6001 = vmatprep.subr.mxu0 0.0
        %6002 = vmatpush1.msra.mxu0 0.0
        %6003 = vmatprep.subr.mxu0 0.0
        %6004 = vmatpush1.msra.mxu0 0.0
        %6005 = vmatprep.subr.mxu0 0.0
        %6006 = vmatpush1.msra.mxu0 0.0
        %6007 = vmatprep.subr.mxu0 0.0
        %6008 = vmatpush1.msra.mxu0 0.0
        %6009 = vmatprep.subr.mxu0 0.0
        %6010 = vmatpush1.msra.mxu0 0.0
        %6011 = vmatprep.subr.mxu0 0.0
        %6012 = vmatpush1.msra.mxu0 0.0
        %6013 = vmatprep.subr.mxu0 0.0
        %6014 = vmatpush1.msra.mxu0 0.0
        %6015 = vmatprep.subr.mxu0 0.0
        %6016 = vmatpush1.msra.mxu0 0.0
        %6017 = vmatprep.subr.mxu0 0.0
        %6018 = vmatpush1.msra.mxu0 0.0
        %6019 = vmatprep.subr.mxu0 0.0
        %6020 = vmatpush1.msra.mxu0 0.0
        %6021 = vmatprep.subr.mxu0 0.0
        %6022 = vmatpush1.msra.mxu0 0.0
        %6023 = vmatprep.subr.mxu0 0.0
        %6024 = vmatpush1.msra.mxu0 0.0
        %6025 = vmatprep.subr.mxu0 0.0
        %6026 = vmatpush1.msra.mxu0 0.0
        %6027 = vmatprep.subr.mxu0 0.0
        %6028 = vmatpush1.msra.mxu0 0.0
        %6029 = vmatprep.subr.mxu0 0.0
        %6030 = vmatpush1.msra.mxu0 0.0
        %6031 = vmatprep.subr.mxu0 0.0
        %6032 = vmatpush1.msra.mxu0 0.0
        %6033 = vmatprep.subr.mxu0 0.0
        %6034 = vmatpush1.msra.mxu0 0.0
        %6035 = vmatprep.subr.mxu0 0.0
        %6036 = vmatpush1.msra.mxu0 0.0
        %6037 = vmatprep.subr.mxu0 0.0
        %6038 = vmatpush1.msra.mxu0 0.0
        %6039 = vmatprep.subr.mxu0 0.0
        %6040 = vmatpush1.msra.mxu0 0.0
        %6041 = vmatprep.subr.mxu0 0.0
        %6042 = vmatpush1.msra.mxu0 0.0
        %6043 = vmatprep.mubr.f32.mxu0 0.0
        %v6044 = vand.u32 %v5548, 4294901760
        %6045 = vmatmul.mubr.f32.gmra.mrb[0].mxu0 %v6044
        %v6046 = vpop.f32.mrb[0].mxu0
        %v6047 = vadd.f32 %v5968, %v6046
        %v6048 = vpop.f32.mrb[0].mxu0
        %6049 = vmatprep.mubr.f32.mxu0 0.0
        %v6050 = vand.u32 %v5550, 4294901760
        %6051 = vmatmul.mubr.f32.gmra.mrb[0].mxu0 %v6050
        %v6052 = vpop.f32.mrb[0].mxu0
        %v6053 = vadd.f32 %v5974, %v6052
        %v6054 = vpop.f32.mrb[0].mxu0
        %6055 = vdwg.mxu0
        %6057 = vxpose.xlu0.b32.start [1/16] %v5544, 128
        %6058 = vxpose.xlu0.b32.cont [2/16] %v5546, 128
        %6059 = vxpose.xlu0.b32.cont [3/16] 0.0, 128
        %6060 = vxpose.xlu0.b32.cont [4/16] 0.0, 128
        %6061 = vxpose.xlu0.b32.cont [5/16] 0.0, 128
        %6062 = vxpose.xlu0.b32.cont [6/16] 0.0, 128
        %6063 = vxpose.xlu0.b32.cont [7/16] 0.0, 128
        %6064 = vxpose.xlu0.b32.cont [8/16] 0.0, 128
        %6065 = vxpose.xlu0.b32.cont [9/16] 0.0, 128
        %6066 = vxpose.xlu0.b32.cont [10/16] 0.0, 128
        %6067 = vxpose.xlu0.b32.cont [11/16] 0.0, 128
        %6068 = vxpose.xlu0.b32.cont [12/16] 0.0, 128
        %6069 = vxpose.xlu0.b32.cont [13/16] 0.0, 128
        %6070 = vxpose.xlu0.b32.cont [14/16] 0.0, 128
        %6071 = vxpose.xlu0.b32.cont [15/16] 0.0, 128
        %6072 = vxpose.xlu0.b32.end [16/16] 0.0, 128
        %v6073 = vpop.trf.xlu0
        %v6074 = vpop.trf.xlu0
        %v6075 = vpop.trf.xlu0
        %v6076 = vpop.trf.xlu0
        %v6077 = vpop.trf.xlu0
        %v6078 = vpop.trf.xlu0
        %v6079 = vpop.trf.xlu0
        %v6080 = vpop.trf.xlu0
        %v6081 = vpop.trf.xlu0
        %v6082 = vpop.trf.xlu0
        %v6083 = vpop.trf.xlu0
        %v6084 = vpop.trf.xlu0
        %v6085 = vpop.trf.xlu0
        %v6086 = vpop.trf.xlu0
        %v6087 = vpop.trf.xlu0
        %v6088 = vpop.trf.xlu0
        %6089 = vxpose.xlu0.b32.start [1/16] %v6047, 128
        %6090 = vxpose.xlu0.b32.cont [2/16] %v6053, 128
        %6091 = vxpose.xlu0.b32.cont [3/16] 0.0, 128
        %6092 = vxpose.xlu0.b32.cont [4/16] 0.0, 128
        %6093 = vxpose.xlu0.b32.cont [5/16] 0.0, 128
        %6094 = vxpose.xlu0.b32.cont [6/16] 0.0, 128
        %6095 = vxpose.xlu0.b32.cont [7/16] 0.0, 128
        %6096 = vxpose.xlu0.b32.cont [8/16] 0.0, 128
        %6097 = vxpose.xlu0.b32.cont [9/16] 0.0, 128
        %6098 = vxpose.xlu0.b32.cont [10/16] 0.0, 128
        %6099 = vxpose.xlu0.b32.cont [11/16] 0.0, 128
        %6100 = vxpose.xlu0.b32.cont [12/16] 0.0, 128
        %6101 = vxpose.xlu0.b32.cont [13/16] 0.0, 128
        %6102 = vxpose.xlu0.b32.cont [14/16] 0.0, 128
        %6103 = vxpose.xlu0.b32.cont [15/16] 0.0, 128
        %6104 = vxpose.xlu0.b32.end [16/16] 0.0, 128
        %v6105 = vpop.trf.xlu0
        %v6106 = vpop.trf.xlu0
        %v6107 = vpop.trf.xlu0
        %v6108 = vpop.trf.xlu0
        %v6109 = vpop.trf.xlu0
        %v6110 = vpop.trf.xlu0
        %v6111 = vpop.trf.xlu0
        %v6112 = vpop.trf.xlu0
        %v6113 = vpop.trf.xlu0
        %v6114 = vpop.trf.xlu0
        %v6115 = vpop.trf.xlu0
        %v6116 = vpop.trf.xlu0
        %v6117 = vpop.trf.xlu0
        %v6118 = vpop.trf.xlu0
        %v6119 = vpop.trf.xlu0
        %v6120 = vpop.trf.xlu0
        %6123 = vrot.lane.b32.xlu0 %v6073, 77
        %v6124 = vpop.permute.xlu0 %6123
        %6125 = vrot.lane.b32.xlu0 %v6074, 77
        %v6126 = vpop.permute.xlu0 %6125
        %v6129 = vmul.f32 %v771, %v6124
        %v6130 = vmul.f32 %v772, %v6126
        %6133 = vrot.lane.b32.xlu0 %v6129, 51
        %v6134 = vpop.permute.xlu0 %6133
        %6135 = vrot.lane.b32.xlu0 %v6130, 51
        %v6136 = vpop.permute.xlu0 %6135
        %v6139 = vsel %vm773, %v6134, 0.0
        %v6140 = vsel %vm1351, %v6136, 0.0
        %v6141 = vadd.f32 %v6139, %v6140
        %6142 = vadd.xlane.f32.xlu0 %v6141
        %v6143 = vpop.xlane.xlu0 %6142
        %v6144 = vrot.slane %v6143, 4
        %v6145 = vadd.f32 %v6143, %v6144
        %v6146 = vrot.slane %v6145, 2
        %v6147 = vadd.f32 %v6145, %v6146
        %v6148 = vrot.slane %v6147, 1
        %v6149 = vadd.f32 %v6147, %v6148
        %s6150 = vtos %v6149
        %s6151 = smul.f32 %s6150, 0.008264462
        %s6152 = sld [smem:[#allocation2 + $0x54]]
        %s6153 = smul.f32 %s6152, %s6151
        %s6154 = sadd.f32 %s5542, %s6153
        %s6155 = smul.f32 %s6151, %s6151
        %s6156 = sld [smem:[#allocation2 + $0x55]]
        %s6157 = smul.f32 %s6156, %s6155
        %s6158 = sadd.f32 %s6154, %s6157
        %s6159 = smul.f32 %s6155, %s6151
        %s6160 = sld [smem:[#allocation2 + $0x56]]
        %s6161 = smul.f32 %s6160, %s6159
        %s6162 = sadd.f32 %s6158, %s6161
        %s6163 = smul.f32 %s6159, %s6151
        %s6164 = sld [smem:[#allocation2 + $0x57]]
        %s6165 = smul.f32 %s6164, %s6163
        %s6166 = sadd.f32 %s6162, %s6165
        %v6167 = vmul.f32 %v6047, %v6073
        %v6168 = vmul.f32 %v6053, %v6074
        %v6169 = vsel %vm773, %v6167, 0.0
        %v6170 = vsel %vm1351, %v6168, 0.0
        %v6171 = vadd.f32 %v6169, %v6170
        %6172 = vadd.xlane.f32.xlu0 %v6171
        %v6173 = vpop.xlane.xlu0 %6172
        %v6174 = vrot.slane %v6173, 4
        %v6175 = vadd.f32 %v6173, %v6174
        %v6176 = vrot.slane %v6175, 2
        %v6177 = vadd.f32 %v6175, %v6176
        %v6178 = vrot.slane %v6177, 1
        %v6179 = vadd.f32 %v6177, %v6178
        %s6180 = vtos %v6179
        %s6181 = smul.f32 %s6180, 0.008264462
        %s6182 = sld [smem:[#allocation2 + $0x58]]
        %s6183 = smul.f32 %s6182, %s6181
        %s6184 = sadd.f32 %s6166, %s6183
        %s6185 = smul.f32 %s6181, %s6181
        %s6186 = sld [smem:[#allocation2 + $0x59]]
        %s6187 = smul.f32 %s6186, %s6185
        %s6188 = sadd.f32 %s6184, %s6187
        %s6189 = smul.f32 %s6185, %s6181
        %s6190 = sld [smem:[#allocation2 + $0x5a]]
        %s6191 = smul.f32 %s6190, %s6189
        %s6192 = sadd.f32 %s6188, %s6191
        %s6193 = smul.f32 %s6189, %s6181
        %s6194 = sld [smem:[#allocation2 + $0x5b]]
        %s6195 = smul.f32 %s6194, %s6193
        %s6196 = sadd.f32 %s6192, %s6195
        %v6197 = vmul.f32 %v6047, %v6105
        %v6198 = vmul.f32 %v6053, %v6106
        %v6199 = vsel %vm773, %v6197, 0.0
        %v6200 = vsel %vm1351, %v6198, 0.0
        %v6201 = vadd.f32 %v6199, %v6200
        %6202 = vadd.xlane.f32.xlu0 %v6201
        %v6203 = vpop.xlane.xlu0 %6202
        %v6204 = vrot.slane %v6203, 4
        %v6205 = vadd.f32 %v6203, %v6204
        %v6206 = vrot.slane %v6205, 2
        %v6207 = vadd.f32 %v6205, %v6206
        %v6208 = vrot.slane %v6207, 1
        %v6209 = vadd.f32 %v6207, %v6208
        %s6210 = vtos %v6209
        %s6211 = smul.f32 %s6210, 0.008264462
        %s6212 = sld [smem:[#allocation2 + $0x5c]]
        %s6213 = smul.f32 %s6212, %s6211
        %s6214 = sadd.f32 %s6196, %s6213
        %s6215 = smul.f32 %s6211, %s6211
        %s6216 = sld [smem:[#allocation2 + $0x5d]]
        %s6217 = smul.f32 %s6216, %s6215
        %s6218 = sadd.f32 %s6214, %s6217
        %s6219 = smul.f32 %s6215, %s6211
        %s6220 = sld [smem:[#allocation2 + $0x5e]]
        %s6221 = smul.f32 %s6220, %s6219
        %s6222 = sadd.f32 %s6218, %s6221
        %s6223 = smul.f32 %s6219, %s6211
        %s6224 = sld [smem:[#allocation2 + $0x5f]]
        %s6225 = smul.f32 %s6224, %s6223
        %s6226 = sadd.f32 %s6222, %s6225
        %6227 = vrot.lane.b32.xlu0 %v771, 40
        %v6228 = vpop.permute.xlu0 %6227
        %6229 = vrot.lane.b32.xlu0 %v772, 40
        %v6230 = vpop.permute.xlu0 %6229
        %v6232 = vsel %vm773, %v6228, 0
        %v6234 = vsel %vm773, %v6230, 0
        %v6236 = vsel %vm677, %v6230, 0
        %6238 = vmatprep.subr.mxu0 0.0
        %v6239 = vand.u32 %v6228, 4294901760
        %6240 = vmatpush1.msra.mxu0 %v6239
        %6241 = vmatprep.subr.mxu0 0.0
        %v6242 = vand.u32 %v6236, 4294901760
        %6243 = vmatpush1.msra.mxu0 %v6242
        %6244 = vmatprep.subr.mxu0 0.0
        %6245 = vmatpush1.msra.mxu0 0.0
        %6246 = vmatprep.subr.mxu0 0.0
        %6247 = vmatpush1.msra.mxu0 0.0
        %6248 = vmatprep.subr.mxu0 0.0
        %6249 = vmatpush1.msra.mxu0 0.0
        %6250 = vmatprep.subr.mxu0 0.0
        %6251 = vmatpush1.msra.mxu0 0.0
        %6252 = vmatprep.subr.mxu0 0.0
        %6253 = vmatpush1.msra.mxu0 0.0
        %6254 = vmatprep.subr.mxu0 0.0
        %6255 = vmatpush1.msra.mxu0 0.0
        %6256 = vmatprep.subr.mxu0 0.0
        %6257 = vmatpush1.msra.mxu0 0.0
        %6258 = vmatprep.subr.mxu0 0.0
        %6259 = vmatpush1.msra.mxu0 0.0
        %6260 = vmatprep.subr.mxu0 0.0
        %6261 = vmatpush1.msra.mxu0 0.0
        %6262 = vmatprep.subr.mxu0 0.0
        %6263 = vmatpush1.msra.mxu0 0.0
        %6264 = vmatprep.subr.mxu0 0.0
        %6265 = vmatpush1.msra.mxu0 0.0
        %6266 = vmatprep.subr.mxu0 0.0
        %6267 = vmatpush1.msra.mxu0 0.0
        %6268 = vmatprep.subr.mxu0 0.0
        %6269 = vmatpush1.msra.mxu0 0.0
        %6270 = vmatprep.subr.mxu0 0.0
        %6271 = vmatpush1.msra.mxu0 0.0
        %6272 = vmatprep.subr.mxu0 0.0
        %6273 = vmatpush1.msra.mxu0 0.0
        %6274 = vmatprep.subr.mxu0 0.0
        %6275 = vmatpush1.msra.mxu0 0.0
        %6276 = vmatprep.subr.mxu0 0.0
        %6277 = vmatpush1.msra.mxu0 0.0
        %6278 = vmatprep.subr.mxu0 0.0
        %6279 = vmatpush1.msra.mxu0 0.0
        %6280 = vmatprep.subr.mxu0 0.0
        %6281 = vmatpush1.msra.mxu0 0.0
        %6282 = vmatprep.subr.mxu0 0.0
        %6283 = vmatpush1.msra.mxu0 0.0
        %6284 = vmatprep.subr.mxu0 0.0
        %6285 = vmatpush1.msra.mxu0 0.0
        %6286 = vmatprep.subr.mxu0 0.0
        %6287 = vmatpush1.msra.mxu0 0.0
        %6288 = vmatprep.subr.mxu0 0.0
        %6289 = vmatpush1.msra.mxu0 0.0
        %6290 = vmatprep.subr.mxu0 0.0
        %6291 = vmatpush1.msra.mxu0 0.0
        %6292 = vmatprep.subr.mxu0 0.0
        %6293 = vmatpush1.msra.mxu0 0.0
        %6294 = vmatprep.subr.mxu0 0.0
        %6295 = vmatpush1.msra.mxu0 0.0
        %6296 = vmatprep.subr.mxu0 0.0
        %6297 = vmatpush1.msra.mxu0 0.0
        %6298 = vmatprep.subr.mxu0 0.0
        %6299 = vmatpush1.msra.mxu0 0.0
        %6300 = vmatprep.subr.mxu0 0.0
        %6301 = vmatpush1.msra.mxu0 0.0
        %6302 = vmatprep.subr.mxu0 0.0
        %6303 = vmatpush1.msra.mxu0 0.0
        %6304 = vmatprep.mubr.f32.mxu0 0.0
        %v6305 = vand.u32 %v6232, 4294901760
        %v6306 = vsub.f32 %v6232, %v6305
        %v6307 = vand.u32 %v6306, 4294901760
        %v6308 = vsub.f32 %v6306, %v6307
        %v6309 = vand.u32 %v6308, 4294901760
        %6310 = vmatmul.mubr.f32.gmra.mrb[0].mxu0 %v6309
        %v6311 = vpop.f32.mrb[0].mxu0
        %v6312 = vadd.f32 0.0, %v6311
        %v6313 = vpop.f32.mrb[0].mxu0
        %6314 = vmatprep.mubr.f32.mxu0 0.0
        %v6315 = vand.u32 %v6234, 4294901760
        %v6316 = vsub.f32 %v6234, %v6315
        %v6317 = vand.u32 %v6316, 4294901760
        %v6318 = vsub.f32 %v6316, %v6317
        %v6319 = vand.u32 %v6318, 4294901760
        %6320 = vmatmul.mubr.f32.gmra.mrb[0].mxu0 %v6319
        %v6321 = vpop.f32.mrb[0].mxu0
        %v6322 = vadd.f32 0.0, %v6321
        %v6323 = vpop.f32.mrb[0].mxu0
        %6324 = vdwg.mxu0
        %6325 = vmatprep.subr.mxu0 0.0
        %v6326 = vand.u32 %v6228, 4294901760
        %v6327 = vsub.f32 %v6228, %v6326
        %v6328 = vand.u32 %v6327, 4294901760
        %v6329 = vsub.f32 %v6327, %v6328
        %v6330 = vand.u32 %v6329, 4294901760
        %6331 = vmatpush1.msra.mxu0 %v6330
        %6332 = vmatprep.subr.mxu0 0.0
        %v6333 = vand.u32 %v6236, 4294901760
        %v6334 = vsub.f32 %v6236, %v6333
        %v6335 = vand.u32 %v6334, 4294901760
        %v6336 = vsub.f32 %v6334, %v6335
        %v6337 = vand.u32 %v6336, 4294901760
        %6338 = vmatpush1.msra.mxu0 %v6337
        %6339 = vmatprep.subr.mxu0 0.0
        %6340 = vmatpush1.msra.mxu0 0.0
        %6341 = vmatprep.subr.mxu0 0.0
        %6342 = vmatpush1.msra.mxu0 0.0
        %6343 = vmatprep.subr.mxu0 0.0
        %6344 = vmatpush1.msra.mxu0 0.0
        %6345 = vmatprep.subr.mxu0 0.0
        %6346 = vmatpush1.msra.mxu0 0.0
        %6347 = vmatprep.subr.mxu0 0.0
        %6348 = vmatpush1.msra.mxu0 0.0
        %6349 = vmatprep.subr.mxu0 0.0
        %6350 = vmatpush1.msra.mxu0 0.0
        %6351 = vmatprep.subr.mxu0 0.0
        %6352 = vmatpush1.msra.mxu0 0.0
        %6353 = vmatprep.subr.mxu0 0.0
        %6354 = vmatpush1.msra.mxu0 0.0
        %6355 = vmatprep.subr.mxu0 0.0
        %6356 = vmatpush1.msra.mxu0 0.0
        %6357 = vmatprep.subr.mxu0 0.0
        %6358 = vmatpush1.msra.mxu0 0.0
        %6359 = vmatprep.subr.mxu0 0.0
        %6360 = vmatpush1.msra.mxu0 0.0
        %6361 = vmatprep.subr.mxu0 0.0
        %6362 = vmatpush1.msra.mxu0 0.0
        %6363 = vmatprep.subr.mxu0 0.0
        %6364 = vmatpush1.msra.mxu0 0.0
        %6365 = vmatprep.subr.mxu0 0.0
        %6366 = vmatpush1.msra.mxu0 0.0
        %6367 = vmatprep.subr.mxu0 0.0
        %6368 = vmatpush1.msra.mxu0 0.0
        %6369 = vmatprep.subr.mxu0 0.0
        %6370 = vmatpush1.msra.mxu0 0.0
        %6371 = vmatprep.subr.mxu0 0.0
        %6372 = vmatpush1.msra.mxu0 0.0
        %6373 = vmatprep.subr.mxu0 0.0
        %6374 = vmatpush1.msra.mxu0 0.0
        %6375 = vmatprep.subr.mxu0 0.0
        %6376 = vmatpush1.msra.mxu0 0.0
        %6377 = vmatprep.subr.mxu0 0.0
        %6378 = vmatpush1.msra.mxu0 0.0
        %6379 = vmatprep.subr.mxu0 0.0
        %6380 = vmatpush1.msra.mxu0 0.0
        %6381 = vmatprep.subr.mxu0 0.0
        %6382 = vmatpush1.msra.mxu0 0.0
        %6383 = vmatprep.subr.mxu0 0.0
        %6384 = vmatpush1.msra.mxu0 0.0
        %6385 = vmatprep.subr.mxu0 0.0
        %6386 = vmatpush1.msra.mxu0 0.0
        %6387 = vmatprep.subr.mxu0 0.0
        %6388 = vmatpush1.msra.mxu0 0.0
        %6389 = vmatprep.subr.mxu0 0.0
        %6390 = vmatpush1.msra.mxu0 0.0
        %6391 = vmatprep.subr.mxu0 0.0
        %6392 = vmatpush1.msra.mxu0 0.0
        %6393 = vmatprep.subr.mxu0 0.0
        %6394 = vmatpush1.msra.mxu0 0.0
        %6395 = vmatprep.subr.mxu0 0.0
        %6396 = vmatpush1.msra.mxu0 0.0
        %6397 = vmatprep.subr.mxu0 0.0
        %6398 = vmatpush1.msra.mxu0 0.0
        %6399 = vmatprep.mubr.f32.mxu0 0.0
        %v6400 = vand.u32 %v6232, 4294901760
        %6401 = vmatmul.mubr.f32.gmra.mrb[0].mxu0 %v6400
        %v6402 = vpop.f32.mrb[0].mxu0
        %v6403 = vadd.f32 %v6312, %v6402
        %v6404 = vpop.f32.mrb[0].mxu0
        %6405 = vmatprep.mubr.f32.mxu0 0.0
        %v6406 = vand.u32 %v6234, 4294901760
        %6407 = vmatmul.mubr.f32.gmra.mrb[0].mxu0 %v6406
        %v6408 = vpop.f32.mrb[0].mxu0
        %v6409 = vadd.f32 %v6322, %v6408
        %v6410 = vpop.f32.mrb[0].mxu0
        %6411 = vdwg.mxu0
        %6412 = vmatprep.subr.mxu0 0.0
        %v6413 = vand.u32 %v6228, 4294901760
        %v6414 = vsub.f32 %v6228, %v6413
        %6415 = vmatpush1.msra.mxu0 %v6414
        %6416 = vmatprep.subr.mxu0 0.0
        %v6417 = vand.u32 %v6236, 4294901760
        %v6418 = vsub.f32 %v6236, %v6417
        %6419 = vmatpush1.msra.mxu0 %v6418
        %6420 = vmatprep.subr.mxu0 0.0
        %6421 = vmatpush1.msra.mxu0 0.0
        %6422 = vmatprep.subr.mxu0 0.0
        %6423 = vmatpush1.msra.mxu0 0.0
        %6424 = vmatprep.subr.mxu0 0.0
        %6425 = vmatpush1.msra.mxu0 0.0
        %6426 = vmatprep.subr.mxu0 0.0
        %6427 = vmatpush1.msra.mxu0 0.0
        %6428 = vmatprep.subr.mxu0 0.0
        %6429 = vmatpush1.msra.mxu0 0.0
        %6430 = vmatprep.subr.mxu0 0.0
        %6431 = vmatpush1.msra.mxu0 0.0
        %6432 = vmatprep.subr.mxu0 0.0
        %6433 = vmatpush1.msra.mxu0 0.0
        %6434 = vmatprep.subr.mxu0 0.0
        %6435 = vmatpush1.msra.mxu0 0.0
        %6436 = vmatprep.subr.mxu0 0.0
        %6437 = vmatpush1.msra.mxu0 0.0
        %6438 = vmatprep.subr.mxu0 0.0
        %6439 = vmatpush1.msra.mxu0 0.0
        %6440 = vmatprep.subr.mxu0 0.0
        %6441 = vmatpush1.msra.mxu0 0.0
        %6442 = vmatprep.subr.mxu0 0.0
        %6443 = vmatpush1.msra.mxu0 0.0
        %6444 = vmatprep.subr.mxu0 0.0
        %6445 = vmatpush1.msra.mxu0 0.0
        %6446 = vmatprep.subr.mxu0 0.0
        %6447 = vmatpush1.msra.mxu0 0.0
        %6448 = vmatprep.subr.mxu0 0.0
        %6449 = vmatpush1.msra.mxu0 0.0
        %6450 = vmatprep.subr.mxu0 0.0
        %6451 = vmatpush1.msra.mxu0 0.0
        %6452 = vmatprep.subr.mxu0 0.0
        %6453 = vmatpush1.msra.mxu0 0.0
        %6454 = vmatprep.subr.mxu0 0.0
        %6455 = vmatpush1.msra.mxu0 0.0
        %6456 = vmatprep.subr.mxu0 0.0
        %6457 = vmatpush1.msra.mxu0 0.0
        %6458 = vmatprep.subr.mxu0 0.0
        %6459 = vmatpush1.msra.mxu0 0.0
        %6460 = vmatprep.subr.mxu0 0.0
        %6461 = vmatpush1.msra.mxu0 0.0
        %6462 = vmatprep.subr.mxu0 0.0
        %6463 = vmatpush1.msra.mxu0 0.0
        %6464 = vmatprep.subr.mxu0 0.0
        %6465 = vmatpush1.msra.mxu0 0.0
        %6466 = vmatprep.subr.mxu0 0.0
        %6467 = vmatpush1.msra.mxu0 0.0
        %6468 = vmatprep.subr.mxu0 0.0
        %6469 = vmatpush1.msra.mxu0 0.0
        %6470 = vmatprep.subr.mxu0 0.0
        %6471 = vmatpush1.msra.mxu0 0.0
        %6472 = vmatprep.subr.mxu0 0.0
        %6473 = vmatpush1.msra.mxu0 0.0
        %6474 = vmatprep.subr.mxu0 0.0
        %6475 = vmatpush1.msra.mxu0 0.0
        %6476 = vmatprep.subr.mxu0 0.0
        %6477 = vmatpush1.msra.mxu0 0.0
        %6478 = vmatprep.subr.mxu0 0.0
        %6479 = vmatpush1.msra.mxu0 0.0
        %6480 = vmatprep.mubr.f32.mxu0 0.0
        %v6481 = vand.u32 %v6232, 4294901760
        %v6482 = vsub.f32 %v6232, %v6481
        %6483 = vmatmul.mubr.f32.gmra.mrb[0].mxu0 %v6482
        %v6484 = vpop.f32.mrb[0].mxu0
        %v6485 = vadd.f32 %v6403, %v6484
        %v6486 = vpop.f32.mrb[0].mxu0
        %6487 = vmatprep.mubr.f32.mxu0 0.0
        %v6488 = vand.u32 %v6234, 4294901760
        %v6489 = vsub.f32 %v6234, %v6488
        %6490 = vmatmul.mubr.f32.gmra.mrb[0].mxu0 %v6489
        %v6491 = vpop.f32.mrb[0].mxu0
        %v6492 = vadd.f32 %v6409, %v6491
        %v6493 = vpop.f32.mrb[0].mxu0
        %6494 = vdwg.mxu0
        %6495 = vmatprep.subr.mxu0 0.0
        %v6496 = vand.u32 %v6228, 4294901760
        %6497 = vmatpush1.msra.mxu0 %v6496
        %6498 = vmatprep.subr.mxu0 0.0
        %v6499 = vand.u32 %v6236, 4294901760
        %6500 = vmatpush1.msra.mxu0 %v6499
        %6501 = vmatprep.subr.mxu0 0.0
        %6502 = vmatpush1.msra.mxu0 0.0
        %6503 = vmatprep.subr.mxu0 0.0
        %6504 = vmatpush1.msra.mxu0 0.0
        %6505 = vmatprep.subr.mxu0 0.0
        %6506 = vmatpush1.msra.mxu0 0.0
        %6507 = vmatprep.subr.mxu0 0.0
        %6508 = vmatpush1.msra.mxu0 0.0
        %6509 = vmatprep.subr.mxu0 0.0
        %6510 = vmatpush1.msra.mxu0 0.0
        %6511 = vmatprep.subr.mxu0 0.0
        %6512 = vmatpush1.msra.mxu0 0.0
        %6513 = vmatprep.subr.mxu0 0.0
        %6514 = vmatpush1.msra.mxu0 0.0
        %6515 = vmatprep.subr.mxu0 0.0
        %6516 = vmatpush1.msra.mxu0 0.0
        %6517 = vmatprep.subr.mxu0 0.0
        %6518 = vmatpush1.msra.mxu0 0.0
        %6519 = vmatprep.subr.mxu0 0.0
        %6520 = vmatpush1.msra.mxu0 0.0
        %6521 = vmatprep.subr.mxu0 0.0
        %6522 = vmatpush1.msra.mxu0 0.0
        %6523 = vmatprep.subr.mxu0 0.0
        %6524 = vmatpush1.msra.mxu0 0.0
        %6525 = vmatprep.subr.mxu0 0.0
        %6526 = vmatpush1.msra.mxu0 0.0
        %6527 = vmatprep.subr.mxu0 0.0
        %6528 = vmatpush1.msra.mxu0 0.0
        %6529 = vmatprep.subr.mxu0 0.0
        %6530 = vmatpush1.msra.mxu0 0.0
        %6531 = vmatprep.subr.mxu0 0.0
        %6532 = vmatpush1.msra.mxu0 0.0
        %6533 = vmatprep.subr.mxu0 0.0
        %6534 = vmatpush1.msra.mxu0 0.0
        %6535 = vmatprep.subr.mxu0 0.0
        %6536 = vmatpush1.msra.mxu0 0.0
        %6537 = vmatprep.subr.mxu0 0.0
        %6538 = vmatpush1.msra.mxu0 0.0
        %6539 = vmatprep.subr.mxu0 0.0
        %6540 = vmatpush1.msra.mxu0 0.0
        %6541 = vmatprep.subr.mxu0 0.0
        %6542 = vmatpush1.msra.mxu0 0.0
        %6543 = vmatprep.subr.mxu0 0.0
        %6544 = vmatpush1.msra.mxu0 0.0
        %6545 = vmatprep.subr.mxu0 0.0
        %6546 = vmatpush1.msra.mxu0 0.0
        %6547 = vmatprep.subr.mxu0 0.0
        %6548 = vmatpush1.msra.mxu0 0.0
        %6549 = vmatprep.subr.mxu0 0.0
        %6550 = vmatpush1.msra.mxu0 0.0
        %6551 = vmatprep.subr.mxu0 0.0
        %6552 = vmatpush1.msra.mxu0 0.0
        %6553 = vmatprep.subr.mxu0 0.0
        %6554 = vmatpush1.msra.mxu0 0.0
        %6555 = vmatprep.subr.mxu0 0.0
        %6556 = vmatpush1.msra.mxu0 0.0
        %6557 = vmatprep.subr.mxu0 0.0
        %6558 = vmatpush1.msra.mxu0 0.0
        %6559 = vmatprep.subr.mxu0 0.0
        %6560 = vmatpush1.msra.mxu0 0.0
        %6561 = vmatprep.mubr.f32.mxu0 0.0
        %v6562 = vand.u32 %v6232, 4294901760
        %v6563 = vsub.f32 %v6232, %v6562
        %v6564 = vand.u32 %v6563, 4294901760
        %6565 = vmatmul.mubr.f32.gmra.mrb[0].mxu0 %v6564
        %v6566 = vpop.f32.mrb[0].mxu0
        %v6567 = vadd.f32 %v6485, %v6566
        %v6568 = vpop.f32.mrb[0].mxu0
        %6569 = vmatprep.mubr.f32.mxu0 0.0
        %v6570 = vand.u32 %v6234, 4294901760
        %v6571 = vsub.f32 %v6234, %v6570
        %v6572 = vand.u32 %v6571, 4294901760
        %6573 = vmatmul.mubr.f32.gmra.mrb[0].mxu0 %v6572
        %v6574 = vpop.f32.mrb[0].mxu0
        %v6575 = vadd.f32 %v6492, %v6574
        %v6576 = vpop.f32.mrb[0].mxu0
        %6577 = vdwg.mxu0
        %6578 = vmatprep.subr.mxu0 0.0
        %v6579 = vand.u32 %v6228, 4294901760
        %v6580 = vsub.f32 %v6228, %v6579
        %v6581 = vand.u32 %v6580, 4294901760
        %6582 = vmatpush1.msra.mxu0 %v6581
        %6583 = vmatprep.subr.mxu0 0.0
        %v6584 = vand.u32 %v6236, 4294901760
        %v6585 = vsub.f32 %v6236, %v6584
        %v6586 = vand.u32 %v6585, 4294901760
        %6587 = vmatpush1.msra.mxu0 %v6586
        %6588 = vmatprep.subr.mxu0 0.0
        %6589 = vmatpush1.msra.mxu0 0.0
        %6590 = vmatprep.subr.mxu0 0.0
        %6591 = vmatpush1.msra.mxu0 0.0
        %6592 = vmatprep.subr.mxu0 0.0
        %6593 = vmatpush1.msra.mxu0 0.0
        %6594 = vmatprep.subr.mxu0 0.0
        %6595 = vmatpush1.msra.mxu0 0.0
        %6596 = vmatprep.subr.mxu0 0.0
        %6597 = vmatpush1.msra.mxu0 0.0
        %6598 = vmatprep.subr.mxu0 0.0
        %6599 = vmatpush1.msra.mxu0 0.0
        %6600 = vmatprep.subr.mxu0 0.0
        %6601 = vmatpush1.msra.mxu0 0.0
        %6602 = vmatprep.subr.mxu0 0.0
        %6603 = vmatpush1.msra.mxu0 0.0
        %6604 = vmatprep.subr.mxu0 0.0
        %6605 = vmatpush1.msra.mxu0 0.0
        %6606 = vmatprep.subr.mxu0 0.0
        %6607 = vmatpush1.msra.mxu0 0.0
        %6608 = vmatprep.subr.mxu0 0.0
        %6609 = vmatpush1.msra.mxu0 0.0
        %6610 = vmatprep.subr.mxu0 0.0
        %6611 = vmatpush1.msra.mxu0 0.0
        %6612 = vmatprep.subr.mxu0 0.0
        %6613 = vmatpush1.msra.mxu0 0.0
        %6614 = vmatprep.subr.mxu0 0.0
        %6615 = vmatpush1.msra.mxu0 0.0
        %6616 = vmatprep.subr.mxu0 0.0
        %6617 = vmatpush1.msra.mxu0 0.0
        %6618 = vmatprep.subr.mxu0 0.0
        %6619 = vmatpush1.msra.mxu0 0.0
        %6620 = vmatprep.subr.mxu0 0.0
        %6621 = vmatpush1.msra.mxu0 0.0
        %6622 = vmatprep.subr.mxu0 0.0
        %6623 = vmatpush1.msra.mxu0 0.0
        %6624 = vmatprep.subr.mxu0 0.0
        %6625 = vmatpush1.msra.mxu0 0.0
        %6626 = vmatprep.subr.mxu0 0.0
        %6627 = vmatpush1.msra.mxu0 0.0
        %6628 = vmatprep.subr.mxu0 0.0
        %6629 = vmatpush1.msra.mxu0 0.0
        %6630 = vmatprep.subr.mxu0 0.0
        %6631 = vmatpush1.msra.mxu0 0.0
        %6632 = vmatprep.subr.mxu0 0.0
        %6633 = vmatpush1.msra.mxu0 0.0
        %6634 = vmatprep.subr.mxu0 0.0
        %6635 = vmatpush1.msra.mxu0 0.0
        %6636 = vmatprep.subr.mxu0 0.0
        %6637 = vmatpush1.msra.mxu0 0.0
        %6638 = vmatprep.subr.mxu0 0.0
        %6639 = vmatpush1.msra.mxu0 0.0
        %6640 = vmatprep.subr.mxu0 0.0
        %6641 = vmatpush1.msra.mxu0 0.0
        %6642 = vmatprep.subr.mxu0 0.0
        %6643 = vmatpush1.msra.mxu0 0.0
        %6644 = vmatprep.subr.mxu0 0.0
        %6645 = vmatpush1.msra.mxu0 0.0
        %6646 = vmatprep.subr.mxu0 0.0
        %6647 = vmatpush1.msra.mxu0 0.0
        %6648 = vmatprep.mubr.f32.mxu0 0.0
        %v6649 = vand.u32 %v6232, 4294901760
        %6650 = vmatmul.mubr.f32.gmra.mrb[0].mxu0 %v6649
        %v6651 = vpop.f32.mrb[0].mxu0
        %v6652 = vadd.f32 %v6567, %v6651
        %v6653 = vpop.f32.mrb[0].mxu0
        %6654 = vmatprep.mubr.f32.mxu0 0.0
        %v6655 = vand.u32 %v6234, 4294901760
        %6656 = vmatmul.mubr.f32.gmra.mrb[0].mxu0 %v6655
        %v6657 = vpop.f32.mrb[0].mxu0
        %v6658 = vadd.f32 %v6575, %v6657
        %v6659 = vpop.f32.mrb[0].mxu0
        %6660 = vdwg.mxu0
        %6661 = vmatprep.subr.mxu0 0.0
        %v6662 = vand.u32 %v6228, 4294901760
        %6663 = vmatpush1.msra.mxu0 %v6662
        %6664 = vmatprep.subr.mxu0 0.0
        %v6665 = vand.u32 %v6236, 4294901760
        %6666 = vmatpush1.msra.mxu0 %v6665
        %6667 = vmatprep.subr.mxu0 0.0
        %6668 = vmatpush1.msra.mxu0 0.0
        %6669 = vmatprep.subr.mxu0 0.0
        %6670 = vmatpush1.msra.mxu0 0.0
        %6671 = vmatprep.subr.mxu0 0.0
        %6672 = vmatpush1.msra.mxu0 0.0
        %6673 = vmatprep.subr.mxu0 0.0
        %6674 = vmatpush1.msra.mxu0 0.0
        %6675 = vmatprep.subr.mxu0 0.0
        %6676 = vmatpush1.msra.mxu0 0.0
        %6677 = vmatprep.subr.mxu0 0.0
        %6678 = vmatpush1.msra.mxu0 0.0
        %6679 = vmatprep.subr.mxu0 0.0
        %6680 = vmatpush1.msra.mxu0 0.0
        %6681 = vmatprep.subr.mxu0 0.0
        %6682 = vmatpush1.msra.mxu0 0.0
        %6683 = vmatprep.subr.mxu0 0.0
        %6684 = vmatpush1.msra.mxu0 0.0
        %6685 = vmatprep.subr.mxu0 0.0
        %6686 = vmatpush1.msra.mxu0 0.0
        %6687 = vmatprep.subr.mxu0 0.0
        %6688 = vmatpush1.msra.mxu0 0.0
        %6689 = vmatprep.subr.mxu0 0.0
        %6690 = vmatpush1.msra.mxu0 0.0
        %6691 = vmatprep.subr.mxu0 0.0
        %6692 = vmatpush1.msra.mxu0 0.0
        %6693 = vmatprep.subr.mxu0 0.0
        %6694 = vmatpush1.msra.mxu0 0.0
        %6695 = vmatprep.subr.mxu0 0.0
        %6696 = vmatpush1.msra.mxu0 0.0
        %6697 = vmatprep.subr.mxu0 0.0
        %6698 = vmatpush1.msra.mxu0 0.0
        %6699 = vmatprep.subr.mxu0 0.0
        %6700 = vmatpush1.msra.mxu0 0.0
        %6701 = vmatprep.subr.mxu0 0.0
        %6702 = vmatpush1.msra.mxu0 0.0
        %6703 = vmatprep.subr.mxu0 0.0
        %6704 = vmatpush1.msra.mxu0 0.0
        %6705 = vmatprep.subr.mxu0 0.0
        %6706 = vmatpush1.msra.mxu0 0.0
        %6707 = vmatprep.subr.mxu0 0.0
        %6708 = vmatpush1.msra.mxu0 0.0
        %6709 = vmatprep.subr.mxu0 0.0
        %6710 = vmatpush1.msra.mxu0 0.0
        %6711 = vmatprep.subr.mxu0 0.0
        %6712 = vmatpush1.msra.mxu0 0.0
        %6713 = vmatprep.subr.mxu0 0.0
        %6714 = vmatpush1.msra.mxu0 0.0
        %6715 = vmatprep.subr.mxu0 0.0
        %6716 = vmatpush1.msra.mxu0 0.0
        %6717 = vmatprep.subr.mxu0 0.0
        %6718 = vmatpush1.msra.mxu0 0.0
        %6719 = vmatprep.subr.mxu0 0.0
        %6720 = vmatpush1.msra.mxu0 0.0
        %6721 = vmatprep.subr.mxu0 0.0
        %6722 = vmatpush1.msra.mxu0 0.0
        %6723 = vmatprep.subr.mxu0 0.0
        %6724 = vmatpush1.msra.mxu0 0.0
        %6725 = vmatprep.subr.mxu0 0.0
        %6726 = vmatpush1.msra.mxu0 0.0
        %6727 = vmatprep.mubr.f32.mxu0 0.0
        %v6728 = vand.u32 %v6232, 4294901760
        %6729 = vmatmul.mubr.f32.gmra.mrb[0].mxu0 %v6728
        %v6730 = vpop.f32.mrb[0].mxu0
        %v6731 = vadd.f32 %v6652, %v6730
        %v6732 = vpop.f32.mrb[0].mxu0
        %6733 = vmatprep.mubr.f32.mxu0 0.0
        %v6734 = vand.u32 %v6234, 4294901760
        %6735 = vmatmul.mubr.f32.gmra.mrb[0].mxu0 %v6734
        %v6736 = vpop.f32.mrb[0].mxu0
        %v6737 = vadd.f32 %v6658, %v6736
        %v6738 = vpop.f32.mrb[0].mxu0
        %6739 = vdwg.mxu0
        %6741 = vxpose.xlu0.b32.start [1/16] %v6228, 128
        %6742 = vxpose.xlu0.b32.cont [2/16] %v6230, 128
        %6743 = vxpose.xlu0.b32.cont [3/16] 0.0, 128
        %6744 = vxpose.xlu0.b32.cont [4/16] 0.0, 128
        %6745 = vxpose.xlu0.b32.cont [5/16] 0.0, 128
        %6746 = vxpose.xlu0.b32.cont [6/16] 0.0, 128
        %6747 = vxpose.xlu0.b32.cont [7/16] 0.0, 128
        %6748 = vxpose.xlu0.b32.cont [8/16] 0.0, 128
        %6749 = vxpose.xlu0.b32.cont [9/16] 0.0, 128
        %6750 = vxpose.xlu0.b32.cont [10/16] 0.0, 128
        %6751 = vxpose.xlu0.b32.cont [11/16] 0.0, 128
        %6752 = vxpose.xlu0.b32.cont [12/16] 0.0, 128
        %6753 = vxpose.xlu0.b32.cont [13/16] 0.0, 128
        %6754 = vxpose.xlu0.b32.cont [14/16] 0.0, 128
        %6755 = vxpose.xlu0.b32.cont [15/16] 0.0, 128
        %6756 = vxpose.xlu0.b32.end [16/16] 0.0, 128
        %v6757 = vpop.trf.xlu0
        %v6758 = vpop.trf.xlu0
        %v6759 = vpop.trf.xlu0
        %v6760 = vpop.trf.xlu0
        %v6761 = vpop.trf.xlu0
        %v6762 = vpop.trf.xlu0
        %v6763 = vpop.trf.xlu0
        %v6764 = vpop.trf.xlu0
        %v6765 = vpop.trf.xlu0
        %v6766 = vpop.trf.xlu0
        %v6767 = vpop.trf.xlu0
        %v6768 = vpop.trf.xlu0
        %v6769 = vpop.trf.xlu0
        %v6770 = vpop.trf.xlu0
        %v6771 = vpop.trf.xlu0
        %v6772 = vpop.trf.xlu0
        %6773 = vxpose.xlu0.b32.start [1/16] %v6731, 128
        %6774 = vxpose.xlu0.b32.cont [2/16] %v6737, 128
        %6775 = vxpose.xlu0.b32.cont [3/16] 0.0, 128
        %6776 = vxpose.xlu0.b32.cont [4/16] 0.0, 128
        %6777 = vxpose.xlu0.b32.cont [5/16] 0.0, 128
        %6778 = vxpose.xlu0.b32.cont [6/16] 0.0, 128
        %6779 = vxpose.xlu0.b32.cont [7/16] 0.0, 128
        %6780 = vxpose.xlu0.b32.cont [8/16] 0.0, 128
        %6781 = vxpose.xlu0.b32.cont [9/16] 0.0, 128
        %6782 = vxpose.xlu0.b32.cont [10/16] 0.0, 128
        %6783 = vxpose.xlu0.b32.cont [11/16] 0.0, 128
        %6784 = vxpose.xlu0.b32.cont [12/16] 0.0, 128
        %6785 = vxpose.xlu0.b32.cont [13/16] 0.0, 128
        %6786 = vxpose.xlu0.b32.cont [14/16] 0.0, 128
        %6787 = vxpose.xlu0.b32.cont [15/16] 0.0, 128
        %6788 = vxpose.xlu0.b32.end [16/16] 0.0, 128
        %v6789 = vpop.trf.xlu0
        %v6790 = vpop.trf.xlu0
        %v6791 = vpop.trf.xlu0
        %v6792 = vpop.trf.xlu0
        %v6793 = vpop.trf.xlu0
        %v6794 = vpop.trf.xlu0
        %v6795 = vpop.trf.xlu0
        %v6796 = vpop.trf.xlu0
        %v6797 = vpop.trf.xlu0
        %v6798 = vpop.trf.xlu0
        %v6799 = vpop.trf.xlu0
        %v6800 = vpop.trf.xlu0
        %v6801 = vpop.trf.xlu0
        %v6802 = vpop.trf.xlu0
        %v6803 = vpop.trf.xlu0
        %v6804 = vpop.trf.xlu0
        %6807 = vrot.lane.b32.xlu0 %v6757, 88
        %v6808 = vpop.permute.xlu0 %6807
        %6809 = vrot.lane.b32.xlu0 %v6758, 88
        %v6810 = vpop.permute.xlu0 %6809
        %v6813 = vmul.f32 %v771, %v6808
        %v6814 = vmul.f32 %v772, %v6810
        %6817 = vrot.lane.b32.xlu0 %v6813, 40
        %v6818 = vpop.permute.xlu0 %6817
        %6819 = vrot.lane.b32.xlu0 %v6814, 40
        %v6820 = vpop.permute.xlu0 %6819
        %v6823 = vsel %vm773, %v6818, 0.0
        %v6824 = vsel %vm1351, %v6820, 0.0
        %v6825 = vadd.f32 %v6823, %v6824
        %6826 = vadd.xlane.f32.xlu0 %v6825
        %v6827 = vpop.xlane.xlu0 %6826
        %v6828 = vrot.slane %v6827, 4
        %v6829 = vadd.f32 %v6827, %v6828
        %v6830 = vrot.slane %v6829, 2
        %v6831 = vadd.f32 %v6829, %v6830
        %v6832 = vrot.slane %v6831, 1
        %v6833 = vadd.f32 %v6831, %v6832
        %s6834 = vtos %v6833
        %s6835 = smul.f32 %s6834, 0.008264462
        %s6836 = sld [smem:[#allocation2 + $0x60]]
        %s6837 = smul.f32 %s6836, %s6835
        %s6838 = sadd.f32 %s6226, %s6837
        %s6839 = smul.f32 %s6835, %s6835
        %s6840 = sld [smem:[#allocation2 + $0x61]]
        %s6841 = smul.f32 %s6840, %s6839
        %s6842 = sadd.f32 %s6838, %s6841
        %s6843 = smul.f32 %s6839, %s6835
        %s6844 = sld [smem:[#allocation2 + $0x62]]
        %s6845 = smul.f32 %s6844, %s6843
        %s6846 = sadd.f32 %s6842, %s6845
        %s6847 = smul.f32 %s6843, %s6835
        %s6848 = sld [smem:[#allocation2 + $0x63]]
        %s6849 = smul.f32 %s6848, %s6847
        %s6850 = sadd.f32 %s6846, %s6849
        %v6851 = vmul.f32 %v6731, %v6757
        %v6852 = vmul.f32 %v6737, %v6758
        %v6853 = vsel %vm773, %v6851, 0.0
        %v6854 = vsel %vm1351, %v6852, 0.0
        %v6855 = vadd.f32 %v6853, %v6854
        %6856 = vadd.xlane.f32.xlu0 %v6855
        %v6857 = vpop.xlane.xlu0 %6856
        %v6858 = vrot.slane %v6857, 4
        %v6859 = vadd.f32 %v6857, %v6858
        %v6860 = vrot.slane %v6859, 2
        %v6861 = vadd.f32 %v6859, %v6860
        %v6862 = vrot.slane %v6861, 1
        %v6863 = vadd.f32 %v6861, %v6862
        %s6864 = vtos %v6863
        %s6865 = smul.f32 %s6864, 0.008264462
        %s6866 = sld [smem:[#allocation2 + $0x64]]
        %s6867 = smul.f32 %s6866, %s6865
        %s6868 = sadd.f32 %s6850, %s6867
        %s6869 = smul.f32 %s6865, %s6865
        %s6870 = sld [smem:[#allocation2 + $0x65]]
        %s6871 = smul.f32 %s6870, %s6869
        %s6872 = sadd.f32 %s6868, %s6871
        %s6873 = smul.f32 %s6869, %s6865
        %s6874 = sld [smem:[#allocation2 + $0x66]]
        %s6875 = smul.f32 %s6874, %s6873
        %s6876 = sadd.f32 %s6872, %s6875
        %s6877 = smul.f32 %s6873, %s6865
        %s6878 = sld [smem:[#allocation2 + $0x67]]
        %s6879 = smul.f32 %s6878, %s6877
        %s6880 = sadd.f32 %s6876, %s6879
        %v6881 = vmul.f32 %v6731, %v6789
        %v6882 = vmul.f32 %v6737, %v6790
        %v6883 = vsel %vm773, %v6881, 0.0
        %v6884 = vsel %vm1351, %v6882, 0.0
        %v6885 = vadd.f32 %v6883, %v6884
        %6886 = vadd.xlane.f32.xlu0 %v6885
        %v6887 = vpop.xlane.xlu0 %6886
        %v6888 = vrot.slane %v6887, 4
        %v6889 = vadd.f32 %v6887, %v6888
        %v6890 = vrot.slane %v6889, 2
        %v6891 = vadd.f32 %v6889, %v6890
        %v6892 = vrot.slane %v6891, 1
        %v6893 = vadd.f32 %v6891, %v6892
        %s6894 = vtos %v6893
        %s6895 = smul.f32 %s6894, 0.008264462
        %s6896 = sld [smem:[#allocation2 + $0x68]]
        %s6897 = smul.f32 %s6896, %s6895
        %s6898 = sadd.f32 %s6880, %s6897
        %s6899 = smul.f32 %s6895, %s6895
        %s6900 = sld [smem:[#allocation2 + $0x69]]
        %s6901 = smul.f32 %s6900, %s6899
        %s6902 = sadd.f32 %s6898, %s6901
        %s6903 = smul.f32 %s6899, %s6895
        %s6904 = sld [smem:[#allocation2 + $0x6a]]
        %s6905 = smul.f32 %s6904, %s6903
        %s6906 = sadd.f32 %s6902, %s6905
        %s6907 = smul.f32 %s6903, %s6895
        %s6908 = sld [smem:[#allocation2 + $0x6b]]
        %s6909 = smul.f32 %s6908, %s6907
        %s6910 = sadd.f32 %s6906, %s6909
        %6911 = vrot.lane.b32.xlu0 %v771, 29
        %v6912 = vpop.permute.xlu0 %6911
        %6913 = vrot.lane.b32.xlu0 %v772, 29
        %v6914 = vpop.permute.xlu0 %6913
        %v6916 = vsel %vm773, %v6912, 0
        %v6918 = vsel %vm773, %v6914, 0
        %v6920 = vsel %vm677, %v6914, 0
        %6922 = vmatprep.subr.mxu0 0.0
        %v6923 = vand.u32 %v6912, 4294901760
        %6924 = vmatpush1.msra.mxu0 %v6923
        %6925 = vmatprep.subr.mxu0 0.0
        %v6926 = vand.u32 %v6920, 4294901760
        %6927 = vmatpush1.msra.mxu0 %v6926
        %6928 = vmatprep.subr.mxu0 0.0
        %6929 = vmatpush1.msra.mxu0 0.0
        %6930 = vmatprep.subr.mxu0 0.0
        %6931 = vmatpush1.msra.mxu0 0.0
        %6932 = vmatprep.subr.mxu0 0.0
        %6933 = vmatpush1.msra.mxu0 0.0
        %6934 = vmatprep.subr.mxu0 0.0
        %6935 = vmatpush1.msra.mxu0 0.0
        %6936 = vmatprep.subr.mxu0 0.0
        %6937 = vmatpush1.msra.mxu0 0.0
        %6938 = vmatprep.subr.mxu0 0.0
        %6939 = vmatpush1.msra.mxu0 0.0
        %6940 = vmatprep.subr.mxu0 0.0
        %6941 = vmatpush1.msra.mxu0 0.0
        %6942 = vmatprep.subr.mxu0 0.0
        %6943 = vmatpush1.msra.mxu0 0.0
        %6944 = vmatprep.subr.mxu0 0.0
        %6945 = vmatpush1.msra.mxu0 0.0
        %6946 = vmatprep.subr.mxu0 0.0
        %6947 = vmatpush1.msra.mxu0 0.0
        %6948 = vmatprep.subr.mxu0 0.0
        %6949 = vmatpush1.msra.mxu0 0.0
        %6950 = vmatprep.subr.mxu0 0.0
        %6951 = vmatpush1.msra.mxu0 0.0
        %6952 = vmatprep.subr.mxu0 0.0
        %6953 = vmatpush1.msra.mxu0 0.0
        %6954 = vmatprep.subr.mxu0 0.0
        %6955 = vmatpush1.msra.mxu0 0.0
        %6956 = vmatprep.subr.mxu0 0.0
        %6957 = vmatpush1.msra.mxu0 0.0
        %6958 = vmatprep.subr.mxu0 0.0
        %6959 = vmatpush1.msra.mxu0 0.0
        %6960 = vmatprep.subr.mxu0 0.0
        %6961 = vmatpush1.msra.mxu0 0.0
        %6962 = vmatprep.subr.mxu0 0.0
        %6963 = vmatpush1.msra.mxu0 0.0
        %6964 = vmatprep.subr.mxu0 0.0
        %6965 = vmatpush1.msra.mxu0 0.0
        %6966 = vmatprep.subr.mxu0 0.0
        %6967 = vmatpush1.msra.mxu0 0.0
        %6968 = vmatprep.subr.mxu0 0.0
        %6969 = vmatpush1.msra.mxu0 0.0
        %6970 = vmatprep.subr.mxu0 0.0
        %6971 = vmatpush1.msra.mxu0 0.0
        %6972 = vmatprep.subr.mxu0 0.0
        %6973 = vmatpush1.msra.mxu0 0.0
        %6974 = vmatprep.subr.mxu0 0.0
        %6975 = vmatpush1.msra.mxu0 0.0
        %6976 = vmatprep.subr.mxu0 0.0
        %6977 = vmatpush1.msra.mxu0 0.0
        %6978 = vmatprep.subr.mxu0 0.0
        %6979 = vmatpush1.msra.mxu0 0.0
        %6980 = vmatprep.subr.mxu0 0.0
        %6981 = vmatpush1.msra.mxu0 0.0
        %6982 = vmatprep.subr.mxu0 0.0
        %6983 = vmatpush1.msra.mxu0 0.0
        %6984 = vmatprep.subr.mxu0 0.0
        %6985 = vmatpush1.msra.mxu0 0.0
        %6986 = vmatprep.subr.mxu0 0.0
        %6987 = vmatpush1.msra.mxu0 0.0
        %6988 = vmatprep.mubr.f32.mxu0 0.0
        %v6989 = vand.u32 %v6916, 4294901760
        %v6990 = vsub.f32 %v6916, %v6989
        %v6991 = vand.u32 %v6990, 4294901760
        %v6992 = vsub.f32 %v6990, %v6991
        %v6993 = vand.u32 %v6992, 4294901760
        %6994 = vmatmul.mubr.f32.gmra.mrb[0].mxu0 %v6993
        %v6995 = vpop.f32.mrb[0].mxu0
        %v6996 = vadd.f32 0.0, %v6995
        %v6997 = vpop.f32.mrb[0].mxu0
        %6998 = vmatprep.mubr.f32.mxu0 0.0
        %v6999 = vand.u32 %v6918, 4294901760
        %v7000 = vsub.f32 %v6918, %v6999
        %v7001 = vand.u32 %v7000, 4294901760
        %v7002 = vsub.f32 %v7000, %v7001
        %v7003 = vand.u32 %v7002, 4294901760
        %7004 = vmatmul.mubr.f32.gmra.mrb[0].mxu0 %v7003
        %v7005 = vpop.f32.mrb[0].mxu0
        %v7006 = vadd.f32 0.0, %v7005
        %v7007 = vpop.f32.mrb[0].mxu0
        %7008 = vdwg.mxu0
        %7009 = vmatprep.subr.mxu0 0.0
        %v7010 = vand.u32 %v6912, 4294901760
        %v7011 = vsub.f32 %v6912, %v7010
        %v7012 = vand.u32 %v7011, 4294901760
        %v7013 = vsub.f32 %v7011, %v7012
        %v7014 = vand.u32 %v7013, 4294901760
        %7015 = vmatpush1.msra.mxu0 %v7014
        %7016 = vmatprep.subr.mxu0 0.0
        %v7017 = vand.u32 %v6920, 4294901760
        %v7018 = vsub.f32 %v6920, %v7017
        %v7019 = vand.u32 %v7018, 4294901760
        %v7020 = vsub.f32 %v7018, %v7019
        %v7021 = vand.u32 %v7020, 4294901760
        %7022 = vmatpush1.msra.mxu0 %v7021
        %7023 = vmatprep.subr.mxu0 0.0
        %7024 = vmatpush1.msra.mxu0 0.0
        %7025 = vmatprep.subr.mxu0 0.0
        %7026 = vmatpush1.msra.mxu0 0.0
        %7027 = vmatprep.subr.mxu0 0.0
        %7028 = vmatpush1.msra.mxu0 0.0
        %7029 = vmatprep.subr.mxu0 0.0
        %7030 = vmatpush1.msra.mxu0 0.0
        %7031 = vmatprep.subr.mxu0 0.0
        %7032 = vmatpush1.msra.mxu0 0.0
        %7033 = vmatprep.subr.mxu0 0.0
        %7034 = vmatpush1.msra.mxu0 0.0
        %7035 = vmatprep.subr.mxu0 0.0
        %7036 = vmatpush1.msra.mxu0 0.0
        %7037 = vmatprep.subr.mxu0 0.0
        %7038 = vmatpush1.msra.mxu0 0.0
        %7039 = vmatprep.subr.mxu0 0.0
        %7040 = vmatpush1.msra.mxu0 0.0
        %7041 = vmatprep.subr.mxu0 0.0
        %7042 = vmatpush1.msra.mxu0 0.0
        %7043 = vmatprep.subr.mxu0 0.0
        %7044 = vmatpush1.msra.mxu0 0.0
        %7045 = vmatprep.subr.mxu0 0.0
        %7046 = vmatpush1.msra.mxu0 0.0
        %7047 = vmatprep.subr.mxu0 0.0
        %7048 = vmatpush1.msra.mxu0 0.0
        %7049 = vmatprep.subr.mxu0 0.0
        %7050 = vmatpush1.msra.mxu0 0.0
        %7051 = vmatprep.subr.mxu0 0.0
        %7052 = vmatpush1.msra.mxu0 0.0
        %7053 = vmatprep.subr.mxu0 0.0
        %7054 = vmatpush1.msra.mxu0 0.0
        %7055 = vmatprep.subr.mxu0 0.0
        %7056 = vmatpush1.msra.mxu0 0.0
        %7057 = vmatprep.subr.mxu0 0.0
        %7058 = vmatpush1.msra.mxu0 0.0
        %7059 = vmatprep.subr.mxu0 0.0
        %7060 = vmatpush1.msra.mxu0 0.0
        %7061 = vmatprep.subr.mxu0 0.0
        %7062 = vmatpush1.msra.mxu0 0.0
        %7063 = vmatprep.subr.mxu0 0.0
        %7064 = vmatpush1.msra.mxu0 0.0
        %7065 = vmatprep.subr.mxu0 0.0
        %7066 = vmatpush1.msra.mxu0 0.0
        %7067 = vmatprep.subr.mxu0 0.0
        %7068 = vmatpush1.msra.mxu0 0.0
        %7069 = vmatprep.subr.mxu0 0.0
        %7070 = vmatpush1.msra.mxu0 0.0
        %7071 = vmatprep.subr.mxu0 0.0
        %7072 = vmatpush1.msra.mxu0 0.0
        %7073 = vmatprep.subr.mxu0 0.0
        %7074 = vmatpush1.msra.mxu0 0.0
        %7075 = vmatprep.subr.mxu0 0.0
        %7076 = vmatpush1.msra.mxu0 0.0
        %7077 = vmatprep.subr.mxu0 0.0
        %7078 = vmatpush1.msra.mxu0 0.0
        %7079 = vmatprep.subr.mxu0 0.0
        %7080 = vmatpush1.msra.mxu0 0.0
        %7081 = vmatprep.subr.mxu0 0.0
        %7082 = vmatpush1.msra.mxu0 0.0
        %7083 = vmatprep.mubr.f32.mxu0 0.0
        %v7084 = vand.u32 %v6916, 4294901760
        %7085 = vmatmul.mubr.f32.gmra.mrb[0].mxu0 %v7084
        %v7086 = vpop.f32.mrb[0].mxu0
        %v7087 = vadd.f32 %v6996, %v7086
        %v7088 = vpop.f32.mrb[0].mxu0
        %7089 = vmatprep.mubr.f32.mxu0 0.0
        %v7090 = vand.u32 %v6918, 4294901760
        %7091 = vmatmul.mubr.f32.gmra.mrb[0].mxu0 %v7090
        %v7092 = vpop.f32.mrb[0].mxu0
        %v7093 = vadd.f32 %v7006, %v7092
        %v7094 = vpop.f32.mrb[0].mxu0
        %7095 = vdwg.mxu0
        %7096 = vmatprep.subr.mxu0 0.0
        %v7097 = vand.u32 %v6912, 4294901760
        %v7098 = vsub.f32 %v6912, %v7097
        %7099 = vmatpush1.msra.mxu0 %v7098
        %7100 = vmatprep.subr.mxu0 0.0
        %v7101 = vand.u32 %v6920, 4294901760
        %v7102 = vsub.f32 %v6920, %v7101
        %7103 = vmatpush1.msra.mxu0 %v7102
        %7104 = vmatprep.subr.mxu0 0.0
        %7105 = vmatpush1.msra.mxu0 0.0
        %7106 = vmatprep.subr.mxu0 0.0
        %7107 = vmatpush1.msra.mxu0 0.0
        %7108 = vmatprep.subr.mxu0 0.0
        %7109 = vmatpush1.msra.mxu0 0.0
        %7110 = vmatprep.subr.mxu0 0.0
        %7111 = vmatpush1.msra.mxu0 0.0
        %7112 = vmatprep.subr.mxu0 0.0
        %7113 = vmatpush1.msra.mxu0 0.0
        %7114 = vmatprep.subr.mxu0 0.0
        %7115 = vmatpush1.msra.mxu0 0.0
        %7116 = vmatprep.subr.mxu0 0.0
        %7117 = vmatpush1.msra.mxu0 0.0
        %7118 = vmatprep.subr.mxu0 0.0
        %7119 = vmatpush1.msra.mxu0 0.0
        %7120 = vmatprep.subr.mxu0 0.0
        %7121 = vmatpush1.msra.mxu0 0.0
        %7122 = vmatprep.subr.mxu0 0.0
        %7123 = vmatpush1.msra.mxu0 0.0
        %7124 = vmatprep.subr.mxu0 0.0
        %7125 = vmatpush1.msra.mxu0 0.0
        %7126 = vmatprep.subr.mxu0 0.0
        %7127 = vmatpush1.msra.mxu0 0.0
        %7128 = vmatprep.subr.mxu0 0.0
        %7129 = vmatpush1.msra.mxu0 0.0
        %7130 = vmatprep.subr.mxu0 0.0
        %7131 = vmatpush1.msra.mxu0 0.0
        %7132 = vmatprep.subr.mxu0 0.0
        %7133 = vmatpush1.msra.mxu0 0.0
        %7134 = vmatprep.subr.mxu0 0.0
        %7135 = vmatpush1.msra.mxu0 0.0
        %7136 = vmatprep.subr.mxu0 0.0
        %7137 = vmatpush1.msra.mxu0 0.0
        %7138 = vmatprep.subr.mxu0 0.0
        %7139 = vmatpush1.msra.mxu0 0.0
        %7140 = vmatprep.subr.mxu0 0.0
        %7141 = vmatpush1.msra.mxu0 0.0
        %7142 = vmatprep.subr.mxu0 0.0
        %7143 = vmatpush1.msra.mxu0 0.0
        %7144 = vmatprep.subr.mxu0 0.0
        %7145 = vmatpush1.msra.mxu0 0.0
        %7146 = vmatprep.subr.mxu0 0.0
        %7147 = vmatpush1.msra.mxu0 0.0
        %7148 = vmatprep.subr.mxu0 0.0
        %7149 = vmatpush1.msra.mxu0 0.0
        %7150 = vmatprep.subr.mxu0 0.0
        %7151 = vmatpush1.msra.mxu0 0.0
        %7152 = vmatprep.subr.mxu0 0.0
        %7153 = vmatpush1.msra.mxu0 0.0
        %7154 = vmatprep.subr.mxu0 0.0
        %7155 = vmatpush1.msra.mxu0 0.0
        %7156 = vmatprep.subr.mxu0 0.0
        %7157 = vmatpush1.msra.mxu0 0.0
        %7158 = vmatprep.subr.mxu0 0.0
        %7159 = vmatpush1.msra.mxu0 0.0
        %7160 = vmatprep.subr.mxu0 0.0
        %7161 = vmatpush1.msra.mxu0 0.0
        %7162 = vmatprep.subr.mxu0 0.0
        %7163 = vmatpush1.msra.mxu0 0.0
        %7164 = vmatprep.mubr.f32.mxu0 0.0
        %v7165 = vand.u32 %v6916, 4294901760
        %v7166 = vsub.f32 %v6916, %v7165
        %7167 = vmatmul.mubr.f32.gmra.mrb[0].mxu0 %v7166
        %v7168 = vpop.f32.mrb[0].mxu0
        %v7169 = vadd.f32 %v7087, %v7168
        %v7170 = vpop.f32.mrb[0].mxu0
        %7171 = vmatprep.mubr.f32.mxu0 0.0
        %v7172 = vand.u32 %v6918, 4294901760
        %v7173 = vsub.f32 %v6918, %v7172
        %7174 = vmatmul.mubr.f32.gmra.mrb[0].mxu0 %v7173
        %v7175 = vpop.f32.mrb[0].mxu0
        %v7176 = vadd.f32 %v7093, %v7175
        %v7177 = vpop.f32.mrb[0].mxu0
        %7178 = vdwg.mxu0
        %7179 = vmatprep.subr.mxu0 0.0
        %v7180 = vand.u32 %v6912, 4294901760
        %7181 = vmatpush1.msra.mxu0 %v7180
        %7182 = vmatprep.subr.mxu0 0.0
        %v7183 = vand.u32 %v6920, 4294901760
        %7184 = vmatpush1.msra.mxu0 %v7183
        %7185 = vmatprep.subr.mxu0 0.0
        %7186 = vmatpush1.msra.mxu0 0.0
        %7187 = vmatprep.subr.mxu0 0.0
        %7188 = vmatpush1.msra.mxu0 0.0
        %7189 = vmatprep.subr.mxu0 0.0
        %7190 = vmatpush1.msra.mxu0 0.0
        %7191 = vmatprep.subr.mxu0 0.0
        %7192 = vmatpush1.msra.mxu0 0.0
        %7193 = vmatprep.subr.mxu0 0.0
        %7194 = vmatpush1.msra.mxu0 0.0
        %7195 = vmatprep.subr.mxu0 0.0
        %7196 = vmatpush1.msra.mxu0 0.0
        %7197 = vmatprep.subr.mxu0 0.0
        %7198 = vmatpush1.msra.mxu0 0.0
        %7199 = vmatprep.subr.mxu0 0.0
        %7200 = vmatpush1.msra.mxu0 0.0
        %7201 = vmatprep.subr.mxu0 0.0
        %7202 = vmatpush1.msra.mxu0 0.0
        %7203 = vmatprep.subr.mxu0 0.0
        %7204 = vmatpush1.msra.mxu0 0.0
        %7205 = vmatprep.subr.mxu0 0.0
        %7206 = vmatpush1.msra.mxu0 0.0
        %7207 = vmatprep.subr.mxu0 0.0
        %7208 = vmatpush1.msra.mxu0 0.0
        %7209 = vmatprep.subr.mxu0 0.0
        %7210 = vmatpush1.msra.mxu0 0.0
        %7211 = vmatprep.subr.mxu0 0.0
        %7212 = vmatpush1.msra.mxu0 0.0
        %7213 = vmatprep.subr.mxu0 0.0
        %7214 = vmatpush1.msra.mxu0 0.0
        %7215 = vmatprep.subr.mxu0 0.0
        %7216 = vmatpush1.msra.mxu0 0.0
        %7217 = vmatprep.subr.mxu0 0.0
        %7218 = vmatpush1.msra.mxu0 0.0
        %7219 = vmatprep.subr.mxu0 0.0
        %7220 = vmatpush1.msra.mxu0 0.0
        %7221 = vmatprep.subr.mxu0 0.0
        %7222 = vmatpush1.msra.mxu0 0.0
        %7223 = vmatprep.subr.mxu0 0.0
        %7224 = vmatpush1.msra.mxu0 0.0
        %7225 = vmatprep.subr.mxu0 0.0
        %7226 = vmatpush1.msra.mxu0 0.0
        %7227 = vmatprep.subr.mxu0 0.0
        %7228 = vmatpush1.msra.mxu0 0.0
        %7229 = vmatprep.subr.mxu0 0.0
        %7230 = vmatpush1.msra.mxu0 0.0
        %7231 = vmatprep.subr.mxu0 0.0
        %7232 = vmatpush1.msra.mxu0 0.0
        %7233 = vmatprep.subr.mxu0 0.0
        %7234 = vmatpush1.msra.mxu0 0.0
        %7235 = vmatprep.subr.mxu0 0.0
        %7236 = vmatpush1.msra.mxu0 0.0
        %7237 = vmatprep.subr.mxu0 0.0
        %7238 = vmatpush1.msra.mxu0 0.0
        %7239 = vmatprep.subr.mxu0 0.0
        %7240 = vmatpush1.msra.mxu0 0.0
        %7241 = vmatprep.subr.mxu0 0.0
        %7242 = vmatpush1.msra.mxu0 0.0
        %7243 = vmatprep.subr.mxu0 0.0
        %7244 = vmatpush1.msra.mxu0 0.0
        %7245 = vmatprep.mubr.f32.mxu0 0.0
        %v7246 = vand.u32 %v6916, 4294901760
        %v7247 = vsub.f32 %v6916, %v7246
        %v7248 = vand.u32 %v7247, 4294901760
        %7249 = vmatmul.mubr.f32.gmra.mrb[0].mxu0 %v7248
        %v7250 = vpop.f32.mrb[0].mxu0
        %v7251 = vadd.f32 %v7169, %v7250
        %v7252 = vpop.f32.mrb[0].mxu0
        %7253 = vmatprep.mubr.f32.mxu0 0.0
        %v7254 = vand.u32 %v6918, 4294901760
        %v7255 = vsub.f32 %v6918, %v7254
        %v7256 = vand.u32 %v7255, 4294901760
        %7257 = vmatmul.mubr.f32.gmra.mrb[0].mxu0 %v7256
        %v7258 = vpop.f32.mrb[0].mxu0
        %v7259 = vadd.f32 %v7176, %v7258
        %v7260 = vpop.f32.mrb[0].mxu0
        %7261 = vdwg.mxu0
        %7262 = vmatprep.subr.mxu0 0.0
        %v7263 = vand.u32 %v6912, 4294901760
        %v7264 = vsub.f32 %v6912, %v7263
        %v7265 = vand.u32 %v7264, 4294901760
        %7266 = vmatpush1.msra.mxu0 %v7265
        %7267 = vmatprep.subr.mxu0 0.0
        %v7268 = vand.u32 %v6920, 4294901760
        %v7269 = vsub.f32 %v6920, %v7268
        %v7270 = vand.u32 %v7269, 4294901760
        %7271 = vmatpush1.msra.mxu0 %v7270
        %7272 = vmatprep.subr.mxu0 0.0
        %7273 = vmatpush1.msra.mxu0 0.0
        %7274 = vmatprep.subr.mxu0 0.0
        %7275 = vmatpush1.msra.mxu0 0.0
        %7276 = vmatprep.subr.mxu0 0.0
        %7277 = vmatpush1.msra.mxu0 0.0
        %7278 = vmatprep.subr.mxu0 0.0
        %7279 = vmatpush1.msra.mxu0 0.0
        %7280 = vmatprep.subr.mxu0 0.0
        %7281 = vmatpush1.msra.mxu0 0.0
        %7282 = vmatprep.subr.mxu0 0.0
        %7283 = vmatpush1.msra.mxu0 0.0
        %7284 = vmatprep.subr.mxu0 0.0
        %7285 = vmatpush1.msra.mxu0 0.0
        %7286 = vmatprep.subr.mxu0 0.0
        %7287 = vmatpush1.msra.mxu0 0.0
        %7288 = vmatprep.subr.mxu0 0.0
        %7289 = vmatpush1.msra.mxu0 0.0
        %7290 = vmatprep.subr.mxu0 0.0
        %7291 = vmatpush1.msra.mxu0 0.0
        %7292 = vmatprep.subr.mxu0 0.0
        %7293 = vmatpush1.msra.mxu0 0.0
        %7294 = vmatprep.subr.mxu0 0.0
        %7295 = vmatpush1.msra.mxu0 0.0
        %7296 = vmatprep.subr.mxu0 0.0
        %7297 = vmatpush1.msra.mxu0 0.0
        %7298 = vmatprep.subr.mxu0 0.0
        %7299 = vmatpush1.msra.mxu0 0.0
        %7300 = vmatprep.subr.mxu0 0.0
        %7301 = vmatpush1.msra.mxu0 0.0
        %7302 = vmatprep.subr.mxu0 0.0
        %7303 = vmatpush1.msra.mxu0 0.0
        %7304 = vmatprep.subr.mxu0 0.0
        %7305 = vmatpush1.msra.mxu0 0.0
        %7306 = vmatprep.subr.mxu0 0.0
        %7307 = vmatpush1.msra.mxu0 0.0
        %7308 = vmatprep.subr.mxu0 0.0
        %7309 = vmatpush1.msra.mxu0 0.0
        %7310 = vmatprep.subr.mxu0 0.0
        %7311 = vmatpush1.msra.mxu0 0.0
        %7312 = vmatprep.subr.mxu0 0.0
        %7313 = vmatpush1.msra.mxu0 0.0
        %7314 = vmatprep.subr.mxu0 0.0
        %7315 = vmatpush1.msra.mxu0 0.0
        %7316 = vmatprep.subr.mxu0 0.0
        %7317 = vmatpush1.msra.mxu0 0.0
        %7318 = vmatprep.subr.mxu0 0.0
        %7319 = vmatpush1.msra.mxu0 0.0
        %7320 = vmatprep.subr.mxu0 0.0
        %7321 = vmatpush1.msra.mxu0 0.0
        %7322 = vmatprep.subr.mxu0 0.0
        %7323 = vmatpush1.msra.mxu0 0.0
        %7324 = vmatprep.subr.mxu0 0.0
        %7325 = vmatpush1.msra.mxu0 0.0
        %7326 = vmatprep.subr.mxu0 0.0
        %7327 = vmatpush1.msra.mxu0 0.0
        %7328 = vmatprep.subr.mxu0 0.0
        %7329 = vmatpush1.msra.mxu0 0.0
        %7330 = vmatprep.subr.mxu0 0.0
        %7331 = vmatpush1.msra.mxu0 0.0
        %7332 = vmatprep.mubr.f32.mxu0 0.0
        %v7333 = vand.u32 %v6916, 4294901760
        %7334 = vmatmul.mubr.f32.gmra.mrb[0].mxu0 %v7333
        %v7335 = vpop.f32.mrb[0].mxu0
        %v7336 = vadd.f32 %v7251, %v7335
        %v7337 = vpop.f32.mrb[0].mxu0
        %7338 = vmatprep.mubr.f32.mxu0 0.0
        %v7339 = vand.u32 %v6918, 4294901760
        %7340 = vmatmul.mubr.f32.gmra.mrb[0].mxu0 %v7339
        %v7341 = vpop.f32.mrb[0].mxu0
        %v7342 = vadd.f32 %v7259, %v7341
        %v7343 = vpop.f32.mrb[0].mxu0
        %7344 = vdwg.mxu0
        %7345 = vmatprep.subr.mxu0 0.0
        %v7346 = vand.u32 %v6912, 4294901760
        %7347 = vmatpush1.msra.mxu0 %v7346
        %7348 = vmatprep.subr.mxu0 0.0
        %v7349 = vand.u32 %v6920, 4294901760
        %7350 = vmatpush1.msra.mxu0 %v7349
        %7351 = vmatprep.subr.mxu0 0.0
        %7352 = vmatpush1.msra.mxu0 0.0
        %7353 = vmatprep.subr.mxu0 0.0
        %7354 = vmatpush1.msra.mxu0 0.0
        %7355 = vmatprep.subr.mxu0 0.0
        %7356 = vmatpush1.msra.mxu0 0.0
        %7357 = vmatprep.subr.mxu0 0.0
        %7358 = vmatpush1.msra.mxu0 0.0
        %7359 = vmatprep.subr.mxu0 0.0
        %7360 = vmatpush1.msra.mxu0 0.0
        %7361 = vmatprep.subr.mxu0 0.0
        %7362 = vmatpush1.msra.mxu0 0.0
        %7363 = vmatprep.subr.mxu0 0.0
        %7364 = vmatpush1.msra.mxu0 0.0
        %7365 = vmatprep.subr.mxu0 0.0
        %7366 = vmatpush1.msra.mxu0 0.0
        %7367 = vmatprep.subr.mxu0 0.0
        %7368 = vmatpush1.msra.mxu0 0.0
        %7369 = vmatprep.subr.mxu0 0.0
        %7370 = vmatpush1.msra.mxu0 0.0
        %7371 = vmatprep.subr.mxu0 0.0
        %7372 = vmatpush1.msra.mxu0 0.0
        %7373 = vmatprep.subr.mxu0 0.0
        %7374 = vmatpush1.msra.mxu0 0.0
        %7375 = vmatprep.subr.mxu0 0.0
        %7376 = vmatpush1.msra.mxu0 0.0
        %7377 = vmatprep.subr.mxu0 0.0
        %7378 = vmatpush1.msra.mxu0 0.0
        %7379 = vmatprep.subr.mxu0 0.0
        %7380 = vmatpush1.msra.mxu0 0.0
        %7381 = vmatprep.subr.mxu0 0.0
        %7382 = vmatpush1.msra.mxu0 0.0
        %7383 = vmatprep.subr.mxu0 0.0
        %7384 = vmatpush1.msra.mxu0 0.0
        %7385 = vmatprep.subr.mxu0 0.0
        %7386 = vmatpush1.msra.mxu0 0.0
        %7387 = vmatprep.subr.mxu0 0.0
        %7388 = vmatpush1.msra.mxu0 0.0
        %7389 = vmatprep.subr.mxu0 0.0
        %7390 = vmatpush1.msra.mxu0 0.0
        %7391 = vmatprep.subr.mxu0 0.0
        %7392 = vmatpush1.msra.mxu0 0.0
        %7393 = vmatprep.subr.mxu0 0.0
        %7394 = vmatpush1.msra.mxu0 0.0
        %7395 = vmatprep.subr.mxu0 0.0
        %7396 = vmatpush1.msra.mxu0 0.0
        %7397 = vmatprep.subr.mxu0 0.0
        %7398 = vmatpush1.msra.mxu0 0.0
        %7399 = vmatprep.subr.mxu0 0.0
        %7400 = vmatpush1.msra.mxu0 0.0
        %7401 = vmatprep.subr.mxu0 0.0
        %7402 = vmatpush1.msra.mxu0 0.0
        %7403 = vmatprep.subr.mxu0 0.0
        %7404 = vmatpush1.msra.mxu0 0.0
        %7405 = vmatprep.subr.mxu0 0.0
        %7406 = vmatpush1.msra.mxu0 0.0
        %7407 = vmatprep.subr.mxu0 0.0
        %7408 = vmatpush1.msra.mxu0 0.0
        %7409 = vmatprep.subr.mxu0 0.0
        %7410 = vmatpush1.msra.mxu0 0.0
        %7411 = vmatprep.mubr.f32.mxu0 0.0
        %v7412 = vand.u32 %v6916, 4294901760
        %7413 = vmatmul.mubr.f32.gmra.mrb[0].mxu0 %v7412
        %v7414 = vpop.f32.mrb[0].mxu0
        %v7415 = vadd.f32 %v7336, %v7414
        %v7416 = vpop.f32.mrb[0].mxu0
        %7417 = vmatprep.mubr.f32.mxu0 0.0
        %v7418 = vand.u32 %v6918, 4294901760
        %7419 = vmatmul.mubr.f32.gmra.mrb[0].mxu0 %v7418
        %v7420 = vpop.f32.mrb[0].mxu0
        %v7421 = vadd.f32 %v7342, %v7420
        %v7422 = vpop.f32.mrb[0].mxu0
        %7423 = vdwg.mxu0
        %7425 = vxpose.xlu0.b32.start [1/16] %v6912, 128
        %7426 = vxpose.xlu0.b32.cont [2/16] %v6914, 128
        %7427 = vxpose.xlu0.b32.cont [3/16] 0.0, 128
        %7428 = vxpose.xlu0.b32.cont [4/16] 0.0, 128
        %7429 = vxpose.xlu0.b32.cont [5/16] 0.0, 128
        %7430 = vxpose.xlu0.b32.cont [6/16] 0.0, 128
        %7431 = vxpose.xlu0.b32.cont [7/16] 0.0, 128
        %7432 = vxpose.xlu0.b32.cont [8/16] 0.0, 128
        %7433 = vxpose.xlu0.b32.cont [9/16] 0.0, 128
        %7434 = vxpose.xlu0.b32.cont [10/16] 0.0, 128
        %7435 = vxpose.xlu0.b32.cont [11/16] 0.0, 128
        %7436 = vxpose.xlu0.b32.cont [12/16] 0.0, 128
        %7437 = vxpose.xlu0.b32.cont [13/16] 0.0, 128
        %7438 = vxpose.xlu0.b32.cont [14/16] 0.0, 128
        %7439 = vxpose.xlu0.b32.cont [15/16] 0.0, 128
        %7440 = vxpose.xlu0.b32.end [16/16] 0.0, 128
        %v7441 = vpop.trf.xlu0
        %v7442 = vpop.trf.xlu0
        %v7443 = vpop.trf.xlu0
        %v7444 = vpop.trf.xlu0
        %v7445 = vpop.trf.xlu0
        %v7446 = vpop.trf.xlu0
        %v7447 = vpop.trf.xlu0
        %v7448 = vpop.trf.xlu0
        %v7449 = vpop.trf.xlu0
        %v7450 = vpop.trf.xlu0
        %v7451 = vpop.trf.xlu0
        %v7452 = vpop.trf.xlu0
        %v7453 = vpop.trf.xlu0
        %v7454 = vpop.trf.xlu0
        %v7455 = vpop.trf.xlu0
        %v7456 = vpop.trf.xlu0
        %7457 = vxpose.xlu0.b32.start [1/16] %v7415, 128
        %7458 = vxpose.xlu0.b32.cont [2/16] %v7421, 128
        %7459 = vxpose.xlu0.b32.cont [3/16] 0.0, 128
        %7460 = vxpose.xlu0.b32.cont [4/16] 0.0, 128
        %7461 = vxpose.xlu0.b32.cont [5/16] 0.0, 128
        %7462 = vxpose.xlu0.b32.cont [6/16] 0.0, 128
        %7463 = vxpose.xlu0.b32.cont [7/16] 0.0, 128
        %7464 = vxpose.xlu0.b32.cont [8/16] 0.0, 128
        %7465 = vxpose.xlu0.b32.cont [9/16] 0.0, 128
        %7466 = vxpose.xlu0.b32.cont [10/16] 0.0, 128
        %7467 = vxpose.xlu0.b32.cont [11/16] 0.0, 128
        %7468 = vxpose.xlu0.b32.cont [12/16] 0.0, 128
        %7469 = vxpose.xlu0.b32.cont [13/16] 0.0, 128
        %7470 = vxpose.xlu0.b32.cont [14/16] 0.0, 128
        %7471 = vxpose.xlu0.b32.cont [15/16] 0.0, 128
        %7472 = vxpose.xlu0.b32.end [16/16] 0.0, 128
        %v7473 = vpop.trf.xlu0
        %v7474 = vpop.trf.xlu0
        %v7475 = vpop.trf.xlu0
        %v7476 = vpop.trf.xlu0
        %v7477 = vpop.trf.xlu0
        %v7478 = vpop.trf.xlu0
        %v7479 = vpop.trf.xlu0
        %v7480 = vpop.trf.xlu0
        %v7481 = vpop.trf.xlu0
        %v7482 = vpop.trf.xlu0
        %v7483 = vpop.trf.xlu0
        %v7484 = vpop.trf.xlu0
        %v7485 = vpop.trf.xlu0
        %v7486 = vpop.trf.xlu0
        %v7487 = vpop.trf.xlu0
        %v7488 = vpop.trf.xlu0
        %7491 = vrot.lane.b32.xlu0 %v7441, 99
        %v7492 = vpop.permute.xlu0 %7491
        %7493 = vrot.lane.b32.xlu0 %v7442, 99
        %v7494 = vpop.permute.xlu0 %7493
        %v7497 = vmul.f32 %v771, %v7492
        %v7498 = vmul.f32 %v772, %v7494
        %7501 = vrot.lane.b32.xlu0 %v7497, 29
        %v7502 = vpop.permute.xlu0 %7501
        %7503 = vrot.lane.b32.xlu0 %v7498, 29
        %v7504 = vpop.permute.xlu0 %7503
        %v7507 = vsel %vm773, %v7502, 0.0
        %v7508 = vsel %vm1351, %v7504, 0.0
        %v7509 = vadd.f32 %v7507, %v7508
        %7510 = vadd.xlane.f32.xlu0 %v7509
        %v7511 = vpop.xlane.xlu0 %7510
        %v7512 = vrot.slane %v7511, 4
        %v7513 = vadd.f32 %v7511, %v7512
        %v7514 = vrot.slane %v7513, 2
        %v7515 = vadd.f32 %v7513, %v7514
        %v7516 = vrot.slane %v7515, 1
        %v7517 = vadd.f32 %v7515, %v7516
        %s7518 = vtos %v7517
        %s7519 = smul.f32 %s7518, 0.008264462
        %s7520 = sld [smem:[#allocation2 + $0x6c]]
        %s7521 = smul.f32 %s7520, %s7519
        %s7522 = sadd.f32 %s6910, %s7521
        %s7523 = smul.f32 %s7519, %s7519
        %s7524 = sld [smem:[#allocation2 + $0x6d]]
        %s7525 = smul.f32 %s7524, %s7523
        %s7526 = sadd.f32 %s7522, %s7525
        %s7527 = smul.f32 %s7523, %s7519
        %s7528 = sld [smem:[#allocation2 + $0x6e]]
        %s7529 = smul.f32 %s7528, %s7527
        %s7530 = sadd.f32 %s7526, %s7529
        %s7531 = smul.f32 %s7527, %s7519
        %s7532 = sld [smem:[#allocation2 + $0x6f]]
        %s7533 = smul.f32 %s7532, %s7531
        %s7534 = sadd.f32 %s7530, %s7533
        %v7535 = vmul.f32 %v7415, %v7441
        %v7536 = vmul.f32 %v7421, %v7442
        %v7537 = vsel %vm773, %v7535, 0.0
        %v7538 = vsel %vm1351, %v7536, 0.0
        %v7539 = vadd.f32 %v7537, %v7538
        %7540 = vadd.xlane.f32.xlu0 %v7539
        %v7541 = vpop.xlane.xlu0 %7540
        %v7542 = vrot.slane %v7541, 4
        %v7543 = vadd.f32 %v7541, %v7542
        %v7544 = vrot.slane %v7543, 2
        %v7545 = vadd.f32 %v7543, %v7544
        %v7546 = vrot.slane %v7545, 1
        %v7547 = vadd.f32 %v7545, %v7546
        %s7548 = vtos %v7547
        %s7549 = smul.f32 %s7548, 0.008264462
        %s7550 = sld [smem:[#allocation2 + $0x70]]
        %s7551 = smul.f32 %s7550, %s7549
        %s7552 = sadd.f32 %s7534, %s7551
        %s7553 = smul.f32 %s7549, %s7549
        %s7554 = sld [smem:[#allocation2 + $0x71]]
        %s7555 = smul.f32 %s7554, %s7553
        %s7556 = sadd.f32 %s7552, %s7555
        %s7557 = smul.f32 %s7553, %s7549
        %s7558 = sld [smem:[#allocation2 + $0x72]]
        %s7559 = smul.f32 %s7558, %s7557
        %s7560 = sadd.f32 %s7556, %s7559
        %s7561 = smul.f32 %s7557, %s7549
        %s7562 = sld [smem:[#allocation2 + $0x73]]
        %s7563 = smul.f32 %s7562, %s7561
        %s7564 = sadd.f32 %s7560, %s7563
        %v7565 = vmul.f32 %v7415, %v7473
        %v7566 = vmul.f32 %v7421, %v7474
        %v7567 = vsel %vm773, %v7565, 0.0
        %v7568 = vsel %vm1351, %v7566, 0.0
        %v7569 = vadd.f32 %v7567, %v7568
        %7570 = vadd.xlane.f32.xlu0 %v7569
        %v7571 = vpop.xlane.xlu0 %7570
        %v7572 = vrot.slane %v7571, 4
        %v7573 = vadd.f32 %v7571, %v7572
        %v7574 = vrot.slane %v7573, 2
        %v7575 = vadd.f32 %v7573, %v7574
        %v7576 = vrot.slane %v7575, 1
        %v7577 = vadd.f32 %v7575, %v7576
        %s7578 = vtos %v7577
        %s7579 = smul.f32 %s7578, 0.008264462
        %s7580 = sld [smem:[#allocation2 + $0x74]]
        %s7581 = smul.f32 %s7580, %s7579
        %s7582 = sadd.f32 %s7564, %s7581
        %s7583 = smul.f32 %s7579, %s7579
        %s7584 = sld [smem:[#allocation2 + $0x75]]
        %s7585 = smul.f32 %s7584, %s7583
        %s7586 = sadd.f32 %s7582, %s7585
        %s7587 = smul.f32 %s7583, %s7579
        %s7588 = sld [smem:[#allocation2 + $0x76]]
        %s7589 = smul.f32 %s7588, %s7587
        %s7590 = sadd.f32 %s7586, %s7589
        %s7591 = smul.f32 %s7587, %s7579
        %s7592 = sld [smem:[#allocation2 + $0x77]]
        %s7593 = smul.f32 %s7592, %s7591
        %s7594 = sadd.f32 %s7590, %s7593
        %v7595 = vstv %s7594
        %vm7596 = vcmp.lt.f32.partialorder %v7595, 0.0
        %v7597 = vsub.f32 0.0, %v7595
        %v7598 = vsel %vm7596, %v7595, %v7597
        %v7599 = vmul.f32 %v7598, 1.442695
        %v7600 = vpow.pop %v7599
        %v7601 = vadd.f32 %v7600, 1.0
        %v7602 = vrcp.pop %v7601
        %v7603 = vmul.f32 %v7600, %v7602
        %v7604 = vmul.f32 1.0, %v7602
        %v7605 = vsel %vm7596, %v7603, %v7604
        %vm7606 = vcmask 0
        %7607 = vst.msk [vmem:[%s207] sm:$0x1] %vm7606, %v7605
        %p7608 = scmp.lt.s32.totalorder %s16, 1
        %s7609 = scalar_select %p7608, %s16, 1
        %s7610 = scalar_lea.vmem %s4, %s7609
        // Predicated region
        $region41: #{sum_term_forward.1} parent=35 // pred_check
          %p7611 = pneg %p123
        $region42: #{sum_term_forward.1} parent=35 // pred_check_branch
          %7613 = sbr.rel (%p7611) target = $region44
        $region43: #{sum_term_forward.1} parent=35 // pred_region
          _
        $region44: #{sum_term_forward.1} parent=35 // pred_fallthru
          _
      $region36: #{sum_term_forward.1} parent=5 // pred_fallthru
        _
      %p7614 = scmp.le.s32.totalorder 2, %s11
      // Predicated region
      $region45: #{sum_term_forward.1} parent=5 // pred_check
        %p7615 = pneg %p7614
      $region46: #{sum_term_forward.1} parent=5 // pred_check_branch
        %7617 = sbr.rel (%p7615) target = $region48
      $region47: #{sum_term_forward.1} parent=5 // pred_region
        %s7618 = ssub.s32 %s11, 2
        // Predicated region
        $region49: #{sum_term_forward.1} parent=47 // pred_check
          %p7619 = pneg %p129
        $region50: #{sum_term_forward.1} parent=47 // pred_check_branch
          %7621 = sbr.rel (%p7619) target = $region52
        $region51: #{sum_term_forward.1} parent=47 // pred_region
          %p7622 = scmp.lt.s32.totalorder %s17, 1
          %s7623 = scalar_select %p7622, %s17, 1
          %s7624 = scalar_lea.vmem %s4, %s7623
        $region52: #{sum_term_forward.1} parent=47 // pred_fallthru
          _
      $region48: #{sum_term_forward.1} parent=5 // pred_fallthru
        _
    $region6: #{sum_term_forward.1} parent=1 // loop_footer
      %s15 = sadd.s32 1, %s11
    $region7: #{sum_term_forward.1} parent=1 // loop_footer_branch
      %10 = sbr.rel target = $region3
    $region8: #{sum_term_forward.1} parent=1 // loop_exit
      _
    %7625 = vsyncpa [#allocation3], 1
    %s7626 = scalar_lea.sflag [#allocation3], 1
    %7627 = vsyncpa %s7626, 1

</llo_original>
